<compile_context>
chip_gen: v7x
topology: tpu7x:2x2x1
jax: 0.10.0
libtpu: 0.0.40
codegen_flags: <defaults>
</compile_context>

<pallas_src>
import functools

import jax
import jax.numpy as jnp
from jax import lax
from jax.experimental import pallas as pl
from jax.experimental.pallas import tpu as pltpu


# ---------------------------------------------------------------------------
# Fused per-batch kernel:
#   out = end(WN(start(x0) * mask, mask))            (dilated gated convs)
#   z   = concat([x0, (m + exp(logs) * x1) * mask])
#   logdet = sum(logs * mask)                        (float32)
# Dilated conv = sum over K taps of pointwise (MXU) matmuls against a
# zero-halo VMEM scratch holding the current hidden state.
# ---------------------------------------------------------------------------
def coupling_fused_kernel(x_ref, mask_ref, start_w_ref, start_b_ref, in_w_ref,
                          in_b_ref, rs_w_ref, rs_b_ref, end_w_ref, end_b_ref,
                          z_ref, logdet_ref, hpad_ref,
                          *, hidden, c_half, kernel_size, dilation_rate,
                          n_layers, sigmoid_scale):
    T = x_ref.shape[2]
    K = kernel_size
    pad_max = (K // 2) * (dilation_rate ** (n_layers - 1))
    f32 = jnp.float32
    prec = lax.Precision.HIGHEST

    mask = mask_ref[0].astype(f32)                      # (1, T)
    xb = x_ref[0].astype(f32)                           # (C, T)
    x0 = xb[:c_half, :]                                 # (c_half, T)
    x1 = xb[c_half:, :]                                 # (c_half, T)

    # start: 1x1 conv == pointwise channel matmul, then mask.
    h = (jnp.dot(start_w_ref[...], x0, preferred_element_type=f32,
                 precision=prec) + start_b_ref[...]) * mask            # (H, T)

    # Zero only the halo columns; the interior is fully rewritten each layer, so
    # the halos stay zero across grid steps (== Conv1d zero padding).
    if pad_max > 0:
        hpad_ref[:, :pad_max] = jnp.zeros((hidden, pad_max), f32)
        hpad_ref[:, pad_max + T:] = jnp.zeros((hidden, pad_max), f32)

    output = jnp.zeros((hidden, T), f32)
    for i in range(n_layers):                           # static unroll (n_layers small)
        d = dilation_rate ** i
        hpad_ref[:, pad_max:pad_max + T] = h            # stage current hidden state

        # dilated conv: K shifted pointwise matmuls (offsets are static ints)
        x_in = jnp.zeros((2 * hidden, T), f32)
        for j in range(K):
            off = (j - K // 2) * d
            tap = h if off == 0 else hpad_ref[:, pad_max + off: pad_max + off + T]
            x_in = x_in + jnp.dot(in_w_ref[i * K + j], tap,
                                  preferred_element_type=f32, precision=prec)
        x_in = x_in + in_b_ref[i]                       # (2H, 1) broadcast over T

        # gated tanh/sigmoid (g is None -> zero conditioning); dropout is eval no-op.
        acts = jnp.tanh(x_in[:hidden, :]) * jax.nn.sigmoid(x_in[hidden:, :])  # (H, T)

        rs = jnp.dot(rs_w_ref[i], acts, preferred_element_type=f32,
                     precision=prec) + rs_b_ref[i]                      # (2H, T)
        if i < n_layers - 1:
            h = (h + rs[:hidden, :]) * mask
            output = output + rs[hidden:, :]
        else:
            output = output + rs[:hidden, :]            # last layer: res_skip has H rows

    output = output * mask
    out = jnp.dot(end_w_ref[...], output, preferred_element_type=f32,
                  precision=prec) + end_b_ref[...]      # (C, T) == (m, logs)

    m = out[:c_half, :]
    logs = out[c_half:, :]
    if sigmoid_scale:
        logs = jnp.log(1e-6 + jax.nn.sigmoid(logs + 2.0))

    # Affine coupling transform, fused (no HBM round trip for `out`).
    z1 = (m + jnp.exp(logs) * x1) * mask
    z_ref[0, :c_half, :] = x0.astype(z_ref.dtype)       # z0 is unmasked (as in PyTorch)
    z_ref[0, c_half:, :] = z1.astype(z_ref.dtype)

    # Per-batch logdet, accumulated in float32.
    logdet_ref[...] = jnp.sum(logs * mask).reshape(1, 1, 1)


def coupling_block_forward(x, x_mask, params, *, hidden_channels, kernel_size,
                           dilation_rate, n_layers, sigmoid_scale=False):
    """x: (B, C, T), x_mask: (B, 1, T) or None. Returns (z: (B,C,T), logdet: (B,) f32)."""
    B, C, T = x.shape
    c_half = C // 2
    H = hidden_channels
    K = kernel_size
    if x_mask is None:
        x_mask = jnp.ones((B, 1, T), x.dtype)

    # Re-pack dilated-conv weights as per-tap (n_layers*K, 2H, H) pointwise matrices.
    in_w_taps = jnp.transpose(params["in_w_conv"], (0, 3, 1, 2)).reshape(
        n_layers * K, 2 * H, H)
    pad_max = (K // 2) * (dilation_rate ** (n_layers - 1))

    kernel = functools.partial(
        coupling_fused_kernel, hidden=H, c_half=c_half, kernel_size=K,
        dilation_rate=dilation_rate, n_layers=n_layers, sigmoid_scale=sigmoid_scale)

    z, logdet3 = pl.pallas_call(
        kernel,
        out_shape=(jax.ShapeDtypeStruct((B, C, T), x.dtype),
                   jax.ShapeDtypeStruct((B, 1, 1), jnp.float32)),
        grid_spec=pltpu.PrefetchScalarGridSpec(
            num_scalar_prefetch=0,
            grid=(B,),
            in_specs=[
                pl.BlockSpec((1, C, T), lambda b: (b, 0, 0)),          # x (one batch)
                pl.BlockSpec((1, 1, T), lambda b: (b, 0, 0)),          # mask
                pl.BlockSpec((H, c_half), lambda b: (0, 0)),           # start_w (resident)
                pl.BlockSpec((H, 1), lambda b: (0, 0)),                # start_b
                pl.BlockSpec((n_layers * K, 2 * H, H), lambda b: (0, 0, 0)),  # in_w taps
                pl.BlockSpec((n_layers, 2 * H, 1), lambda b: (0, 0, 0)),      # in_b
                pl.BlockSpec((n_layers, 2 * H, H), lambda b: (0, 0, 0)),      # rs_w
                pl.BlockSpec((n_layers, 2 * H, 1), lambda b: (0, 0, 0)),      # rs_b
                pl.BlockSpec((C, H), lambda b: (0, 0)),                # end_w
                pl.BlockSpec((C, 1), lambda b: (0, 0)),                # end_b
            ],
            out_specs=[
                pl.BlockSpec((1, C, T), lambda b: (b, 0, 0)),          # z
                pl.BlockSpec((1, 1, 1), lambda b: (b, 0, 0)),          # logdet (f32)
            ],
            scratch_shapes=[pltpu.VMEM((H, T + 2 * pad_max), jnp.float32)],
        ),
        compiler_params=pltpu.CompilerParams(
            dimension_semantics=("parallel",),
            vmem_limit_bytes=32 * 1024 * 1024),
    )(x, x_mask, params["start_w"], params["start_b"], in_w_taps, params["in_b"],
      params["rs_w"], params["rs_b"], params["end_w"], params["end_b"])

    return z, logdet3[:, 0, 0]


# ---------------------------------------------------------------------------
# Pure-JAX reference (independent formulation via lax.conv_general_dilated).
# ---------------------------------------------------------------------------
def coupling_block_reference(x, x_mask, p, *, hidden, c_half, kernel_size,
                             dilation_rate, n_layers, sigmoid_scale=False):
    prec = lax.Precision.HIGHEST

    def conv1x1(v, w, b):
        return jnp.einsum("oc,bct->bot", w, v, precision=prec) + b[None]

    def dconv(v, w, b, dilation):
        Kk = w.shape[-1]
        pad = dilation * (Kk - 1) // 2
        y = lax.conv_general_dilated(
            v, w, window_strides=(1,), padding=[(pad, pad)], rhs_dilation=(dilation,),
            dimension_numbers=("NCH", "OIH", "NCH"), precision=prec)
        return y + b[None]

    x0, x1 = x[:, :c_half], x[:, c_half:]
    h = conv1x1(x0, p["start_w"], p["start_b"]) * x_mask
    output = jnp.zeros_like(h)
    for i in range(n_layers):
        x_in = dconv(h, p["in_w_conv"][i], p["in_b"][i], dilation_rate ** i)
        acts = jnp.tanh(x_in[:, :hidden]) * jax.nn.sigmoid(x_in[:, hidden:])
        rs = conv1x1(acts, p["rs_w"][i], p["rs_b"][i])
        if i < n_layers - 1:
            h = (h + rs[:, :hidden]) * x_mask
            output = output + rs[:, hidden:]
        else:
            output = output + rs[:, :hidden]
    output = output * x_mask
    out = conv1x1(output, p["end_w"], p["end_b"])
    m, logs = out[:, :c_half], out[:, c_half:]
    if sigmoid_scale:
        logs = jnp.log(1e-6 + jax.nn.sigmoid(logs + 2.0))
    z1 = (m + jnp.exp(logs) * x1) * x_mask
    z = jnp.concatenate([x0, z1], axis=1)
    logdet = jnp.sum(logs * x_mask, axis=(1, 2))
    return z, logdet


if __name__ == "__main__":
    B, C, T = 2, 4, 16            # batch, in_channels, time
    hidden = 32                   # hidden_channels (even)
    kernel_size = 3               # odd
    dilation_rate = 2
    n_layers = 2
    c_half = C // 2
    K = kernel_size

    key = jax.random.PRNGKey(0)
    keys = jax.random.split(key, 10)

    x = jax.random.normal(keys[0], (B, C, T), dtype=jnp.float32)
    lengths = jnp.array([T, 10], dtype=jnp.int32)                 # ragged mask
    x_mask = (jnp.arange(T)[None, :] < lengths[:, None]).astype(jnp.float32)
    x_mask = x_mask.reshape(B, 1, T)

    s = 0.1
    start_w = s * jax.random.normal(keys[1], (hidden, c_half), jnp.float32)
    start_b = s * jax.random.normal(keys[2], (hidden, 1), jnp.float32)
    in_w_conv = s * jax.random.normal(keys[3], (n_layers, 2 * hidden, hidden, K), jnp.float32)
    in_b = s * jax.random.normal(keys[4], (n_layers, 2 * hidden, 1), jnp.float32)
    rs_w = s * jax.random.normal(keys[5], (n_layers, 2 * hidden, hidden), jnp.float32)
    rs_b = s * jax.random.normal(keys[6], (n_layers, 2 * hidden, 1), jnp.float32)
    # Last WN layer's res_skip conv has only `hidden` outputs: zero-pad rows [H:2H].
    last_pad = jnp.concatenate([jnp.ones((hidden,), jnp.float32),
                                jnp.zeros((hidden,), jnp.float32)])[:, None]
    rs_w = rs_w.at[n_layers - 1].multiply(last_pad)
    rs_b = rs_b.at[n_layers - 1].multiply(last_pad)
    # NOTE: the PyTorch module zero-inits `end`; use small random weights so the test
    # is non-trivial (kernel must be generic in the weights either way).
    end_w = s * jax.random.normal(keys[7], (C, hidden), jnp.float32)
    end_b = s * jax.random.normal(keys[8], (C, 1), jnp.float32)

    params = dict(start_w=start_w, start_b=start_b, in_w_conv=in_w_conv, in_b=in_b,
                  rs_w=rs_w, rs_b=rs_b, end_w=end_w, end_b=end_b)

    z, logdet = coupling_block_forward(
        x, x_mask, params, hidden_channels=hidden, kernel_size=kernel_size,
        dilation_rate=dilation_rate, n_layers=n_layers, sigmoid_scale=False)
    jax.block_until_ready((z, logdet))

    z_ref, logdet_ref = coupling_block_reference(
        x, x_mask, params, hidden=hidden, c_half=c_half, kernel_size=kernel_size,
        dilation_rate=dilation_rate, n_layers=n_layers, sigmoid_scale=False)

    assert z.shape == (B, C, T) and logdet.shape == (B,)
    assert jnp.allclose(z, z_ref, atol=1e-3, rtol=1e-3), float(jnp.max(jnp.abs(z - z_ref)))
    assert jnp.allclose(logdet, logdet_ref, atol=1e-3, rtol=1e-3), (logdet, logdet_ref)

    print("KERNEL_OK")
</pallas_src>

<mosaic_0001>
module attributes {stable_mosaic.version = 11 : i64} {
  func.func @coupling_fused_kernel(%arg0: i32, %arg1: memref<1x4x16xf32, #tpu.memory_space<vmem>>, %arg2: memref<1x1x16xf32, #tpu.memory_space<vmem>>, %arg3: memref<32x2xf32, #tpu.memory_space<vmem>>, %arg4: memref<32x1xf32, #tpu.memory_space<vmem>>, %arg5: memref<6x64x32xf32, #tpu.memory_space<vmem>>, %arg6: memref<2x64x1xf32, #tpu.memory_space<vmem>>, %arg7: memref<2x64x32xf32, #tpu.memory_space<vmem>>, %arg8: memref<2x64x1xf32, #tpu.memory_space<vmem>>, %arg9: memref<4x32xf32, #tpu.memory_space<vmem>>, %arg10: memref<4x1xf32, #tpu.memory_space<vmem>>, %arg11: memref<1x4x16xf32, #tpu.memory_space<vmem>>, %arg12: memref<1x1x1xf32, #tpu.memory_space<vmem>>, %arg13: memref<32x20xf32, #tpu.memory_space<vmem>>) attributes {dimension_semantics = [#tpu.dimension_semantics<parallel>], iteration_bounds = array<i64: 2>, scalar_prefetch = 0 : i64, scratch_operands = 1 : i64, tpu.core_type = #tpu.core_type<tc>, window_params = [{transform_indices = @transform_0, window_bounds = array<i64: 1, 4, 16>}, {transform_indices = @transform_1, window_bounds = array<i64: 1, 1, 16>}, {pipeline_mode = #tpu.pipeline_mode<synchronous>, transform_indices = @transform_2, window_bounds = array<i64: 32, 2>}, {pipeline_mode = #tpu.pipeline_mode<synchronous>, transform_indices = @transform_3, window_bounds = array<i64: 32, 1>}, {pipeline_mode = #tpu.pipeline_mode<synchronous>, transform_indices = @transform_4, window_bounds = array<i64: 6, 64, 32>}, {pipeline_mode = #tpu.pipeline_mode<synchronous>, transform_indices = @transform_5, window_bounds = array<i64: 2, 64, 1>}, {pipeline_mode = #tpu.pipeline_mode<synchronous>, transform_indices = @transform_6, window_bounds = array<i64: 2, 64, 32>}, {pipeline_mode = #tpu.pipeline_mode<synchronous>, transform_indices = @transform_7, window_bounds = array<i64: 2, 64, 1>}, {pipeline_mode = #tpu.pipeline_mode<synchronous>, transform_indices = @transform_8, window_bounds = array<i64: 4, 32>}, {pipeline_mode = #tpu.pipeline_mode<synchronous>, transform_indices = @transform_9, window_bounds = array<i64: 4, 1>}, {transform_indices = @transform_10, window_bounds = array<i64: 1, 4, 16>}, {transform_indices = @transform_11, window_bounds = array<i64: 1, 1, 1>}]} {
    %c0 = arith.constant 0 : index
    %c0_0 = arith.constant 0 : index
    %c0_1 = arith.constant 0 : index
    %0 = vector.load %arg2[%c0, %c0_0, %c0_1] : memref<1x1x16xf32, #tpu.memory_space<vmem>>, vector<1x1x16xf32>
    %1 = vector.shape_cast %0 : vector<1x1x16xf32> to vector<1x16xf32>
    %c0_2 = arith.constant 0 : index
    %c0_3 = arith.constant 0 : index
    %c0_4 = arith.constant 0 : index
    %2 = vector.load %arg1[%c0_2, %c0_3, %c0_4] : memref<1x4x16xf32, #tpu.memory_space<vmem>>, vector<1x4x16xf32>
    %3 = vector.shape_cast %2 : vector<1x4x16xf32> to vector<4x16xf32>
    %4 = vector.extract_strided_slice %3 {offsets = [0, 0], sizes = [2, 16], strides = [1, 1]} : vector<4x16xf32> to vector<2x16xf32>
    %5 = vector.extract_strided_slice %3 {offsets = [2, 0], sizes = [2, 16], strides = [1, 1]} : vector<4x16xf32> to vector<2x16xf32>
    %c0_5 = arith.constant 0 : index
    %c0_6 = arith.constant 0 : index
    %6 = vector.load %arg3[%c0_5, %c0_6] : memref<32x2xf32, #tpu.memory_space<vmem>>, vector<32x2xf32>
    %cst = arith.constant dense<0.000000e+00> : vector<32x16xf32>
    %7 = tpu.matmul %6, %4, %cst {dimension_numbers = #tpu.dot_dimension_numbers<[1], [0], [0], [1], [0, 0, 1, 1], [], []>, precision = #tpu.contract_precision<fp32>} : vector<32x2xf32>, vector<2x16xf32>, vector<32x16xf32> -> vector<32x16xf32>
    %c0_7 = arith.constant 0 : index
    %c0_8 = arith.constant 0 : index
    %8 = vector.load %arg4[%c0_7, %c0_8] : memref<32x1xf32, #tpu.memory_space<vmem>>, vector<32x1xf32>
    %9 = vector.broadcast %8 : vector<32x1xf32> to vector<32x16xf32>
    %10 = arith.addf %7, %9 : vector<32x16xf32>
    %11 = vector.broadcast %1 : vector<1x16xf32> to vector<32x16xf32>
    %12 = arith.mulf %10, %11 : vector<32x16xf32>
    %cst_9 = arith.constant 0.000000e+00 : f32
    %13 = vector.broadcast %cst_9 : f32 to vector<32x2xf32>
    %c0_10 = arith.constant 0 : index
    %c0_11 = arith.constant 0 : index
    %14 = vector.load %arg13[%c0_10, %c0_11] : memref<32x20xf32, #tpu.memory_space<vmem>>, vector<32x2xf32>
    tpu.vector_store %arg13[%c0_10, %c0_11], %13 {strides = array<i32>} : memref<32x20xf32, #tpu.memory_space<vmem>>, vector<32x2xf32>,
    %cst_12 = arith.constant 0.000000e+00 : f32
    %15 = vector.broadcast %cst_12 : f32 to vector<32x2xf32>
    %c0_13 = arith.constant 0 : index
    %c18 = arith.constant 18 : index
    %16 = vector.load %arg13[%c0_13, %c18] : memref<32x20xf32, #tpu.memory_space<vmem>>, vector<32x2xf32>
    tpu.vector_store %arg13[%c0_13, %c18], %15 {strides = array<i32>} : memref<32x20xf32, #tpu.memory_space<vmem>>, vector<32x2xf32>,
    %cst_14 = arith.constant 0.000000e+00 : f32
    %17 = vector.broadcast %cst_14 : f32 to vector<32x16xf32>
    %c0_15 = arith.constant 0 : index
    %c2 = arith.constant 2 : index
    %18 = vector.load %arg13[%c0_15, %c2] : memref<32x20xf32, #tpu.memory_space<vmem>>, vector<32x16xf32>
    tpu.vector_store %arg13[%c0_15, %c2], %12 {strides = array<i32>} : memref<32x20xf32, #tpu.memory_space<vmem>>, vector<32x16xf32>,
    %cst_16 = arith.constant 0.000000e+00 : f32
    %19 = vector.broadcast %cst_16 : f32 to vector<64x16xf32>
    %c0_17 = arith.constant 0 : index
    %c1 = arith.constant 1 : index
    %20 = vector.load %arg13[%c0_17, %c1] : memref<32x20xf32, #tpu.memory_space<vmem>>, vector<32x16xf32>
    %c0_18 = arith.constant 0 : index
    %c0_19 = arith.constant 0 : index
    %c0_20 = arith.constant 0 : index
    %21 = vector.load %arg5[%c0_18, %c0_19, %c0_20] : memref<6x64x32xf32, #tpu.memory_space<vmem>>, vector<1x64x32xf32>
    %22 = vector.shape_cast %21 : vector<1x64x32xf32> to vector<64x32xf32>
    %cst_21 = arith.constant dense<0.000000e+00> : vector<64x16xf32>
    %23 = tpu.matmul %22, %20, %cst_21 {dimension_numbers = #tpu.dot_dimension_numbers<[1], [0], [0], [1], [0, 0, 1, 1], [], []>, precision = #tpu.contract_precision<fp32>} : vector<64x32xf32>, vector<32x16xf32>, vector<64x16xf32> -> vector<64x16xf32>
    %24 = arith.addf %19, %23 : vector<64x16xf32>
    %c1_22 = arith.constant 1 : index
    %c0_23 = arith.constant 0 : index
    %c0_24 = arith.constant 0 : index
    %25 = vector.load %arg5[%c1_22, %c0_23, %c0_24] : memref<6x64x32xf32, #tpu.memory_space<vmem>>, vector<1x64x32xf32>
    %26 = vector.shape_cast %25 : vector<1x64x32xf32> to vector<64x32xf32>
    %cst_25 = arith.constant dense<0.000000e+00> : vector<64x16xf32>
    %27 = tpu.matmul %26, %12, %cst_25 {dimension_numbers = #tpu.dot_dimension_numbers<[1], [0], [0], [1], [0, 0, 1, 1], [], []>, precision = #tpu.contract_precision<fp32>} : vector<64x32xf32>, vector<32x16xf32>, vector<64x16xf32> -> vector<64x16xf32>
    %28 = arith.addf %24, %27 : vector<64x16xf32>
    %c0_26 = arith.constant 0 : index
    %c3 = arith.constant 3 : index
    %29 = vector.load %arg13[%c0_26, %c3] : memref<32x20xf32, #tpu.memory_space<vmem>>, vector<32x16xf32>
    %c2_27 = arith.constant 2 : index
    %c0_28 = arith.constant 0 : index
    %c0_29 = arith.constant 0 : index
    %30 = vector.load %arg5[%c2_27, %c0_28, %c0_29] : memref<6x64x32xf32, #tpu.memory_space<vmem>>, vector<1x64x32xf32>
    %31 = vector.shape_cast %30 : vector<1x64x32xf32> to vector<64x32xf32>
    %cst_30 = arith.constant dense<0.000000e+00> : vector<64x16xf32>
    %32 = tpu.matmul %31, %29, %cst_30 {dimension_numbers = #tpu.dot_dimension_numbers<[1], [0], [0], [1], [0, 0, 1, 1], [], []>, precision = #tpu.contract_precision<fp32>} : vector<64x32xf32>, vector<32x16xf32>, vector<64x16xf32> -> vector<64x16xf32>
    %33 = arith.addf %28, %32 : vector<64x16xf32>
    %c0_31 = arith.constant 0 : index
    %c0_32 = arith.constant 0 : index
    %c0_33 = arith.constant 0 : index
    %34 = vector.load %arg6[%c0_31, %c0_32, %c0_33] : memref<2x64x1xf32, #tpu.memory_space<vmem>>, vector<1x64x1xf32>
    %35 = vector.shape_cast %34 : vector<1x64x1xf32> to vector<64x1xf32>
    %36 = vector.broadcast %35 : vector<64x1xf32> to vector<64x16xf32>
    %37 = arith.addf %33, %36 : vector<64x16xf32>
    %38 = vector.extract_strided_slice %37 {offsets = [0, 0], sizes = [32, 16], strides = [1, 1]} : vector<64x16xf32> to vector<32x16xf32>
    %39 = math.tanh %38 : vector<32x16xf32>
    %40 = vector.extract_strided_slice %37 {offsets = [32, 0], sizes = [32, 16], strides = [1, 1]} : vector<64x16xf32> to vector<32x16xf32>
    %41 = arith.negf %40 : vector<32x16xf32>
    %42 = math.exp %41 : vector<32x16xf32>
    %cst_34 = arith.constant 1.000000e+00 : f32
    %43 = vector.broadcast %cst_34 : f32 to vector<32x16xf32>
    %44 = arith.addf %43, %42 : vector<32x16xf32>
    %45 = arith.divf %43, %44 : vector<32x16xf32>
    %46 = arith.mulf %39, %45 : vector<32x16xf32>
    %c0_35 = arith.constant 0 : index
    %c0_36 = arith.constant 0 : index
    %c0_37 = arith.constant 0 : index
    %47 = vector.load %arg7[%c0_35, %c0_36, %c0_37] : memref<2x64x32xf32, #tpu.memory_space<vmem>>, vector<1x64x32xf32>
    %48 = vector.shape_cast %47 : vector<1x64x32xf32> to vector<64x32xf32>
    %cst_38 = arith.constant dense<0.000000e+00> : vector<64x16xf32>
    %49 = tpu.matmul %48, %46, %cst_38 {dimension_numbers = #tpu.dot_dimension_numbers<[1], [0], [0], [1], [0, 0, 1, 1], [], []>, precision = #tpu.contract_precision<fp32>} : vector<64x32xf32>, vector<32x16xf32>, vector<64x16xf32> -> vector<64x16xf32>
    %c0_39 = arith.constant 0 : index
    %c0_40 = arith.constant 0 : index
    %c0_41 = arith.constant 0 : index
    %50 = vector.load %arg8[%c0_39, %c0_40, %c0_41] : memref<2x64x1xf32, #tpu.memory_space<vmem>>, vector<1x64x1xf32>
    %51 = vector.shape_cast %50 : vector<1x64x1xf32> to vector<64x1xf32>
    %52 = vector.broadcast %51 : vector<64x1xf32> to vector<64x16xf32>
    %53 = arith.addf %49, %52 : vector<64x16xf32>
    %54 = vector.extract_strided_slice %53 {offsets = [0, 0], sizes = [32, 16], strides = [1, 1]} : vector<64x16xf32> to vector<32x16xf32>
    %55 = arith.addf %12, %54 : vector<32x16xf32>
    %56 = vector.broadcast %1 : vector<1x16xf32> to vector<32x16xf32>
    %57 = arith.mulf %55, %56 : vector<32x16xf32>
    %58 = vector.extract_strided_slice %53 {offsets = [32, 0], sizes = [32, 16], strides = [1, 1]} : vector<64x16xf32> to vector<32x16xf32>
    %59 = arith.addf %17, %58 : vector<32x16xf32>
    %c0_42 = arith.constant 0 : index
    %c2_43 = arith.constant 2 : index
    %60 = vector.load %arg13[%c0_42, %c2_43] : memref<32x20xf32, #tpu.memory_space<vmem>>, vector<32x16xf32>
    tpu.vector_store %arg13[%c0_42, %c2_43], %57 {strides = array<i32>} : memref<32x20xf32, #tpu.memory_space<vmem>>, vector<32x16xf32>,
    %cst_44 = arith.constant 0.000000e+00 : f32
    %61 = vector.broadcast %cst_44 : f32 to vector<64x16xf32>
    %c0_45 = arith.constant 0 : index
    %c0_46 = arith.constant 0 : index
    %62 = vector.load %arg13[%c0_45, %c0_46] : memref<32x20xf32, #tpu.memory_space<vmem>>, vector<32x16xf32>
    %c3_47 = arith.constant 3 : index
    %c0_48 = arith.constant 0 : index
    %c0_49 = arith.constant 0 : index
    %63 = vector.load %arg5[%c3_47, %c0_48, %c0_49] : memref<6x64x32xf32, #tpu.memory_space<vmem>>, vector<1x64x32xf32>
    %64 = vector.shape_cast %63 : vector<1x64x32xf32> to vector<64x32xf32>
    %cst_50 = arith.constant dense<0.000000e+00> : vector<64x16xf32>
    %65 = tpu.matmul %64, %62, %cst_50 {dimension_numbers = #tpu.dot_dimension_numbers<[1], [0], [0], [1], [0, 0, 1, 1], [], []>, precision = #tpu.contract_precision<fp32>} : vector<64x32xf32>, vector<32x16xf32>, vector<64x16xf32> -> vector<64x16xf32>
    %66 = arith.addf %61, %65 : vector<64x16xf32>
    %c4 = arith.constant 4 : index
    %c0_51 = arith.constant 0 : index
    %c0_52 = arith.constant 0 : index
    %67 = vector.load %arg5[%c4, %c0_51, %c0_52] : memref<6x64x32xf32, #tpu.memory_space<vmem>>, vector<1x64x32xf32>
    %68 = vector.shape_cast %67 : vector<1x64x32xf32> to vector<64x32xf32>
    %cst_53 = arith.constant dense<0.000000e+00> : vector<64x16xf32>
    %69 = tpu.matmul %68, %57, %cst_53 {dimension_numbers = #tpu.dot_dimension_numbers<[1], [0], [0], [1], [0, 0, 1, 1], [], []>, precision = #tpu.contract_precision<fp32>} : vector<64x32xf32>, vector<32x16xf32>, vector<64x16xf32> -> vector<64x16xf32>
    %70 = arith.addf %66, %69 : vector<64x16xf32>
    %c0_54 = arith.constant 0 : index
    %c4_55 = arith.constant 4 : index
    %71 = vector.load %arg13[%c0_54, %c4_55] : memref<32x20xf32, #tpu.memory_space<vmem>>, vector<32x16xf32>
    %c5 = arith.constant 5 : index
    %c0_56 = arith.constant 0 : index
    %c0_57 = arith.constant 0 : index
    %72 = vector.load %arg5[%c5, %c0_56, %c0_57] : memref<6x64x32xf32, #tpu.memory_space<vmem>>, vector<1x64x32xf32>
    %73 = vector.shape_cast %72 : vector<1x64x32xf32> to vector<64x32xf32>
    %cst_58 = arith.constant dense<0.000000e+00> : vector<64x16xf32>
    %74 = tpu.matmul %73, %71, %cst_58 {dimension_numbers = #tpu.dot_dimension_numbers<[1], [0], [0], [1], [0, 0, 1, 1], [], []>, precision = #tpu.contract_precision<fp32>} : vector<64x32xf32>, vector<32x16xf32>, vector<64x16xf32> -> vector<64x16xf32>
    %75 = arith.addf %70, %74 : vector<64x16xf32>
    %c1_59 = arith.constant 1 : index
    %c0_60 = arith.constant 0 : index
    %c0_61 = arith.constant 0 : index
    %76 = vector.load %arg6[%c1_59, %c0_60, %c0_61] : memref<2x64x1xf32, #tpu.memory_space<vmem>>, vector<1x64x1xf32>
    %77 = vector.shape_cast %76 : vector<1x64x1xf32> to vector<64x1xf32>
    %78 = vector.broadcast %77 : vector<64x1xf32> to vector<64x16xf32>
    %79 = arith.addf %75, %78 : vector<64x16xf32>
    %80 = vector.extract_strided_slice %79 {offsets = [0, 0], sizes = [32, 16], strides = [1, 1]} : vector<64x16xf32> to vector<32x16xf32>
    %81 = math.tanh %80 : vector<32x16xf32>
    %82 = vector.extract_strided_slice %79 {offsets = [32, 0], sizes = [32, 16], strides = [1, 1]} : vector<64x16xf32> to vector<32x16xf32>
    %83 = arith.negf %82 : vector<32x16xf32>
    %84 = math.exp %83 : vector<32x16xf32>
    %cst_62 = arith.constant 1.000000e+00 : f32
    %85 = vector.broadcast %cst_62 : f32 to vector<32x16xf32>
    %86 = arith.addf %85, %84 : vector<32x16xf32>
    %87 = arith.divf %85, %86 : vector<32x16xf32>
    %88 = arith.mulf %81, %87 : vector<32x16xf32>
    %c1_63 = arith.constant 1 : index
    %c0_64 = arith.constant 0 : index
    %c0_65 = arith.constant 0 : index
    %89 = vector.load %arg7[%c1_63, %c0_64, %c0_65] : memref<2x64x32xf32, #tpu.memory_space<vmem>>, vector<1x64x32xf32>
    %90 = vector.shape_cast %89 : vector<1x64x32xf32> to vector<64x32xf32>
    %cst_66 = arith.constant dense<0.000000e+00> : vector<64x16xf32>
    %91 = tpu.matmul %90, %88, %cst_66 {dimension_numbers = #tpu.dot_dimension_numbers<[1], [0], [0], [1], [0, 0, 1, 1], [], []>, precision = #tpu.contract_precision<fp32>} : vector<64x32xf32>, vector<32x16xf32>, vector<64x16xf32> -> vector<64x16xf32>
    %c1_67 = arith.constant 1 : index
    %c0_68 = arith.constant 0 : index
    %c0_69 = arith.constant 0 : index
    %92 = vector.load %arg8[%c1_67, %c0_68, %c0_69] : memref<2x64x1xf32, #tpu.memory_space<vmem>>, vector<1x64x1xf32>
    %93 = vector.shape_cast %92 : vector<1x64x1xf32> to vector<64x1xf32>
    %94 = vector.broadcast %93 : vector<64x1xf32> to vector<64x16xf32>
    %95 = arith.addf %91, %94 : vector<64x16xf32>
    %96 = vector.extract_strided_slice %95 {offsets = [0, 0], sizes = [32, 16], strides = [1, 1]} : vector<64x16xf32> to vector<32x16xf32>
    %97 = arith.addf %59, %96 : vector<32x16xf32>
    %98 = vector.broadcast %1 : vector<1x16xf32> to vector<32x16xf32>
    %99 = arith.mulf %97, %98 : vector<32x16xf32>
    %c0_70 = arith.constant 0 : index
    %c0_71 = arith.constant 0 : index
    %100 = vector.load %arg9[%c0_70, %c0_71] : memref<4x32xf32, #tpu.memory_space<vmem>>, vector<4x32xf32>
    %cst_72 = arith.constant dense<0.000000e+00> : vector<4x16xf32>
    %101 = tpu.matmul %100, %99, %cst_72 {dimension_numbers = #tpu.dot_dimension_numbers<[1], [0], [0], [1], [0, 0, 1, 1], [], []>, precision = #tpu.contract_precision<fp32>} : vector<4x32xf32>, vector<32x16xf32>, vector<4x16xf32> -> vector<4x16xf32>
    %c0_73 = arith.constant 0 : index
    %c0_74 = arith.constant 0 : index
    %102 = vector.load %arg10[%c0_73, %c0_74] : memref<4x1xf32, #tpu.memory_space<vmem>>, vector<4x1xf32>
    %103 = vector.broadcast %102 : vector<4x1xf32> to vector<4x16xf32>
    %104 = arith.addf %101, %103 : vector<4x16xf32>
    %105 = vector.extract_strided_slice %104 {offsets = [0, 0], sizes = [2, 16], strides = [1, 1]} : vector<4x16xf32> to vector<2x16xf32>
    %106 = vector.extract_strided_slice %104 {offsets = [2, 0], sizes = [2, 16], strides = [1, 1]} : vector<4x16xf32> to vector<2x16xf32>
    %107 = math.exp %106 : vector<2x16xf32>
    %108 = arith.mulf %107, %5 : vector<2x16xf32>
    %109 = arith.addf %105, %108 : vector<2x16xf32>
    %110 = vector.broadcast %1 : vector<1x16xf32> to vector<2x16xf32>
    %111 = arith.mulf %109, %110 : vector<2x16xf32>
    %c0_75 = arith.constant 0 : index
    %c0_76 = arith.constant 0 : index
    %c0_77 = arith.constant 0 : index
    %112 = vector.load %arg11[%c0_75, %c0_76, %c0_77] : memref<1x4x16xf32, #tpu.memory_space<vmem>>, vector<1x2x16xf32>
    %113 = vector.shape_cast %112 : vector<1x2x16xf32> to vector<2x16xf32>
    %114 = vector.shape_cast %4 : vector<2x16xf32> to vector<1x2x16xf32>
    tpu.vector_store %arg11[%c0_75, %c0_76, %c0_77], %114 {strides = array<i32>} : memref<1x4x16xf32, #tpu.memory_space<vmem>>, vector<1x2x16xf32>,
    %c0_78 = arith.constant 0 : index
    %c2_79 = arith.constant 2 : index
    %c0_80 = arith.constant 0 : index
    %115 = vector.load %arg11[%c0_78, %c2_79, %c0_80] : memref<1x4x16xf32, #tpu.memory_space<vmem>>, vector<1x2x16xf32>
    %116 = vector.shape_cast %115 : vector<1x2x16xf32> to vector<2x16xf32>
    %117 = vector.shape_cast %111 : vector<2x16xf32> to vector<1x2x16xf32>
    tpu.vector_store %arg11[%c0_78, %c2_79, %c0_80], %117 {strides = array<i32>} : memref<1x4x16xf32, #tpu.memory_space<vmem>>, vector<1x2x16xf32>,
    %118 = vector.broadcast %1 : vector<1x16xf32> to vector<2x16xf32>
    %119 = arith.mulf %106, %118 : vector<2x16xf32>
    %120 = vector.shape_cast %119 : vector<2x16xf32> to vector<1x2x16xf32>
    %cst_81 = arith.constant dense<0.000000e+00> : vector<1xf32>
    %121 = vector.multi_reduction <add>, %120, %cst_81 [1, 2] : vector<1x2x16xf32> to vector<1xf32>
    %122 = vector.shape_cast %121 : vector<1xf32> to vector<1x1x1xf32>
    %123 = vector.extract %122[0, 0, 0] : f32 from vector<1x1x1xf32>
    %124 = vector.broadcast %123 : f32 to vector<1x1x1xf32>
    %c0_82 = arith.constant 0 : index
    %c0_83 = arith.constant 0 : index
    %c0_84 = arith.constant 0 : index
    %125 = vector.load %arg12[%c0_82, %c0_83, %c0_84] : memref<1x1x1xf32, #tpu.memory_space<vmem>>, vector<1x1x1xf32>
    tpu.vector_store %arg12[%c0_82, %c0_83, %c0_84], %124 {strides = array<i32>} : memref<1x1x1xf32, #tpu.memory_space<vmem>>, vector<1x1x1xf32>,
    return
  }
  func.func @transform_0(%arg0: i32) -> (i32, i32, i32) {
    %c0_i32 = arith.constant 0 : i32
    %c0_i32_0 = arith.constant 0 : i32
    %c0_i32_1 = arith.constant 0 : i32
    return %arg0, %c0_i32, %c0_i32_0 : i32, i32, i32
  }
  func.func @transform_1(%arg0: i32) -> (i32, i32, i32) {
    %c0_i32 = arith.constant 0 : i32
    %c0_i32_0 = arith.constant 0 : i32
    %c0_i32_1 = arith.constant 0 : i32
    return %arg0, %c0_i32, %c0_i32_0 : i32, i32, i32
  }
  func.func @transform_2(%arg0: i32) -> (i32, i32) {
    %c0_i32 = arith.constant 0 : i32
    %c0_i32_0 = arith.constant 0 : i32
    %c0_i32_1 = arith.constant 0 : i32
    return %c0_i32, %c0_i32_0 : i32, i32
  }
  func.func @transform_3(%arg0: i32) -> (i32, i32) {
    %c0_i32 = arith.constant 0 : i32
    %c0_i32_0 = arith.constant 0 : i32
    %c0_i32_1 = arith.constant 0 : i32
    return %c0_i32, %c0_i32_0 : i32, i32
  }
  func.func @transform_4(%arg0: i32) -> (i32, i32, i32) {
    %c0_i32 = arith.constant 0 : i32
    %c0_i32_0 = arith.constant 0 : i32
    %c0_i32_1 = arith.constant 0 : i32
    %c0_i32_2 = arith.constant 0 : i32
    return %c0_i32, %c0_i32_0, %c0_i32_1 : i32, i32, i32
  }
  func.func @transform_5(%arg0: i32) -> (i32, i32, i32) {
    %c0_i32 = arith.constant 0 : i32
    %c0_i32_0 = arith.constant 0 : i32
    %c0_i32_1 = arith.constant 0 : i32
    %c0_i32_2 = arith.constant 0 : i32
    return %c0_i32, %c0_i32_0, %c0_i32_1 : i32, i32, i32
  }
  func.func @transform_6(%arg0: i32) -> (i32, i32, i32) {
    %c0_i32 = arith.constant 0 : i32
    %c0_i32_0 = arith.constant 0 : i32
    %c0_i32_1 = arith.constant 0 : i32
    %c0_i32_2 = arith.constant 0 : i32
    return %c0_i32, %c0_i32_0, %c0_i32_1 : i32, i32, i32
  }
  func.func @transform_7(%arg0: i32) -> (i32, i32, i32) {
    %c0_i32 = arith.constant 0 : i32
    %c0_i32_0 = arith.constant 0 : i32
    %c0_i32_1 = arith.constant 0 : i32
    %c0_i32_2 = arith.constant 0 : i32
    return %c0_i32, %c0_i32_0, %c0_i32_1 : i32, i32, i32
  }
  func.func @transform_8(%arg0: i32) -> (i32, i32) {
    %c0_i32 = arith.constant 0 : i32
    %c0_i32_0 = arith.constant 0 : i32
    %c0_i32_1 = arith.constant 0 : i32
    return %c0_i32, %c0_i32_0 : i32, i32
  }
  func.func @transform_9(%arg0: i32) -> (i32, i32) {
    %c0_i32 = arith.constant 0 : i32
    %c0_i32_0 = arith.constant 0 : i32
    %c0_i32_1 = arith.constant 0 : i32
    return %c0_i32, %c0_i32_0 : i32, i32
  }
  func.func @transform_10(%arg0: i32) -> (i32, i32, i32) {
    %c0_i32 = arith.constant 0 : i32
    %c0_i32_0 = arith.constant 0 : i32
    %c0_i32_1 = arith.constant 0 : i32
    return %arg0, %c0_i32, %c0_i32_0 : i32, i32, i32
  }
  func.func @transform_11(%arg0: i32) -> (i32, i32, i32) {
    %c0_i32 = arith.constant 0 : i32
    %c0_i32_0 = arith.constant 0 : i32
    %c0_i32_1 = arith.constant 0 : i32
    return %arg0, %c0_i32, %c0_i32_0 : i32, i32, i32
  }
}

</mosaic_0001>

<llo_original>
// kernel: tpu_custom_call.1
$region0: #{tpu_custom_call.1}
  #allocation0 [shape = 'u32[]', space=smem, size = 0x4, offset = 0x4, fixed_abs, tag = 'smem constant byte address 0x4 - core index']
  #allocation1 [shape = 'u32[144,128]{1,0:T(1,128)}', space=vmem, size = 0x12000, scoped, tag = 'internal scratch']
  #allocation2 [shape = 'f32[32,20]{1,0:T(8,128)}', space=vmem, size = 0x4000, scoped, tag = 'scratch operand']
  %s0 = inlined_call_operand.vmem [shape: f32[2,4,16], index: 0, kind: input, shape index: {}]
  %s1 = inlined_call_operand.vmem [shape: f32[2,1,16], index: 1, kind: input, shape index: {}]
  %s2 = inlined_call_operand.vmem [shape: f32[32,2], index: 2, kind: input, shape index: {}]
  %s3 = inlined_call_operand.vmem [shape: f32[32,1], index: 3, kind: input, shape index: {}]
  %s4 = inlined_call_operand.vmem [shape: f32[6,64,32], index: 4, kind: input, shape index: {}]
  %s5 = inlined_call_operand.vmem [shape: f32[2,64,1], index: 5, kind: input, shape index: {}]
  %s6 = inlined_call_operand.vmem [shape: f32[2,64,32], index: 6, kind: input, shape index: {}]
  %s7 = inlined_call_operand.vmem [shape: f32[2,64,1], index: 7, kind: input, shape index: {}]
  %s8 = inlined_call_operand.vmem [shape: f32[4,32], index: 8, kind: input, shape index: {}]
  %s9 = inlined_call_operand.vmem [shape: f32[4,1], index: 9, kind: input, shape index: {}]
  %s10 = inlined_call_operand.hbm [shape: f32[2,4,16], index: 10, kind: output, shape index: {0}]
  %s11 = inlined_call_operand.vmem [shape: f32[2,1,1], index: 11, kind: output, shape index: {1}]
  %12 = xla_tuple %s10, %s11
  %s13 = sld [smem:[#allocation0]]
  $region81: #{tpu_custom_call.1} parent=0
    _
  %s15 = ssub.s32 1, %s13
  %s16 = scalar_select 0, %s15, %s13
  $region1: #{tpu_custom_call.1} parent=0
    #allocation3 [shape = 'u8[4096]{0}', space=vmem, size = 0x1000, scoped, tag = 'output window, operand 0']
    #allocation4 [shape = 's32[2]{0}', space=sflag, size = 0x8, scoped, tag = 'scoped memory for tpu_custom_call.1']
    %17 = vsyncpa [#allocation4], 0
    %s18 = scalar_lea.sflag [#allocation4], 1
    %19 = vsyncpa %s18, 0
    loop: start=0, step=1, limit=4
    $region2: #{tpu_custom_call.1} parent=1 // loop_pre_header
      _
    $region3: #{tpu_custom_call.1} parent=1 // loop_header
      %s21 = sphi 0, %s25
      %p22 = scmp.ge.s32.totalorder %s21, 4
      %s31 = sphi 0, %s33
      %s34 = sphi 0, %s31
      %s35 = sphi 0, %s34
      %s51 = sphi 0, %s35
      %s57 = sphi 0, %s59
      %s60 = sphi 0, %s57
      %s61 = sphi 0, %s60
      %s77 = sphi 0, %s61
      %s81 = sphi 0, %s81
      %s83 = sphi 0, %s81
      %s84 = sphi 0, %s83
      %s98 = sphi 0, %s84
      %s102 = sphi 0, %s102
      %s104 = sphi 0, %s102
      %s105 = sphi 0, %s104
      %s119 = sphi 0, %s105
      %s123 = sphi 0, %s123
      %s125 = sphi 0, %s123
      %s126 = sphi 0, %s125
      %s140 = sphi 0, %s126
      %s144 = sphi 0, %s144
      %s146 = sphi 0, %s144
      %s147 = sphi 0, %s146
      %s161 = sphi 0, %s147
      %s165 = sphi 0, %s165
      %s167 = sphi 0, %s165
      %s168 = sphi 0, %s167
      %s182 = sphi 0, %s168
      %s186 = sphi 0, %s186
      %s188 = sphi 0, %s186
      %s189 = sphi 0, %s188
      %s203 = sphi 0, %s189
      %s207 = sphi 0, %s207
      %s209 = sphi 0, %s207
      %s210 = sphi 0, %s209
      %s224 = sphi 0, %s210
      %s228 = sphi 0, %s228
      %s230 = sphi 0, %s228
      %s231 = sphi 0, %s230
      %s245 = sphi 0, %s231
      %s251 = sphi 0, %s253
      %s254 = sphi 0, %s251
      %s255 = sphi 0, %s254
      %s271 = sphi 0, %s255
      %s277 = sphi 0, %s279
      %s280 = sphi 0, %s277
      %s281 = sphi 0, %s280
      %s297 = sphi 0, %s281
    $region4: #{tpu_custom_call.1} parent=1 // loop_header_branch
      %24 = sbr.rel (%p22) target = $region8
    $region5: #{tpu_custom_call.1} parent=1 // loop_body
      %s26 = ssub.s32 %s21, 1
      %s27 = ssub.s32 %s21, 2
      %s28 = sadd.s32 %s21, 1
      %s29 = ssub.s32 %s21, %s28
      %p30 = scmp.eq.s32.totalorder %s29, 0
      %s32 = sadd.s32 %s31, 1
      %s33 = scalar_select %p30, %s31, %s32
      %p36 = pneg %p30
      %p37 = scmp.eq.s32.totalorder %s21, 1
      %p38 = por %p36, %p37
      %p39 = scmp.ne.s32.totalorder %s31, %s34
      %p40 = scmp.eq.s32.totalorder %s21, 0
      %p41 = por %p39, %p40
      %p42 = scmp.ne.s32.totalorder %s31, %s34
      %p43 = scmp.eq.s32.totalorder %s26, 1
      %p44 = por %p42, %p43
      %p45 = scmp.ne.s32.totalorder %s34, %s35
      %p46 = scmp.eq.s32.totalorder %s26, 0
      %p47 = por %p45, %p46
      %p48 = scmp.ne.s32.totalorder %s34, %s35
      %p49 = scmp.eq.s32.totalorder %s27, 1
      %p50 = por %p48, %p49
      %p52 = scmp.ne.s32.totalorder %s35, %s51
      %p53 = scmp.eq.s32.totalorder %s27, 0
      %p54 = por %p52, %p53
      %s55 = ssub.s32 %s21, %s28
      %p56 = scmp.eq.s32.totalorder %s55, 0
      %s58 = sadd.s32 %s57, 1
      %s59 = scalar_select %p56, %s57, %s58
      %p62 = pneg %p56
      %p63 = scmp.eq.s32.totalorder %s21, 1
      %p64 = por %p62, %p63
      %p65 = scmp.ne.s32.totalorder %s57, %s60
      %p66 = scmp.eq.s32.totalorder %s21, 0
      %p67 = por %p65, %p66
      %p68 = scmp.ne.s32.totalorder %s57, %s60
      %p69 = scmp.eq.s32.totalorder %s26, 1
      %p70 = por %p68, %p69
      %p71 = scmp.ne.s32.totalorder %s60, %s61
      %p72 = scmp.eq.s32.totalorder %s26, 0
      %p73 = por %p71, %p72
      %p74 = scmp.ne.s32.totalorder %s60, %s61
      %p75 = scmp.eq.s32.totalorder %s27, 1
      %p76 = por %p74, %p75
      %p78 = scmp.ne.s32.totalorder %s61, %s77
      %p79 = scmp.eq.s32.totalorder %s27, 0
      %p80 = por %p78, %p79
      %s82 = sadd.s32 %s81, 1
      %p85 = scmp.eq.s32.totalorder %s21, 1
      %p86 = scmp.ne.s32.totalorder %s81, %s83
      %p87 = scmp.eq.s32.totalorder %s21, 0
      %p88 = por %p86, %p87
      %p89 = scmp.ne.s32.totalorder %s81, %s83
      %p90 = scmp.eq.s32.totalorder %s26, 1
      %p91 = por %p89, %p90
      %p92 = scmp.ne.s32.totalorder %s83, %s84
      %p93 = scmp.eq.s32.totalorder %s26, 0
      %p94 = por %p92, %p93
      %p95 = scmp.ne.s32.totalorder %s83, %s84
      %p96 = scmp.eq.s32.totalorder %s27, 1
      %p97 = por %p95, %p96
      %p99 = scmp.ne.s32.totalorder %s84, %s98
      %p100 = scmp.eq.s32.totalorder %s27, 0
      %p101 = por %p99, %p100
      %s103 = sadd.s32 %s102, 1
      %p106 = scmp.eq.s32.totalorder %s21, 1
      %p107 = scmp.ne.s32.totalorder %s102, %s104
      %p108 = scmp.eq.s32.totalorder %s21, 0
      %p109 = por %p107, %p108
      %p110 = scmp.ne.s32.totalorder %s102, %s104
      %p111 = scmp.eq.s32.totalorder %s26, 1
      %p112 = por %p110, %p111
      %p113 = scmp.ne.s32.totalorder %s104, %s105
      %p114 = scmp.eq.s32.totalorder %s26, 0
      %p115 = por %p113, %p114
      %p116 = scmp.ne.s32.totalorder %s104, %s105
      %p117 = scmp.eq.s32.totalorder %s27, 1
      %p118 = por %p116, %p117
      %p120 = scmp.ne.s32.totalorder %s105, %s119
      %p121 = scmp.eq.s32.totalorder %s27, 0
      %p122 = por %p120, %p121
      %s124 = sadd.s32 %s123, 1
      %p127 = scmp.eq.s32.totalorder %s21, 1
      %p128 = scmp.ne.s32.totalorder %s123, %s125
      %p129 = scmp.eq.s32.totalorder %s21, 0
      %p130 = por %p128, %p129
      %p131 = scmp.ne.s32.totalorder %s123, %s125
      %p132 = scmp.eq.s32.totalorder %s26, 1
      %p133 = por %p131, %p132
      %p134 = scmp.ne.s32.totalorder %s125, %s126
      %p135 = scmp.eq.s32.totalorder %s26, 0
      %p136 = por %p134, %p135
      %p137 = scmp.ne.s32.totalorder %s125, %s126
      %p138 = scmp.eq.s32.totalorder %s27, 1
      %p139 = por %p137, %p138
      %p141 = scmp.ne.s32.totalorder %s126, %s140
      %p142 = scmp.eq.s32.totalorder %s27, 0
      %p143 = por %p141, %p142
      %s145 = sadd.s32 %s144, 1
      %p148 = scmp.eq.s32.totalorder %s21, 1
      %p149 = scmp.ne.s32.totalorder %s144, %s146
      %p150 = scmp.eq.s32.totalorder %s21, 0
      %p151 = por %p149, %p150
      %p152 = scmp.ne.s32.totalorder %s144, %s146
      %p153 = scmp.eq.s32.totalorder %s26, 1
      %p154 = por %p152, %p153
      %p155 = scmp.ne.s32.totalorder %s146, %s147
      %p156 = scmp.eq.s32.totalorder %s26, 0
      %p157 = por %p155, %p156
      %p158 = scmp.ne.s32.totalorder %s146, %s147
      %p159 = scmp.eq.s32.totalorder %s27, 1
      %p160 = por %p158, %p159
      %p162 = scmp.ne.s32.totalorder %s147, %s161
      %p163 = scmp.eq.s32.totalorder %s27, 0
      %p164 = por %p162, %p163
      %s166 = sadd.s32 %s165, 1
      %p169 = scmp.eq.s32.totalorder %s21, 1
      %p170 = scmp.ne.s32.totalorder %s165, %s167
      %p171 = scmp.eq.s32.totalorder %s21, 0
      %p172 = por %p170, %p171
      %p173 = scmp.ne.s32.totalorder %s165, %s167
      %p174 = scmp.eq.s32.totalorder %s26, 1
      %p175 = por %p173, %p174
      %p176 = scmp.ne.s32.totalorder %s167, %s168
      %p177 = scmp.eq.s32.totalorder %s26, 0
      %p178 = por %p176, %p177
      %p179 = scmp.ne.s32.totalorder %s167, %s168
      %p180 = scmp.eq.s32.totalorder %s27, 1
      %p181 = por %p179, %p180
      %p183 = scmp.ne.s32.totalorder %s168, %s182
      %p184 = scmp.eq.s32.totalorder %s27, 0
      %p185 = por %p183, %p184
      %s187 = sadd.s32 %s186, 1
      %p190 = scmp.eq.s32.totalorder %s21, 1
      %p191 = scmp.ne.s32.totalorder %s186, %s188
      %p192 = scmp.eq.s32.totalorder %s21, 0
      %p193 = por %p191, %p192
      %p194 = scmp.ne.s32.totalorder %s186, %s188
      %p195 = scmp.eq.s32.totalorder %s26, 1
      %p196 = por %p194, %p195
      %p197 = scmp.ne.s32.totalorder %s188, %s189
      %p198 = scmp.eq.s32.totalorder %s26, 0
      %p199 = por %p197, %p198
      %p200 = scmp.ne.s32.totalorder %s188, %s189
      %p201 = scmp.eq.s32.totalorder %s27, 1
      %p202 = por %p200, %p201
      %p204 = scmp.ne.s32.totalorder %s189, %s203
      %p205 = scmp.eq.s32.totalorder %s27, 0
      %p206 = por %p204, %p205
      %s208 = sadd.s32 %s207, 1
      %p211 = scmp.eq.s32.totalorder %s21, 1
      %p212 = scmp.ne.s32.totalorder %s207, %s209
      %p213 = scmp.eq.s32.totalorder %s21, 0
      %p214 = por %p212, %p213
      %p215 = scmp.ne.s32.totalorder %s207, %s209
      %p216 = scmp.eq.s32.totalorder %s26, 1
      %p217 = por %p215, %p216
      %p218 = scmp.ne.s32.totalorder %s209, %s210
      %p219 = scmp.eq.s32.totalorder %s26, 0
      %p220 = por %p218, %p219
      %p221 = scmp.ne.s32.totalorder %s209, %s210
      %p222 = scmp.eq.s32.totalorder %s27, 1
      %p223 = por %p221, %p222
      %p225 = scmp.ne.s32.totalorder %s210, %s224
      %p226 = scmp.eq.s32.totalorder %s27, 0
      %p227 = por %p225, %p226
      %s229 = sadd.s32 %s228, 1
      %p232 = scmp.eq.s32.totalorder %s21, 1
      %p233 = scmp.ne.s32.totalorder %s228, %s230
      %p234 = scmp.eq.s32.totalorder %s21, 0
      %p235 = por %p233, %p234
      %p236 = scmp.ne.s32.totalorder %s228, %s230
      %p237 = scmp.eq.s32.totalorder %s26, 1
      %p238 = por %p236, %p237
      %p239 = scmp.ne.s32.totalorder %s230, %s231
      %p240 = scmp.eq.s32.totalorder %s26, 0
      %p241 = por %p239, %p240
      %p242 = scmp.ne.s32.totalorder %s230, %s231
      %p243 = scmp.eq.s32.totalorder %s27, 1
      %p244 = por %p242, %p243
      %p246 = scmp.ne.s32.totalorder %s231, %s245
      %p247 = scmp.eq.s32.totalorder %s27, 0
      %p248 = por %p246, %p247
      %s249 = ssub.s32 %s21, %s28
      %p250 = scmp.eq.s32.totalorder %s249, 0
      %s252 = sadd.s32 %s251, 1
      %s253 = scalar_select %p250, %s251, %s252
      %p256 = pneg %p250
      %p257 = scmp.eq.s32.totalorder %s21, 1
      %p258 = por %p256, %p257
      %p259 = scmp.ne.s32.totalorder %s251, %s254
      %p260 = scmp.eq.s32.totalorder %s21, 0
      %p261 = por %p259, %p260
      %p262 = scmp.ne.s32.totalorder %s251, %s254
      %p263 = scmp.eq.s32.totalorder %s26, 1
      %p264 = por %p262, %p263
      %p265 = scmp.ne.s32.totalorder %s254, %s255
      %p266 = scmp.eq.s32.totalorder %s26, 0
      %p267 = por %p265, %p266
      %p268 = scmp.ne.s32.totalorder %s254, %s255
      %p269 = scmp.eq.s32.totalorder %s27, 1
      %p270 = por %p268, %p269
      %p272 = scmp.ne.s32.totalorder %s255, %s271
      %p273 = scmp.eq.s32.totalorder %s27, 0
      %p274 = por %p272, %p273
      %s275 = ssub.s32 %s21, %s28
      %p276 = scmp.eq.s32.totalorder %s275, 0
      %s278 = sadd.s32 %s277, 1
      %s279 = scalar_select %p276, %s277, %s278
      %p282 = pneg %p276
      %p283 = scmp.eq.s32.totalorder %s21, 1
      %p284 = por %p282, %p283
      %p285 = scmp.ne.s32.totalorder %s277, %s280
      %p286 = scmp.eq.s32.totalorder %s21, 0
      %p287 = por %p285, %p286
      %p288 = scmp.ne.s32.totalorder %s277, %s280
      %p289 = scmp.eq.s32.totalorder %s26, 1
      %p290 = por %p288, %p289
      %p291 = scmp.ne.s32.totalorder %s280, %s281
      %p292 = scmp.eq.s32.totalorder %s26, 0
      %p293 = por %p291, %p292
      %p294 = scmp.ne.s32.totalorder %s280, %s281
      %p295 = scmp.eq.s32.totalorder %s27, 1
      %p296 = por %p294, %p295
      %p298 = scmp.ne.s32.totalorder %s281, %s297
      %p299 = scmp.eq.s32.totalorder %s27, 0
      %p300 = por %p298, %p299
      %p301 = scmp.le.s32.totalorder 1, %s21
      %p302 = scmp.lt.s32.totalorder %s21, 3
      %p303 = pnand %p301, %p302
      %p304 = pneg %p303
      // Predicated region
      $region9: #{tpu_custom_call.1} parent=5 // pred_check
        _
      $region10: #{tpu_custom_call.1} parent=5 // pred_check_branch
        %306 = sbr.rel (%p303) target = $region12
      $region11: #{tpu_custom_call.1} parent=5 // pred_region
        %s307 = ssub.s32 %s21, 1
        // Predicated region
        $region13: #{tpu_custom_call.1} parent=11 // pred_check
          %p308 = pneg %p94
        $region14: #{tpu_custom_call.1} parent=11 // pred_check_branch
          %310 = sbr.rel (%p308) target = $region16
        $region15: #{tpu_custom_call.1} parent=11 // pred_region
          _
        $region16: #{tpu_custom_call.1} parent=11 // pred_fallthru
          _
        // Predicated region
        $region17: #{tpu_custom_call.1} parent=11 // pred_check
          %p311 = pneg %p115
        $region18: #{tpu_custom_call.1} parent=11 // pred_check_branch
          %313 = sbr.rel (%p311) target = $region20
        $region19: #{tpu_custom_call.1} parent=11 // pred_region
          _
        $region20: #{tpu_custom_call.1} parent=11 // pred_fallthru
          _
        // Predicated region
        $region21: #{tpu_custom_call.1} parent=11 // pred_check
          %p314 = pneg %p136
        $region22: #{tpu_custom_call.1} parent=11 // pred_check_branch
          %316 = sbr.rel (%p314) target = $region24
        $region23: #{tpu_custom_call.1} parent=11 // pred_region
          _
        $region24: #{tpu_custom_call.1} parent=11 // pred_fallthru
          _
        // Predicated region
        $region25: #{tpu_custom_call.1} parent=11 // pred_check
          %p317 = pneg %p157
        $region26: #{tpu_custom_call.1} parent=11 // pred_check_branch
          %319 = sbr.rel (%p317) target = $region28
        $region27: #{tpu_custom_call.1} parent=11 // pred_region
          _
        $region28: #{tpu_custom_call.1} parent=11 // pred_fallthru
          _
        // Predicated region
        $region29: #{tpu_custom_call.1} parent=11 // pred_check
          %p320 = pneg %p178
        $region30: #{tpu_custom_call.1} parent=11 // pred_check_branch
          %322 = sbr.rel (%p320) target = $region32
        $region31: #{tpu_custom_call.1} parent=11 // pred_region
          _
        $region32: #{tpu_custom_call.1} parent=11 // pred_fallthru
          _
        // Predicated region
        $region33: #{tpu_custom_call.1} parent=11 // pred_check
          %p323 = pneg %p199
        $region34: #{tpu_custom_call.1} parent=11 // pred_check_branch
          %325 = sbr.rel (%p323) target = $region36
        $region35: #{tpu_custom_call.1} parent=11 // pred_region
          _
        $region36: #{tpu_custom_call.1} parent=11 // pred_fallthru
          _
        // Predicated region
        $region37: #{tpu_custom_call.1} parent=11 // pred_check
          %p326 = pneg %p220
        $region38: #{tpu_custom_call.1} parent=11 // pred_check_branch
          %328 = sbr.rel (%p326) target = $region40
        $region39: #{tpu_custom_call.1} parent=11 // pred_region
          _
        $region40: #{tpu_custom_call.1} parent=11 // pred_fallthru
          _
        // Predicated region
        $region41: #{tpu_custom_call.1} parent=11 // pred_check
          %p329 = pneg %p241
        $region42: #{tpu_custom_call.1} parent=11 // pred_check_branch
          %331 = sbr.rel (%p329) target = $region44
        $region43: #{tpu_custom_call.1} parent=11 // pred_region
          _
        $region44: #{tpu_custom_call.1} parent=11 // pred_fallthru
          _
      $region12: #{tpu_custom_call.1} parent=5 // pred_fallthru
        _
      %p332 = scmp.lt.s32.totalorder %s21, 2
      // Predicated region
      $region45: #{tpu_custom_call.1} parent=5 // pred_check
        %p333 = pneg %p332
      $region46: #{tpu_custom_call.1} parent=5 // pred_check_branch
        %335 = sbr.rel (%p333) target = $region48
      $region47: #{tpu_custom_call.1} parent=5 // pred_region
        // Predicated region
        $region49: #{tpu_custom_call.1} parent=47 // pred_check
          %p336 = pneg %p41
        $region50: #{tpu_custom_call.1} parent=47 // pred_check_branch
          %338 = sbr.rel (%p336) target = $region52
        $region51: #{tpu_custom_call.1} parent=47 // pred_region
          %p339 = scmp.lt.s32.totalorder %s21, 1
          %s340 = scalar_select %p339, %s21, 1
          %s341 = smul.addr %s340, 4
          %s342 = scalar_lea.vmem %s0, %s341
        $region52: #{tpu_custom_call.1} parent=47 // pred_fallthru
          _
        // Predicated region
        $region53: #{tpu_custom_call.1} parent=47 // pred_check
          %p343 = pneg %p67
        $region54: #{tpu_custom_call.1} parent=47 // pred_check_branch
          %345 = sbr.rel (%p343) target = $region56
        $region55: #{tpu_custom_call.1} parent=47 // pred_region
          %p346 = scmp.lt.s32.totalorder %s21, 1
          %s347 = scalar_select %p346, %s21, 1
          %s348 = scalar_lea.vmem %s1, %s347
        $region56: #{tpu_custom_call.1} parent=47 // pred_fallthru
          _
      $region48: #{tpu_custom_call.1} parent=5 // pred_fallthru
        _
      %p349 = scmp.le.s32.totalorder 1, %s21
      %p350 = scmp.lt.s32.totalorder %s21, 3
      %p351 = pnand %p349, %p350
      %p352 = pneg %p351
      // Predicated region
      $region57: #{tpu_custom_call.1} parent=5 // pred_check
        _
      $region58: #{tpu_custom_call.1} parent=5 // pred_check_branch
        %354 = sbr.rel (%p351) target = $region60
      $region59: #{tpu_custom_call.1} parent=5 // pred_region
        %s355 = ssub.s32 %s21, 1
        %p356 = scmp.lt.s32.totalorder %s26, 1
        %s357 = scalar_select %p356, %s26, 1
        %s358 = smul.addr %s357, 4
        %s359 = scalar_lea.vmem %s0, %s358
        %p360 = pneg %p47
        %p361 = pneg %p44
        %p362 = scmp.lt.s32.totalorder %s26, 1
        %s363 = scalar_select %p362, %s26, 1
        %s364 = scalar_lea.vmem %s1, %s363
        %p365 = pneg %p73
        %p366 = pneg %p70
        %p367 = pneg %p94
        %p368 = pneg %p91
        %p369 = pneg %p115
        %p370 = pneg %p112
        %p371 = pneg %p136
        %p372 = pneg %p133
        %p373 = pneg %p157
        %p374 = pneg %p154
        %p375 = pneg %p178
        %p376 = pneg %p175
        %p377 = pneg %p199
        %p378 = pneg %p196
        %p379 = pneg %p220
        %p380 = pneg %p217
        %p381 = pneg %p241
        %p382 = pneg %p238
        %p383 = pneg %p267
        %p384 = pneg %p264
        %s385 = sand.u32 %s254, 1
        %s386 = scalar_lea.sflag [#allocation4], %s385
        %s387 = sand.u32 %s254, 1
        %s388 = smul.addr %s387, 4
        %s389 = scalar_lea.vmem [#allocation3], %s388
        %p390 = pneg %p293
        %p391 = pneg %p290
        %p392 = scmp.lt.s32.totalorder %s26, 1
        %s393 = scalar_select %p392, %s26, 1
        %s394 = scalar_lea.vmem %s11, %s393
        %p395 = scmp.lt.s32.totalorder %s26, 1
        %s396 = scalar_select %p395, %s26, 1
        %s397 = smul.addr %s396, 4
        %s398 = scalar_lea.vmem %s0, %s397
        %p399 = scmp.lt.s32.totalorder %s26, 1
        %s400 = scalar_select %p399, %s26, 1
        %s401 = scalar_lea.vmem %s1, %s400
        %p402 = scmp.lt.s32.totalorder %s26, 1
        %s403 = scalar_select %p402, %s26, 1
        %s404 = scalar_lea.vmem %s11, %s403
        %v405 = vld [vmem:[%s401] sm:$0x1]
        %v406 = vld [vmem:[%s398] sm:$0xf]
        %v407 = vld [vmem:[%s2] sm:$0xff]
        %v408 = vld [vmem:[%s2 + $0x8] sm:$0xff]
        %v409 = vld [vmem:[%s2 + $0x10] sm:$0xff]
        %v410 = vld [vmem:[%s2 + $0x18] sm:$0xff]
        %v411 = vld [vmem:[%s3] sm:$0xff]
        %v412 = vld [vmem:[%s3 + $0x8] sm:$0xff]
        %v413 = vld [vmem:[%s3 + $0x10] sm:$0xff]
        %v414 = vld [vmem:[%s3 + $0x18] sm:$0xff]
        %416 = vset.pattern.permute.xlu0 0
        %417 = vperm.xlu0 %416, %v411
        %v418 = vpop.permute.xlu0 %417
        %421 = vset.pattern.permute.xlu0 0
        %422 = vperm.xlu0 %421, %v412
        %v423 = vpop.permute.xlu0 %422
        %426 = vset.pattern.permute.xlu0 0
        %427 = vperm.xlu0 %426, %v413
        %v428 = vpop.permute.xlu0 %427
        %431 = vset.pattern.permute.xlu0 0
        %432 = vperm.xlu0 %431, %v414
        %v433 = vpop.permute.xlu0 %432
        %vm435 = vcmask 15360
        %v437 = vsel %vm435, %v407, 0
        %v440 = vsel %vm435, %v408, 0
        %v443 = vsel %vm435, %v409, 0
        %v446 = vsel %vm435, %v410, 0
        %vm448 = vcmask 1041408
        %v450 = vsel %vm448, %v406, 0
        %452 = vmatprep.subr.mxu0 0.0
        %v453 = vand.u32 %v450, 4294901760
        %454 = vmatpush1.msra.mxu0 %v453
        %455 = vmatprep.subr.mxu0 0.0
        %456 = vmatpush1.msra.mxu0 0.0
        %457 = vmatprep.subr.mxu0 0.0
        %458 = vmatpush1.msra.mxu0 0.0
        %459 = vmatprep.subr.mxu0 0.0
        %460 = vmatpush1.msra.mxu0 0.0
        %461 = vmatprep.subr.mxu0 0.0
        %462 = vmatpush1.msra.mxu0 0.0
        %463 = vmatprep.subr.mxu0 0.0
        %464 = vmatpush1.msra.mxu0 0.0
        %465 = vmatprep.subr.mxu0 0.0
        %466 = vmatpush1.msra.mxu0 0.0
        %467 = vmatprep.subr.mxu0 0.0
        %468 = vmatpush1.msra.mxu0 0.0
        %469 = vmatprep.subr.mxu0 0.0
        %470 = vmatpush1.msra.mxu0 0.0
        %471 = vmatprep.subr.mxu0 0.0
        %472 = vmatpush1.msra.mxu0 0.0
        %473 = vmatprep.subr.mxu0 0.0
        %474 = vmatpush1.msra.mxu0 0.0
        %475 = vmatprep.subr.mxu0 0.0
        %476 = vmatpush1.msra.mxu0 0.0
        %477 = vmatprep.subr.mxu0 0.0
        %478 = vmatpush1.msra.mxu0 0.0
        %479 = vmatprep.subr.mxu0 0.0
        %480 = vmatpush1.msra.mxu0 0.0
        %481 = vmatprep.subr.mxu0 0.0
        %482 = vmatpush1.msra.mxu0 0.0
        %483 = vmatprep.subr.mxu0 0.0
        %484 = vmatpush1.msra.mxu0 0.0
        %485 = vmatprep.subr.mxu0 0.0
        %486 = vmatpush1.msra.mxu0 0.0
        %487 = vmatprep.subr.mxu0 0.0
        %488 = vmatpush1.msra.mxu0 0.0
        %489 = vmatprep.subr.mxu0 0.0
        %490 = vmatpush1.msra.mxu0 0.0
        %491 = vmatprep.subr.mxu0 0.0
        %492 = vmatpush1.msra.mxu0 0.0
        %493 = vmatprep.subr.mxu0 0.0
        %494 = vmatpush1.msra.mxu0 0.0
        %495 = vmatprep.subr.mxu0 0.0
        %496 = vmatpush1.msra.mxu0 0.0
        %497 = vmatprep.subr.mxu0 0.0
        %498 = vmatpush1.msra.mxu0 0.0
        %499 = vmatprep.subr.mxu0 0.0
        %500 = vmatpush1.msra.mxu0 0.0
        %501 = vmatprep.subr.mxu0 0.0
        %502 = vmatpush1.msra.mxu0 0.0
        %503 = vmatprep.subr.mxu0 0.0
        %504 = vmatpush1.msra.mxu0 0.0
        %505 = vmatprep.subr.mxu0 0.0
        %506 = vmatpush1.msra.mxu0 0.0
        %507 = vmatprep.subr.mxu0 0.0
        %508 = vmatpush1.msra.mxu0 0.0
        %509 = vmatprep.subr.mxu0 0.0
        %510 = vmatpush1.msra.mxu0 0.0
        %511 = vmatprep.subr.mxu0 0.0
        %512 = vmatpush1.msra.mxu0 0.0
        %513 = vmatprep.subr.mxu0 0.0
        %514 = vmatpush1.msra.mxu0 0.0
        %515 = vmatprep.subr.mxu0 0.0
        %516 = vmatpush1.msra.mxu0 0.0
        %517 = vmatprep.mubr.f32.mxu0 0.0
        %v518 = vand.u32 %v437, 4294901760
        %v519 = vsub.f32 %v437, %v518
        %v520 = vand.u32 %v519, 4294901760
        %v521 = vsub.f32 %v519, %v520
        %v522 = vand.u32 %v521, 4294901760
        %523 = vmatmul.mubr.f32.gmra.mrb[0].mxu0 %v522
        %v524 = vpop.f32.mrb[0].mxu0
        %v525 = vadd.f32 %v418, %v524
        %v526 = vpop.f32.mrb[0].mxu0
        %527 = vmatprep.mubr.f32.mxu0 0.0
        %v528 = vand.u32 %v440, 4294901760
        %v529 = vsub.f32 %v440, %v528
        %v530 = vand.u32 %v529, 4294901760
        %v531 = vsub.f32 %v529, %v530
        %v532 = vand.u32 %v531, 4294901760
        %533 = vmatmul.mubr.f32.gmra.mrb[0].mxu0 %v532
        %v534 = vpop.f32.mrb[0].mxu0
        %v535 = vadd.f32 %v423, %v534
        %v536 = vpop.f32.mrb[0].mxu0
        %537 = vmatprep.mubr.f32.mxu0 0.0
        %v538 = vand.u32 %v443, 4294901760
        %v539 = vsub.f32 %v443, %v538
        %v540 = vand.u32 %v539, 4294901760
        %v541 = vsub.f32 %v539, %v540
        %v542 = vand.u32 %v541, 4294901760
        %543 = vmatmul.mubr.f32.gmra.mrb[0].mxu0 %v542
        %v544 = vpop.f32.mrb[0].mxu0
        %v545 = vadd.f32 %v428, %v544
        %v546 = vpop.f32.mrb[0].mxu0
        %547 = vmatprep.mubr.f32.mxu0 0.0
        %v548 = vand.u32 %v446, 4294901760
        %v549 = vsub.f32 %v446, %v548
        %v550 = vand.u32 %v549, 4294901760
        %v551 = vsub.f32 %v549, %v550
        %v552 = vand.u32 %v551, 4294901760
        %553 = vmatmul.mubr.f32.gmra.mrb[0].mxu0 %v552
        %v554 = vpop.f32.mrb[0].mxu0
        %v555 = vadd.f32 %v433, %v554
        %v556 = vpop.f32.mrb[0].mxu0
        %557 = vdwg.mxu0
        %558 = vmatprep.subr.mxu0 0.0
        %v559 = vand.u32 %v450, 4294901760
        %v560 = vsub.f32 %v450, %v559
        %v561 = vand.u32 %v560, 4294901760
        %v562 = vsub.f32 %v560, %v561
        %v563 = vand.u32 %v562, 4294901760
        %564 = vmatpush1.msra.mxu0 %v563
        %565 = vmatprep.subr.mxu0 0.0
        %566 = vmatpush1.msra.mxu0 0.0
        %567 = vmatprep.subr.mxu0 0.0
        %568 = vmatpush1.msra.mxu0 0.0
        %569 = vmatprep.subr.mxu0 0.0
        %570 = vmatpush1.msra.mxu0 0.0
        %571 = vmatprep.subr.mxu0 0.0
        %572 = vmatpush1.msra.mxu0 0.0
        %573 = vmatprep.subr.mxu0 0.0
        %574 = vmatpush1.msra.mxu0 0.0
        %575 = vmatprep.subr.mxu0 0.0
        %576 = vmatpush1.msra.mxu0 0.0
        %577 = vmatprep.subr.mxu0 0.0
        %578 = vmatpush1.msra.mxu0 0.0
        %579 = vmatprep.subr.mxu0 0.0
        %580 = vmatpush1.msra.mxu0 0.0
        %581 = vmatprep.subr.mxu0 0.0
        %582 = vmatpush1.msra.mxu0 0.0
        %583 = vmatprep.subr.mxu0 0.0
        %584 = vmatpush1.msra.mxu0 0.0
        %585 = vmatprep.subr.mxu0 0.0
        %586 = vmatpush1.msra.mxu0 0.0
        %587 = vmatprep.subr.mxu0 0.0
        %588 = vmatpush1.msra.mxu0 0.0
        %589 = vmatprep.subr.mxu0 0.0
        %590 = vmatpush1.msra.mxu0 0.0
        %591 = vmatprep.subr.mxu0 0.0
        %592 = vmatpush1.msra.mxu0 0.0
        %593 = vmatprep.subr.mxu0 0.0
        %594 = vmatpush1.msra.mxu0 0.0
        %595 = vmatprep.subr.mxu0 0.0
        %596 = vmatpush1.msra.mxu0 0.0
        %597 = vmatprep.subr.mxu0 0.0
        %598 = vmatpush1.msra.mxu0 0.0
        %599 = vmatprep.subr.mxu0 0.0
        %600 = vmatpush1.msra.mxu0 0.0
        %601 = vmatprep.subr.mxu0 0.0
        %602 = vmatpush1.msra.mxu0 0.0
        %603 = vmatprep.subr.mxu0 0.0
        %604 = vmatpush1.msra.mxu0 0.0
        %605 = vmatprep.subr.mxu0 0.0
        %606 = vmatpush1.msra.mxu0 0.0
        %607 = vmatprep.subr.mxu0 0.0
        %608 = vmatpush1.msra.mxu0 0.0
        %609 = vmatprep.subr.mxu0 0.0
        %610 = vmatpush1.msra.mxu0 0.0
        %611 = vmatprep.subr.mxu0 0.0
        %612 = vmatpush1.msra.mxu0 0.0
        %613 = vmatprep.subr.mxu0 0.0
        %614 = vmatpush1.msra.mxu0 0.0
        %615 = vmatprep.subr.mxu0 0.0
        %616 = vmatpush1.msra.mxu0 0.0
        %617 = vmatprep.subr.mxu0 0.0
        %618 = vmatpush1.msra.mxu0 0.0
        %619 = vmatprep.subr.mxu0 0.0
        %620 = vmatpush1.msra.mxu0 0.0
        %621 = vmatprep.subr.mxu0 0.0
        %622 = vmatpush1.msra.mxu0 0.0
        %623 = vmatprep.subr.mxu0 0.0
        %624 = vmatpush1.msra.mxu0 0.0
        %625 = vmatprep.subr.mxu0 0.0
        %626 = vmatpush1.msra.mxu0 0.0
        %627 = vmatprep.mubr.f32.mxu0 0.0
        %v628 = vand.u32 %v437, 4294901760
        %629 = vmatmul.mubr.f32.gmra.mrb[0].mxu0 %v628
        %v630 = vpop.f32.mrb[0].mxu0
        %v631 = vadd.f32 %v525, %v630
        %v632 = vpop.f32.mrb[0].mxu0
        %633 = vmatprep.mubr.f32.mxu0 0.0
        %v634 = vand.u32 %v440, 4294901760
        %635 = vmatmul.mubr.f32.gmra.mrb[0].mxu0 %v634
        %v636 = vpop.f32.mrb[0].mxu0
        %v637 = vadd.f32 %v535, %v636
        %v638 = vpop.f32.mrb[0].mxu0
        %639 = vmatprep.mubr.f32.mxu0 0.0
        %v640 = vand.u32 %v443, 4294901760
        %641 = vmatmul.mubr.f32.gmra.mrb[0].mxu0 %v640
        %v642 = vpop.f32.mrb[0].mxu0
        %v643 = vadd.f32 %v545, %v642
        %v644 = vpop.f32.mrb[0].mxu0
        %645 = vmatprep.mubr.f32.mxu0 0.0
        %v646 = vand.u32 %v446, 4294901760
        %647 = vmatmul.mubr.f32.gmra.mrb[0].mxu0 %v646
        %v648 = vpop.f32.mrb[0].mxu0
        %v649 = vadd.f32 %v555, %v648
        %v650 = vpop.f32.mrb[0].mxu0
        %651 = vdwg.mxu0
        %652 = vmatprep.subr.mxu0 0.0
        %v653 = vand.u32 %v450, 4294901760
        %v654 = vsub.f32 %v450, %v653
        %655 = vmatpush1.msra.mxu0 %v654
        %656 = vmatprep.subr.mxu0 0.0
        %657 = vmatpush1.msra.mxu0 0.0
        %658 = vmatprep.subr.mxu0 0.0
        %659 = vmatpush1.msra.mxu0 0.0
        %660 = vmatprep.subr.mxu0 0.0
        %661 = vmatpush1.msra.mxu0 0.0
        %662 = vmatprep.subr.mxu0 0.0
        %663 = vmatpush1.msra.mxu0 0.0
        %664 = vmatprep.subr.mxu0 0.0
        %665 = vmatpush1.msra.mxu0 0.0
        %666 = vmatprep.subr.mxu0 0.0
        %667 = vmatpush1.msra.mxu0 0.0
        %668 = vmatprep.subr.mxu0 0.0
        %669 = vmatpush1.msra.mxu0 0.0
        %670 = vmatprep.subr.mxu0 0.0
        %671 = vmatpush1.msra.mxu0 0.0
        %672 = vmatprep.subr.mxu0 0.0
        %673 = vmatpush1.msra.mxu0 0.0
        %674 = vmatprep.subr.mxu0 0.0
        %675 = vmatpush1.msra.mxu0 0.0
        %676 = vmatprep.subr.mxu0 0.0
        %677 = vmatpush1.msra.mxu0 0.0
        %678 = vmatprep.subr.mxu0 0.0
        %679 = vmatpush1.msra.mxu0 0.0
        %680 = vmatprep.subr.mxu0 0.0
        %681 = vmatpush1.msra.mxu0 0.0
        %682 = vmatprep.subr.mxu0 0.0
        %683 = vmatpush1.msra.mxu0 0.0
        %684 = vmatprep.subr.mxu0 0.0
        %685 = vmatpush1.msra.mxu0 0.0
        %686 = vmatprep.subr.mxu0 0.0
        %687 = vmatpush1.msra.mxu0 0.0
        %688 = vmatprep.subr.mxu0 0.0
        %689 = vmatpush1.msra.mxu0 0.0
        %690 = vmatprep.subr.mxu0 0.0
        %691 = vmatpush1.msra.mxu0 0.0
        %692 = vmatprep.subr.mxu0 0.0
        %693 = vmatpush1.msra.mxu0 0.0
        %694 = vmatprep.subr.mxu0 0.0
        %695 = vmatpush1.msra.mxu0 0.0
        %696 = vmatprep.subr.mxu0 0.0
        %697 = vmatpush1.msra.mxu0 0.0
        %698 = vmatprep.subr.mxu0 0.0
        %699 = vmatpush1.msra.mxu0 0.0
        %700 = vmatprep.subr.mxu0 0.0
        %701 = vmatpush1.msra.mxu0 0.0
        %702 = vmatprep.subr.mxu0 0.0
        %703 = vmatpush1.msra.mxu0 0.0
        %704 = vmatprep.subr.mxu0 0.0
        %705 = vmatpush1.msra.mxu0 0.0
        %706 = vmatprep.subr.mxu0 0.0
        %707 = vmatpush1.msra.mxu0 0.0
        %708 = vmatprep.subr.mxu0 0.0
        %709 = vmatpush1.msra.mxu0 0.0
        %710 = vmatprep.subr.mxu0 0.0
        %711 = vmatpush1.msra.mxu0 0.0
        %712 = vmatprep.subr.mxu0 0.0
        %713 = vmatpush1.msra.mxu0 0.0
        %714 = vmatprep.subr.mxu0 0.0
        %715 = vmatpush1.msra.mxu0 0.0
        %716 = vmatprep.subr.mxu0 0.0
        %717 = vmatpush1.msra.mxu0 0.0
        %718 = vmatprep.mubr.f32.mxu0 0.0
        %v719 = vand.u32 %v437, 4294901760
        %v720 = vsub.f32 %v437, %v719
        %721 = vmatmul.mubr.f32.gmra.mrb[0].mxu0 %v720
        %v722 = vpop.f32.mrb[0].mxu0
        %v723 = vadd.f32 %v631, %v722
        %v724 = vpop.f32.mrb[0].mxu0
        %725 = vmatprep.mubr.f32.mxu0 0.0
        %v726 = vand.u32 %v440, 4294901760
        %v727 = vsub.f32 %v440, %v726
        %728 = vmatmul.mubr.f32.gmra.mrb[0].mxu0 %v727
        %v729 = vpop.f32.mrb[0].mxu0
        %v730 = vadd.f32 %v637, %v729
        %v731 = vpop.f32.mrb[0].mxu0
        %732 = vmatprep.mubr.f32.mxu0 0.0
        %v733 = vand.u32 %v443, 4294901760
        %v734 = vsub.f32 %v443, %v733
        %735 = vmatmul.mubr.f32.gmra.mrb[0].mxu0 %v734
        %v736 = vpop.f32.mrb[0].mxu0
        %v737 = vadd.f32 %v643, %v736
        %v738 = vpop.f32.mrb[0].mxu0
        %739 = vmatprep.mubr.f32.mxu0 0.0
        %v740 = vand.u32 %v446, 4294901760
        %v741 = vsub.f32 %v446, %v740
        %742 = vmatmul.mubr.f32.gmra.mrb[0].mxu0 %v741
        %v743 = vpop.f32.mrb[0].mxu0
        %v744 = vadd.f32 %v649, %v743
        %v745 = vpop.f32.mrb[0].mxu0
        %746 = vdwg.mxu0
        %747 = vmatprep.subr.mxu0 0.0
        %v748 = vand.u32 %v450, 4294901760
        %749 = vmatpush1.msra.mxu0 %v748
        %750 = vmatprep.subr.mxu0 0.0
        %751 = vmatpush1.msra.mxu0 0.0
        %752 = vmatprep.subr.mxu0 0.0
        %753 = vmatpush1.msra.mxu0 0.0
        %754 = vmatprep.subr.mxu0 0.0
        %755 = vmatpush1.msra.mxu0 0.0
        %756 = vmatprep.subr.mxu0 0.0
        %757 = vmatpush1.msra.mxu0 0.0
        %758 = vmatprep.subr.mxu0 0.0
        %759 = vmatpush1.msra.mxu0 0.0
        %760 = vmatprep.subr.mxu0 0.0
        %761 = vmatpush1.msra.mxu0 0.0
        %762 = vmatprep.subr.mxu0 0.0
        %763 = vmatpush1.msra.mxu0 0.0
        %764 = vmatprep.subr.mxu0 0.0
        %765 = vmatpush1.msra.mxu0 0.0
        %766 = vmatprep.subr.mxu0 0.0
        %767 = vmatpush1.msra.mxu0 0.0
        %768 = vmatprep.subr.mxu0 0.0
        %769 = vmatpush1.msra.mxu0 0.0
        %770 = vmatprep.subr.mxu0 0.0
        %771 = vmatpush1.msra.mxu0 0.0
        %772 = vmatprep.subr.mxu0 0.0
        %773 = vmatpush1.msra.mxu0 0.0
        %774 = vmatprep.subr.mxu0 0.0
        %775 = vmatpush1.msra.mxu0 0.0
        %776 = vmatprep.subr.mxu0 0.0
        %777 = vmatpush1.msra.mxu0 0.0
        %778 = vmatprep.subr.mxu0 0.0
        %779 = vmatpush1.msra.mxu0 0.0
        %780 = vmatprep.subr.mxu0 0.0
        %781 = vmatpush1.msra.mxu0 0.0
        %782 = vmatprep.subr.mxu0 0.0
        %783 = vmatpush1.msra.mxu0 0.0
        %784 = vmatprep.subr.mxu0 0.0
        %785 = vmatpush1.msra.mxu0 0.0
        %786 = vmatprep.subr.mxu0 0.0
        %787 = vmatpush1.msra.mxu0 0.0
        %788 = vmatprep.subr.mxu0 0.0
        %789 = vmatpush1.msra.mxu0 0.0
        %790 = vmatprep.subr.mxu0 0.0
        %791 = vmatpush1.msra.mxu0 0.0
        %792 = vmatprep.subr.mxu0 0.0
        %793 = vmatpush1.msra.mxu0 0.0
        %794 = vmatprep.subr.mxu0 0.0
        %795 = vmatpush1.msra.mxu0 0.0
        %796 = vmatprep.subr.mxu0 0.0
        %797 = vmatpush1.msra.mxu0 0.0
        %798 = vmatprep.subr.mxu0 0.0
        %799 = vmatpush1.msra.mxu0 0.0
        %800 = vmatprep.subr.mxu0 0.0
        %801 = vmatpush1.msra.mxu0 0.0
        %802 = vmatprep.subr.mxu0 0.0
        %803 = vmatpush1.msra.mxu0 0.0
        %804 = vmatprep.subr.mxu0 0.0
        %805 = vmatpush1.msra.mxu0 0.0
        %806 = vmatprep.subr.mxu0 0.0
        %807 = vmatpush1.msra.mxu0 0.0
        %808 = vmatprep.subr.mxu0 0.0
        %809 = vmatpush1.msra.mxu0 0.0
        %810 = vmatprep.subr.mxu0 0.0
        %811 = vmatpush1.msra.mxu0 0.0
        %812 = vmatprep.mubr.f32.mxu0 0.0
        %v813 = vand.u32 %v437, 4294901760
        %v814 = vsub.f32 %v437, %v813
        %v815 = vand.u32 %v814, 4294901760
        %816 = vmatmul.mubr.f32.gmra.mrb[0].mxu0 %v815
        %v817 = vpop.f32.mrb[0].mxu0
        %v818 = vadd.f32 %v723, %v817
        %v819 = vpop.f32.mrb[0].mxu0
        %820 = vmatprep.mubr.f32.mxu0 0.0
        %v821 = vand.u32 %v440, 4294901760
        %v822 = vsub.f32 %v440, %v821
        %v823 = vand.u32 %v822, 4294901760
        %824 = vmatmul.mubr.f32.gmra.mrb[0].mxu0 %v823
        %v825 = vpop.f32.mrb[0].mxu0
        %v826 = vadd.f32 %v730, %v825
        %v827 = vpop.f32.mrb[0].mxu0
        %828 = vmatprep.mubr.f32.mxu0 0.0
        %v829 = vand.u32 %v443, 4294901760
        %v830 = vsub.f32 %v443, %v829
        %v831 = vand.u32 %v830, 4294901760
        %832 = vmatmul.mubr.f32.gmra.mrb[0].mxu0 %v831
        %v833 = vpop.f32.mrb[0].mxu0
        %v834 = vadd.f32 %v737, %v833
        %v835 = vpop.f32.mrb[0].mxu0
        %836 = vmatprep.mubr.f32.mxu0 0.0
        %v837 = vand.u32 %v446, 4294901760
        %v838 = vsub.f32 %v446, %v837
        %v839 = vand.u32 %v838, 4294901760
        %840 = vmatmul.mubr.f32.gmra.mrb[0].mxu0 %v839
        %v841 = vpop.f32.mrb[0].mxu0
        %v842 = vadd.f32 %v744, %v841
        %v843 = vpop.f32.mrb[0].mxu0
        %844 = vdwg.mxu0
        %845 = vmatprep.subr.mxu0 0.0
        %v846 = vand.u32 %v450, 4294901760
        %v847 = vsub.f32 %v450, %v846
        %v848 = vand.u32 %v847, 4294901760
        %849 = vmatpush1.msra.mxu0 %v848
        %850 = vmatprep.subr.mxu0 0.0
        %851 = vmatpush1.msra.mxu0 0.0
        %852 = vmatprep.subr.mxu0 0.0
        %853 = vmatpush1.msra.mxu0 0.0
        %854 = vmatprep.subr.mxu0 0.0
        %855 = vmatpush1.msra.mxu0 0.0
        %856 = vmatprep.subr.mxu0 0.0
        %857 = vmatpush1.msra.mxu0 0.0
        %858 = vmatprep.subr.mxu0 0.0
        %859 = vmatpush1.msra.mxu0 0.0
        %860 = vmatprep.subr.mxu0 0.0
        %861 = vmatpush1.msra.mxu0 0.0
        %862 = vmatprep.subr.mxu0 0.0
        %863 = vmatpush1.msra.mxu0 0.0
        %864 = vmatprep.subr.mxu0 0.0
        %865 = vmatpush1.msra.mxu0 0.0
        %866 = vmatprep.subr.mxu0 0.0
        %867 = vmatpush1.msra.mxu0 0.0
        %868 = vmatprep.subr.mxu0 0.0
        %869 = vmatpush1.msra.mxu0 0.0
        %870 = vmatprep.subr.mxu0 0.0
        %871 = vmatpush1.msra.mxu0 0.0
        %872 = vmatprep.subr.mxu0 0.0
        %873 = vmatpush1.msra.mxu0 0.0
        %874 = vmatprep.subr.mxu0 0.0
        %875 = vmatpush1.msra.mxu0 0.0
        %876 = vmatprep.subr.mxu0 0.0
        %877 = vmatpush1.msra.mxu0 0.0
        %878 = vmatprep.subr.mxu0 0.0
        %879 = vmatpush1.msra.mxu0 0.0
        %880 = vmatprep.subr.mxu0 0.0
        %881 = vmatpush1.msra.mxu0 0.0
        %882 = vmatprep.subr.mxu0 0.0
        %883 = vmatpush1.msra.mxu0 0.0
        %884 = vmatprep.subr.mxu0 0.0
        %885 = vmatpush1.msra.mxu0 0.0
        %886 = vmatprep.subr.mxu0 0.0
        %887 = vmatpush1.msra.mxu0 0.0
        %888 = vmatprep.subr.mxu0 0.0
        %889 = vmatpush1.msra.mxu0 0.0
        %890 = vmatprep.subr.mxu0 0.0
        %891 = vmatpush1.msra.mxu0 0.0
        %892 = vmatprep.subr.mxu0 0.0
        %893 = vmatpush1.msra.mxu0 0.0
        %894 = vmatprep.subr.mxu0 0.0
        %895 = vmatpush1.msra.mxu0 0.0
        %896 = vmatprep.subr.mxu0 0.0
        %897 = vmatpush1.msra.mxu0 0.0
        %898 = vmatprep.subr.mxu0 0.0
        %899 = vmatpush1.msra.mxu0 0.0
        %900 = vmatprep.subr.mxu0 0.0
        %901 = vmatpush1.msra.mxu0 0.0
        %902 = vmatprep.subr.mxu0 0.0
        %903 = vmatpush1.msra.mxu0 0.0
        %904 = vmatprep.subr.mxu0 0.0
        %905 = vmatpush1.msra.mxu0 0.0
        %906 = vmatprep.subr.mxu0 0.0
        %907 = vmatpush1.msra.mxu0 0.0
        %908 = vmatprep.subr.mxu0 0.0
        %909 = vmatpush1.msra.mxu0 0.0
        %910 = vmatprep.subr.mxu0 0.0
        %911 = vmatpush1.msra.mxu0 0.0
        %912 = vmatprep.mubr.f32.mxu0 0.0
        %v913 = vand.u32 %v437, 4294901760
        %914 = vmatmul.mubr.f32.gmra.mrb[0].mxu0 %v913
        %v915 = vpop.f32.mrb[0].mxu0
        %v916 = vadd.f32 %v818, %v915
        %v917 = vpop.f32.mrb[0].mxu0
        %918 = vmatprep.mubr.f32.mxu0 0.0
        %v919 = vand.u32 %v440, 4294901760
        %920 = vmatmul.mubr.f32.gmra.mrb[0].mxu0 %v919
        %v921 = vpop.f32.mrb[0].mxu0
        %v922 = vadd.f32 %v826, %v921
        %v923 = vpop.f32.mrb[0].mxu0
        %924 = vmatprep.mubr.f32.mxu0 0.0
        %v925 = vand.u32 %v443, 4294901760
        %926 = vmatmul.mubr.f32.gmra.mrb[0].mxu0 %v925
        %v927 = vpop.f32.mrb[0].mxu0
        %v928 = vadd.f32 %v834, %v927
        %v929 = vpop.f32.mrb[0].mxu0
        %930 = vmatprep.mubr.f32.mxu0 0.0
        %v931 = vand.u32 %v446, 4294901760
        %932 = vmatmul.mubr.f32.gmra.mrb[0].mxu0 %v931
        %v933 = vpop.f32.mrb[0].mxu0
        %v934 = vadd.f32 %v842, %v933
        %v935 = vpop.f32.mrb[0].mxu0
        %936 = vdwg.mxu0
        %937 = vmatprep.subr.mxu0 0.0
        %v938 = vand.u32 %v450, 4294901760
        %939 = vmatpush1.msra.mxu0 %v938
        %940 = vmatprep.subr.mxu0 0.0
        %941 = vmatpush1.msra.mxu0 0.0
        %942 = vmatprep.subr.mxu0 0.0
        %943 = vmatpush1.msra.mxu0 0.0
        %944 = vmatprep.subr.mxu0 0.0
        %945 = vmatpush1.msra.mxu0 0.0
        %946 = vmatprep.subr.mxu0 0.0
        %947 = vmatpush1.msra.mxu0 0.0
        %948 = vmatprep.subr.mxu0 0.0
        %949 = vmatpush1.msra.mxu0 0.0
        %950 = vmatprep.subr.mxu0 0.0
        %951 = vmatpush1.msra.mxu0 0.0
        %952 = vmatprep.subr.mxu0 0.0
        %953 = vmatpush1.msra.mxu0 0.0
        %954 = vmatprep.subr.mxu0 0.0
        %955 = vmatpush1.msra.mxu0 0.0
        %956 = vmatprep.subr.mxu0 0.0
        %957 = vmatpush1.msra.mxu0 0.0
        %958 = vmatprep.subr.mxu0 0.0
        %959 = vmatpush1.msra.mxu0 0.0
        %960 = vmatprep.subr.mxu0 0.0
        %961 = vmatpush1.msra.mxu0 0.0
        %962 = vmatprep.subr.mxu0 0.0
        %963 = vmatpush1.msra.mxu0 0.0
        %964 = vmatprep.subr.mxu0 0.0
        %965 = vmatpush1.msra.mxu0 0.0
        %966 = vmatprep.subr.mxu0 0.0
        %967 = vmatpush1.msra.mxu0 0.0
        %968 = vmatprep.subr.mxu0 0.0
        %969 = vmatpush1.msra.mxu0 0.0
        %970 = vmatprep.subr.mxu0 0.0
        %971 = vmatpush1.msra.mxu0 0.0
        %972 = vmatprep.subr.mxu0 0.0
        %973 = vmatpush1.msra.mxu0 0.0
        %974 = vmatprep.subr.mxu0 0.0
        %975 = vmatpush1.msra.mxu0 0.0
        %976 = vmatprep.subr.mxu0 0.0
        %977 = vmatpush1.msra.mxu0 0.0
        %978 = vmatprep.subr.mxu0 0.0
        %979 = vmatpush1.msra.mxu0 0.0
        %980 = vmatprep.subr.mxu0 0.0
        %981 = vmatpush1.msra.mxu0 0.0
        %982 = vmatprep.subr.mxu0 0.0
        %983 = vmatpush1.msra.mxu0 0.0
        %984 = vmatprep.subr.mxu0 0.0
        %985 = vmatpush1.msra.mxu0 0.0
        %986 = vmatprep.subr.mxu0 0.0
        %987 = vmatpush1.msra.mxu0 0.0
        %988 = vmatprep.subr.mxu0 0.0
        %989 = vmatpush1.msra.mxu0 0.0
        %990 = vmatprep.subr.mxu0 0.0
        %991 = vmatpush1.msra.mxu0 0.0
        %992 = vmatprep.subr.mxu0 0.0
        %993 = vmatpush1.msra.mxu0 0.0
        %994 = vmatprep.subr.mxu0 0.0
        %995 = vmatpush1.msra.mxu0 0.0
        %996 = vmatprep.subr.mxu0 0.0
        %997 = vmatpush1.msra.mxu0 0.0
        %998 = vmatprep.subr.mxu0 0.0
        %999 = vmatpush1.msra.mxu0 0.0
        %1000 = vmatprep.subr.mxu0 0.0
        %1001 = vmatpush1.msra.mxu0 0.0
        %1002 = vmatprep.mubr.f32.mxu0 0.0
        %v1003 = vand.u32 %v437, 4294901760
        %1004 = vmatmul.mubr.f32.gmra.mrb[0].mxu0 %v1003
        %v1005 = vpop.f32.mrb[0].mxu0
        %v1006 = vadd.f32 %v916, %v1005
        %v1007 = vpop.f32.mrb[0].mxu0
        %1008 = vmatprep.mubr.f32.mxu0 0.0
        %v1009 = vand.u32 %v440, 4294901760
        %1010 = vmatmul.mubr.f32.gmra.mrb[0].mxu0 %v1009
        %v1011 = vpop.f32.mrb[0].mxu0
        %v1012 = vadd.f32 %v922, %v1011
        %v1013 = vpop.f32.mrb[0].mxu0
        %1014 = vmatprep.mubr.f32.mxu0 0.0
        %v1015 = vand.u32 %v443, 4294901760
        %1016 = vmatmul.mubr.f32.gmra.mrb[0].mxu0 %v1015
        %v1017 = vpop.f32.mrb[0].mxu0
        %v1018 = vadd.f32 %v928, %v1017
        %v1019 = vpop.f32.mrb[0].mxu0
        %1020 = vmatprep.mubr.f32.mxu0 0.0
        %v1021 = vand.u32 %v446, 4294901760
        %1022 = vmatmul.mubr.f32.gmra.mrb[0].mxu0 %v1021
        %v1023 = vpop.f32.mrb[0].mxu0
        %v1024 = vadd.f32 %v934, %v1023
        %v1025 = vpop.f32.mrb[0].mxu0
        %1026 = vdwg.mxu0
        %v1028 = vlaneseq
        %v1029 = vshrl.u32 %v1028, 7
        %v1030 = vsub.s32 0, %v1029
        %v1031 = vrot.slane %v405, %v1030
        %v1033 = vmul.f32 %v1006, %v1031
        %v1034 = vmul.f32 %v1012, %v1031
        %v1035 = vmul.f32 %v1018, %v1031
        %v1036 = vmul.f32 %v1024, %v1031
        %1037 = vst.msk [vmem:[#allocation2] sm:$0xff] %vm435, 0.0
        %1038 = vst.msk [vmem:[#allocation2 + $0x8] sm:$0xff] %vm435, 0.0
        %1039 = vst.msk [vmem:[#allocation2 + $0x10] sm:$0xff] %vm435, 0.0
        %1040 = vst.msk [vmem:[#allocation2 + $0x18] sm:$0xff] %vm435, 0.0
        %vm1041 = vcmask 162960
        %1042 = vst.msk [vmem:[#allocation2] sm:$0xff] %vm1041, 0.0
        %1043 = vst.msk [vmem:[#allocation2 + $0x8] sm:$0xff] %vm1041, 0.0
        %1044 = vst.msk [vmem:[#allocation2 + $0x10] sm:$0xff] %vm1041, 0.0
        %1045 = vst.msk [vmem:[#allocation2 + $0x18] sm:$0xff] %vm1041, 0.0
        %1050 = vrot.lane.b32.xlu0 %v1033, 2
        %v1051 = vpop.permute.xlu0 %1050
        %1052 = vrot.lane.b32.xlu0 %v1034, 2
        %v1053 = vpop.permute.xlu0 %1052
        %1054 = vrot.lane.b32.xlu0 %v1035, 2
        %v1055 = vpop.permute.xlu0 %1054
        %1056 = vrot.lane.b32.xlu0 %v1036, 2
        %v1057 = vpop.permute.xlu0 %1056
        %vm1062 = vcmask 146448
        %1063 = vst.msk [vmem:[#allocation2] sm:$0xff] %vm1062, %v1051
        %1064 = vst.msk [vmem:[#allocation2 + $0x8] sm:$0xff] %vm1062, %v1053
        %1065 = vst.msk [vmem:[#allocation2 + $0x10] sm:$0xff] %vm1062, %v1055
        %1066 = vst.msk [vmem:[#allocation2 + $0x18] sm:$0xff] %vm1062, %v1057
        %v1067 = vld [vmem:[#allocation2] sm:$0xff]
        %v1068 = vld [vmem:[#allocation2 + $0x8] sm:$0xff]
        %v1069 = vld [vmem:[#allocation2 + $0x10] sm:$0xff]
        %v1070 = vld [vmem:[#allocation2 + $0x18] sm:$0xff]
        %v1071 = vld [vmem:[%s4] sm:$0xff]
        %v1072 = vld [vmem:[%s4 + $0x8] sm:$0xff]
        %v1073 = vld [vmem:[%s4 + $0x10] sm:$0xff]
        %v1074 = vld [vmem:[%s4 + $0x18] sm:$0xff]
        %v1075 = vld [vmem:[%s4 + $0x20] sm:$0xff]
        %v1076 = vld [vmem:[%s4 + $0x28] sm:$0xff]
        %v1077 = vld [vmem:[%s4 + $0x30] sm:$0xff]
        %v1078 = vld [vmem:[%s4 + $0x38] sm:$0xff]
        %s1079 = scalar_lea.vmem %s4, 64
        %v1080 = vld [vmem:[%s1079] sm:$0xff]
        %v1081 = vld [vmem:[%s1079 + $0x8] sm:$0xff]
        %v1082 = vld [vmem:[%s1079 + $0x10] sm:$0xff]
        %v1083 = vld [vmem:[%s1079 + $0x18] sm:$0xff]
        %v1084 = vld [vmem:[%s1079 + $0x20] sm:$0xff]
        %v1085 = vld [vmem:[%s1079 + $0x28] sm:$0xff]
        %v1086 = vld [vmem:[%s1079 + $0x30] sm:$0xff]
        %v1087 = vld [vmem:[%s1079 + $0x38] sm:$0xff]
        %vm1088 = vcmask 261120
        %v1090 = vsel %vm1088, %v1080, 0
        %v1093 = vsel %vm1088, %v1081, 0
        %v1096 = vsel %vm1088, %v1082, 0
        %v1099 = vsel %vm1088, %v1083, 0
        %v1102 = vsel %vm1088, %v1084, 0
        %v1105 = vsel %vm1088, %v1085, 0
        %v1108 = vsel %vm1088, %v1086, 0
        %v1111 = vsel %vm1088, %v1087, 0
        %1113 = vmatprep.subr.mxu0 0.0
        %v1114 = vand.u32 %v1033, 4294901760
        %1115 = vmatpush1.msra.mxu0 %v1114
        %1116 = vmatprep.subr.mxu0 0.0
        %v1117 = vand.u32 %v1034, 4294901760
        %1118 = vmatpush1.msra.mxu0 %v1117
        %1119 = vmatprep.subr.mxu0 0.0
        %v1120 = vand.u32 %v1035, 4294901760
        %1121 = vmatpush1.msra.mxu0 %v1120
        %1122 = vmatprep.subr.mxu0 0.0
        %v1123 = vand.u32 %v1036, 4294901760
        %1124 = vmatpush1.msra.mxu0 %v1123
        %1125 = vmatprep.subr.mxu0 0.0
        %1126 = vmatpush1.msra.mxu0 0.0
        %1127 = vmatprep.subr.mxu0 0.0
        %1128 = vmatpush1.msra.mxu0 0.0
        %1129 = vmatprep.subr.mxu0 0.0
        %1130 = vmatpush1.msra.mxu0 0.0
        %1131 = vmatprep.subr.mxu0 0.0
        %1132 = vmatpush1.msra.mxu0 0.0
        %1133 = vmatprep.subr.mxu0 0.0
        %1134 = vmatpush1.msra.mxu0 0.0
        %1135 = vmatprep.subr.mxu0 0.0
        %1136 = vmatpush1.msra.mxu0 0.0
        %1137 = vmatprep.subr.mxu0 0.0
        %1138 = vmatpush1.msra.mxu0 0.0
        %1139 = vmatprep.subr.mxu0 0.0
        %1140 = vmatpush1.msra.mxu0 0.0
        %1141 = vmatprep.subr.mxu0 0.0
        %1142 = vmatpush1.msra.mxu0 0.0
        %1143 = vmatprep.subr.mxu0 0.0
        %1144 = vmatpush1.msra.mxu0 0.0
        %1145 = vmatprep.subr.mxu0 0.0
        %1146 = vmatpush1.msra.mxu0 0.0
        %1147 = vmatprep.subr.mxu0 0.0
        %1148 = vmatpush1.msra.mxu0 0.0
        %1149 = vmatprep.subr.mxu0 0.0
        %1150 = vmatpush1.msra.mxu0 0.0
        %1151 = vmatprep.subr.mxu0 0.0
        %1152 = vmatpush1.msra.mxu0 0.0
        %1153 = vmatprep.subr.mxu0 0.0
        %1154 = vmatpush1.msra.mxu0 0.0
        %1155 = vmatprep.subr.mxu0 0.0
        %1156 = vmatpush1.msra.mxu0 0.0
        %1157 = vmatprep.subr.mxu0 0.0
        %1158 = vmatpush1.msra.mxu0 0.0
        %1159 = vmatprep.subr.mxu0 0.0
        %1160 = vmatpush1.msra.mxu0 0.0
        %1161 = vmatprep.subr.mxu0 0.0
        %1162 = vmatpush1.msra.mxu0 0.0
        %1163 = vmatprep.subr.mxu0 0.0
        %1164 = vmatpush1.msra.mxu0 0.0
        %1165 = vmatprep.subr.mxu0 0.0
        %1166 = vmatpush1.msra.mxu0 0.0
        %1167 = vmatprep.subr.mxu0 0.0
        %1168 = vmatpush1.msra.mxu0 0.0
        %1169 = vmatprep.subr.mxu0 0.0
        %1170 = vmatpush1.msra.mxu0 0.0
        %1171 = vmatprep.subr.mxu0 0.0
        %1172 = vmatpush1.msra.mxu0 0.0
        %1173 = vmatprep.subr.mxu0 0.0
        %1174 = vmatpush1.msra.mxu0 0.0
        %1175 = vmatprep.subr.mxu0 0.0
        %1176 = vmatpush1.msra.mxu0 0.0
        %1177 = vmatprep.subr.mxu0 0.0
        %1178 = vmatpush1.msra.mxu0 0.0
        %1179 = vmatprep.subr.mxu0 0.0
        %1180 = vmatpush1.msra.mxu0 0.0
        %1181 = vmatprep.mubr.f32.mxu0 0.0
        %v1182 = vand.u32 %v1090, 4294901760
        %v1183 = vsub.f32 %v1090, %v1182
        %v1184 = vand.u32 %v1183, 4294901760
        %v1185 = vsub.f32 %v1183, %v1184
        %v1186 = vand.u32 %v1185, 4294901760
        %1187 = vmatmul.mubr.f32.gmra.mrb[0].mxu0 %v1186
        %v1188 = vpop.f32.mrb[0].mxu0
        %v1189 = vadd.f32 0.0, %v1188
        %v1190 = vpop.f32.mrb[0].mxu0
        %1191 = vmatprep.mubr.f32.mxu0 0.0
        %v1192 = vand.u32 %v1093, 4294901760
        %v1193 = vsub.f32 %v1093, %v1192
        %v1194 = vand.u32 %v1193, 4294901760
        %v1195 = vsub.f32 %v1193, %v1194
        %v1196 = vand.u32 %v1195, 4294901760
        %1197 = vmatmul.mubr.f32.gmra.mrb[0].mxu0 %v1196
        %v1198 = vpop.f32.mrb[0].mxu0
        %v1199 = vadd.f32 0.0, %v1198
        %v1200 = vpop.f32.mrb[0].mxu0
        %1201 = vmatprep.mubr.f32.mxu0 0.0
        %v1202 = vand.u32 %v1096, 4294901760
        %v1203 = vsub.f32 %v1096, %v1202
        %v1204 = vand.u32 %v1203, 4294901760
        %v1205 = vsub.f32 %v1203, %v1204
        %v1206 = vand.u32 %v1205, 4294901760
        %1207 = vmatmul.mubr.f32.gmra.mrb[0].mxu0 %v1206
        %v1208 = vpop.f32.mrb[0].mxu0
        %v1209 = vadd.f32 0.0, %v1208
        %v1210 = vpop.f32.mrb[0].mxu0
        %1211 = vmatprep.mubr.f32.mxu0 0.0
        %v1212 = vand.u32 %v1099, 4294901760
        %v1213 = vsub.f32 %v1099, %v1212
        %v1214 = vand.u32 %v1213, 4294901760
        %v1215 = vsub.f32 %v1213, %v1214
        %v1216 = vand.u32 %v1215, 4294901760
        %1217 = vmatmul.mubr.f32.gmra.mrb[0].mxu0 %v1216
        %v1218 = vpop.f32.mrb[0].mxu0
        %v1219 = vadd.f32 0.0, %v1218
        %v1220 = vpop.f32.mrb[0].mxu0
        %1221 = vmatprep.mubr.f32.mxu0 0.0
        %v1222 = vand.u32 %v1102, 4294901760
        %v1223 = vsub.f32 %v1102, %v1222
        %v1224 = vand.u32 %v1223, 4294901760
        %v1225 = vsub.f32 %v1223, %v1224
        %v1226 = vand.u32 %v1225, 4294901760
        %1227 = vmatmul.mubr.f32.gmra.mrb[0].mxu0 %v1226
        %v1228 = vpop.f32.mrb[0].mxu0
        %v1229 = vadd.f32 0.0, %v1228
        %v1230 = vpop.f32.mrb[0].mxu0
        %1231 = vmatprep.mubr.f32.mxu0 0.0
        %v1232 = vand.u32 %v1105, 4294901760
        %v1233 = vsub.f32 %v1105, %v1232
        %v1234 = vand.u32 %v1233, 4294901760
        %v1235 = vsub.f32 %v1233, %v1234
        %v1236 = vand.u32 %v1235, 4294901760
        %1237 = vmatmul.mubr.f32.gmra.mrb[0].mxu0 %v1236
        %v1238 = vpop.f32.mrb[0].mxu0
        %v1239 = vadd.f32 0.0, %v1238
        %v1240 = vpop.f32.mrb[0].mxu0
        %1241 = vmatprep.mubr.f32.mxu0 0.0
        %v1242 = vand.u32 %v1108, 4294901760
        %v1243 = vsub.f32 %v1108, %v1242
        %v1244 = vand.u32 %v1243, 4294901760
        %v1245 = vsub.f32 %v1243, %v1244
        %v1246 = vand.u32 %v1245, 4294901760
        %1247 = vmatmul.mubr.f32.gmra.mrb[0].mxu0 %v1246
        %v1248 = vpop.f32.mrb[0].mxu0
        %v1249 = vadd.f32 0.0, %v1248
        %v1250 = vpop.f32.mrb[0].mxu0
        %1251 = vmatprep.mubr.f32.mxu0 0.0
        %v1252 = vand.u32 %v1111, 4294901760
        %v1253 = vsub.f32 %v1111, %v1252
        %v1254 = vand.u32 %v1253, 4294901760
        %v1255 = vsub.f32 %v1253, %v1254
        %v1256 = vand.u32 %v1255, 4294901760
        %1257 = vmatmul.mubr.f32.gmra.mrb[0].mxu0 %v1256
        %v1258 = vpop.f32.mrb[0].mxu0
        %v1259 = vadd.f32 0.0, %v1258
        %v1260 = vpop.f32.mrb[0].mxu0
        %1261 = vdwg.mxu0
        %1262 = vmatprep.subr.mxu0 0.0
        %v1263 = vand.u32 %v1033, 4294901760
        %v1264 = vsub.f32 %v1033, %v1263
        %v1265 = vand.u32 %v1264, 4294901760
        %v1266 = vsub.f32 %v1264, %v1265
        %v1267 = vand.u32 %v1266, 4294901760
        %1268 = vmatpush1.msra.mxu0 %v1267
        %1269 = vmatprep.subr.mxu0 0.0
        %v1270 = vand.u32 %v1034, 4294901760
        %v1271 = vsub.f32 %v1034, %v1270
        %v1272 = vand.u32 %v1271, 4294901760
        %v1273 = vsub.f32 %v1271, %v1272
        %v1274 = vand.u32 %v1273, 4294901760
        %1275 = vmatpush1.msra.mxu0 %v1274
        %1276 = vmatprep.subr.mxu0 0.0
        %v1277 = vand.u32 %v1035, 4294901760
        %v1278 = vsub.f32 %v1035, %v1277
        %v1279 = vand.u32 %v1278, 4294901760
        %v1280 = vsub.f32 %v1278, %v1279
        %v1281 = vand.u32 %v1280, 4294901760
        %1282 = vmatpush1.msra.mxu0 %v1281
        %1283 = vmatprep.subr.mxu0 0.0
        %v1284 = vand.u32 %v1036, 4294901760
        %v1285 = vsub.f32 %v1036, %v1284
        %v1286 = vand.u32 %v1285, 4294901760
        %v1287 = vsub.f32 %v1285, %v1286
        %v1288 = vand.u32 %v1287, 4294901760
        %1289 = vmatpush1.msra.mxu0 %v1288
        %1290 = vmatprep.subr.mxu0 0.0
        %1291 = vmatpush1.msra.mxu0 0.0
        %1292 = vmatprep.subr.mxu0 0.0
        %1293 = vmatpush1.msra.mxu0 0.0
        %1294 = vmatprep.subr.mxu0 0.0
        %1295 = vmatpush1.msra.mxu0 0.0
        %1296 = vmatprep.subr.mxu0 0.0
        %1297 = vmatpush1.msra.mxu0 0.0
        %1298 = vmatprep.subr.mxu0 0.0
        %1299 = vmatpush1.msra.mxu0 0.0
        %1300 = vmatprep.subr.mxu0 0.0
        %1301 = vmatpush1.msra.mxu0 0.0
        %1302 = vmatprep.subr.mxu0 0.0
        %1303 = vmatpush1.msra.mxu0 0.0
        %1304 = vmatprep.subr.mxu0 0.0
        %1305 = vmatpush1.msra.mxu0 0.0
        %1306 = vmatprep.subr.mxu0 0.0
        %1307 = vmatpush1.msra.mxu0 0.0
        %1308 = vmatprep.subr.mxu0 0.0
        %1309 = vmatpush1.msra.mxu0 0.0
        %1310 = vmatprep.subr.mxu0 0.0
        %1311 = vmatpush1.msra.mxu0 0.0
        %1312 = vmatprep.subr.mxu0 0.0
        %1313 = vmatpush1.msra.mxu0 0.0
        %1314 = vmatprep.subr.mxu0 0.0
        %1315 = vmatpush1.msra.mxu0 0.0
        %1316 = vmatprep.subr.mxu0 0.0
        %1317 = vmatpush1.msra.mxu0 0.0
        %1318 = vmatprep.subr.mxu0 0.0
        %1319 = vmatpush1.msra.mxu0 0.0
        %1320 = vmatprep.subr.mxu0 0.0
        %1321 = vmatpush1.msra.mxu0 0.0
        %1322 = vmatprep.subr.mxu0 0.0
        %1323 = vmatpush1.msra.mxu0 0.0
        %1324 = vmatprep.subr.mxu0 0.0
        %1325 = vmatpush1.msra.mxu0 0.0
        %1326 = vmatprep.subr.mxu0 0.0
        %1327 = vmatpush1.msra.mxu0 0.0
        %1328 = vmatprep.subr.mxu0 0.0
        %1329 = vmatpush1.msra.mxu0 0.0
        %1330 = vmatprep.subr.mxu0 0.0
        %1331 = vmatpush1.msra.mxu0 0.0
        %1332 = vmatprep.subr.mxu0 0.0
        %1333 = vmatpush1.msra.mxu0 0.0
        %1334 = vmatprep.subr.mxu0 0.0
        %1335 = vmatpush1.msra.mxu0 0.0
        %1336 = vmatprep.subr.mxu0 0.0
        %1337 = vmatpush1.msra.mxu0 0.0
        %1338 = vmatprep.subr.mxu0 0.0
        %1339 = vmatpush1.msra.mxu0 0.0
        %1340 = vmatprep.subr.mxu0 0.0
        %1341 = vmatpush1.msra.mxu0 0.0
        %1342 = vmatprep.subr.mxu0 0.0
        %1343 = vmatpush1.msra.mxu0 0.0
        %1344 = vmatprep.subr.mxu0 0.0
        %1345 = vmatpush1.msra.mxu0 0.0
        %1346 = vmatprep.mubr.f32.mxu0 0.0
        %v1347 = vand.u32 %v1090, 4294901760
        %1348 = vmatmul.mubr.f32.gmra.mrb[0].mxu0 %v1347
        %v1349 = vpop.f32.mrb[0].mxu0
        %v1350 = vadd.f32 %v1189, %v1349
        %v1351 = vpop.f32.mrb[0].mxu0
        %1352 = vmatprep.mubr.f32.mxu0 0.0
        %v1353 = vand.u32 %v1093, 4294901760
        %1354 = vmatmul.mubr.f32.gmra.mrb[0].mxu0 %v1353
        %v1355 = vpop.f32.mrb[0].mxu0
        %v1356 = vadd.f32 %v1199, %v1355
        %v1357 = vpop.f32.mrb[0].mxu0
        %1358 = vmatprep.mubr.f32.mxu0 0.0
        %v1359 = vand.u32 %v1096, 4294901760
        %1360 = vmatmul.mubr.f32.gmra.mrb[0].mxu0 %v1359
        %v1361 = vpop.f32.mrb[0].mxu0
        %v1362 = vadd.f32 %v1209, %v1361
        %v1363 = vpop.f32.mrb[0].mxu0
        %1364 = vmatprep.mubr.f32.mxu0 0.0
        %v1365 = vand.u32 %v1099, 4294901760
        %1366 = vmatmul.mubr.f32.gmra.mrb[0].mxu0 %v1365
        %v1367 = vpop.f32.mrb[0].mxu0
        %v1368 = vadd.f32 %v1219, %v1367
        %v1369 = vpop.f32.mrb[0].mxu0
        %1370 = vmatprep.mubr.f32.mxu0 0.0
        %v1371 = vand.u32 %v1102, 4294901760
        %1372 = vmatmul.mubr.f32.gmra.mrb[0].mxu0 %v1371
        %v1373 = vpop.f32.mrb[0].mxu0
        %v1374 = vadd.f32 %v1229, %v1373
        %v1375 = vpop.f32.mrb[0].mxu0
        %1376 = vmatprep.mubr.f32.mxu0 0.0
        %v1377 = vand.u32 %v1105, 4294901760
        %1378 = vmatmul.mubr.f32.gmra.mrb[0].mxu0 %v1377
        %v1379 = vpop.f32.mrb[0].mxu0
        %v1380 = vadd.f32 %v1239, %v1379
        %v1381 = vpop.f32.mrb[0].mxu0
        %1382 = vmatprep.mubr.f32.mxu0 0.0
        %v1383 = vand.u32 %v1108, 4294901760
        %1384 = vmatmul.mubr.f32.gmra.mrb[0].mxu0 %v1383
        %v1385 = vpop.f32.mrb[0].mxu0
        %v1386 = vadd.f32 %v1249, %v1385
        %v1387 = vpop.f32.mrb[0].mxu0
        %1388 = vmatprep.mubr.f32.mxu0 0.0
        %v1389 = vand.u32 %v1111, 4294901760
        %1390 = vmatmul.mubr.f32.gmra.mrb[0].mxu0 %v1389
        %v1391 = vpop.f32.mrb[0].mxu0
        %v1392 = vadd.f32 %v1259, %v1391
        %v1393 = vpop.f32.mrb[0].mxu0
        %1394 = vdwg.mxu0
        %1395 = vmatprep.subr.mxu0 0.0
        %v1396 = vand.u32 %v1033, 4294901760
        %v1397 = vsub.f32 %v1033, %v1396
        %1398 = vmatpush1.msra.mxu0 %v1397
        %1399 = vmatprep.subr.mxu0 0.0
        %v1400 = vand.u32 %v1034, 4294901760
        %v1401 = vsub.f32 %v1034, %v1400
        %1402 = vmatpush1.msra.mxu0 %v1401
        %1403 = vmatprep.subr.mxu0 0.0
        %v1404 = vand.u32 %v1035, 4294901760
        %v1405 = vsub.f32 %v1035, %v1404
        %1406 = vmatpush1.msra.mxu0 %v1405
        %1407 = vmatprep.subr.mxu0 0.0
        %v1408 = vand.u32 %v1036, 4294901760
        %v1409 = vsub.f32 %v1036, %v1408
        %1410 = vmatpush1.msra.mxu0 %v1409
        %1411 = vmatprep.subr.mxu0 0.0
        %1412 = vmatpush1.msra.mxu0 0.0
        %1413 = vmatprep.subr.mxu0 0.0
        %1414 = vmatpush1.msra.mxu0 0.0
        %1415 = vmatprep.subr.mxu0 0.0
        %1416 = vmatpush1.msra.mxu0 0.0
        %1417 = vmatprep.subr.mxu0 0.0
        %1418 = vmatpush1.msra.mxu0 0.0
        %1419 = vmatprep.subr.mxu0 0.0
        %1420 = vmatpush1.msra.mxu0 0.0
        %1421 = vmatprep.subr.mxu0 0.0
        %1422 = vmatpush1.msra.mxu0 0.0
        %1423 = vmatprep.subr.mxu0 0.0
        %1424 = vmatpush1.msra.mxu0 0.0
        %1425 = vmatprep.subr.mxu0 0.0
        %1426 = vmatpush1.msra.mxu0 0.0
        %1427 = vmatprep.subr.mxu0 0.0
        %1428 = vmatpush1.msra.mxu0 0.0
        %1429 = vmatprep.subr.mxu0 0.0
        %1430 = vmatpush1.msra.mxu0 0.0
        %1431 = vmatprep.subr.mxu0 0.0
        %1432 = vmatpush1.msra.mxu0 0.0
        %1433 = vmatprep.subr.mxu0 0.0
        %1434 = vmatpush1.msra.mxu0 0.0
        %1435 = vmatprep.subr.mxu0 0.0
        %1436 = vmatpush1.msra.mxu0 0.0
        %1437 = vmatprep.subr.mxu0 0.0
        %1438 = vmatpush1.msra.mxu0 0.0
        %1439 = vmatprep.subr.mxu0 0.0
        %1440 = vmatpush1.msra.mxu0 0.0
        %1441 = vmatprep.subr.mxu0 0.0
        %1442 = vmatpush1.msra.mxu0 0.0
        %1443 = vmatprep.subr.mxu0 0.0
        %1444 = vmatpush1.msra.mxu0 0.0
        %1445 = vmatprep.subr.mxu0 0.0
        %1446 = vmatpush1.msra.mxu0 0.0
        %1447 = vmatprep.subr.mxu0 0.0
        %1448 = vmatpush1.msra.mxu0 0.0
        %1449 = vmatprep.subr.mxu0 0.0
        %1450 = vmatpush1.msra.mxu0 0.0
        %1451 = vmatprep.subr.mxu0 0.0
        %1452 = vmatpush1.msra.mxu0 0.0
        %1453 = vmatprep.subr.mxu0 0.0
        %1454 = vmatpush1.msra.mxu0 0.0
        %1455 = vmatprep.subr.mxu0 0.0
        %1456 = vmatpush1.msra.mxu0 0.0
        %1457 = vmatprep.subr.mxu0 0.0
        %1458 = vmatpush1.msra.mxu0 0.0
        %1459 = vmatprep.subr.mxu0 0.0
        %1460 = vmatpush1.msra.mxu0 0.0
        %1461 = vmatprep.subr.mxu0 0.0
        %1462 = vmatpush1.msra.mxu0 0.0
        %1463 = vmatprep.subr.mxu0 0.0
        %1464 = vmatpush1.msra.mxu0 0.0
        %1465 = vmatprep.subr.mxu0 0.0
        %1466 = vmatpush1.msra.mxu0 0.0
        %1467 = vmatprep.mubr.f32.mxu0 0.0
        %v1468 = vand.u32 %v1090, 4294901760
        %v1469 = vsub.f32 %v1090, %v1468
        %1470 = vmatmul.mubr.f32.gmra.mrb[0].mxu0 %v1469
        %v1471 = vpop.f32.mrb[0].mxu0
        %v1472 = vadd.f32 %v1350, %v1471
        %v1473 = vpop.f32.mrb[0].mxu0
        %1474 = vmatprep.mubr.f32.mxu0 0.0
        %v1475 = vand.u32 %v1093, 4294901760
        %v1476 = vsub.f32 %v1093, %v1475
        %1477 = vmatmul.mubr.f32.gmra.mrb[0].mxu0 %v1476
        %v1478 = vpop.f32.mrb[0].mxu0
        %v1479 = vadd.f32 %v1356, %v1478
        %v1480 = vpop.f32.mrb[0].mxu0
        %1481 = vmatprep.mubr.f32.mxu0 0.0
        %v1482 = vand.u32 %v1096, 4294901760
        %v1483 = vsub.f32 %v1096, %v1482
        %1484 = vmatmul.mubr.f32.gmra.mrb[0].mxu0 %v1483
        %v1485 = vpop.f32.mrb[0].mxu0
        %v1486 = vadd.f32 %v1362, %v1485
        %v1487 = vpop.f32.mrb[0].mxu0
        %1488 = vmatprep.mubr.f32.mxu0 0.0
        %v1489 = vand.u32 %v1099, 4294901760
        %v1490 = vsub.f32 %v1099, %v1489
        %1491 = vmatmul.mubr.f32.gmra.mrb[0].mxu0 %v1490
        %v1492 = vpop.f32.mrb[0].mxu0
        %v1493 = vadd.f32 %v1368, %v1492
        %v1494 = vpop.f32.mrb[0].mxu0
        %1495 = vmatprep.mubr.f32.mxu0 0.0
        %v1496 = vand.u32 %v1102, 4294901760
        %v1497 = vsub.f32 %v1102, %v1496
        %1498 = vmatmul.mubr.f32.gmra.mrb[0].mxu0 %v1497
        %v1499 = vpop.f32.mrb[0].mxu0
        %v1500 = vadd.f32 %v1374, %v1499
        %v1501 = vpop.f32.mrb[0].mxu0
        %1502 = vmatprep.mubr.f32.mxu0 0.0
        %v1503 = vand.u32 %v1105, 4294901760
        %v1504 = vsub.f32 %v1105, %v1503
        %1505 = vmatmul.mubr.f32.gmra.mrb[0].mxu0 %v1504
        %v1506 = vpop.f32.mrb[0].mxu0
        %v1507 = vadd.f32 %v1380, %v1506
        %v1508 = vpop.f32.mrb[0].mxu0
        %1509 = vmatprep.mubr.f32.mxu0 0.0
        %v1510 = vand.u32 %v1108, 4294901760
        %v1511 = vsub.f32 %v1108, %v1510
        %1512 = vmatmul.mubr.f32.gmra.mrb[0].mxu0 %v1511
        %v1513 = vpop.f32.mrb[0].mxu0
        %v1514 = vadd.f32 %v1386, %v1513
        %v1515 = vpop.f32.mrb[0].mxu0
        %1516 = vmatprep.mubr.f32.mxu0 0.0
        %v1517 = vand.u32 %v1111, 4294901760
        %v1518 = vsub.f32 %v1111, %v1517
        %1519 = vmatmul.mubr.f32.gmra.mrb[0].mxu0 %v1518
        %v1520 = vpop.f32.mrb[0].mxu0
        %v1521 = vadd.f32 %v1392, %v1520
        %v1522 = vpop.f32.mrb[0].mxu0
        %1523 = vdwg.mxu0
        %1524 = vmatprep.subr.mxu0 0.0
        %v1525 = vand.u32 %v1033, 4294901760
        %1526 = vmatpush1.msra.mxu0 %v1525
        %1527 = vmatprep.subr.mxu0 0.0
        %v1528 = vand.u32 %v1034, 4294901760
        %1529 = vmatpush1.msra.mxu0 %v1528
        %1530 = vmatprep.subr.mxu0 0.0
        %v1531 = vand.u32 %v1035, 4294901760
        %1532 = vmatpush1.msra.mxu0 %v1531
        %1533 = vmatprep.subr.mxu0 0.0
        %v1534 = vand.u32 %v1036, 4294901760
        %1535 = vmatpush1.msra.mxu0 %v1534
        %1536 = vmatprep.subr.mxu0 0.0
        %1537 = vmatpush1.msra.mxu0 0.0
        %1538 = vmatprep.subr.mxu0 0.0
        %1539 = vmatpush1.msra.mxu0 0.0
        %1540 = vmatprep.subr.mxu0 0.0
        %1541 = vmatpush1.msra.mxu0 0.0
        %1542 = vmatprep.subr.mxu0 0.0
        %1543 = vmatpush1.msra.mxu0 0.0
        %1544 = vmatprep.subr.mxu0 0.0
        %1545 = vmatpush1.msra.mxu0 0.0
        %1546 = vmatprep.subr.mxu0 0.0
        %1547 = vmatpush1.msra.mxu0 0.0
        %1548 = vmatprep.subr.mxu0 0.0
        %1549 = vmatpush1.msra.mxu0 0.0
        %1550 = vmatprep.subr.mxu0 0.0
        %1551 = vmatpush1.msra.mxu0 0.0
        %1552 = vmatprep.subr.mxu0 0.0
        %1553 = vmatpush1.msra.mxu0 0.0
        %1554 = vmatprep.subr.mxu0 0.0
        %1555 = vmatpush1.msra.mxu0 0.0
        %1556 = vmatprep.subr.mxu0 0.0
        %1557 = vmatpush1.msra.mxu0 0.0
        %1558 = vmatprep.subr.mxu0 0.0
        %1559 = vmatpush1.msra.mxu0 0.0
        %1560 = vmatprep.subr.mxu0 0.0
        %1561 = vmatpush1.msra.mxu0 0.0
        %1562 = vmatprep.subr.mxu0 0.0
        %1563 = vmatpush1.msra.mxu0 0.0
        %1564 = vmatprep.subr.mxu0 0.0
        %1565 = vmatpush1.msra.mxu0 0.0
        %1566 = vmatprep.subr.mxu0 0.0
        %1567 = vmatpush1.msra.mxu0 0.0
        %1568 = vmatprep.subr.mxu0 0.0
        %1569 = vmatpush1.msra.mxu0 0.0
        %1570 = vmatprep.subr.mxu0 0.0
        %1571 = vmatpush1.msra.mxu0 0.0
        %1572 = vmatprep.subr.mxu0 0.0
        %1573 = vmatpush1.msra.mxu0 0.0
        %1574 = vmatprep.subr.mxu0 0.0
        %1575 = vmatpush1.msra.mxu0 0.0
        %1576 = vmatprep.subr.mxu0 0.0
        %1577 = vmatpush1.msra.mxu0 0.0
        %1578 = vmatprep.subr.mxu0 0.0
        %1579 = vmatpush1.msra.mxu0 0.0
        %1580 = vmatprep.subr.mxu0 0.0
        %1581 = vmatpush1.msra.mxu0 0.0
        %1582 = vmatprep.subr.mxu0 0.0
        %1583 = vmatpush1.msra.mxu0 0.0
        %1584 = vmatprep.subr.mxu0 0.0
        %1585 = vmatpush1.msra.mxu0 0.0
        %1586 = vmatprep.subr.mxu0 0.0
        %1587 = vmatpush1.msra.mxu0 0.0
        %1588 = vmatprep.subr.mxu0 0.0
        %1589 = vmatpush1.msra.mxu0 0.0
        %1590 = vmatprep.subr.mxu0 0.0
        %1591 = vmatpush1.msra.mxu0 0.0
        %1592 = vmatprep.mubr.f32.mxu0 0.0
        %v1593 = vand.u32 %v1090, 4294901760
        %v1594 = vsub.f32 %v1090, %v1593
        %v1595 = vand.u32 %v1594, 4294901760
        %1596 = vmatmul.mubr.f32.gmra.mrb[0].mxu0 %v1595
        %v1597 = vpop.f32.mrb[0].mxu0
        %v1598 = vadd.f32 %v1472, %v1597
        %v1599 = vpop.f32.mrb[0].mxu0
        %1600 = vmatprep.mubr.f32.mxu0 0.0
        %v1601 = vand.u32 %v1093, 4294901760
        %v1602 = vsub.f32 %v1093, %v1601
        %v1603 = vand.u32 %v1602, 4294901760
        %1604 = vmatmul.mubr.f32.gmra.mrb[0].mxu0 %v1603
        %v1605 = vpop.f32.mrb[0].mxu0
        %v1606 = vadd.f32 %v1479, %v1605
        %v1607 = vpop.f32.mrb[0].mxu0
        %1608 = vmatprep.mubr.f32.mxu0 0.0
        %v1609 = vand.u32 %v1096, 4294901760
        %v1610 = vsub.f32 %v1096, %v1609
        %v1611 = vand.u32 %v1610, 4294901760
        %1612 = vmatmul.mubr.f32.gmra.mrb[0].mxu0 %v1611
        %v1613 = vpop.f32.mrb[0].mxu0
        %v1614 = vadd.f32 %v1486, %v1613
        %v1615 = vpop.f32.mrb[0].mxu0
        %1616 = vmatprep.mubr.f32.mxu0 0.0
        %v1617 = vand.u32 %v1099, 4294901760
        %v1618 = vsub.f32 %v1099, %v1617
        %v1619 = vand.u32 %v1618, 4294901760
        %1620 = vmatmul.mubr.f32.gmra.mrb[0].mxu0 %v1619
        %v1621 = vpop.f32.mrb[0].mxu0
        %v1622 = vadd.f32 %v1493, %v1621
        %v1623 = vpop.f32.mrb[0].mxu0
        %1624 = vmatprep.mubr.f32.mxu0 0.0
        %v1625 = vand.u32 %v1102, 4294901760
        %v1626 = vsub.f32 %v1102, %v1625
        %v1627 = vand.u32 %v1626, 4294901760
        %1628 = vmatmul.mubr.f32.gmra.mrb[0].mxu0 %v1627
        %v1629 = vpop.f32.mrb[0].mxu0
        %v1630 = vadd.f32 %v1500, %v1629
        %v1631 = vpop.f32.mrb[0].mxu0
        %1632 = vmatprep.mubr.f32.mxu0 0.0
        %v1633 = vand.u32 %v1105, 4294901760
        %v1634 = vsub.f32 %v1105, %v1633
        %v1635 = vand.u32 %v1634, 4294901760
        %1636 = vmatmul.mubr.f32.gmra.mrb[0].mxu0 %v1635
        %v1637 = vpop.f32.mrb[0].mxu0
        %v1638 = vadd.f32 %v1507, %v1637
        %v1639 = vpop.f32.mrb[0].mxu0
        %1640 = vmatprep.mubr.f32.mxu0 0.0
        %v1641 = vand.u32 %v1108, 4294901760
        %v1642 = vsub.f32 %v1108, %v1641
        %v1643 = vand.u32 %v1642, 4294901760
        %1644 = vmatmul.mubr.f32.gmra.mrb[0].mxu0 %v1643
        %v1645 = vpop.f32.mrb[0].mxu0
        %v1646 = vadd.f32 %v1514, %v1645
        %v1647 = vpop.f32.mrb[0].mxu0
        %1648 = vmatprep.mubr.f32.mxu0 0.0
        %v1649 = vand.u32 %v1111, 4294901760
        %v1650 = vsub.f32 %v1111, %v1649
        %v1651 = vand.u32 %v1650, 4294901760
        %1652 = vmatmul.mubr.f32.gmra.mrb[0].mxu0 %v1651
        %v1653 = vpop.f32.mrb[0].mxu0
        %v1654 = vadd.f32 %v1521, %v1653
        %v1655 = vpop.f32.mrb[0].mxu0
        %1656 = vdwg.mxu0
        %1657 = vmatprep.subr.mxu0 0.0
        %v1658 = vand.u32 %v1033, 4294901760
        %v1659 = vsub.f32 %v1033, %v1658
        %v1660 = vand.u32 %v1659, 4294901760
        %1661 = vmatpush1.msra.mxu0 %v1660
        %1662 = vmatprep.subr.mxu0 0.0
        %v1663 = vand.u32 %v1034, 4294901760
        %v1664 = vsub.f32 %v1034, %v1663
        %v1665 = vand.u32 %v1664, 4294901760
        %1666 = vmatpush1.msra.mxu0 %v1665
        %1667 = vmatprep.subr.mxu0 0.0
        %v1668 = vand.u32 %v1035, 4294901760
        %v1669 = vsub.f32 %v1035, %v1668
        %v1670 = vand.u32 %v1669, 4294901760
        %1671 = vmatpush1.msra.mxu0 %v1670
        %1672 = vmatprep.subr.mxu0 0.0
        %v1673 = vand.u32 %v1036, 4294901760
        %v1674 = vsub.f32 %v1036, %v1673
        %v1675 = vand.u32 %v1674, 4294901760
        %1676 = vmatpush1.msra.mxu0 %v1675
        %1677 = vmatprep.subr.mxu0 0.0
        %1678 = vmatpush1.msra.mxu0 0.0
        %1679 = vmatprep.subr.mxu0 0.0
        %1680 = vmatpush1.msra.mxu0 0.0
        %1681 = vmatprep.subr.mxu0 0.0
        %1682 = vmatpush1.msra.mxu0 0.0
        %1683 = vmatprep.subr.mxu0 0.0
        %1684 = vmatpush1.msra.mxu0 0.0
        %1685 = vmatprep.subr.mxu0 0.0
        %1686 = vmatpush1.msra.mxu0 0.0
        %1687 = vmatprep.subr.mxu0 0.0
        %1688 = vmatpush1.msra.mxu0 0.0
        %1689 = vmatprep.subr.mxu0 0.0
        %1690 = vmatpush1.msra.mxu0 0.0
        %1691 = vmatprep.subr.mxu0 0.0
        %1692 = vmatpush1.msra.mxu0 0.0
        %1693 = vmatprep.subr.mxu0 0.0
        %1694 = vmatpush1.msra.mxu0 0.0
        %1695 = vmatprep.subr.mxu0 0.0
        %1696 = vmatpush1.msra.mxu0 0.0
        %1697 = vmatprep.subr.mxu0 0.0
        %1698 = vmatpush1.msra.mxu0 0.0
        %1699 = vmatprep.subr.mxu0 0.0
        %1700 = vmatpush1.msra.mxu0 0.0
        %1701 = vmatprep.subr.mxu0 0.0
        %1702 = vmatpush1.msra.mxu0 0.0
        %1703 = vmatprep.subr.mxu0 0.0
        %1704 = vmatpush1.msra.mxu0 0.0
        %1705 = vmatprep.subr.mxu0 0.0
        %1706 = vmatpush1.msra.mxu0 0.0
        %1707 = vmatprep.subr.mxu0 0.0
        %1708 = vmatpush1.msra.mxu0 0.0
        %1709 = vmatprep.subr.mxu0 0.0
        %1710 = vmatpush1.msra.mxu0 0.0
        %1711 = vmatprep.subr.mxu0 0.0
        %1712 = vmatpush1.msra.mxu0 0.0
        %1713 = vmatprep.subr.mxu0 0.0
        %1714 = vmatpush1.msra.mxu0 0.0
        %1715 = vmatprep.subr.mxu0 0.0
        %1716 = vmatpush1.msra.mxu0 0.0
        %1717 = vmatprep.subr.mxu0 0.0
        %1718 = vmatpush1.msra.mxu0 0.0
        %1719 = vmatprep.subr.mxu0 0.0
        %1720 = vmatpush1.msra.mxu0 0.0
        %1721 = vmatprep.subr.mxu0 0.0
        %1722 = vmatpush1.msra.mxu0 0.0
        %1723 = vmatprep.subr.mxu0 0.0
        %1724 = vmatpush1.msra.mxu0 0.0
        %1725 = vmatprep.subr.mxu0 0.0
        %1726 = vmatpush1.msra.mxu0 0.0
        %1727 = vmatprep.subr.mxu0 0.0
        %1728 = vmatpush1.msra.mxu0 0.0
        %1729 = vmatprep.subr.mxu0 0.0
        %1730 = vmatpush1.msra.mxu0 0.0
        %1731 = vmatprep.subr.mxu0 0.0
        %1732 = vmatpush1.msra.mxu0 0.0
        %1733 = vmatprep.mubr.f32.mxu0 0.0
        %v1734 = vand.u32 %v1090, 4294901760
        %1735 = vmatmul.mubr.f32.gmra.mrb[0].mxu0 %v1734
        %v1736 = vpop.f32.mrb[0].mxu0
        %v1737 = vadd.f32 %v1598, %v1736
        %v1738 = vpop.f32.mrb[0].mxu0
        %1739 = vmatprep.mubr.f32.mxu0 0.0
        %v1740 = vand.u32 %v1093, 4294901760
        %1741 = vmatmul.mubr.f32.gmra.mrb[0].mxu0 %v1740
        %v1742 = vpop.f32.mrb[0].mxu0
        %v1743 = vadd.f32 %v1606, %v1742
        %v1744 = vpop.f32.mrb[0].mxu0
        %1745 = vmatprep.mubr.f32.mxu0 0.0
        %v1746 = vand.u32 %v1096, 4294901760
        %1747 = vmatmul.mubr.f32.gmra.mrb[0].mxu0 %v1746
        %v1748 = vpop.f32.mrb[0].mxu0
        %v1749 = vadd.f32 %v1614, %v1748
        %v1750 = vpop.f32.mrb[0].mxu0
        %1751 = vmatprep.mubr.f32.mxu0 0.0
        %v1752 = vand.u32 %v1099, 4294901760
        %1753 = vmatmul.mubr.f32.gmra.mrb[0].mxu0 %v1752
        %v1754 = vpop.f32.mrb[0].mxu0
        %v1755 = vadd.f32 %v1622, %v1754
        %v1756 = vpop.f32.mrb[0].mxu0
        %1757 = vmatprep.mubr.f32.mxu0 0.0
        %v1758 = vand.u32 %v1102, 4294901760
        %1759 = vmatmul.mubr.f32.gmra.mrb[0].mxu0 %v1758
        %v1760 = vpop.f32.mrb[0].mxu0
        %v1761 = vadd.f32 %v1630, %v1760
        %v1762 = vpop.f32.mrb[0].mxu0
        %1763 = vmatprep.mubr.f32.mxu0 0.0
        %v1764 = vand.u32 %v1105, 4294901760
        %1765 = vmatmul.mubr.f32.gmra.mrb[0].mxu0 %v1764
        %v1766 = vpop.f32.mrb[0].mxu0
        %v1767 = vadd.f32 %v1638, %v1766
        %v1768 = vpop.f32.mrb[0].mxu0
        %1769 = vmatprep.mubr.f32.mxu0 0.0
        %v1770 = vand.u32 %v1108, 4294901760
        %1771 = vmatmul.mubr.f32.gmra.mrb[0].mxu0 %v1770
        %v1772 = vpop.f32.mrb[0].mxu0
        %v1773 = vadd.f32 %v1646, %v1772
        %v1774 = vpop.f32.mrb[0].mxu0
        %1775 = vmatprep.mubr.f32.mxu0 0.0
        %v1776 = vand.u32 %v1111, 4294901760
        %1777 = vmatmul.mubr.f32.gmra.mrb[0].mxu0 %v1776
        %v1778 = vpop.f32.mrb[0].mxu0
        %v1779 = vadd.f32 %v1654, %v1778
        %v1780 = vpop.f32.mrb[0].mxu0
        %1781 = vdwg.mxu0
        %1782 = vmatprep.subr.mxu0 0.0
        %v1783 = vand.u32 %v1033, 4294901760
        %1784 = vmatpush1.msra.mxu0 %v1783
        %1785 = vmatprep.subr.mxu0 0.0
        %v1786 = vand.u32 %v1034, 4294901760
        %1787 = vmatpush1.msra.mxu0 %v1786
        %1788 = vmatprep.subr.mxu0 0.0
        %v1789 = vand.u32 %v1035, 4294901760
        %1790 = vmatpush1.msra.mxu0 %v1789
        %1791 = vmatprep.subr.mxu0 0.0
        %v1792 = vand.u32 %v1036, 4294901760
        %1793 = vmatpush1.msra.mxu0 %v1792
        %1794 = vmatprep.subr.mxu0 0.0
        %1795 = vmatpush1.msra.mxu0 0.0
        %1796 = vmatprep.subr.mxu0 0.0
        %1797 = vmatpush1.msra.mxu0 0.0
        %1798 = vmatprep.subr.mxu0 0.0
        %1799 = vmatpush1.msra.mxu0 0.0
        %1800 = vmatprep.subr.mxu0 0.0
        %1801 = vmatpush1.msra.mxu0 0.0
        %1802 = vmatprep.subr.mxu0 0.0
        %1803 = vmatpush1.msra.mxu0 0.0
        %1804 = vmatprep.subr.mxu0 0.0
        %1805 = vmatpush1.msra.mxu0 0.0
        %1806 = vmatprep.subr.mxu0 0.0
        %1807 = vmatpush1.msra.mxu0 0.0
        %1808 = vmatprep.subr.mxu0 0.0
        %1809 = vmatpush1.msra.mxu0 0.0
        %1810 = vmatprep.subr.mxu0 0.0
        %1811 = vmatpush1.msra.mxu0 0.0
        %1812 = vmatprep.subr.mxu0 0.0
        %1813 = vmatpush1.msra.mxu0 0.0
        %1814 = vmatprep.subr.mxu0 0.0
        %1815 = vmatpush1.msra.mxu0 0.0
        %1816 = vmatprep.subr.mxu0 0.0
        %1817 = vmatpush1.msra.mxu0 0.0
        %1818 = vmatprep.subr.mxu0 0.0
        %1819 = vmatpush1.msra.mxu0 0.0
        %1820 = vmatprep.subr.mxu0 0.0
        %1821 = vmatpush1.msra.mxu0 0.0
        %1822 = vmatprep.subr.mxu0 0.0
        %1823 = vmatpush1.msra.mxu0 0.0
        %1824 = vmatprep.subr.mxu0 0.0
        %1825 = vmatpush1.msra.mxu0 0.0
        %1826 = vmatprep.subr.mxu0 0.0
        %1827 = vmatpush1.msra.mxu0 0.0
        %1828 = vmatprep.subr.mxu0 0.0
        %1829 = vmatpush1.msra.mxu0 0.0
        %1830 = vmatprep.subr.mxu0 0.0
        %1831 = vmatpush1.msra.mxu0 0.0
        %1832 = vmatprep.subr.mxu0 0.0
        %1833 = vmatpush1.msra.mxu0 0.0
        %1834 = vmatprep.subr.mxu0 0.0
        %1835 = vmatpush1.msra.mxu0 0.0
        %1836 = vmatprep.subr.mxu0 0.0
        %1837 = vmatpush1.msra.mxu0 0.0
        %1838 = vmatprep.subr.mxu0 0.0
        %1839 = vmatpush1.msra.mxu0 0.0
        %1840 = vmatprep.subr.mxu0 0.0
        %1841 = vmatpush1.msra.mxu0 0.0
        %1842 = vmatprep.subr.mxu0 0.0
        %1843 = vmatpush1.msra.mxu0 0.0
        %1844 = vmatprep.subr.mxu0 0.0
        %1845 = vmatpush1.msra.mxu0 0.0
        %1846 = vmatprep.subr.mxu0 0.0
        %1847 = vmatpush1.msra.mxu0 0.0
        %1848 = vmatprep.subr.mxu0 0.0
        %1849 = vmatpush1.msra.mxu0 0.0
        %1850 = vmatprep.mubr.f32.mxu0 0.0
        %v1851 = vand.u32 %v1090, 4294901760
        %1852 = vmatmul.mubr.f32.gmra.mrb[0].mxu0 %v1851
        %v1853 = vpop.f32.mrb[0].mxu0
        %v1854 = vadd.f32 %v1737, %v1853
        %v1855 = vpop.f32.mrb[0].mxu0
        %1856 = vmatprep.mubr.f32.mxu0 0.0
        %v1857 = vand.u32 %v1093, 4294901760
        %1858 = vmatmul.mubr.f32.gmra.mrb[0].mxu0 %v1857
        %v1859 = vpop.f32.mrb[0].mxu0
        %v1860 = vadd.f32 %v1743, %v1859
        %v1861 = vpop.f32.mrb[0].mxu0
        %1862 = vmatprep.mubr.f32.mxu0 0.0
        %v1863 = vand.u32 %v1096, 4294901760
        %1864 = vmatmul.mubr.f32.gmra.mrb[0].mxu0 %v1863
        %v1865 = vpop.f32.mrb[0].mxu0
        %v1866 = vadd.f32 %v1749, %v1865
        %v1867 = vpop.f32.mrb[0].mxu0
        %1868 = vmatprep.mubr.f32.mxu0 0.0
        %v1869 = vand.u32 %v1099, 4294901760
        %1870 = vmatmul.mubr.f32.gmra.mrb[0].mxu0 %v1869
        %v1871 = vpop.f32.mrb[0].mxu0
        %v1872 = vadd.f32 %v1755, %v1871
        %v1873 = vpop.f32.mrb[0].mxu0
        %1874 = vmatprep.mubr.f32.mxu0 0.0
        %v1875 = vand.u32 %v1102, 4294901760
        %1876 = vmatmul.mubr.f32.gmra.mrb[0].mxu0 %v1875
        %v1877 = vpop.f32.mrb[0].mxu0
        %v1878 = vadd.f32 %v1761, %v1877
        %v1879 = vpop.f32.mrb[0].mxu0
        %1880 = vmatprep.mubr.f32.mxu0 0.0
        %v1881 = vand.u32 %v1105, 4294901760
        %1882 = vmatmul.mubr.f32.gmra.mrb[0].mxu0 %v1881
        %v1883 = vpop.f32.mrb[0].mxu0
        %v1884 = vadd.f32 %v1767, %v1883
        %v1885 = vpop.f32.mrb[0].mxu0
        %1886 = vmatprep.mubr.f32.mxu0 0.0
        %v1887 = vand.u32 %v1108, 4294901760
        %1888 = vmatmul.mubr.f32.gmra.mrb[0].mxu0 %v1887
        %v1889 = vpop.f32.mrb[0].mxu0
        %v1890 = vadd.f32 %v1773, %v1889
        %v1891 = vpop.f32.mrb[0].mxu0
        %1892 = vmatprep.mubr.f32.mxu0 0.0
        %v1893 = vand.u32 %v1111, 4294901760
        %1894 = vmatmul.mubr.f32.gmra.mrb[0].mxu0 %v1893
        %v1895 = vpop.f32.mrb[0].mxu0
        %v1896 = vadd.f32 %v1779, %v1895
        %v1897 = vpop.f32.mrb[0].mxu0
        %1898 = vdwg.mxu0
        %1903 = vrot.lane.b32.xlu0 %v1067, 127
        %v1904 = vpop.permute.xlu0 %1903
        %1905 = vrot.lane.b32.xlu0 %v1068, 127
        %v1906 = vpop.permute.xlu0 %1905
        %1907 = vrot.lane.b32.xlu0 %v1069, 127
        %v1908 = vpop.permute.xlu0 %1907
        %1909 = vrot.lane.b32.xlu0 %v1070, 127
        %v1910 = vpop.permute.xlu0 %1909
        %v1916 = vsel %vm1088, %v1071, 0
        %v1919 = vsel %vm1088, %v1072, 0
        %v1922 = vsel %vm1088, %v1073, 0
        %v1925 = vsel %vm1088, %v1074, 0
        %v1928 = vsel %vm1088, %v1075, 0
        %v1931 = vsel %vm1088, %v1076, 0
        %v1934 = vsel %vm1088, %v1077, 0
        %v1937 = vsel %vm1088, %v1078, 0
        %1939 = vmatprep.subr.mxu0 0.0
        %v1940 = vand.u32 %v1904, 4294901760
        %1941 = vmatpush1.msra.mxu0 %v1940
        %1942 = vmatprep.subr.mxu0 0.0
        %v1943 = vand.u32 %v1906, 4294901760
        %1944 = vmatpush1.msra.mxu0 %v1943
        %1945 = vmatprep.subr.mxu0 0.0
        %v1946 = vand.u32 %v1908, 4294901760
        %1947 = vmatpush1.msra.mxu0 %v1946
        %1948 = vmatprep.subr.mxu0 0.0
        %v1949 = vand.u32 %v1910, 4294901760
        %1950 = vmatpush1.msra.mxu0 %v1949
        %1951 = vmatprep.subr.mxu0 0.0
        %1952 = vmatpush1.msra.mxu0 0.0
        %1953 = vmatprep.subr.mxu0 0.0
        %1954 = vmatpush1.msra.mxu0 0.0
        %1955 = vmatprep.subr.mxu0 0.0
        %1956 = vmatpush1.msra.mxu0 0.0
        %1957 = vmatprep.subr.mxu0 0.0
        %1958 = vmatpush1.msra.mxu0 0.0
        %1959 = vmatprep.subr.mxu0 0.0
        %1960 = vmatpush1.msra.mxu0 0.0
        %1961 = vmatprep.subr.mxu0 0.0
        %1962 = vmatpush1.msra.mxu0 0.0
        %1963 = vmatprep.subr.mxu0 0.0
        %1964 = vmatpush1.msra.mxu0 0.0
        %1965 = vmatprep.subr.mxu0 0.0
        %1966 = vmatpush1.msra.mxu0 0.0
        %1967 = vmatprep.subr.mxu0 0.0
        %1968 = vmatpush1.msra.mxu0 0.0
        %1969 = vmatprep.subr.mxu0 0.0
        %1970 = vmatpush1.msra.mxu0 0.0
        %1971 = vmatprep.subr.mxu0 0.0
        %1972 = vmatpush1.msra.mxu0 0.0
        %1973 = vmatprep.subr.mxu0 0.0
        %1974 = vmatpush1.msra.mxu0 0.0
        %1975 = vmatprep.subr.mxu0 0.0
        %1976 = vmatpush1.msra.mxu0 0.0
        %1977 = vmatprep.subr.mxu0 0.0
        %1978 = vmatpush1.msra.mxu0 0.0
        %1979 = vmatprep.subr.mxu0 0.0
        %1980 = vmatpush1.msra.mxu0 0.0
        %1981 = vmatprep.subr.mxu0 0.0
        %1982 = vmatpush1.msra.mxu0 0.0
        %1983 = vmatprep.subr.mxu0 0.0
        %1984 = vmatpush1.msra.mxu0 0.0
        %1985 = vmatprep.subr.mxu0 0.0
        %1986 = vmatpush1.msra.mxu0 0.0
        %1987 = vmatprep.subr.mxu0 0.0
        %1988 = vmatpush1.msra.mxu0 0.0
        %1989 = vmatprep.subr.mxu0 0.0
        %1990 = vmatpush1.msra.mxu0 0.0
        %1991 = vmatprep.subr.mxu0 0.0
        %1992 = vmatpush1.msra.mxu0 0.0
        %1993 = vmatprep.subr.mxu0 0.0
        %1994 = vmatpush1.msra.mxu0 0.0
        %1995 = vmatprep.subr.mxu0 0.0
        %1996 = vmatpush1.msra.mxu0 0.0
        %1997 = vmatprep.subr.mxu0 0.0
        %1998 = vmatpush1.msra.mxu0 0.0
        %1999 = vmatprep.subr.mxu0 0.0
        %2000 = vmatpush1.msra.mxu0 0.0
        %2001 = vmatprep.subr.mxu0 0.0
        %2002 = vmatpush1.msra.mxu0 0.0
        %2003 = vmatprep.subr.mxu0 0.0
        %2004 = vmatpush1.msra.mxu0 0.0
        %2005 = vmatprep.subr.mxu0 0.0
        %2006 = vmatpush1.msra.mxu0 0.0
        %2007 = vmatprep.mubr.f32.mxu0 0.0
        %v2008 = vand.u32 %v1916, 4294901760
        %v2009 = vsub.f32 %v1916, %v2008
        %v2010 = vand.u32 %v2009, 4294901760
        %v2011 = vsub.f32 %v2009, %v2010
        %v2012 = vand.u32 %v2011, 4294901760
        %2013 = vmatmul.mubr.f32.gmra.mrb[0].mxu0 %v2012
        %v2014 = vpop.f32.mrb[0].mxu0
        %v2015 = vadd.f32 %v1854, %v2014
        %v2016 = vpop.f32.mrb[0].mxu0
        %2017 = vmatprep.mubr.f32.mxu0 0.0
        %v2018 = vand.u32 %v1919, 4294901760
        %v2019 = vsub.f32 %v1919, %v2018
        %v2020 = vand.u32 %v2019, 4294901760
        %v2021 = vsub.f32 %v2019, %v2020
        %v2022 = vand.u32 %v2021, 4294901760
        %2023 = vmatmul.mubr.f32.gmra.mrb[0].mxu0 %v2022
        %v2024 = vpop.f32.mrb[0].mxu0
        %v2025 = vadd.f32 %v1860, %v2024
        %v2026 = vpop.f32.mrb[0].mxu0
        %2027 = vmatprep.mubr.f32.mxu0 0.0
        %v2028 = vand.u32 %v1922, 4294901760
        %v2029 = vsub.f32 %v1922, %v2028
        %v2030 = vand.u32 %v2029, 4294901760
        %v2031 = vsub.f32 %v2029, %v2030
        %v2032 = vand.u32 %v2031, 4294901760
        %2033 = vmatmul.mubr.f32.gmra.mrb[0].mxu0 %v2032
        %v2034 = vpop.f32.mrb[0].mxu0
        %v2035 = vadd.f32 %v1866, %v2034
        %v2036 = vpop.f32.mrb[0].mxu0
        %2037 = vmatprep.mubr.f32.mxu0 0.0
        %v2038 = vand.u32 %v1925, 4294901760
        %v2039 = vsub.f32 %v1925, %v2038
        %v2040 = vand.u32 %v2039, 4294901760
        %v2041 = vsub.f32 %v2039, %v2040
        %v2042 = vand.u32 %v2041, 4294901760
        %2043 = vmatmul.mubr.f32.gmra.mrb[0].mxu0 %v2042
        %v2044 = vpop.f32.mrb[0].mxu0
        %v2045 = vadd.f32 %v1872, %v2044
        %v2046 = vpop.f32.mrb[0].mxu0
        %2047 = vmatprep.mubr.f32.mxu0 0.0
        %v2048 = vand.u32 %v1928, 4294901760
        %v2049 = vsub.f32 %v1928, %v2048
        %v2050 = vand.u32 %v2049, 4294901760
        %v2051 = vsub.f32 %v2049, %v2050
        %v2052 = vand.u32 %v2051, 4294901760
        %2053 = vmatmul.mubr.f32.gmra.mrb[0].mxu0 %v2052
        %v2054 = vpop.f32.mrb[0].mxu0
        %v2055 = vadd.f32 %v1878, %v2054
        %v2056 = vpop.f32.mrb[0].mxu0
        %2057 = vmatprep.mubr.f32.mxu0 0.0
        %v2058 = vand.u32 %v1931, 4294901760
        %v2059 = vsub.f32 %v1931, %v2058
        %v2060 = vand.u32 %v2059, 4294901760
        %v2061 = vsub.f32 %v2059, %v2060
        %v2062 = vand.u32 %v2061, 4294901760
        %2063 = vmatmul.mubr.f32.gmra.mrb[0].mxu0 %v2062
        %v2064 = vpop.f32.mrb[0].mxu0
        %v2065 = vadd.f32 %v1884, %v2064
        %v2066 = vpop.f32.mrb[0].mxu0
        %2067 = vmatprep.mubr.f32.mxu0 0.0
        %v2068 = vand.u32 %v1934, 4294901760
        %v2069 = vsub.f32 %v1934, %v2068
        %v2070 = vand.u32 %v2069, 4294901760
        %v2071 = vsub.f32 %v2069, %v2070
        %v2072 = vand.u32 %v2071, 4294901760
        %2073 = vmatmul.mubr.f32.gmra.mrb[0].mxu0 %v2072
        %v2074 = vpop.f32.mrb[0].mxu0
        %v2075 = vadd.f32 %v1890, %v2074
        %v2076 = vpop.f32.mrb[0].mxu0
        %2077 = vmatprep.mubr.f32.mxu0 0.0
        %v2078 = vand.u32 %v1937, 4294901760
        %v2079 = vsub.f32 %v1937, %v2078
        %v2080 = vand.u32 %v2079, 4294901760
        %v2081 = vsub.f32 %v2079, %v2080
        %v2082 = vand.u32 %v2081, 4294901760
        %2083 = vmatmul.mubr.f32.gmra.mrb[0].mxu0 %v2082
        %v2084 = vpop.f32.mrb[0].mxu0
        %v2085 = vadd.f32 %v1896, %v2084
        %v2086 = vpop.f32.mrb[0].mxu0
        %2087 = vdwg.mxu0
        %2088 = vmatprep.subr.mxu0 0.0
        %v2089 = vand.u32 %v1904, 4294901760
        %v2090 = vsub.f32 %v1904, %v2089
        %v2091 = vand.u32 %v2090, 4294901760
        %v2092 = vsub.f32 %v2090, %v2091
        %v2093 = vand.u32 %v2092, 4294901760
        %2094 = vmatpush1.msra.mxu0 %v2093
        %2095 = vmatprep.subr.mxu0 0.0
        %v2096 = vand.u32 %v1906, 4294901760
        %v2097 = vsub.f32 %v1906, %v2096
        %v2098 = vand.u32 %v2097, 4294901760
        %v2099 = vsub.f32 %v2097, %v2098
        %v2100 = vand.u32 %v2099, 4294901760
        %2101 = vmatpush1.msra.mxu0 %v2100
        %2102 = vmatprep.subr.mxu0 0.0
        %v2103 = vand.u32 %v1908, 4294901760
        %v2104 = vsub.f32 %v1908, %v2103
        %v2105 = vand.u32 %v2104, 4294901760
        %v2106 = vsub.f32 %v2104, %v2105
        %v2107 = vand.u32 %v2106, 4294901760
        %2108 = vmatpush1.msra.mxu0 %v2107
        %2109 = vmatprep.subr.mxu0 0.0
        %v2110 = vand.u32 %v1910, 4294901760
        %v2111 = vsub.f32 %v1910, %v2110
        %v2112 = vand.u32 %v2111, 4294901760
        %v2113 = vsub.f32 %v2111, %v2112
        %v2114 = vand.u32 %v2113, 4294901760
        %2115 = vmatpush1.msra.mxu0 %v2114
        %2116 = vmatprep.subr.mxu0 0.0
        %2117 = vmatpush1.msra.mxu0 0.0
        %2118 = vmatprep.subr.mxu0 0.0
        %2119 = vmatpush1.msra.mxu0 0.0
        %2120 = vmatprep.subr.mxu0 0.0
        %2121 = vmatpush1.msra.mxu0 0.0
        %2122 = vmatprep.subr.mxu0 0.0
        %2123 = vmatpush1.msra.mxu0 0.0
        %2124 = vmatprep.subr.mxu0 0.0
        %2125 = vmatpush1.msra.mxu0 0.0
        %2126 = vmatprep.subr.mxu0 0.0
        %2127 = vmatpush1.msra.mxu0 0.0
        %2128 = vmatprep.subr.mxu0 0.0
        %2129 = vmatpush1.msra.mxu0 0.0
        %2130 = vmatprep.subr.mxu0 0.0
        %2131 = vmatpush1.msra.mxu0 0.0
        %2132 = vmatprep.subr.mxu0 0.0
        %2133 = vmatpush1.msra.mxu0 0.0
        %2134 = vmatprep.subr.mxu0 0.0
        %2135 = vmatpush1.msra.mxu0 0.0
        %2136 = vmatprep.subr.mxu0 0.0
        %2137 = vmatpush1.msra.mxu0 0.0
        %2138 = vmatprep.subr.mxu0 0.0
        %2139 = vmatpush1.msra.mxu0 0.0
        %2140 = vmatprep.subr.mxu0 0.0
        %2141 = vmatpush1.msra.mxu0 0.0
        %2142 = vmatprep.subr.mxu0 0.0
        %2143 = vmatpush1.msra.mxu0 0.0
        %2144 = vmatprep.subr.mxu0 0.0
        %2145 = vmatpush1.msra.mxu0 0.0
        %2146 = vmatprep.subr.mxu0 0.0
        %2147 = vmatpush1.msra.mxu0 0.0
        %2148 = vmatprep.subr.mxu0 0.0
        %2149 = vmatpush1.msra.mxu0 0.0
        %2150 = vmatprep.subr.mxu0 0.0
        %2151 = vmatpush1.msra.mxu0 0.0
        %2152 = vmatprep.subr.mxu0 0.0
        %2153 = vmatpush1.msra.mxu0 0.0
        %2154 = vmatprep.subr.mxu0 0.0
        %2155 = vmatpush1.msra.mxu0 0.0
        %2156 = vmatprep.subr.mxu0 0.0
        %2157 = vmatpush1.msra.mxu0 0.0
        %2158 = vmatprep.subr.mxu0 0.0
        %2159 = vmatpush1.msra.mxu0 0.0
        %2160 = vmatprep.subr.mxu0 0.0
        %2161 = vmatpush1.msra.mxu0 0.0
        %2162 = vmatprep.subr.mxu0 0.0
        %2163 = vmatpush1.msra.mxu0 0.0
        %2164 = vmatprep.subr.mxu0 0.0
        %2165 = vmatpush1.msra.mxu0 0.0
        %2166 = vmatprep.subr.mxu0 0.0
        %2167 = vmatpush1.msra.mxu0 0.0
        %2168 = vmatprep.subr.mxu0 0.0
        %2169 = vmatpush1.msra.mxu0 0.0
        %2170 = vmatprep.subr.mxu0 0.0
        %2171 = vmatpush1.msra.mxu0 0.0
        %2172 = vmatprep.mubr.f32.mxu0 0.0
        %v2173 = vand.u32 %v1916, 4294901760
        %2174 = vmatmul.mubr.f32.gmra.mrb[0].mxu0 %v2173
        %v2175 = vpop.f32.mrb[0].mxu0
        %v2176 = vadd.f32 %v2015, %v2175
        %v2177 = vpop.f32.mrb[0].mxu0
        %2178 = vmatprep.mubr.f32.mxu0 0.0
        %v2179 = vand.u32 %v1919, 4294901760
        %2180 = vmatmul.mubr.f32.gmra.mrb[0].mxu0 %v2179
        %v2181 = vpop.f32.mrb[0].mxu0
        %v2182 = vadd.f32 %v2025, %v2181
        %v2183 = vpop.f32.mrb[0].mxu0
        %2184 = vmatprep.mubr.f32.mxu0 0.0
        %v2185 = vand.u32 %v1922, 4294901760
        %2186 = vmatmul.mubr.f32.gmra.mrb[0].mxu0 %v2185
        %v2187 = vpop.f32.mrb[0].mxu0
        %v2188 = vadd.f32 %v2035, %v2187
        %v2189 = vpop.f32.mrb[0].mxu0
        %2190 = vmatprep.mubr.f32.mxu0 0.0
        %v2191 = vand.u32 %v1925, 4294901760
        %2192 = vmatmul.mubr.f32.gmra.mrb[0].mxu0 %v2191
        %v2193 = vpop.f32.mrb[0].mxu0
        %v2194 = vadd.f32 %v2045, %v2193
        %v2195 = vpop.f32.mrb[0].mxu0
        %2196 = vmatprep.mubr.f32.mxu0 0.0
        %v2197 = vand.u32 %v1928, 4294901760
        %2198 = vmatmul.mubr.f32.gmra.mrb[0].mxu0 %v2197
        %v2199 = vpop.f32.mrb[0].mxu0
        %v2200 = vadd.f32 %v2055, %v2199
        %v2201 = vpop.f32.mrb[0].mxu0
        %2202 = vmatprep.mubr.f32.mxu0 0.0
        %v2203 = vand.u32 %v1931, 4294901760
        %2204 = vmatmul.mubr.f32.gmra.mrb[0].mxu0 %v2203
        %v2205 = vpop.f32.mrb[0].mxu0
        %v2206 = vadd.f32 %v2065, %v2205
        %v2207 = vpop.f32.mrb[0].mxu0
        %2208 = vmatprep.mubr.f32.mxu0 0.0
        %v2209 = vand.u32 %v1934, 4294901760
        %2210 = vmatmul.mubr.f32.gmra.mrb[0].mxu0 %v2209
        %v2211 = vpop.f32.mrb[0].mxu0
        %v2212 = vadd.f32 %v2075, %v2211
        %v2213 = vpop.f32.mrb[0].mxu0
        %2214 = vmatprep.mubr.f32.mxu0 0.0
        %v2215 = vand.u32 %v1937, 4294901760
        %2216 = vmatmul.mubr.f32.gmra.mrb[0].mxu0 %v2215
        %v2217 = vpop.f32.mrb[0].mxu0
        %v2218 = vadd.f32 %v2085, %v2217
        %v2219 = vpop.f32.mrb[0].mxu0
        %2220 = vdwg.mxu0
        %2221 = vmatprep.subr.mxu0 0.0
        %v2222 = vand.u32 %v1904, 4294901760
        %v2223 = vsub.f32 %v1904, %v2222
        %2224 = vmatpush1.msra.mxu0 %v2223
        %2225 = vmatprep.subr.mxu0 0.0
        %v2226 = vand.u32 %v1906, 4294901760
        %v2227 = vsub.f32 %v1906, %v2226
        %2228 = vmatpush1.msra.mxu0 %v2227
        %2229 = vmatprep.subr.mxu0 0.0
        %v2230 = vand.u32 %v1908, 4294901760
        %v2231 = vsub.f32 %v1908, %v2230
        %2232 = vmatpush1.msra.mxu0 %v2231
        %2233 = vmatprep.subr.mxu0 0.0
        %v2234 = vand.u32 %v1910, 4294901760
        %v2235 = vsub.f32 %v1910, %v2234
        %2236 = vmatpush1.msra.mxu0 %v2235
        %2237 = vmatprep.subr.mxu0 0.0
        %2238 = vmatpush1.msra.mxu0 0.0
        %2239 = vmatprep.subr.mxu0 0.0
        %2240 = vmatpush1.msra.mxu0 0.0
        %2241 = vmatprep.subr.mxu0 0.0
        %2242 = vmatpush1.msra.mxu0 0.0
        %2243 = vmatprep.subr.mxu0 0.0
        %2244 = vmatpush1.msra.mxu0 0.0
        %2245 = vmatprep.subr.mxu0 0.0
        %2246 = vmatpush1.msra.mxu0 0.0
        %2247 = vmatprep.subr.mxu0 0.0
        %2248 = vmatpush1.msra.mxu0 0.0
        %2249 = vmatprep.subr.mxu0 0.0
        %2250 = vmatpush1.msra.mxu0 0.0
        %2251 = vmatprep.subr.mxu0 0.0
        %2252 = vmatpush1.msra.mxu0 0.0
        %2253 = vmatprep.subr.mxu0 0.0
        %2254 = vmatpush1.msra.mxu0 0.0
        %2255 = vmatprep.subr.mxu0 0.0
        %2256 = vmatpush1.msra.mxu0 0.0
        %2257 = vmatprep.subr.mxu0 0.0
        %2258 = vmatpush1.msra.mxu0 0.0
        %2259 = vmatprep.subr.mxu0 0.0
        %2260 = vmatpush1.msra.mxu0 0.0
        %2261 = vmatprep.subr.mxu0 0.0
        %2262 = vmatpush1.msra.mxu0 0.0
        %2263 = vmatprep.subr.mxu0 0.0
        %2264 = vmatpush1.msra.mxu0 0.0
        %2265 = vmatprep.subr.mxu0 0.0
        %2266 = vmatpush1.msra.mxu0 0.0
        %2267 = vmatprep.subr.mxu0 0.0
        %2268 = vmatpush1.msra.mxu0 0.0
        %2269 = vmatprep.subr.mxu0 0.0
        %2270 = vmatpush1.msra.mxu0 0.0
        %2271 = vmatprep.subr.mxu0 0.0
        %2272 = vmatpush1.msra.mxu0 0.0
        %2273 = vmatprep.subr.mxu0 0.0
        %2274 = vmatpush1.msra.mxu0 0.0
        %2275 = vmatprep.subr.mxu0 0.0
        %2276 = vmatpush1.msra.mxu0 0.0
        %2277 = vmatprep.subr.mxu0 0.0
        %2278 = vmatpush1.msra.mxu0 0.0
        %2279 = vmatprep.subr.mxu0 0.0
        %2280 = vmatpush1.msra.mxu0 0.0
        %2281 = vmatprep.subr.mxu0 0.0
        %2282 = vmatpush1.msra.mxu0 0.0
        %2283 = vmatprep.subr.mxu0 0.0
        %2284 = vmatpush1.msra.mxu0 0.0
        %2285 = vmatprep.subr.mxu0 0.0
        %2286 = vmatpush1.msra.mxu0 0.0
        %2287 = vmatprep.subr.mxu0 0.0
        %2288 = vmatpush1.msra.mxu0 0.0
        %2289 = vmatprep.subr.mxu0 0.0
        %2290 = vmatpush1.msra.mxu0 0.0
        %2291 = vmatprep.subr.mxu0 0.0
        %2292 = vmatpush1.msra.mxu0 0.0
        %2293 = vmatprep.mubr.f32.mxu0 0.0
        %v2294 = vand.u32 %v1916, 4294901760
        %v2295 = vsub.f32 %v1916, %v2294
        %2296 = vmatmul.mubr.f32.gmra.mrb[0].mxu0 %v2295
        %v2297 = vpop.f32.mrb[0].mxu0
        %v2298 = vadd.f32 %v2176, %v2297
        %v2299 = vpop.f32.mrb[0].mxu0
        %2300 = vmatprep.mubr.f32.mxu0 0.0
        %v2301 = vand.u32 %v1919, 4294901760
        %v2302 = vsub.f32 %v1919, %v2301
        %2303 = vmatmul.mubr.f32.gmra.mrb[0].mxu0 %v2302
        %v2304 = vpop.f32.mrb[0].mxu0
        %v2305 = vadd.f32 %v2182, %v2304
        %v2306 = vpop.f32.mrb[0].mxu0
        %2307 = vmatprep.mubr.f32.mxu0 0.0
        %v2308 = vand.u32 %v1922, 4294901760
        %v2309 = vsub.f32 %v1922, %v2308
        %2310 = vmatmul.mubr.f32.gmra.mrb[0].mxu0 %v2309
        %v2311 = vpop.f32.mrb[0].mxu0
        %v2312 = vadd.f32 %v2188, %v2311
        %v2313 = vpop.f32.mrb[0].mxu0
        %2314 = vmatprep.mubr.f32.mxu0 0.0
        %v2315 = vand.u32 %v1925, 4294901760
        %v2316 = vsub.f32 %v1925, %v2315
        %2317 = vmatmul.mubr.f32.gmra.mrb[0].mxu0 %v2316
        %v2318 = vpop.f32.mrb[0].mxu0
        %v2319 = vadd.f32 %v2194, %v2318
        %v2320 = vpop.f32.mrb[0].mxu0
        %2321 = vmatprep.mubr.f32.mxu0 0.0
        %v2322 = vand.u32 %v1928, 4294901760
        %v2323 = vsub.f32 %v1928, %v2322
        %2324 = vmatmul.mubr.f32.gmra.mrb[0].mxu0 %v2323
        %v2325 = vpop.f32.mrb[0].mxu0
        %v2326 = vadd.f32 %v2200, %v2325
        %v2327 = vpop.f32.mrb[0].mxu0
        %2328 = vmatprep.mubr.f32.mxu0 0.0
        %v2329 = vand.u32 %v1931, 4294901760
        %v2330 = vsub.f32 %v1931, %v2329
        %2331 = vmatmul.mubr.f32.gmra.mrb[0].mxu0 %v2330
        %v2332 = vpop.f32.mrb[0].mxu0
        %v2333 = vadd.f32 %v2206, %v2332
        %v2334 = vpop.f32.mrb[0].mxu0
        %2335 = vmatprep.mubr.f32.mxu0 0.0
        %v2336 = vand.u32 %v1934, 4294901760
        %v2337 = vsub.f32 %v1934, %v2336
        %2338 = vmatmul.mubr.f32.gmra.mrb[0].mxu0 %v2337
        %v2339 = vpop.f32.mrb[0].mxu0
        %v2340 = vadd.f32 %v2212, %v2339
        %v2341 = vpop.f32.mrb[0].mxu0
        %2342 = vmatprep.mubr.f32.mxu0 0.0
        %v2343 = vand.u32 %v1937, 4294901760
        %v2344 = vsub.f32 %v1937, %v2343
        %2345 = vmatmul.mubr.f32.gmra.mrb[0].mxu0 %v2344
        %v2346 = vpop.f32.mrb[0].mxu0
        %v2347 = vadd.f32 %v2218, %v2346
        %v2348 = vpop.f32.mrb[0].mxu0
        %2349 = vdwg.mxu0
        %2350 = vmatprep.subr.mxu0 0.0
        %v2351 = vand.u32 %v1904, 4294901760
        %2352 = vmatpush1.msra.mxu0 %v2351
        %2353 = vmatprep.subr.mxu0 0.0
        %v2354 = vand.u32 %v1906, 4294901760
        %2355 = vmatpush1.msra.mxu0 %v2354
        %2356 = vmatprep.subr.mxu0 0.0
        %v2357 = vand.u32 %v1908, 4294901760
        %2358 = vmatpush1.msra.mxu0 %v2357
        %2359 = vmatprep.subr.mxu0 0.0
        %v2360 = vand.u32 %v1910, 4294901760
        %2361 = vmatpush1.msra.mxu0 %v2360
        %2362 = vmatprep.subr.mxu0 0.0
        %2363 = vmatpush1.msra.mxu0 0.0
        %2364 = vmatprep.subr.mxu0 0.0
        %2365 = vmatpush1.msra.mxu0 0.0
        %2366 = vmatprep.subr.mxu0 0.0
        %2367 = vmatpush1.msra.mxu0 0.0
        %2368 = vmatprep.subr.mxu0 0.0
        %2369 = vmatpush1.msra.mxu0 0.0
        %2370 = vmatprep.subr.mxu0 0.0
        %2371 = vmatpush1.msra.mxu0 0.0
        %2372 = vmatprep.subr.mxu0 0.0
        %2373 = vmatpush1.msra.mxu0 0.0
        %2374 = vmatprep.subr.mxu0 0.0
        %2375 = vmatpush1.msra.mxu0 0.0
        %2376 = vmatprep.subr.mxu0 0.0
        %2377 = vmatpush1.msra.mxu0 0.0
        %2378 = vmatprep.subr.mxu0 0.0
        %2379 = vmatpush1.msra.mxu0 0.0
        %2380 = vmatprep.subr.mxu0 0.0
        %2381 = vmatpush1.msra.mxu0 0.0
        %2382 = vmatprep.subr.mxu0 0.0
        %2383 = vmatpush1.msra.mxu0 0.0
        %2384 = vmatprep.subr.mxu0 0.0
        %2385 = vmatpush1.msra.mxu0 0.0
        %2386 = vmatprep.subr.mxu0 0.0
        %2387 = vmatpush1.msra.mxu0 0.0
        %2388 = vmatprep.subr.mxu0 0.0
        %2389 = vmatpush1.msra.mxu0 0.0
        %2390 = vmatprep.subr.mxu0 0.0
        %2391 = vmatpush1.msra.mxu0 0.0
        %2392 = vmatprep.subr.mxu0 0.0
        %2393 = vmatpush1.msra.mxu0 0.0
        %2394 = vmatprep.subr.mxu0 0.0
        %2395 = vmatpush1.msra.mxu0 0.0
        %2396 = vmatprep.subr.mxu0 0.0
        %2397 = vmatpush1.msra.mxu0 0.0
        %2398 = vmatprep.subr.mxu0 0.0
        %2399 = vmatpush1.msra.mxu0 0.0
        %2400 = vmatprep.subr.mxu0 0.0
        %2401 = vmatpush1.msra.mxu0 0.0
        %2402 = vmatprep.subr.mxu0 0.0
        %2403 = vmatpush1.msra.mxu0 0.0
        %2404 = vmatprep.subr.mxu0 0.0
        %2405 = vmatpush1.msra.mxu0 0.0
        %2406 = vmatprep.subr.mxu0 0.0
        %2407 = vmatpush1.msra.mxu0 0.0
        %2408 = vmatprep.subr.mxu0 0.0
        %2409 = vmatpush1.msra.mxu0 0.0
        %2410 = vmatprep.subr.mxu0 0.0
        %2411 = vmatpush1.msra.mxu0 0.0
        %2412 = vmatprep.subr.mxu0 0.0
        %2413 = vmatpush1.msra.mxu0 0.0
        %2414 = vmatprep.subr.mxu0 0.0
        %2415 = vmatpush1.msra.mxu0 0.0
        %2416 = vmatprep.subr.mxu0 0.0
        %2417 = vmatpush1.msra.mxu0 0.0
        %2418 = vmatprep.mubr.f32.mxu0 0.0
        %v2419 = vand.u32 %v1916, 4294901760
        %v2420 = vsub.f32 %v1916, %v2419
        %v2421 = vand.u32 %v2420, 4294901760
        %2422 = vmatmul.mubr.f32.gmra.mrb[0].mxu0 %v2421
        %v2423 = vpop.f32.mrb[0].mxu0
        %v2424 = vadd.f32 %v2298, %v2423
        %v2425 = vpop.f32.mrb[0].mxu0
        %2426 = vmatprep.mubr.f32.mxu0 0.0
        %v2427 = vand.u32 %v1919, 4294901760
        %v2428 = vsub.f32 %v1919, %v2427
        %v2429 = vand.u32 %v2428, 4294901760
        %2430 = vmatmul.mubr.f32.gmra.mrb[0].mxu0 %v2429
        %v2431 = vpop.f32.mrb[0].mxu0
        %v2432 = vadd.f32 %v2305, %v2431
        %v2433 = vpop.f32.mrb[0].mxu0
        %2434 = vmatprep.mubr.f32.mxu0 0.0
        %v2435 = vand.u32 %v1922, 4294901760
        %v2436 = vsub.f32 %v1922, %v2435
        %v2437 = vand.u32 %v2436, 4294901760
        %2438 = vmatmul.mubr.f32.gmra.mrb[0].mxu0 %v2437
        %v2439 = vpop.f32.mrb[0].mxu0
        %v2440 = vadd.f32 %v2312, %v2439
        %v2441 = vpop.f32.mrb[0].mxu0
        %2442 = vmatprep.mubr.f32.mxu0 0.0
        %v2443 = vand.u32 %v1925, 4294901760
        %v2444 = vsub.f32 %v1925, %v2443
        %v2445 = vand.u32 %v2444, 4294901760
        %2446 = vmatmul.mubr.f32.gmra.mrb[0].mxu0 %v2445
        %v2447 = vpop.f32.mrb[0].mxu0
        %v2448 = vadd.f32 %v2319, %v2447
        %v2449 = vpop.f32.mrb[0].mxu0
        %2450 = vmatprep.mubr.f32.mxu0 0.0
        %v2451 = vand.u32 %v1928, 4294901760
        %v2452 = vsub.f32 %v1928, %v2451
        %v2453 = vand.u32 %v2452, 4294901760
        %2454 = vmatmul.mubr.f32.gmra.mrb[0].mxu0 %v2453
        %v2455 = vpop.f32.mrb[0].mxu0
        %v2456 = vadd.f32 %v2326, %v2455
        %v2457 = vpop.f32.mrb[0].mxu0
        %2458 = vmatprep.mubr.f32.mxu0 0.0
        %v2459 = vand.u32 %v1931, 4294901760
        %v2460 = vsub.f32 %v1931, %v2459
        %v2461 = vand.u32 %v2460, 4294901760
        %2462 = vmatmul.mubr.f32.gmra.mrb[0].mxu0 %v2461
        %v2463 = vpop.f32.mrb[0].mxu0
        %v2464 = vadd.f32 %v2333, %v2463
        %v2465 = vpop.f32.mrb[0].mxu0
        %2466 = vmatprep.mubr.f32.mxu0 0.0
        %v2467 = vand.u32 %v1934, 4294901760
        %v2468 = vsub.f32 %v1934, %v2467
        %v2469 = vand.u32 %v2468, 4294901760
        %2470 = vmatmul.mubr.f32.gmra.mrb[0].mxu0 %v2469
        %v2471 = vpop.f32.mrb[0].mxu0
        %v2472 = vadd.f32 %v2340, %v2471
        %v2473 = vpop.f32.mrb[0].mxu0
        %2474 = vmatprep.mubr.f32.mxu0 0.0
        %v2475 = vand.u32 %v1937, 4294901760
        %v2476 = vsub.f32 %v1937, %v2475
        %v2477 = vand.u32 %v2476, 4294901760
        %2478 = vmatmul.mubr.f32.gmra.mrb[0].mxu0 %v2477
        %v2479 = vpop.f32.mrb[0].mxu0
        %v2480 = vadd.f32 %v2347, %v2479
        %v2481 = vpop.f32.mrb[0].mxu0
        %2482 = vdwg.mxu0
        %2483 = vmatprep.subr.mxu0 0.0
        %v2484 = vand.u32 %v1904, 4294901760
        %v2485 = vsub.f32 %v1904, %v2484
        %v2486 = vand.u32 %v2485, 4294901760
        %2487 = vmatpush1.msra.mxu0 %v2486
        %2488 = vmatprep.subr.mxu0 0.0
        %v2489 = vand.u32 %v1906, 4294901760
        %v2490 = vsub.f32 %v1906, %v2489
        %v2491 = vand.u32 %v2490, 4294901760
        %2492 = vmatpush1.msra.mxu0 %v2491
        %2493 = vmatprep.subr.mxu0 0.0
        %v2494 = vand.u32 %v1908, 4294901760
        %v2495 = vsub.f32 %v1908, %v2494
        %v2496 = vand.u32 %v2495, 4294901760
        %2497 = vmatpush1.msra.mxu0 %v2496
        %2498 = vmatprep.subr.mxu0 0.0
        %v2499 = vand.u32 %v1910, 4294901760
        %v2500 = vsub.f32 %v1910, %v2499
        %v2501 = vand.u32 %v2500, 4294901760
        %2502 = vmatpush1.msra.mxu0 %v2501
        %2503 = vmatprep.subr.mxu0 0.0
        %2504 = vmatpush1.msra.mxu0 0.0
        %2505 = vmatprep.subr.mxu0 0.0
        %2506 = vmatpush1.msra.mxu0 0.0
        %2507 = vmatprep.subr.mxu0 0.0
        %2508 = vmatpush1.msra.mxu0 0.0
        %2509 = vmatprep.subr.mxu0 0.0
        %2510 = vmatpush1.msra.mxu0 0.0
        %2511 = vmatprep.subr.mxu0 0.0
        %2512 = vmatpush1.msra.mxu0 0.0
        %2513 = vmatprep.subr.mxu0 0.0
        %2514 = vmatpush1.msra.mxu0 0.0
        %2515 = vmatprep.subr.mxu0 0.0
        %2516 = vmatpush1.msra.mxu0 0.0
        %2517 = vmatprep.subr.mxu0 0.0
        %2518 = vmatpush1.msra.mxu0 0.0
        %2519 = vmatprep.subr.mxu0 0.0
        %2520 = vmatpush1.msra.mxu0 0.0
        %2521 = vmatprep.subr.mxu0 0.0
        %2522 = vmatpush1.msra.mxu0 0.0
        %2523 = vmatprep.subr.mxu0 0.0
        %2524 = vmatpush1.msra.mxu0 0.0
        %2525 = vmatprep.subr.mxu0 0.0
        %2526 = vmatpush1.msra.mxu0 0.0
        %2527 = vmatprep.subr.mxu0 0.0
        %2528 = vmatpush1.msra.mxu0 0.0
        %2529 = vmatprep.subr.mxu0 0.0
        %2530 = vmatpush1.msra.mxu0 0.0
        %2531 = vmatprep.subr.mxu0 0.0
        %2532 = vmatpush1.msra.mxu0 0.0
        %2533 = vmatprep.subr.mxu0 0.0
        %2534 = vmatpush1.msra.mxu0 0.0
        %2535 = vmatprep.subr.mxu0 0.0
        %2536 = vmatpush1.msra.mxu0 0.0
        %2537 = vmatprep.subr.mxu0 0.0
        %2538 = vmatpush1.msra.mxu0 0.0
        %2539 = vmatprep.subr.mxu0 0.0
        %2540 = vmatpush1.msra.mxu0 0.0
        %2541 = vmatprep.subr.mxu0 0.0
        %2542 = vmatpush1.msra.mxu0 0.0
        %2543 = vmatprep.subr.mxu0 0.0
        %2544 = vmatpush1.msra.mxu0 0.0
        %2545 = vmatprep.subr.mxu0 0.0
        %2546 = vmatpush1.msra.mxu0 0.0
        %2547 = vmatprep.subr.mxu0 0.0
        %2548 = vmatpush1.msra.mxu0 0.0
        %2549 = vmatprep.subr.mxu0 0.0
        %2550 = vmatpush1.msra.mxu0 0.0
        %2551 = vmatprep.subr.mxu0 0.0
        %2552 = vmatpush1.msra.mxu0 0.0
        %2553 = vmatprep.subr.mxu0 0.0
        %2554 = vmatpush1.msra.mxu0 0.0
        %2555 = vmatprep.subr.mxu0 0.0
        %2556 = vmatpush1.msra.mxu0 0.0
        %2557 = vmatprep.subr.mxu0 0.0
        %2558 = vmatpush1.msra.mxu0 0.0
        %2559 = vmatprep.mubr.f32.mxu0 0.0
        %v2560 = vand.u32 %v1916, 4294901760
        %2561 = vmatmul.mubr.f32.gmra.mrb[0].mxu0 %v2560
        %v2562 = vpop.f32.mrb[0].mxu0
        %v2563 = vadd.f32 %v2424, %v2562
        %v2564 = vpop.f32.mrb[0].mxu0
        %2565 = vmatprep.mubr.f32.mxu0 0.0
        %v2566 = vand.u32 %v1919, 4294901760
        %2567 = vmatmul.mubr.f32.gmra.mrb[0].mxu0 %v2566
        %v2568 = vpop.f32.mrb[0].mxu0
        %v2569 = vadd.f32 %v2432, %v2568
        %v2570 = vpop.f32.mrb[0].mxu0
        %2571 = vmatprep.mubr.f32.mxu0 0.0
        %v2572 = vand.u32 %v1922, 4294901760
        %2573 = vmatmul.mubr.f32.gmra.mrb[0].mxu0 %v2572
        %v2574 = vpop.f32.mrb[0].mxu0
        %v2575 = vadd.f32 %v2440, %v2574
        %v2576 = vpop.f32.mrb[0].mxu0
        %2577 = vmatprep.mubr.f32.mxu0 0.0
        %v2578 = vand.u32 %v1925, 4294901760
        %2579 = vmatmul.mubr.f32.gmra.mrb[0].mxu0 %v2578
        %v2580 = vpop.f32.mrb[0].mxu0
        %v2581 = vadd.f32 %v2448, %v2580
        %v2582 = vpop.f32.mrb[0].mxu0
        %2583 = vmatprep.mubr.f32.mxu0 0.0
        %v2584 = vand.u32 %v1928, 4294901760
        %2585 = vmatmul.mubr.f32.gmra.mrb[0].mxu0 %v2584
        %v2586 = vpop.f32.mrb[0].mxu0
        %v2587 = vadd.f32 %v2456, %v2586
        %v2588 = vpop.f32.mrb[0].mxu0
        %2589 = vmatprep.mubr.f32.mxu0 0.0
        %v2590 = vand.u32 %v1931, 4294901760
        %2591 = vmatmul.mubr.f32.gmra.mrb[0].mxu0 %v2590
        %v2592 = vpop.f32.mrb[0].mxu0
        %v2593 = vadd.f32 %v2464, %v2592
        %v2594 = vpop.f32.mrb[0].mxu0
        %2595 = vmatprep.mubr.f32.mxu0 0.0
        %v2596 = vand.u32 %v1934, 4294901760
        %2597 = vmatmul.mubr.f32.gmra.mrb[0].mxu0 %v2596
        %v2598 = vpop.f32.mrb[0].mxu0
        %v2599 = vadd.f32 %v2472, %v2598
        %v2600 = vpop.f32.mrb[0].mxu0
        %2601 = vmatprep.mubr.f32.mxu0 0.0
        %v2602 = vand.u32 %v1937, 4294901760
        %2603 = vmatmul.mubr.f32.gmra.mrb[0].mxu0 %v2602
        %v2604 = vpop.f32.mrb[0].mxu0
        %v2605 = vadd.f32 %v2480, %v2604
        %v2606 = vpop.f32.mrb[0].mxu0
        %2607 = vdwg.mxu0
        %2608 = vmatprep.subr.mxu0 0.0
        %v2609 = vand.u32 %v1904, 4294901760
        %2610 = vmatpush1.msra.mxu0 %v2609
        %2611 = vmatprep.subr.mxu0 0.0
        %v2612 = vand.u32 %v1906, 4294901760
        %2613 = vmatpush1.msra.mxu0 %v2612
        %2614 = vmatprep.subr.mxu0 0.0
        %v2615 = vand.u32 %v1908, 4294901760
        %2616 = vmatpush1.msra.mxu0 %v2615
        %2617 = vmatprep.subr.mxu0 0.0
        %v2618 = vand.u32 %v1910, 4294901760
        %2619 = vmatpush1.msra.mxu0 %v2618
        %2620 = vmatprep.subr.mxu0 0.0
        %2621 = vmatpush1.msra.mxu0 0.0
        %2622 = vmatprep.subr.mxu0 0.0
        %2623 = vmatpush1.msra.mxu0 0.0
        %2624 = vmatprep.subr.mxu0 0.0
        %2625 = vmatpush1.msra.mxu0 0.0
        %2626 = vmatprep.subr.mxu0 0.0
        %2627 = vmatpush1.msra.mxu0 0.0
        %2628 = vmatprep.subr.mxu0 0.0
        %2629 = vmatpush1.msra.mxu0 0.0
        %2630 = vmatprep.subr.mxu0 0.0
        %2631 = vmatpush1.msra.mxu0 0.0
        %2632 = vmatprep.subr.mxu0 0.0
        %2633 = vmatpush1.msra.mxu0 0.0
        %2634 = vmatprep.subr.mxu0 0.0
        %2635 = vmatpush1.msra.mxu0 0.0
        %2636 = vmatprep.subr.mxu0 0.0
        %2637 = vmatpush1.msra.mxu0 0.0
        %2638 = vmatprep.subr.mxu0 0.0
        %2639 = vmatpush1.msra.mxu0 0.0
        %2640 = vmatprep.subr.mxu0 0.0
        %2641 = vmatpush1.msra.mxu0 0.0
        %2642 = vmatprep.subr.mxu0 0.0
        %2643 = vmatpush1.msra.mxu0 0.0
        %2644 = vmatprep.subr.mxu0 0.0
        %2645 = vmatpush1.msra.mxu0 0.0
        %2646 = vmatprep.subr.mxu0 0.0
        %2647 = vmatpush1.msra.mxu0 0.0
        %2648 = vmatprep.subr.mxu0 0.0
        %2649 = vmatpush1.msra.mxu0 0.0
        %2650 = vmatprep.subr.mxu0 0.0
        %2651 = vmatpush1.msra.mxu0 0.0
        %2652 = vmatprep.subr.mxu0 0.0
        %2653 = vmatpush1.msra.mxu0 0.0
        %2654 = vmatprep.subr.mxu0 0.0
        %2655 = vmatpush1.msra.mxu0 0.0
        %2656 = vmatprep.subr.mxu0 0.0
        %2657 = vmatpush1.msra.mxu0 0.0
        %2658 = vmatprep.subr.mxu0 0.0
        %2659 = vmatpush1.msra.mxu0 0.0
        %2660 = vmatprep.subr.mxu0 0.0
        %2661 = vmatpush1.msra.mxu0 0.0
        %2662 = vmatprep.subr.mxu0 0.0
        %2663 = vmatpush1.msra.mxu0 0.0
        %2664 = vmatprep.subr.mxu0 0.0
        %2665 = vmatpush1.msra.mxu0 0.0
        %2666 = vmatprep.subr.mxu0 0.0
        %2667 = vmatpush1.msra.mxu0 0.0
        %2668 = vmatprep.subr.mxu0 0.0
        %2669 = vmatpush1.msra.mxu0 0.0
        %2670 = vmatprep.subr.mxu0 0.0
        %2671 = vmatpush1.msra.mxu0 0.0
        %2672 = vmatprep.subr.mxu0 0.0
        %2673 = vmatpush1.msra.mxu0 0.0
        %2674 = vmatprep.subr.mxu0 0.0
        %2675 = vmatpush1.msra.mxu0 0.0
        %2676 = vmatprep.mubr.f32.mxu0 0.0
        %v2677 = vand.u32 %v1916, 4294901760
        %2678 = vmatmul.mubr.f32.gmra.mrb[0].mxu0 %v2677
        %v2679 = vpop.f32.mrb[0].mxu0
        %v2680 = vadd.f32 %v2563, %v2679
        %v2681 = vpop.f32.mrb[0].mxu0
        %2682 = vmatprep.mubr.f32.mxu0 0.0
        %v2683 = vand.u32 %v1919, 4294901760
        %2684 = vmatmul.mubr.f32.gmra.mrb[0].mxu0 %v2683
        %v2685 = vpop.f32.mrb[0].mxu0
        %v2686 = vadd.f32 %v2569, %v2685
        %v2687 = vpop.f32.mrb[0].mxu0
        %2688 = vmatprep.mubr.f32.mxu0 0.0
        %v2689 = vand.u32 %v1922, 4294901760
        %2690 = vmatmul.mubr.f32.gmra.mrb[0].mxu0 %v2689
        %v2691 = vpop.f32.mrb[0].mxu0
        %v2692 = vadd.f32 %v2575, %v2691
        %v2693 = vpop.f32.mrb[0].mxu0
        %2694 = vmatprep.mubr.f32.mxu0 0.0
        %v2695 = vand.u32 %v1925, 4294901760
        %2696 = vmatmul.mubr.f32.gmra.mrb[0].mxu0 %v2695
        %v2697 = vpop.f32.mrb[0].mxu0
        %v2698 = vadd.f32 %v2581, %v2697
        %v2699 = vpop.f32.mrb[0].mxu0
        %2700 = vmatprep.mubr.f32.mxu0 0.0
        %v2701 = vand.u32 %v1928, 4294901760
        %2702 = vmatmul.mubr.f32.gmra.mrb[0].mxu0 %v2701
        %v2703 = vpop.f32.mrb[0].mxu0
        %v2704 = vadd.f32 %v2587, %v2703
        %v2705 = vpop.f32.mrb[0].mxu0
        %2706 = vmatprep.mubr.f32.mxu0 0.0
        %v2707 = vand.u32 %v1931, 4294901760
        %2708 = vmatmul.mubr.f32.gmra.mrb[0].mxu0 %v2707
        %v2709 = vpop.f32.mrb[0].mxu0
        %v2710 = vadd.f32 %v2593, %v2709
        %v2711 = vpop.f32.mrb[0].mxu0
        %2712 = vmatprep.mubr.f32.mxu0 0.0
        %v2713 = vand.u32 %v1934, 4294901760
        %2714 = vmatmul.mubr.f32.gmra.mrb[0].mxu0 %v2713
        %v2715 = vpop.f32.mrb[0].mxu0
        %v2716 = vadd.f32 %v2599, %v2715
        %v2717 = vpop.f32.mrb[0].mxu0
        %2718 = vmatprep.mubr.f32.mxu0 0.0
        %v2719 = vand.u32 %v1937, 4294901760
        %2720 = vmatmul.mubr.f32.gmra.mrb[0].mxu0 %v2719
        %v2721 = vpop.f32.mrb[0].mxu0
        %v2722 = vadd.f32 %v2605, %v2721
        %v2723 = vpop.f32.mrb[0].mxu0
        %2724 = vdwg.mxu0
        %s2725 = scalar_lea.vmem %s4, 128
        %v2726 = vld [vmem:[%s2725] sm:$0xff]
        %v2727 = vld [vmem:[%s2725 + $0x8] sm:$0xff]
        %v2728 = vld [vmem:[%s2725 + $0x10] sm:$0xff]
        %v2729 = vld [vmem:[%s2725 + $0x18] sm:$0xff]
        %v2730 = vld [vmem:[%s2725 + $0x20] sm:$0xff]
        %v2731 = vld [vmem:[%s2725 + $0x28] sm:$0xff]
        %v2732 = vld [vmem:[%s2725 + $0x30] sm:$0xff]
        %v2733 = vld [vmem:[%s2725 + $0x38] sm:$0xff]
        %2734 = vrot.lane.b32.xlu0 %v1067, 125
        %v2735 = vpop.permute.xlu0 %2734
        %2736 = vrot.lane.b32.xlu0 %v1068, 125
        %v2737 = vpop.permute.xlu0 %2736
        %2738 = vrot.lane.b32.xlu0 %v1069, 125
        %v2739 = vpop.permute.xlu0 %2738
        %2740 = vrot.lane.b32.xlu0 %v1070, 125
        %v2741 = vpop.permute.xlu0 %2740
        %v2747 = vsel %vm1088, %v2726, 0
        %v2750 = vsel %vm1088, %v2727, 0
        %v2753 = vsel %vm1088, %v2728, 0
        %v2756 = vsel %vm1088, %v2729, 0
        %v2759 = vsel %vm1088, %v2730, 0
        %v2762 = vsel %vm1088, %v2731, 0
        %v2765 = vsel %vm1088, %v2732, 0
        %v2768 = vsel %vm1088, %v2733, 0
        %2770 = vmatprep.subr.mxu0 0.0
        %v2771 = vand.u32 %v2735, 4294901760
        %2772 = vmatpush1.msra.mxu0 %v2771
        %2773 = vmatprep.subr.mxu0 0.0
        %v2774 = vand.u32 %v2737, 4294901760
        %2775 = vmatpush1.msra.mxu0 %v2774
        %2776 = vmatprep.subr.mxu0 0.0
        %v2777 = vand.u32 %v2739, 4294901760
        %2778 = vmatpush1.msra.mxu0 %v2777
        %2779 = vmatprep.subr.mxu0 0.0
        %v2780 = vand.u32 %v2741, 4294901760
        %2781 = vmatpush1.msra.mxu0 %v2780
        %2782 = vmatprep.subr.mxu0 0.0
        %2783 = vmatpush1.msra.mxu0 0.0
        %2784 = vmatprep.subr.mxu0 0.0
        %2785 = vmatpush1.msra.mxu0 0.0
        %2786 = vmatprep.subr.mxu0 0.0
        %2787 = vmatpush1.msra.mxu0 0.0
        %2788 = vmatprep.subr.mxu0 0.0
        %2789 = vmatpush1.msra.mxu0 0.0
        %2790 = vmatprep.subr.mxu0 0.0
        %2791 = vmatpush1.msra.mxu0 0.0
        %2792 = vmatprep.subr.mxu0 0.0
        %2793 = vmatpush1.msra.mxu0 0.0
        %2794 = vmatprep.subr.mxu0 0.0
        %2795 = vmatpush1.msra.mxu0 0.0
        %2796 = vmatprep.subr.mxu0 0.0
        %2797 = vmatpush1.msra.mxu0 0.0
        %2798 = vmatprep.subr.mxu0 0.0
        %2799 = vmatpush1.msra.mxu0 0.0
        %2800 = vmatprep.subr.mxu0 0.0
        %2801 = vmatpush1.msra.mxu0 0.0
        %2802 = vmatprep.subr.mxu0 0.0
        %2803 = vmatpush1.msra.mxu0 0.0
        %2804 = vmatprep.subr.mxu0 0.0
        %2805 = vmatpush1.msra.mxu0 0.0
        %2806 = vmatprep.subr.mxu0 0.0
        %2807 = vmatpush1.msra.mxu0 0.0
        %2808 = vmatprep.subr.mxu0 0.0
        %2809 = vmatpush1.msra.mxu0 0.0
        %2810 = vmatprep.subr.mxu0 0.0
        %2811 = vmatpush1.msra.mxu0 0.0
        %2812 = vmatprep.subr.mxu0 0.0
        %2813 = vmatpush1.msra.mxu0 0.0
        %2814 = vmatprep.subr.mxu0 0.0
        %2815 = vmatpush1.msra.mxu0 0.0
        %2816 = vmatprep.subr.mxu0 0.0
        %2817 = vmatpush1.msra.mxu0 0.0
        %2818 = vmatprep.subr.mxu0 0.0
        %2819 = vmatpush1.msra.mxu0 0.0
        %2820 = vmatprep.subr.mxu0 0.0
        %2821 = vmatpush1.msra.mxu0 0.0
        %2822 = vmatprep.subr.mxu0 0.0
        %2823 = vmatpush1.msra.mxu0 0.0
        %2824 = vmatprep.subr.mxu0 0.0
        %2825 = vmatpush1.msra.mxu0 0.0
        %2826 = vmatprep.subr.mxu0 0.0
        %2827 = vmatpush1.msra.mxu0 0.0
        %2828 = vmatprep.subr.mxu0 0.0
        %2829 = vmatpush1.msra.mxu0 0.0
        %2830 = vmatprep.subr.mxu0 0.0
        %2831 = vmatpush1.msra.mxu0 0.0
        %2832 = vmatprep.subr.mxu0 0.0
        %2833 = vmatpush1.msra.mxu0 0.0
        %2834 = vmatprep.subr.mxu0 0.0
        %2835 = vmatpush1.msra.mxu0 0.0
        %2836 = vmatprep.subr.mxu0 0.0
        %2837 = vmatpush1.msra.mxu0 0.0
        %2838 = vmatprep.mubr.f32.mxu0 0.0
        %v2839 = vand.u32 %v2747, 4294901760
        %v2840 = vsub.f32 %v2747, %v2839
        %v2841 = vand.u32 %v2840, 4294901760
        %v2842 = vsub.f32 %v2840, %v2841
        %v2843 = vand.u32 %v2842, 4294901760
        %2844 = vmatmul.mubr.f32.gmra.mrb[0].mxu0 %v2843
        %v2845 = vpop.f32.mrb[0].mxu0
        %v2846 = vadd.f32 0.0, %v2845
        %v2847 = vpop.f32.mrb[0].mxu0
        %2848 = vmatprep.mubr.f32.mxu0 0.0
        %v2849 = vand.u32 %v2750, 4294901760
        %v2850 = vsub.f32 %v2750, %v2849
        %v2851 = vand.u32 %v2850, 4294901760
        %v2852 = vsub.f32 %v2850, %v2851
        %v2853 = vand.u32 %v2852, 4294901760
        %2854 = vmatmul.mubr.f32.gmra.mrb[0].mxu0 %v2853
        %v2855 = vpop.f32.mrb[0].mxu0
        %v2856 = vadd.f32 0.0, %v2855
        %v2857 = vpop.f32.mrb[0].mxu0
        %2858 = vmatprep.mubr.f32.mxu0 0.0
        %v2859 = vand.u32 %v2753, 4294901760
        %v2860 = vsub.f32 %v2753, %v2859
        %v2861 = vand.u32 %v2860, 4294901760
        %v2862 = vsub.f32 %v2860, %v2861
        %v2863 = vand.u32 %v2862, 4294901760
        %2864 = vmatmul.mubr.f32.gmra.mrb[0].mxu0 %v2863
        %v2865 = vpop.f32.mrb[0].mxu0
        %v2866 = vadd.f32 0.0, %v2865
        %v2867 = vpop.f32.mrb[0].mxu0
        %2868 = vmatprep.mubr.f32.mxu0 0.0
        %v2869 = vand.u32 %v2756, 4294901760
        %v2870 = vsub.f32 %v2756, %v2869
        %v2871 = vand.u32 %v2870, 4294901760
        %v2872 = vsub.f32 %v2870, %v2871
        %v2873 = vand.u32 %v2872, 4294901760
        %2874 = vmatmul.mubr.f32.gmra.mrb[0].mxu0 %v2873
        %v2875 = vpop.f32.mrb[0].mxu0
        %v2876 = vadd.f32 0.0, %v2875
        %v2877 = vpop.f32.mrb[0].mxu0
        %2878 = vmatprep.mubr.f32.mxu0 0.0
        %v2879 = vand.u32 %v2759, 4294901760
        %v2880 = vsub.f32 %v2759, %v2879
        %v2881 = vand.u32 %v2880, 4294901760
        %v2882 = vsub.f32 %v2880, %v2881
        %v2883 = vand.u32 %v2882, 4294901760
        %2884 = vmatmul.mubr.f32.gmra.mrb[0].mxu0 %v2883
        %v2885 = vpop.f32.mrb[0].mxu0
        %v2886 = vadd.f32 0.0, %v2885
        %v2887 = vpop.f32.mrb[0].mxu0
        %2888 = vmatprep.mubr.f32.mxu0 0.0
        %v2889 = vand.u32 %v2762, 4294901760
        %v2890 = vsub.f32 %v2762, %v2889
        %v2891 = vand.u32 %v2890, 4294901760
        %v2892 = vsub.f32 %v2890, %v2891
        %v2893 = vand.u32 %v2892, 4294901760
        %2894 = vmatmul.mubr.f32.gmra.mrb[0].mxu0 %v2893
        %v2895 = vpop.f32.mrb[0].mxu0
        %v2896 = vadd.f32 0.0, %v2895
        %v2897 = vpop.f32.mrb[0].mxu0
        %2898 = vmatprep.mubr.f32.mxu0 0.0
        %v2899 = vand.u32 %v2765, 4294901760
        %v2900 = vsub.f32 %v2765, %v2899
        %v2901 = vand.u32 %v2900, 4294901760
        %v2902 = vsub.f32 %v2900, %v2901
        %v2903 = vand.u32 %v2902, 4294901760
        %2904 = vmatmul.mubr.f32.gmra.mrb[0].mxu0 %v2903
        %v2905 = vpop.f32.mrb[0].mxu0
        %v2906 = vadd.f32 0.0, %v2905
        %v2907 = vpop.f32.mrb[0].mxu0
        %2908 = vmatprep.mubr.f32.mxu0 0.0
        %v2909 = vand.u32 %v2768, 4294901760
        %v2910 = vsub.f32 %v2768, %v2909
        %v2911 = vand.u32 %v2910, 4294901760
        %v2912 = vsub.f32 %v2910, %v2911
        %v2913 = vand.u32 %v2912, 4294901760
        %2914 = vmatmul.mubr.f32.gmra.mrb[0].mxu0 %v2913
        %v2915 = vpop.f32.mrb[0].mxu0
        %v2916 = vadd.f32 0.0, %v2915
        %v2917 = vpop.f32.mrb[0].mxu0
        %2918 = vdwg.mxu0
        %2919 = vmatprep.subr.mxu0 0.0
        %v2920 = vand.u32 %v2735, 4294901760
        %v2921 = vsub.f32 %v2735, %v2920
        %v2922 = vand.u32 %v2921, 4294901760
        %v2923 = vsub.f32 %v2921, %v2922
        %v2924 = vand.u32 %v2923, 4294901760
        %2925 = vmatpush1.msra.mxu0 %v2924
        %2926 = vmatprep.subr.mxu0 0.0
        %v2927 = vand.u32 %v2737, 4294901760
        %v2928 = vsub.f32 %v2737, %v2927
        %v2929 = vand.u32 %v2928, 4294901760
        %v2930 = vsub.f32 %v2928, %v2929
        %v2931 = vand.u32 %v2930, 4294901760
        %2932 = vmatpush1.msra.mxu0 %v2931
        %2933 = vmatprep.subr.mxu0 0.0
        %v2934 = vand.u32 %v2739, 4294901760
        %v2935 = vsub.f32 %v2739, %v2934
        %v2936 = vand.u32 %v2935, 4294901760
        %v2937 = vsub.f32 %v2935, %v2936
        %v2938 = vand.u32 %v2937, 4294901760
        %2939 = vmatpush1.msra.mxu0 %v2938
        %2940 = vmatprep.subr.mxu0 0.0
        %v2941 = vand.u32 %v2741, 4294901760
        %v2942 = vsub.f32 %v2741, %v2941
        %v2943 = vand.u32 %v2942, 4294901760
        %v2944 = vsub.f32 %v2942, %v2943
        %v2945 = vand.u32 %v2944, 4294901760
        %2946 = vmatpush1.msra.mxu0 %v2945
        %2947 = vmatprep.subr.mxu0 0.0
        %2948 = vmatpush1.msra.mxu0 0.0
        %2949 = vmatprep.subr.mxu0 0.0
        %2950 = vmatpush1.msra.mxu0 0.0
        %2951 = vmatprep.subr.mxu0 0.0
        %2952 = vmatpush1.msra.mxu0 0.0
        %2953 = vmatprep.subr.mxu0 0.0
        %2954 = vmatpush1.msra.mxu0 0.0
        %2955 = vmatprep.subr.mxu0 0.0
        %2956 = vmatpush1.msra.mxu0 0.0
        %2957 = vmatprep.subr.mxu0 0.0
        %2958 = vmatpush1.msra.mxu0 0.0
        %2959 = vmatprep.subr.mxu0 0.0
        %2960 = vmatpush1.msra.mxu0 0.0
        %2961 = vmatprep.subr.mxu0 0.0
        %2962 = vmatpush1.msra.mxu0 0.0
        %2963 = vmatprep.subr.mxu0 0.0
        %2964 = vmatpush1.msra.mxu0 0.0
        %2965 = vmatprep.subr.mxu0 0.0
        %2966 = vmatpush1.msra.mxu0 0.0
        %2967 = vmatprep.subr.mxu0 0.0
        %2968 = vmatpush1.msra.mxu0 0.0
        %2969 = vmatprep.subr.mxu0 0.0
        %2970 = vmatpush1.msra.mxu0 0.0
        %2971 = vmatprep.subr.mxu0 0.0
        %2972 = vmatpush1.msra.mxu0 0.0
        %2973 = vmatprep.subr.mxu0 0.0
        %2974 = vmatpush1.msra.mxu0 0.0
        %2975 = vmatprep.subr.mxu0 0.0
        %2976 = vmatpush1.msra.mxu0 0.0
        %2977 = vmatprep.subr.mxu0 0.0
        %2978 = vmatpush1.msra.mxu0 0.0
        %2979 = vmatprep.subr.mxu0 0.0
        %2980 = vmatpush1.msra.mxu0 0.0
        %2981 = vmatprep.subr.mxu0 0.0
        %2982 = vmatpush1.msra.mxu0 0.0
        %2983 = vmatprep.subr.mxu0 0.0
        %2984 = vmatpush1.msra.mxu0 0.0
        %2985 = vmatprep.subr.mxu0 0.0
        %2986 = vmatpush1.msra.mxu0 0.0
        %2987 = vmatprep.subr.mxu0 0.0
        %2988 = vmatpush1.msra.mxu0 0.0
        %2989 = vmatprep.subr.mxu0 0.0
        %2990 = vmatpush1.msra.mxu0 0.0
        %2991 = vmatprep.subr.mxu0 0.0
        %2992 = vmatpush1.msra.mxu0 0.0
        %2993 = vmatprep.subr.mxu0 0.0
        %2994 = vmatpush1.msra.mxu0 0.0
        %2995 = vmatprep.subr.mxu0 0.0
        %2996 = vmatpush1.msra.mxu0 0.0
        %2997 = vmatprep.subr.mxu0 0.0
        %2998 = vmatpush1.msra.mxu0 0.0
        %2999 = vmatprep.subr.mxu0 0.0
        %3000 = vmatpush1.msra.mxu0 0.0
        %3001 = vmatprep.subr.mxu0 0.0
        %3002 = vmatpush1.msra.mxu0 0.0
        %3003 = vmatprep.mubr.f32.mxu0 0.0
        %v3004 = vand.u32 %v2747, 4294901760
        %3005 = vmatmul.mubr.f32.gmra.mrb[0].mxu0 %v3004
        %v3006 = vpop.f32.mrb[0].mxu0
        %v3007 = vadd.f32 %v2846, %v3006
        %v3008 = vpop.f32.mrb[0].mxu0
        %3009 = vmatprep.mubr.f32.mxu0 0.0
        %v3010 = vand.u32 %v2750, 4294901760
        %3011 = vmatmul.mubr.f32.gmra.mrb[0].mxu0 %v3010
        %v3012 = vpop.f32.mrb[0].mxu0
        %v3013 = vadd.f32 %v2856, %v3012
        %v3014 = vpop.f32.mrb[0].mxu0
        %3015 = vmatprep.mubr.f32.mxu0 0.0
        %v3016 = vand.u32 %v2753, 4294901760
        %3017 = vmatmul.mubr.f32.gmra.mrb[0].mxu0 %v3016
        %v3018 = vpop.f32.mrb[0].mxu0
        %v3019 = vadd.f32 %v2866, %v3018
        %v3020 = vpop.f32.mrb[0].mxu0
        %3021 = vmatprep.mubr.f32.mxu0 0.0
        %v3022 = vand.u32 %v2756, 4294901760
        %3023 = vmatmul.mubr.f32.gmra.mrb[0].mxu0 %v3022
        %v3024 = vpop.f32.mrb[0].mxu0
        %v3025 = vadd.f32 %v2876, %v3024
        %v3026 = vpop.f32.mrb[0].mxu0
        %3027 = vmatprep.mubr.f32.mxu0 0.0
        %v3028 = vand.u32 %v2759, 4294901760
        %3029 = vmatmul.mubr.f32.gmra.mrb[0].mxu0 %v3028
        %v3030 = vpop.f32.mrb[0].mxu0
        %v3031 = vadd.f32 %v2886, %v3030
        %v3032 = vpop.f32.mrb[0].mxu0
        %3033 = vmatprep.mubr.f32.mxu0 0.0
        %v3034 = vand.u32 %v2762, 4294901760
        %3035 = vmatmul.mubr.f32.gmra.mrb[0].mxu0 %v3034
        %v3036 = vpop.f32.mrb[0].mxu0
        %v3037 = vadd.f32 %v2896, %v3036
        %v3038 = vpop.f32.mrb[0].mxu0
        %3039 = vmatprep.mubr.f32.mxu0 0.0
        %v3040 = vand.u32 %v2765, 4294901760
        %3041 = vmatmul.mubr.f32.gmra.mrb[0].mxu0 %v3040
        %v3042 = vpop.f32.mrb[0].mxu0
        %v3043 = vadd.f32 %v2906, %v3042
        %v3044 = vpop.f32.mrb[0].mxu0
        %3045 = vmatprep.mubr.f32.mxu0 0.0
        %v3046 = vand.u32 %v2768, 4294901760
        %3047 = vmatmul.mubr.f32.gmra.mrb[0].mxu0 %v3046
        %v3048 = vpop.f32.mrb[0].mxu0
        %v3049 = vadd.f32 %v2916, %v3048
        %v3050 = vpop.f32.mrb[0].mxu0
        %3051 = vdwg.mxu0
        %3052 = vmatprep.subr.mxu0 0.0
        %v3053 = vand.u32 %v2735, 4294901760
        %v3054 = vsub.f32 %v2735, %v3053
        %3055 = vmatpush1.msra.mxu0 %v3054
        %3056 = vmatprep.subr.mxu0 0.0
        %v3057 = vand.u32 %v2737, 4294901760
        %v3058 = vsub.f32 %v2737, %v3057
        %3059 = vmatpush1.msra.mxu0 %v3058
        %3060 = vmatprep.subr.mxu0 0.0
        %v3061 = vand.u32 %v2739, 4294901760
        %v3062 = vsub.f32 %v2739, %v3061
        %3063 = vmatpush1.msra.mxu0 %v3062
        %3064 = vmatprep.subr.mxu0 0.0
        %v3065 = vand.u32 %v2741, 4294901760
        %v3066 = vsub.f32 %v2741, %v3065
        %3067 = vmatpush1.msra.mxu0 %v3066
        %3068 = vmatprep.subr.mxu0 0.0
        %3069 = vmatpush1.msra.mxu0 0.0
        %3070 = vmatprep.subr.mxu0 0.0
        %3071 = vmatpush1.msra.mxu0 0.0
        %3072 = vmatprep.subr.mxu0 0.0
        %3073 = vmatpush1.msra.mxu0 0.0
        %3074 = vmatprep.subr.mxu0 0.0
        %3075 = vmatpush1.msra.mxu0 0.0
        %3076 = vmatprep.subr.mxu0 0.0
        %3077 = vmatpush1.msra.mxu0 0.0
        %3078 = vmatprep.subr.mxu0 0.0
        %3079 = vmatpush1.msra.mxu0 0.0
        %3080 = vmatprep.subr.mxu0 0.0
        %3081 = vmatpush1.msra.mxu0 0.0
        %3082 = vmatprep.subr.mxu0 0.0
        %3083 = vmatpush1.msra.mxu0 0.0
        %3084 = vmatprep.subr.mxu0 0.0
        %3085 = vmatpush1.msra.mxu0 0.0
        %3086 = vmatprep.subr.mxu0 0.0
        %3087 = vmatpush1.msra.mxu0 0.0
        %3088 = vmatprep.subr.mxu0 0.0
        %3089 = vmatpush1.msra.mxu0 0.0
        %3090 = vmatprep.subr.mxu0 0.0
        %3091 = vmatpush1.msra.mxu0 0.0
        %3092 = vmatprep.subr.mxu0 0.0
        %3093 = vmatpush1.msra.mxu0 0.0
        %3094 = vmatprep.subr.mxu0 0.0
        %3095 = vmatpush1.msra.mxu0 0.0
        %3096 = vmatprep.subr.mxu0 0.0
        %3097 = vmatpush1.msra.mxu0 0.0
        %3098 = vmatprep.subr.mxu0 0.0
        %3099 = vmatpush1.msra.mxu0 0.0
        %3100 = vmatprep.subr.mxu0 0.0
        %3101 = vmatpush1.msra.mxu0 0.0
        %3102 = vmatprep.subr.mxu0 0.0
        %3103 = vmatpush1.msra.mxu0 0.0
        %3104 = vmatprep.subr.mxu0 0.0
        %3105 = vmatpush1.msra.mxu0 0.0
        %3106 = vmatprep.subr.mxu0 0.0
        %3107 = vmatpush1.msra.mxu0 0.0
        %3108 = vmatprep.subr.mxu0 0.0
        %3109 = vmatpush1.msra.mxu0 0.0
        %3110 = vmatprep.subr.mxu0 0.0
        %3111 = vmatpush1.msra.mxu0 0.0
        %3112 = vmatprep.subr.mxu0 0.0
        %3113 = vmatpush1.msra.mxu0 0.0
        %3114 = vmatprep.subr.mxu0 0.0
        %3115 = vmatpush1.msra.mxu0 0.0
        %3116 = vmatprep.subr.mxu0 0.0
        %3117 = vmatpush1.msra.mxu0 0.0
        %3118 = vmatprep.subr.mxu0 0.0
        %3119 = vmatpush1.msra.mxu0 0.0
        %3120 = vmatprep.subr.mxu0 0.0
        %3121 = vmatpush1.msra.mxu0 0.0
        %3122 = vmatprep.subr.mxu0 0.0
        %3123 = vmatpush1.msra.mxu0 0.0
        %3124 = vmatprep.mubr.f32.mxu0 0.0
        %v3125 = vand.u32 %v2747, 4294901760
        %v3126 = vsub.f32 %v2747, %v3125
        %3127 = vmatmul.mubr.f32.gmra.mrb[0].mxu0 %v3126
        %v3128 = vpop.f32.mrb[0].mxu0
        %v3129 = vadd.f32 %v3007, %v3128
        %v3130 = vpop.f32.mrb[0].mxu0
        %3131 = vmatprep.mubr.f32.mxu0 0.0
        %v3132 = vand.u32 %v2750, 4294901760
        %v3133 = vsub.f32 %v2750, %v3132
        %3134 = vmatmul.mubr.f32.gmra.mrb[0].mxu0 %v3133
        %v3135 = vpop.f32.mrb[0].mxu0
        %v3136 = vadd.f32 %v3013, %v3135
        %v3137 = vpop.f32.mrb[0].mxu0
        %3138 = vmatprep.mubr.f32.mxu0 0.0
        %v3139 = vand.u32 %v2753, 4294901760
        %v3140 = vsub.f32 %v2753, %v3139
        %3141 = vmatmul.mubr.f32.gmra.mrb[0].mxu0 %v3140
        %v3142 = vpop.f32.mrb[0].mxu0
        %v3143 = vadd.f32 %v3019, %v3142
        %v3144 = vpop.f32.mrb[0].mxu0
        %3145 = vmatprep.mubr.f32.mxu0 0.0
        %v3146 = vand.u32 %v2756, 4294901760
        %v3147 = vsub.f32 %v2756, %v3146
        %3148 = vmatmul.mubr.f32.gmra.mrb[0].mxu0 %v3147
        %v3149 = vpop.f32.mrb[0].mxu0
        %v3150 = vadd.f32 %v3025, %v3149
        %v3151 = vpop.f32.mrb[0].mxu0
        %3152 = vmatprep.mubr.f32.mxu0 0.0
        %v3153 = vand.u32 %v2759, 4294901760
        %v3154 = vsub.f32 %v2759, %v3153
        %3155 = vmatmul.mubr.f32.gmra.mrb[0].mxu0 %v3154
        %v3156 = vpop.f32.mrb[0].mxu0
        %v3157 = vadd.f32 %v3031, %v3156
        %v3158 = vpop.f32.mrb[0].mxu0
        %3159 = vmatprep.mubr.f32.mxu0 0.0
        %v3160 = vand.u32 %v2762, 4294901760
        %v3161 = vsub.f32 %v2762, %v3160
        %3162 = vmatmul.mubr.f32.gmra.mrb[0].mxu0 %v3161
        %v3163 = vpop.f32.mrb[0].mxu0
        %v3164 = vadd.f32 %v3037, %v3163
        %v3165 = vpop.f32.mrb[0].mxu0
        %3166 = vmatprep.mubr.f32.mxu0 0.0
        %v3167 = vand.u32 %v2765, 4294901760
        %v3168 = vsub.f32 %v2765, %v3167
        %3169 = vmatmul.mubr.f32.gmra.mrb[0].mxu0 %v3168
        %v3170 = vpop.f32.mrb[0].mxu0
        %v3171 = vadd.f32 %v3043, %v3170
        %v3172 = vpop.f32.mrb[0].mxu0
        %3173 = vmatprep.mubr.f32.mxu0 0.0
        %v3174 = vand.u32 %v2768, 4294901760
        %v3175 = vsub.f32 %v2768, %v3174
        %3176 = vmatmul.mubr.f32.gmra.mrb[0].mxu0 %v3175
        %v3177 = vpop.f32.mrb[0].mxu0
        %v3178 = vadd.f32 %v3049, %v3177
        %v3179 = vpop.f32.mrb[0].mxu0
        %3180 = vdwg.mxu0
        %3181 = vmatprep.subr.mxu0 0.0
        %v3182 = vand.u32 %v2735, 4294901760
        %3183 = vmatpush1.msra.mxu0 %v3182
        %3184 = vmatprep.subr.mxu0 0.0
        %v3185 = vand.u32 %v2737, 4294901760
        %3186 = vmatpush1.msra.mxu0 %v3185
        %3187 = vmatprep.subr.mxu0 0.0
        %v3188 = vand.u32 %v2739, 4294901760
        %3189 = vmatpush1.msra.mxu0 %v3188
        %3190 = vmatprep.subr.mxu0 0.0
        %v3191 = vand.u32 %v2741, 4294901760
        %3192 = vmatpush1.msra.mxu0 %v3191
        %3193 = vmatprep.subr.mxu0 0.0
        %3194 = vmatpush1.msra.mxu0 0.0
        %3195 = vmatprep.subr.mxu0 0.0
        %3196 = vmatpush1.msra.mxu0 0.0
        %3197 = vmatprep.subr.mxu0 0.0
        %3198 = vmatpush1.msra.mxu0 0.0
        %3199 = vmatprep.subr.mxu0 0.0
        %3200 = vmatpush1.msra.mxu0 0.0
        %3201 = vmatprep.subr.mxu0 0.0
        %3202 = vmatpush1.msra.mxu0 0.0
        %3203 = vmatprep.subr.mxu0 0.0
        %3204 = vmatpush1.msra.mxu0 0.0
        %3205 = vmatprep.subr.mxu0 0.0
        %3206 = vmatpush1.msra.mxu0 0.0
        %3207 = vmatprep.subr.mxu0 0.0
        %3208 = vmatpush1.msra.mxu0 0.0
        %3209 = vmatprep.subr.mxu0 0.0
        %3210 = vmatpush1.msra.mxu0 0.0
        %3211 = vmatprep.subr.mxu0 0.0
        %3212 = vmatpush1.msra.mxu0 0.0
        %3213 = vmatprep.subr.mxu0 0.0
        %3214 = vmatpush1.msra.mxu0 0.0
        %3215 = vmatprep.subr.mxu0 0.0
        %3216 = vmatpush1.msra.mxu0 0.0
        %3217 = vmatprep.subr.mxu0 0.0
        %3218 = vmatpush1.msra.mxu0 0.0
        %3219 = vmatprep.subr.mxu0 0.0
        %3220 = vmatpush1.msra.mxu0 0.0
        %3221 = vmatprep.subr.mxu0 0.0
        %3222 = vmatpush1.msra.mxu0 0.0
        %3223 = vmatprep.subr.mxu0 0.0
        %3224 = vmatpush1.msra.mxu0 0.0
        %3225 = vmatprep.subr.mxu0 0.0
        %3226 = vmatpush1.msra.mxu0 0.0
        %3227 = vmatprep.subr.mxu0 0.0
        %3228 = vmatpush1.msra.mxu0 0.0
        %3229 = vmatprep.subr.mxu0 0.0
        %3230 = vmatpush1.msra.mxu0 0.0
        %3231 = vmatprep.subr.mxu0 0.0
        %3232 = vmatpush1.msra.mxu0 0.0
        %3233 = vmatprep.subr.mxu0 0.0
        %3234 = vmatpush1.msra.mxu0 0.0
        %3235 = vmatprep.subr.mxu0 0.0
        %3236 = vmatpush1.msra.mxu0 0.0
        %3237 = vmatprep.subr.mxu0 0.0
        %3238 = vmatpush1.msra.mxu0 0.0
        %3239 = vmatprep.subr.mxu0 0.0
        %3240 = vmatpush1.msra.mxu0 0.0
        %3241 = vmatprep.subr.mxu0 0.0
        %3242 = vmatpush1.msra.mxu0 0.0
        %3243 = vmatprep.subr.mxu0 0.0
        %3244 = vmatpush1.msra.mxu0 0.0
        %3245 = vmatprep.subr.mxu0 0.0
        %3246 = vmatpush1.msra.mxu0 0.0
        %3247 = vmatprep.subr.mxu0 0.0
        %3248 = vmatpush1.msra.mxu0 0.0
        %3249 = vmatprep.mubr.f32.mxu0 0.0
        %v3250 = vand.u32 %v2747, 4294901760
        %v3251 = vsub.f32 %v2747, %v3250
        %v3252 = vand.u32 %v3251, 4294901760
        %3253 = vmatmul.mubr.f32.gmra.mrb[0].mxu0 %v3252
        %v3254 = vpop.f32.mrb[0].mxu0
        %v3255 = vadd.f32 %v3129, %v3254
        %v3256 = vpop.f32.mrb[0].mxu0
        %3257 = vmatprep.mubr.f32.mxu0 0.0
        %v3258 = vand.u32 %v2750, 4294901760
        %v3259 = vsub.f32 %v2750, %v3258
        %v3260 = vand.u32 %v3259, 4294901760
        %3261 = vmatmul.mubr.f32.gmra.mrb[0].mxu0 %v3260
        %v3262 = vpop.f32.mrb[0].mxu0
        %v3263 = vadd.f32 %v3136, %v3262
        %v3264 = vpop.f32.mrb[0].mxu0
        %3265 = vmatprep.mubr.f32.mxu0 0.0
        %v3266 = vand.u32 %v2753, 4294901760
        %v3267 = vsub.f32 %v2753, %v3266
        %v3268 = vand.u32 %v3267, 4294901760
        %3269 = vmatmul.mubr.f32.gmra.mrb[0].mxu0 %v3268
        %v3270 = vpop.f32.mrb[0].mxu0
        %v3271 = vadd.f32 %v3143, %v3270
        %v3272 = vpop.f32.mrb[0].mxu0
        %3273 = vmatprep.mubr.f32.mxu0 0.0
        %v3274 = vand.u32 %v2756, 4294901760
        %v3275 = vsub.f32 %v2756, %v3274
        %v3276 = vand.u32 %v3275, 4294901760
        %3277 = vmatmul.mubr.f32.gmra.mrb[0].mxu0 %v3276
        %v3278 = vpop.f32.mrb[0].mxu0
        %v3279 = vadd.f32 %v3150, %v3278
        %v3280 = vpop.f32.mrb[0].mxu0
        %3281 = vmatprep.mubr.f32.mxu0 0.0
        %v3282 = vand.u32 %v2759, 4294901760
        %v3283 = vsub.f32 %v2759, %v3282
        %v3284 = vand.u32 %v3283, 4294901760
        %3285 = vmatmul.mubr.f32.gmra.mrb[0].mxu0 %v3284
        %v3286 = vpop.f32.mrb[0].mxu0
        %v3287 = vadd.f32 %v3157, %v3286
        %v3288 = vpop.f32.mrb[0].mxu0
        %3289 = vmatprep.mubr.f32.mxu0 0.0
        %v3290 = vand.u32 %v2762, 4294901760
        %v3291 = vsub.f32 %v2762, %v3290
        %v3292 = vand.u32 %v3291, 4294901760
        %3293 = vmatmul.mubr.f32.gmra.mrb[0].mxu0 %v3292
        %v3294 = vpop.f32.mrb[0].mxu0
        %v3295 = vadd.f32 %v3164, %v3294
        %v3296 = vpop.f32.mrb[0].mxu0
        %3297 = vmatprep.mubr.f32.mxu0 0.0
        %v3298 = vand.u32 %v2765, 4294901760
        %v3299 = vsub.f32 %v2765, %v3298
        %v3300 = vand.u32 %v3299, 4294901760
        %3301 = vmatmul.mubr.f32.gmra.mrb[0].mxu0 %v3300
        %v3302 = vpop.f32.mrb[0].mxu0
        %v3303 = vadd.f32 %v3171, %v3302
        %v3304 = vpop.f32.mrb[0].mxu0
        %3305 = vmatprep.mubr.f32.mxu0 0.0
        %v3306 = vand.u32 %v2768, 4294901760
        %v3307 = vsub.f32 %v2768, %v3306
        %v3308 = vand.u32 %v3307, 4294901760
        %3309 = vmatmul.mubr.f32.gmra.mrb[0].mxu0 %v3308
        %v3310 = vpop.f32.mrb[0].mxu0
        %v3311 = vadd.f32 %v3178, %v3310
        %v3312 = vpop.f32.mrb[0].mxu0
        %3313 = vdwg.mxu0
        %3314 = vmatprep.subr.mxu0 0.0
        %v3315 = vand.u32 %v2735, 4294901760
        %v3316 = vsub.f32 %v2735, %v3315
        %v3317 = vand.u32 %v3316, 4294901760
        %3318 = vmatpush1.msra.mxu0 %v3317
        %3319 = vmatprep.subr.mxu0 0.0
        %v3320 = vand.u32 %v2737, 4294901760
        %v3321 = vsub.f32 %v2737, %v3320
        %v3322 = vand.u32 %v3321, 4294901760
        %3323 = vmatpush1.msra.mxu0 %v3322
        %3324 = vmatprep.subr.mxu0 0.0
        %v3325 = vand.u32 %v2739, 4294901760
        %v3326 = vsub.f32 %v2739, %v3325
        %v3327 = vand.u32 %v3326, 4294901760
        %3328 = vmatpush1.msra.mxu0 %v3327
        %3329 = vmatprep.subr.mxu0 0.0
        %v3330 = vand.u32 %v2741, 4294901760
        %v3331 = vsub.f32 %v2741, %v3330
        %v3332 = vand.u32 %v3331, 4294901760
        %3333 = vmatpush1.msra.mxu0 %v3332
        %3334 = vmatprep.subr.mxu0 0.0
        %3335 = vmatpush1.msra.mxu0 0.0
        %3336 = vmatprep.subr.mxu0 0.0
        %3337 = vmatpush1.msra.mxu0 0.0
        %3338 = vmatprep.subr.mxu0 0.0
        %3339 = vmatpush1.msra.mxu0 0.0
        %3340 = vmatprep.subr.mxu0 0.0
        %3341 = vmatpush1.msra.mxu0 0.0
        %3342 = vmatprep.subr.mxu0 0.0
        %3343 = vmatpush1.msra.mxu0 0.0
        %3344 = vmatprep.subr.mxu0 0.0
        %3345 = vmatpush1.msra.mxu0 0.0
        %3346 = vmatprep.subr.mxu0 0.0
        %3347 = vmatpush1.msra.mxu0 0.0
        %3348 = vmatprep.subr.mxu0 0.0
        %3349 = vmatpush1.msra.mxu0 0.0
        %3350 = vmatprep.subr.mxu0 0.0
        %3351 = vmatpush1.msra.mxu0 0.0
        %3352 = vmatprep.subr.mxu0 0.0
        %3353 = vmatpush1.msra.mxu0 0.0
        %3354 = vmatprep.subr.mxu0 0.0
        %3355 = vmatpush1.msra.mxu0 0.0
        %3356 = vmatprep.subr.mxu0 0.0
        %3357 = vmatpush1.msra.mxu0 0.0
        %3358 = vmatprep.subr.mxu0 0.0
        %3359 = vmatpush1.msra.mxu0 0.0
        %3360 = vmatprep.subr.mxu0 0.0
        %3361 = vmatpush1.msra.mxu0 0.0
        %3362 = vmatprep.subr.mxu0 0.0
        %3363 = vmatpush1.msra.mxu0 0.0
        %3364 = vmatprep.subr.mxu0 0.0
        %3365 = vmatpush1.msra.mxu0 0.0
        %3366 = vmatprep.subr.mxu0 0.0
        %3367 = vmatpush1.msra.mxu0 0.0
        %3368 = vmatprep.subr.mxu0 0.0
        %3369 = vmatpush1.msra.mxu0 0.0
        %3370 = vmatprep.subr.mxu0 0.0
        %3371 = vmatpush1.msra.mxu0 0.0
        %3372 = vmatprep.subr.mxu0 0.0
        %3373 = vmatpush1.msra.mxu0 0.0
        %3374 = vmatprep.subr.mxu0 0.0
        %3375 = vmatpush1.msra.mxu0 0.0
        %3376 = vmatprep.subr.mxu0 0.0
        %3377 = vmatpush1.msra.mxu0 0.0
        %3378 = vmatprep.subr.mxu0 0.0
        %3379 = vmatpush1.msra.mxu0 0.0
        %3380 = vmatprep.subr.mxu0 0.0
        %3381 = vmatpush1.msra.mxu0 0.0
        %3382 = vmatprep.subr.mxu0 0.0
        %3383 = vmatpush1.msra.mxu0 0.0
        %3384 = vmatprep.subr.mxu0 0.0
        %3385 = vmatpush1.msra.mxu0 0.0
        %3386 = vmatprep.subr.mxu0 0.0
        %3387 = vmatpush1.msra.mxu0 0.0
        %3388 = vmatprep.subr.mxu0 0.0
        %3389 = vmatpush1.msra.mxu0 0.0
        %3390 = vmatprep.mubr.f32.mxu0 0.0
        %v3391 = vand.u32 %v2747, 4294901760
        %3392 = vmatmul.mubr.f32.gmra.mrb[0].mxu0 %v3391
        %v3393 = vpop.f32.mrb[0].mxu0
        %v3394 = vadd.f32 %v3255, %v3393
        %v3395 = vpop.f32.mrb[0].mxu0
        %3396 = vmatprep.mubr.f32.mxu0 0.0
        %v3397 = vand.u32 %v2750, 4294901760
        %3398 = vmatmul.mubr.f32.gmra.mrb[0].mxu0 %v3397
        %v3399 = vpop.f32.mrb[0].mxu0
        %v3400 = vadd.f32 %v3263, %v3399
        %v3401 = vpop.f32.mrb[0].mxu0
        %3402 = vmatprep.mubr.f32.mxu0 0.0
        %v3403 = vand.u32 %v2753, 4294901760
        %3404 = vmatmul.mubr.f32.gmra.mrb[0].mxu0 %v3403
        %v3405 = vpop.f32.mrb[0].mxu0
        %v3406 = vadd.f32 %v3271, %v3405
        %v3407 = vpop.f32.mrb[0].mxu0
        %3408 = vmatprep.mubr.f32.mxu0 0.0
        %v3409 = vand.u32 %v2756, 4294901760
        %3410 = vmatmul.mubr.f32.gmra.mrb[0].mxu0 %v3409
        %v3411 = vpop.f32.mrb[0].mxu0
        %v3412 = vadd.f32 %v3279, %v3411
        %v3413 = vpop.f32.mrb[0].mxu0
        %3414 = vmatprep.mubr.f32.mxu0 0.0
        %v3415 = vand.u32 %v2759, 4294901760
        %3416 = vmatmul.mubr.f32.gmra.mrb[0].mxu0 %v3415
        %v3417 = vpop.f32.mrb[0].mxu0
        %v3418 = vadd.f32 %v3287, %v3417
        %v3419 = vpop.f32.mrb[0].mxu0
        %3420 = vmatprep.mubr.f32.mxu0 0.0
        %v3421 = vand.u32 %v2762, 4294901760
        %3422 = vmatmul.mubr.f32.gmra.mrb[0].mxu0 %v3421
        %v3423 = vpop.f32.mrb[0].mxu0
        %v3424 = vadd.f32 %v3295, %v3423
        %v3425 = vpop.f32.mrb[0].mxu0
        %3426 = vmatprep.mubr.f32.mxu0 0.0
        %v3427 = vand.u32 %v2765, 4294901760
        %3428 = vmatmul.mubr.f32.gmra.mrb[0].mxu0 %v3427
        %v3429 = vpop.f32.mrb[0].mxu0
        %v3430 = vadd.f32 %v3303, %v3429
        %v3431 = vpop.f32.mrb[0].mxu0
        %3432 = vmatprep.mubr.f32.mxu0 0.0
        %v3433 = vand.u32 %v2768, 4294901760
        %3434 = vmatmul.mubr.f32.gmra.mrb[0].mxu0 %v3433
        %v3435 = vpop.f32.mrb[0].mxu0
        %v3436 = vadd.f32 %v3311, %v3435
        %v3437 = vpop.f32.mrb[0].mxu0
        %3438 = vdwg.mxu0
        %3439 = vmatprep.subr.mxu0 0.0
        %v3440 = vand.u32 %v2735, 4294901760
        %3441 = vmatpush1.msra.mxu0 %v3440
        %3442 = vmatprep.subr.mxu0 0.0
        %v3443 = vand.u32 %v2737, 4294901760
        %3444 = vmatpush1.msra.mxu0 %v3443
        %3445 = vmatprep.subr.mxu0 0.0
        %v3446 = vand.u32 %v2739, 4294901760
        %3447 = vmatpush1.msra.mxu0 %v3446
        %3448 = vmatprep.subr.mxu0 0.0
        %v3449 = vand.u32 %v2741, 4294901760
        %3450 = vmatpush1.msra.mxu0 %v3449
        %3451 = vmatprep.subr.mxu0 0.0
        %3452 = vmatpush1.msra.mxu0 0.0
        %3453 = vmatprep.subr.mxu0 0.0
        %3454 = vmatpush1.msra.mxu0 0.0
        %3455 = vmatprep.subr.mxu0 0.0
        %3456 = vmatpush1.msra.mxu0 0.0
        %3457 = vmatprep.subr.mxu0 0.0
        %3458 = vmatpush1.msra.mxu0 0.0
        %3459 = vmatprep.subr.mxu0 0.0
        %3460 = vmatpush1.msra.mxu0 0.0
        %3461 = vmatprep.subr.mxu0 0.0
        %3462 = vmatpush1.msra.mxu0 0.0
        %3463 = vmatprep.subr.mxu0 0.0
        %3464 = vmatpush1.msra.mxu0 0.0
        %3465 = vmatprep.subr.mxu0 0.0
        %3466 = vmatpush1.msra.mxu0 0.0
        %3467 = vmatprep.subr.mxu0 0.0
        %3468 = vmatpush1.msra.mxu0 0.0
        %3469 = vmatprep.subr.mxu0 0.0
        %3470 = vmatpush1.msra.mxu0 0.0
        %3471 = vmatprep.subr.mxu0 0.0
        %3472 = vmatpush1.msra.mxu0 0.0
        %3473 = vmatprep.subr.mxu0 0.0
        %3474 = vmatpush1.msra.mxu0 0.0
        %3475 = vmatprep.subr.mxu0 0.0
        %3476 = vmatpush1.msra.mxu0 0.0
        %3477 = vmatprep.subr.mxu0 0.0
        %3478 = vmatpush1.msra.mxu0 0.0
        %3479 = vmatprep.subr.mxu0 0.0
        %3480 = vmatpush1.msra.mxu0 0.0
        %3481 = vmatprep.subr.mxu0 0.0
        %3482 = vmatpush1.msra.mxu0 0.0
        %3483 = vmatprep.subr.mxu0 0.0
        %3484 = vmatpush1.msra.mxu0 0.0
        %3485 = vmatprep.subr.mxu0 0.0
        %3486 = vmatpush1.msra.mxu0 0.0
        %3487 = vmatprep.subr.mxu0 0.0
        %3488 = vmatpush1.msra.mxu0 0.0
        %3489 = vmatprep.subr.mxu0 0.0
        %3490 = vmatpush1.msra.mxu0 0.0
        %3491 = vmatprep.subr.mxu0 0.0
        %3492 = vmatpush1.msra.mxu0 0.0
        %3493 = vmatprep.subr.mxu0 0.0
        %3494 = vmatpush1.msra.mxu0 0.0
        %3495 = vmatprep.subr.mxu0 0.0
        %3496 = vmatpush1.msra.mxu0 0.0
        %3497 = vmatprep.subr.mxu0 0.0
        %3498 = vmatpush1.msra.mxu0 0.0
        %3499 = vmatprep.subr.mxu0 0.0
        %3500 = vmatpush1.msra.mxu0 0.0
        %3501 = vmatprep.subr.mxu0 0.0
        %3502 = vmatpush1.msra.mxu0 0.0
        %3503 = vmatprep.subr.mxu0 0.0
        %3504 = vmatpush1.msra.mxu0 0.0
        %3505 = vmatprep.subr.mxu0 0.0
        %3506 = vmatpush1.msra.mxu0 0.0
        %3507 = vmatprep.mubr.f32.mxu0 0.0
        %v3508 = vand.u32 %v2747, 4294901760
        %3509 = vmatmul.mubr.f32.gmra.mrb[0].mxu0 %v3508
        %v3510 = vpop.f32.mrb[0].mxu0
        %v3511 = vadd.f32 %v3394, %v3510
        %v3512 = vpop.f32.mrb[0].mxu0
        %3513 = vmatprep.mubr.f32.mxu0 0.0
        %v3514 = vand.u32 %v2750, 4294901760
        %3515 = vmatmul.mubr.f32.gmra.mrb[0].mxu0 %v3514
        %v3516 = vpop.f32.mrb[0].mxu0
        %v3517 = vadd.f32 %v3400, %v3516
        %v3518 = vpop.f32.mrb[0].mxu0
        %3519 = vmatprep.mubr.f32.mxu0 0.0
        %v3520 = vand.u32 %v2753, 4294901760
        %3521 = vmatmul.mubr.f32.gmra.mrb[0].mxu0 %v3520
        %v3522 = vpop.f32.mrb[0].mxu0
        %v3523 = vadd.f32 %v3406, %v3522
        %v3524 = vpop.f32.mrb[0].mxu0
        %3525 = vmatprep.mubr.f32.mxu0 0.0
        %v3526 = vand.u32 %v2756, 4294901760
        %3527 = vmatmul.mubr.f32.gmra.mrb[0].mxu0 %v3526
        %v3528 = vpop.f32.mrb[0].mxu0
        %v3529 = vadd.f32 %v3412, %v3528
        %v3530 = vpop.f32.mrb[0].mxu0
        %3531 = vmatprep.mubr.f32.mxu0 0.0
        %v3532 = vand.u32 %v2759, 4294901760
        %3533 = vmatmul.mubr.f32.gmra.mrb[0].mxu0 %v3532
        %v3534 = vpop.f32.mrb[0].mxu0
        %v3535 = vadd.f32 %v3418, %v3534
        %v3536 = vpop.f32.mrb[0].mxu0
        %3537 = vmatprep.mubr.f32.mxu0 0.0
        %v3538 = vand.u32 %v2762, 4294901760
        %3539 = vmatmul.mubr.f32.gmra.mrb[0].mxu0 %v3538
        %v3540 = vpop.f32.mrb[0].mxu0
        %v3541 = vadd.f32 %v3424, %v3540
        %v3542 = vpop.f32.mrb[0].mxu0
        %3543 = vmatprep.mubr.f32.mxu0 0.0
        %v3544 = vand.u32 %v2765, 4294901760
        %3545 = vmatmul.mubr.f32.gmra.mrb[0].mxu0 %v3544
        %v3546 = vpop.f32.mrb[0].mxu0
        %v3547 = vadd.f32 %v3430, %v3546
        %v3548 = vpop.f32.mrb[0].mxu0
        %3549 = vmatprep.mubr.f32.mxu0 0.0
        %v3550 = vand.u32 %v2768, 4294901760
        %3551 = vmatmul.mubr.f32.gmra.mrb[0].mxu0 %v3550
        %v3552 = vpop.f32.mrb[0].mxu0
        %v3553 = vadd.f32 %v3436, %v3552
        %v3554 = vpop.f32.mrb[0].mxu0
        %3555 = vdwg.mxu0
        %v3556 = vadd.f32 %v2680, %v3511
        %v3557 = vadd.f32 %v2686, %v3517
        %v3558 = vadd.f32 %v2692, %v3523
        %v3559 = vadd.f32 %v2698, %v3529
        %v3560 = vadd.f32 %v2704, %v3535
        %v3561 = vadd.f32 %v2710, %v3541
        %v3562 = vadd.f32 %v2716, %v3547
        %v3563 = vadd.f32 %v2722, %v3553
        %v3564 = vld [vmem:[%s5] sm:$0xff]
        %v3565 = vld [vmem:[%s5 + $0x8] sm:$0xff]
        %v3566 = vld [vmem:[%s5 + $0x10] sm:$0xff]
        %v3567 = vld [vmem:[%s5 + $0x18] sm:$0xff]
        %v3568 = vld [vmem:[%s5 + $0x20] sm:$0xff]
        %v3569 = vld [vmem:[%s5 + $0x28] sm:$0xff]
        %v3570 = vld [vmem:[%s5 + $0x30] sm:$0xff]
        %v3571 = vld [vmem:[%s5 + $0x38] sm:$0xff]
        %3573 = vset.pattern.permute.xlu0 0
        %3574 = vperm.xlu0 %3573, %v3564
        %v3575 = vpop.permute.xlu0 %3574
        %3578 = vset.pattern.permute.xlu0 0
        %3579 = vperm.xlu0 %3578, %v3565
        %v3580 = vpop.permute.xlu0 %3579
        %3583 = vset.pattern.permute.xlu0 0
        %3584 = vperm.xlu0 %3583, %v3566
        %v3585 = vpop.permute.xlu0 %3584
        %3588 = vset.pattern.permute.xlu0 0
        %3589 = vperm.xlu0 %3588, %v3567
        %v3590 = vpop.permute.xlu0 %3589
        %3593 = vset.pattern.permute.xlu0 0
        %3594 = vperm.xlu0 %3593, %v3568
        %v3595 = vpop.permute.xlu0 %3594
        %3598 = vset.pattern.permute.xlu0 0
        %3599 = vperm.xlu0 %3598, %v3569
        %v3600 = vpop.permute.xlu0 %3599
        %3603 = vset.pattern.permute.xlu0 0
        %3604 = vperm.xlu0 %3603, %v3570
        %v3605 = vpop.permute.xlu0 %3604
        %3608 = vset.pattern.permute.xlu0 0
        %3609 = vperm.xlu0 %3608, %v3571
        %v3610 = vpop.permute.xlu0 %3609
        %v3612 = vadd.f32 %v3556, %v3575
        %v3613 = vadd.f32 %v3557, %v3580
        %v3614 = vadd.f32 %v3558, %v3585
        %v3615 = vadd.f32 %v3559, %v3590
        %v3616 = vadd.f32 %v3560, %v3595
        %v3617 = vadd.f32 %v3561, %v3600
        %v3618 = vadd.f32 %v3562, %v3605
        %v3619 = vadd.f32 %v3563, %v3610
        %v3620 = vtanh.pop %v3612
        %v3621 = vtanh.pop %v3613
        %v3622 = vtanh.pop %v3614
        %v3623 = vtanh.pop %v3615
        %v3624 = vxor.u32 %v3616, 2147483648
        %v3625 = vxor.u32 %v3617, 2147483648
        %v3626 = vxor.u32 %v3618, 2147483648
        %v3627 = vxor.u32 %v3619, 2147483648
        %v3628 = vmul.f32 %v3624, 1.442695
        %v3629 = vpow.pop %v3628
        %v3630 = vmul.f32 %v3625, 1.442695
        %v3631 = vpow.pop %v3630
        %v3632 = vmul.f32 %v3626, 1.442695
        %v3633 = vpow.pop %v3632
        %v3634 = vmul.f32 %v3627, 1.442695
        %v3635 = vpow.pop %v3634
        %v3636 = vadd.f32 %v3629, 1.0
        %v3637 = vadd.f32 %v3631, 1.0
        %v3638 = vadd.f32 %v3633, 1.0
        %v3639 = vadd.f32 %v3635, 1.0
        %v3640 = vrcp.pop %v3636
        %v3641 = vmul.f32 1.0, %v3640
        %v3642 = vrcp.pop %v3637
        %v3643 = vmul.f32 1.0, %v3642
        %v3644 = vrcp.pop %v3638
        %v3645 = vmul.f32 1.0, %v3644
        %v3646 = vrcp.pop %v3639
        %v3647 = vmul.f32 1.0, %v3646
        %v3648 = vmul.f32 %v3620, %v3641
        %v3649 = vmul.f32 %v3621, %v3643
        %v3650 = vmul.f32 %v3622, %v3645
        %v3651 = vmul.f32 %v3623, %v3647
        %v3652 = vld [vmem:[%s6] sm:$0xff]
        %v3653 = vld [vmem:[%s6 + $0x8] sm:$0xff]
        %v3654 = vld [vmem:[%s6 + $0x10] sm:$0xff]
        %v3655 = vld [vmem:[%s6 + $0x18] sm:$0xff]
        %v3656 = vld [vmem:[%s6 + $0x20] sm:$0xff]
        %v3657 = vld [vmem:[%s6 + $0x28] sm:$0xff]
        %v3658 = vld [vmem:[%s6 + $0x30] sm:$0xff]
        %v3659 = vld [vmem:[%s6 + $0x38] sm:$0xff]
        %v3660 = vld [vmem:[%s7] sm:$0xff]
        %v3661 = vld [vmem:[%s7 + $0x8] sm:$0xff]
        %v3662 = vld [vmem:[%s7 + $0x10] sm:$0xff]
        %v3663 = vld [vmem:[%s7 + $0x18] sm:$0xff]
        %v3664 = vld [vmem:[%s7 + $0x20] sm:$0xff]
        %v3665 = vld [vmem:[%s7 + $0x28] sm:$0xff]
        %v3666 = vld [vmem:[%s7 + $0x30] sm:$0xff]
        %v3667 = vld [vmem:[%s7 + $0x38] sm:$0xff]
        %3669 = vset.pattern.permute.xlu0 0
        %3670 = vperm.xlu0 %3669, %v3660
        %v3671 = vpop.permute.xlu0 %3670
        %3674 = vset.pattern.permute.xlu0 0
        %3675 = vperm.xlu0 %3674, %v3661
        %v3676 = vpop.permute.xlu0 %3675
        %3679 = vset.pattern.permute.xlu0 0
        %3680 = vperm.xlu0 %3679, %v3662
        %v3681 = vpop.permute.xlu0 %3680
        %3684 = vset.pattern.permute.xlu0 0
        %3685 = vperm.xlu0 %3684, %v3663
        %v3686 = vpop.permute.xlu0 %3685
        %3689 = vset.pattern.permute.xlu0 0
        %3690 = vperm.xlu0 %3689, %v3664
        %v3691 = vpop.permute.xlu0 %3690
        %3694 = vset.pattern.permute.xlu0 0
        %3695 = vperm.xlu0 %3694, %v3665
        %v3696 = vpop.permute.xlu0 %3695
        %3699 = vset.pattern.permute.xlu0 0
        %3700 = vperm.xlu0 %3699, %v3666
        %v3701 = vpop.permute.xlu0 %3700
        %3704 = vset.pattern.permute.xlu0 0
        %3705 = vperm.xlu0 %3704, %v3667
        %v3706 = vpop.permute.xlu0 %3705
        %v3709 = vsel %vm1088, %v3652, 0
        %v3712 = vsel %vm1088, %v3653, 0
        %v3715 = vsel %vm1088, %v3654, 0
        %v3718 = vsel %vm1088, %v3655, 0
        %v3721 = vsel %vm1088, %v3656, 0
        %v3724 = vsel %vm1088, %v3657, 0
        %v3727 = vsel %vm1088, %v3658, 0
        %v3730 = vsel %vm1088, %v3659, 0
        %3732 = vmatprep.subr.mxu0 0.0
        %v3733 = vand.u32 %v3648, 4294901760
        %3734 = vmatpush1.msra.mxu0 %v3733
        %3735 = vmatprep.subr.mxu0 0.0
        %v3736 = vand.u32 %v3649, 4294901760
        %3737 = vmatpush1.msra.mxu0 %v3736
        %3738 = vmatprep.subr.mxu0 0.0
        %v3739 = vand.u32 %v3650, 4294901760
        %3740 = vmatpush1.msra.mxu0 %v3739
        %3741 = vmatprep.subr.mxu0 0.0
        %v3742 = vand.u32 %v3651, 4294901760
        %3743 = vmatpush1.msra.mxu0 %v3742
        %3744 = vmatprep.subr.mxu0 0.0
        %3745 = vmatpush1.msra.mxu0 0.0
        %3746 = vmatprep.subr.mxu0 0.0
        %3747 = vmatpush1.msra.mxu0 0.0
        %3748 = vmatprep.subr.mxu0 0.0
        %3749 = vmatpush1.msra.mxu0 0.0
        %3750 = vmatprep.subr.mxu0 0.0
        %3751 = vmatpush1.msra.mxu0 0.0
        %3752 = vmatprep.subr.mxu0 0.0
        %3753 = vmatpush1.msra.mxu0 0.0
        %3754 = vmatprep.subr.mxu0 0.0
        %3755 = vmatpush1.msra.mxu0 0.0
        %3756 = vmatprep.subr.mxu0 0.0
        %3757 = vmatpush1.msra.mxu0 0.0
        %3758 = vmatprep.subr.mxu0 0.0
        %3759 = vmatpush1.msra.mxu0 0.0
        %3760 = vmatprep.subr.mxu0 0.0
        %3761 = vmatpush1.msra.mxu0 0.0
        %3762 = vmatprep.subr.mxu0 0.0
        %3763 = vmatpush1.msra.mxu0 0.0
        %3764 = vmatprep.subr.mxu0 0.0
        %3765 = vmatpush1.msra.mxu0 0.0
        %3766 = vmatprep.subr.mxu0 0.0
        %3767 = vmatpush1.msra.mxu0 0.0
        %3768 = vmatprep.subr.mxu0 0.0
        %3769 = vmatpush1.msra.mxu0 0.0
        %3770 = vmatprep.subr.mxu0 0.0
        %3771 = vmatpush1.msra.mxu0 0.0
        %3772 = vmatprep.subr.mxu0 0.0
        %3773 = vmatpush1.msra.mxu0 0.0
        %3774 = vmatprep.subr.mxu0 0.0
        %3775 = vmatpush1.msra.mxu0 0.0
        %3776 = vmatprep.subr.mxu0 0.0
        %3777 = vmatpush1.msra.mxu0 0.0
        %3778 = vmatprep.subr.mxu0 0.0
        %3779 = vmatpush1.msra.mxu0 0.0
        %3780 = vmatprep.subr.mxu0 0.0
        %3781 = vmatpush1.msra.mxu0 0.0
        %3782 = vmatprep.subr.mxu0 0.0
        %3783 = vmatpush1.msra.mxu0 0.0
        %3784 = vmatprep.subr.mxu0 0.0
        %3785 = vmatpush1.msra.mxu0 0.0
        %3786 = vmatprep.subr.mxu0 0.0
        %3787 = vmatpush1.msra.mxu0 0.0
        %3788 = vmatprep.subr.mxu0 0.0
        %3789 = vmatpush1.msra.mxu0 0.0
        %3790 = vmatprep.subr.mxu0 0.0
        %3791 = vmatpush1.msra.mxu0 0.0
        %3792 = vmatprep.subr.mxu0 0.0
        %3793 = vmatpush1.msra.mxu0 0.0
        %3794 = vmatprep.subr.mxu0 0.0
        %3795 = vmatpush1.msra.mxu0 0.0
        %3796 = vmatprep.subr.mxu0 0.0
        %3797 = vmatpush1.msra.mxu0 0.0
        %3798 = vmatprep.subr.mxu0 0.0
        %3799 = vmatpush1.msra.mxu0 0.0
        %3800 = vmatprep.mubr.f32.mxu0 0.0
        %v3801 = vand.u32 %v3709, 4294901760
        %v3802 = vsub.f32 %v3709, %v3801
        %v3803 = vand.u32 %v3802, 4294901760
        %v3804 = vsub.f32 %v3802, %v3803
        %v3805 = vand.u32 %v3804, 4294901760
        %3806 = vmatmul.mubr.f32.gmra.mrb[0].mxu0 %v3805
        %v3807 = vpop.f32.mrb[0].mxu0
        %v3808 = vadd.f32 %v3671, %v3807
        %v3809 = vpop.f32.mrb[0].mxu0
        %3810 = vmatprep.mubr.f32.mxu0 0.0
        %v3811 = vand.u32 %v3712, 4294901760
        %v3812 = vsub.f32 %v3712, %v3811
        %v3813 = vand.u32 %v3812, 4294901760
        %v3814 = vsub.f32 %v3812, %v3813
        %v3815 = vand.u32 %v3814, 4294901760
        %3816 = vmatmul.mubr.f32.gmra.mrb[0].mxu0 %v3815
        %v3817 = vpop.f32.mrb[0].mxu0
        %v3818 = vadd.f32 %v3676, %v3817
        %v3819 = vpop.f32.mrb[0].mxu0
        %3820 = vmatprep.mubr.f32.mxu0 0.0
        %v3821 = vand.u32 %v3715, 4294901760
        %v3822 = vsub.f32 %v3715, %v3821
        %v3823 = vand.u32 %v3822, 4294901760
        %v3824 = vsub.f32 %v3822, %v3823
        %v3825 = vand.u32 %v3824, 4294901760
        %3826 = vmatmul.mubr.f32.gmra.mrb[0].mxu0 %v3825
        %v3827 = vpop.f32.mrb[0].mxu0
        %v3828 = vadd.f32 %v3681, %v3827
        %v3829 = vpop.f32.mrb[0].mxu0
        %3830 = vmatprep.mubr.f32.mxu0 0.0
        %v3831 = vand.u32 %v3718, 4294901760
        %v3832 = vsub.f32 %v3718, %v3831
        %v3833 = vand.u32 %v3832, 4294901760
        %v3834 = vsub.f32 %v3832, %v3833
        %v3835 = vand.u32 %v3834, 4294901760
        %3836 = vmatmul.mubr.f32.gmra.mrb[0].mxu0 %v3835
        %v3837 = vpop.f32.mrb[0].mxu0
        %v3838 = vadd.f32 %v3686, %v3837
        %v3839 = vpop.f32.mrb[0].mxu0
        %3840 = vmatprep.mubr.f32.mxu0 0.0
        %v3841 = vand.u32 %v3721, 4294901760
        %v3842 = vsub.f32 %v3721, %v3841
        %v3843 = vand.u32 %v3842, 4294901760
        %v3844 = vsub.f32 %v3842, %v3843
        %v3845 = vand.u32 %v3844, 4294901760
        %3846 = vmatmul.mubr.f32.gmra.mrb[0].mxu0 %v3845
        %v3847 = vpop.f32.mrb[0].mxu0
        %v3848 = vadd.f32 %v3691, %v3847
        %v3849 = vpop.f32.mrb[0].mxu0
        %3850 = vmatprep.mubr.f32.mxu0 0.0
        %v3851 = vand.u32 %v3724, 4294901760
        %v3852 = vsub.f32 %v3724, %v3851
        %v3853 = vand.u32 %v3852, 4294901760
        %v3854 = vsub.f32 %v3852, %v3853
        %v3855 = vand.u32 %v3854, 4294901760
        %3856 = vmatmul.mubr.f32.gmra.mrb[0].mxu0 %v3855
        %v3857 = vpop.f32.mrb[0].mxu0
        %v3858 = vadd.f32 %v3696, %v3857
        %v3859 = vpop.f32.mrb[0].mxu0
        %3860 = vmatprep.mubr.f32.mxu0 0.0
        %v3861 = vand.u32 %v3727, 4294901760
        %v3862 = vsub.f32 %v3727, %v3861
        %v3863 = vand.u32 %v3862, 4294901760
        %v3864 = vsub.f32 %v3862, %v3863
        %v3865 = vand.u32 %v3864, 4294901760
        %3866 = vmatmul.mubr.f32.gmra.mrb[0].mxu0 %v3865
        %v3867 = vpop.f32.mrb[0].mxu0
        %v3868 = vadd.f32 %v3701, %v3867
        %v3869 = vpop.f32.mrb[0].mxu0
        %3870 = vmatprep.mubr.f32.mxu0 0.0
        %v3871 = vand.u32 %v3730, 4294901760
        %v3872 = vsub.f32 %v3730, %v3871
        %v3873 = vand.u32 %v3872, 4294901760
        %v3874 = vsub.f32 %v3872, %v3873
        %v3875 = vand.u32 %v3874, 4294901760
        %3876 = vmatmul.mubr.f32.gmra.mrb[0].mxu0 %v3875
        %v3877 = vpop.f32.mrb[0].mxu0
        %v3878 = vadd.f32 %v3706, %v3877
        %v3879 = vpop.f32.mrb[0].mxu0
        %3880 = vdwg.mxu0
        %3881 = vmatprep.subr.mxu0 0.0
        %v3882 = vand.u32 %v3648, 4294901760
        %v3883 = vsub.f32 %v3648, %v3882
        %v3884 = vand.u32 %v3883, 4294901760
        %v3885 = vsub.f32 %v3883, %v3884
        %v3886 = vand.u32 %v3885, 4294901760
        %3887 = vmatpush1.msra.mxu0 %v3886
        %3888 = vmatprep.subr.mxu0 0.0
        %v3889 = vand.u32 %v3649, 4294901760
        %v3890 = vsub.f32 %v3649, %v3889
        %v3891 = vand.u32 %v3890, 4294901760
        %v3892 = vsub.f32 %v3890, %v3891
        %v3893 = vand.u32 %v3892, 4294901760
        %3894 = vmatpush1.msra.mxu0 %v3893
        %3895 = vmatprep.subr.mxu0 0.0
        %v3896 = vand.u32 %v3650, 4294901760
        %v3897 = vsub.f32 %v3650, %v3896
        %v3898 = vand.u32 %v3897, 4294901760
        %v3899 = vsub.f32 %v3897, %v3898
        %v3900 = vand.u32 %v3899, 4294901760
        %3901 = vmatpush1.msra.mxu0 %v3900
        %3902 = vmatprep.subr.mxu0 0.0
        %v3903 = vand.u32 %v3651, 4294901760
        %v3904 = vsub.f32 %v3651, %v3903
        %v3905 = vand.u32 %v3904, 4294901760
        %v3906 = vsub.f32 %v3904, %v3905
        %v3907 = vand.u32 %v3906, 4294901760
        %3908 = vmatpush1.msra.mxu0 %v3907
        %3909 = vmatprep.subr.mxu0 0.0
        %3910 = vmatpush1.msra.mxu0 0.0
        %3911 = vmatprep.subr.mxu0 0.0
        %3912 = vmatpush1.msra.mxu0 0.0
        %3913 = vmatprep.subr.mxu0 0.0
        %3914 = vmatpush1.msra.mxu0 0.0
        %3915 = vmatprep.subr.mxu0 0.0
        %3916 = vmatpush1.msra.mxu0 0.0
        %3917 = vmatprep.subr.mxu0 0.0
        %3918 = vmatpush1.msra.mxu0 0.0
        %3919 = vmatprep.subr.mxu0 0.0
        %3920 = vmatpush1.msra.mxu0 0.0
        %3921 = vmatprep.subr.mxu0 0.0
        %3922 = vmatpush1.msra.mxu0 0.0
        %3923 = vmatprep.subr.mxu0 0.0
        %3924 = vmatpush1.msra.mxu0 0.0
        %3925 = vmatprep.subr.mxu0 0.0
        %3926 = vmatpush1.msra.mxu0 0.0
        %3927 = vmatprep.subr.mxu0 0.0
        %3928 = vmatpush1.msra.mxu0 0.0
        %3929 = vmatprep.subr.mxu0 0.0
        %3930 = vmatpush1.msra.mxu0 0.0
        %3931 = vmatprep.subr.mxu0 0.0
        %3932 = vmatpush1.msra.mxu0 0.0
        %3933 = vmatprep.subr.mxu0 0.0
        %3934 = vmatpush1.msra.mxu0 0.0
        %3935 = vmatprep.subr.mxu0 0.0
        %3936 = vmatpush1.msra.mxu0 0.0
        %3937 = vmatprep.subr.mxu0 0.0
        %3938 = vmatpush1.msra.mxu0 0.0
        %3939 = vmatprep.subr.mxu0 0.0
        %3940 = vmatpush1.msra.mxu0 0.0
        %3941 = vmatprep.subr.mxu0 0.0
        %3942 = vmatpush1.msra.mxu0 0.0
        %3943 = vmatprep.subr.mxu0 0.0
        %3944 = vmatpush1.msra.mxu0 0.0
        %3945 = vmatprep.subr.mxu0 0.0
        %3946 = vmatpush1.msra.mxu0 0.0
        %3947 = vmatprep.subr.mxu0 0.0
        %3948 = vmatpush1.msra.mxu0 0.0
        %3949 = vmatprep.subr.mxu0 0.0
        %3950 = vmatpush1.msra.mxu0 0.0
        %3951 = vmatprep.subr.mxu0 0.0
        %3952 = vmatpush1.msra.mxu0 0.0
        %3953 = vmatprep.subr.mxu0 0.0
        %3954 = vmatpush1.msra.mxu0 0.0
        %3955 = vmatprep.subr.mxu0 0.0
        %3956 = vmatpush1.msra.mxu0 0.0
        %3957 = vmatprep.subr.mxu0 0.0
        %3958 = vmatpush1.msra.mxu0 0.0
        %3959 = vmatprep.subr.mxu0 0.0
        %3960 = vmatpush1.msra.mxu0 0.0
        %3961 = vmatprep.subr.mxu0 0.0
        %3962 = vmatpush1.msra.mxu0 0.0
        %3963 = vmatprep.subr.mxu0 0.0
        %3964 = vmatpush1.msra.mxu0 0.0
        %3965 = vmatprep.mubr.f32.mxu0 0.0
        %v3966 = vand.u32 %v3709, 4294901760
        %3967 = vmatmul.mubr.f32.gmra.mrb[0].mxu0 %v3966
        %v3968 = vpop.f32.mrb[0].mxu0
        %v3969 = vadd.f32 %v3808, %v3968
        %v3970 = vpop.f32.mrb[0].mxu0
        %3971 = vmatprep.mubr.f32.mxu0 0.0
        %v3972 = vand.u32 %v3712, 4294901760
        %3973 = vmatmul.mubr.f32.gmra.mrb[0].mxu0 %v3972
        %v3974 = vpop.f32.mrb[0].mxu0
        %v3975 = vadd.f32 %v3818, %v3974
        %v3976 = vpop.f32.mrb[0].mxu0
        %3977 = vmatprep.mubr.f32.mxu0 0.0
        %v3978 = vand.u32 %v3715, 4294901760
        %3979 = vmatmul.mubr.f32.gmra.mrb[0].mxu0 %v3978
        %v3980 = vpop.f32.mrb[0].mxu0
        %v3981 = vadd.f32 %v3828, %v3980
        %v3982 = vpop.f32.mrb[0].mxu0
        %3983 = vmatprep.mubr.f32.mxu0 0.0
        %v3984 = vand.u32 %v3718, 4294901760
        %3985 = vmatmul.mubr.f32.gmra.mrb[0].mxu0 %v3984
        %v3986 = vpop.f32.mrb[0].mxu0
        %v3987 = vadd.f32 %v3838, %v3986
        %v3988 = vpop.f32.mrb[0].mxu0
        %3989 = vmatprep.mubr.f32.mxu0 0.0
        %v3990 = vand.u32 %v3721, 4294901760
        %3991 = vmatmul.mubr.f32.gmra.mrb[0].mxu0 %v3990
        %v3992 = vpop.f32.mrb[0].mxu0
        %v3993 = vadd.f32 %v3848, %v3992
        %v3994 = vpop.f32.mrb[0].mxu0
        %3995 = vmatprep.mubr.f32.mxu0 0.0
        %v3996 = vand.u32 %v3724, 4294901760
        %3997 = vmatmul.mubr.f32.gmra.mrb[0].mxu0 %v3996
        %v3998 = vpop.f32.mrb[0].mxu0
        %v3999 = vadd.f32 %v3858, %v3998
        %v4000 = vpop.f32.mrb[0].mxu0
        %4001 = vmatprep.mubr.f32.mxu0 0.0
        %v4002 = vand.u32 %v3727, 4294901760
        %4003 = vmatmul.mubr.f32.gmra.mrb[0].mxu0 %v4002
        %v4004 = vpop.f32.mrb[0].mxu0
        %v4005 = vadd.f32 %v3868, %v4004
        %v4006 = vpop.f32.mrb[0].mxu0
        %4007 = vmatprep.mubr.f32.mxu0 0.0
        %v4008 = vand.u32 %v3730, 4294901760
        %4009 = vmatmul.mubr.f32.gmra.mrb[0].mxu0 %v4008
        %v4010 = vpop.f32.mrb[0].mxu0
        %v4011 = vadd.f32 %v3878, %v4010
        %v4012 = vpop.f32.mrb[0].mxu0
        %4013 = vdwg.mxu0
        %4014 = vmatprep.subr.mxu0 0.0
        %v4015 = vand.u32 %v3648, 4294901760
        %v4016 = vsub.f32 %v3648, %v4015
        %4017 = vmatpush1.msra.mxu0 %v4016
        %4018 = vmatprep.subr.mxu0 0.0
        %v4019 = vand.u32 %v3649, 4294901760
        %v4020 = vsub.f32 %v3649, %v4019
        %4021 = vmatpush1.msra.mxu0 %v4020
        %4022 = vmatprep.subr.mxu0 0.0
        %v4023 = vand.u32 %v3650, 4294901760
        %v4024 = vsub.f32 %v3650, %v4023
        %4025 = vmatpush1.msra.mxu0 %v4024
        %4026 = vmatprep.subr.mxu0 0.0
        %v4027 = vand.u32 %v3651, 4294901760
        %v4028 = vsub.f32 %v3651, %v4027
        %4029 = vmatpush1.msra.mxu0 %v4028
        %4030 = vmatprep.subr.mxu0 0.0
        %4031 = vmatpush1.msra.mxu0 0.0
        %4032 = vmatprep.subr.mxu0 0.0
        %4033 = vmatpush1.msra.mxu0 0.0
        %4034 = vmatprep.subr.mxu0 0.0
        %4035 = vmatpush1.msra.mxu0 0.0
        %4036 = vmatprep.subr.mxu0 0.0
        %4037 = vmatpush1.msra.mxu0 0.0
        %4038 = vmatprep.subr.mxu0 0.0
        %4039 = vmatpush1.msra.mxu0 0.0
        %4040 = vmatprep.subr.mxu0 0.0
        %4041 = vmatpush1.msra.mxu0 0.0
        %4042 = vmatprep.subr.mxu0 0.0
        %4043 = vmatpush1.msra.mxu0 0.0
        %4044 = vmatprep.subr.mxu0 0.0
        %4045 = vmatpush1.msra.mxu0 0.0
        %4046 = vmatprep.subr.mxu0 0.0
        %4047 = vmatpush1.msra.mxu0 0.0
        %4048 = vmatprep.subr.mxu0 0.0
        %4049 = vmatpush1.msra.mxu0 0.0
        %4050 = vmatprep.subr.mxu0 0.0
        %4051 = vmatpush1.msra.mxu0 0.0
        %4052 = vmatprep.subr.mxu0 0.0
        %4053 = vmatpush1.msra.mxu0 0.0
        %4054 = vmatprep.subr.mxu0 0.0
        %4055 = vmatpush1.msra.mxu0 0.0
        %4056 = vmatprep.subr.mxu0 0.0
        %4057 = vmatpush1.msra.mxu0 0.0
        %4058 = vmatprep.subr.mxu0 0.0
        %4059 = vmatpush1.msra.mxu0 0.0
        %4060 = vmatprep.subr.mxu0 0.0
        %4061 = vmatpush1.msra.mxu0 0.0
        %4062 = vmatprep.subr.mxu0 0.0
        %4063 = vmatpush1.msra.mxu0 0.0
        %4064 = vmatprep.subr.mxu0 0.0
        %4065 = vmatpush1.msra.mxu0 0.0
        %4066 = vmatprep.subr.mxu0 0.0
        %4067 = vmatpush1.msra.mxu0 0.0
        %4068 = vmatprep.subr.mxu0 0.0
        %4069 = vmatpush1.msra.mxu0 0.0
        %4070 = vmatprep.subr.mxu0 0.0
        %4071 = vmatpush1.msra.mxu0 0.0
        %4072 = vmatprep.subr.mxu0 0.0
        %4073 = vmatpush1.msra.mxu0 0.0
        %4074 = vmatprep.subr.mxu0 0.0
        %4075 = vmatpush1.msra.mxu0 0.0
        %4076 = vmatprep.subr.mxu0 0.0
        %4077 = vmatpush1.msra.mxu0 0.0
        %4078 = vmatprep.subr.mxu0 0.0
        %4079 = vmatpush1.msra.mxu0 0.0
        %4080 = vmatprep.subr.mxu0 0.0
        %4081 = vmatpush1.msra.mxu0 0.0
        %4082 = vmatprep.subr.mxu0 0.0
        %4083 = vmatpush1.msra.mxu0 0.0
        %4084 = vmatprep.subr.mxu0 0.0
        %4085 = vmatpush1.msra.mxu0 0.0
        %4086 = vmatprep.mubr.f32.mxu0 0.0
        %v4087 = vand.u32 %v3709, 4294901760
        %v4088 = vsub.f32 %v3709, %v4087
        %4089 = vmatmul.mubr.f32.gmra.mrb[0].mxu0 %v4088
        %v4090 = vpop.f32.mrb[0].mxu0
        %v4091 = vadd.f32 %v3969, %v4090
        %v4092 = vpop.f32.mrb[0].mxu0
        %4093 = vmatprep.mubr.f32.mxu0 0.0
        %v4094 = vand.u32 %v3712, 4294901760
        %v4095 = vsub.f32 %v3712, %v4094
        %4096 = vmatmul.mubr.f32.gmra.mrb[0].mxu0 %v4095
        %v4097 = vpop.f32.mrb[0].mxu0
        %v4098 = vadd.f32 %v3975, %v4097
        %v4099 = vpop.f32.mrb[0].mxu0
        %4100 = vmatprep.mubr.f32.mxu0 0.0
        %v4101 = vand.u32 %v3715, 4294901760
        %v4102 = vsub.f32 %v3715, %v4101
        %4103 = vmatmul.mubr.f32.gmra.mrb[0].mxu0 %v4102
        %v4104 = vpop.f32.mrb[0].mxu0
        %v4105 = vadd.f32 %v3981, %v4104
        %v4106 = vpop.f32.mrb[0].mxu0
        %4107 = vmatprep.mubr.f32.mxu0 0.0
        %v4108 = vand.u32 %v3718, 4294901760
        %v4109 = vsub.f32 %v3718, %v4108
        %4110 = vmatmul.mubr.f32.gmra.mrb[0].mxu0 %v4109
        %v4111 = vpop.f32.mrb[0].mxu0
        %v4112 = vadd.f32 %v3987, %v4111
        %v4113 = vpop.f32.mrb[0].mxu0
        %4114 = vmatprep.mubr.f32.mxu0 0.0
        %v4115 = vand.u32 %v3721, 4294901760
        %v4116 = vsub.f32 %v3721, %v4115
        %4117 = vmatmul.mubr.f32.gmra.mrb[0].mxu0 %v4116
        %v4118 = vpop.f32.mrb[0].mxu0
        %v4119 = vadd.f32 %v3993, %v4118
        %v4120 = vpop.f32.mrb[0].mxu0
        %4121 = vmatprep.mubr.f32.mxu0 0.0
        %v4122 = vand.u32 %v3724, 4294901760
        %v4123 = vsub.f32 %v3724, %v4122
        %4124 = vmatmul.mubr.f32.gmra.mrb[0].mxu0 %v4123
        %v4125 = vpop.f32.mrb[0].mxu0
        %v4126 = vadd.f32 %v3999, %v4125
        %v4127 = vpop.f32.mrb[0].mxu0
        %4128 = vmatprep.mubr.f32.mxu0 0.0
        %v4129 = vand.u32 %v3727, 4294901760
        %v4130 = vsub.f32 %v3727, %v4129
        %4131 = vmatmul.mubr.f32.gmra.mrb[0].mxu0 %v4130
        %v4132 = vpop.f32.mrb[0].mxu0
        %v4133 = vadd.f32 %v4005, %v4132
        %v4134 = vpop.f32.mrb[0].mxu0
        %4135 = vmatprep.mubr.f32.mxu0 0.0
        %v4136 = vand.u32 %v3730, 4294901760
        %v4137 = vsub.f32 %v3730, %v4136
        %4138 = vmatmul.mubr.f32.gmra.mrb[0].mxu0 %v4137
        %v4139 = vpop.f32.mrb[0].mxu0
        %v4140 = vadd.f32 %v4011, %v4139
        %v4141 = vpop.f32.mrb[0].mxu0
        %4142 = vdwg.mxu0
        %4143 = vmatprep.subr.mxu0 0.0
        %v4144 = vand.u32 %v3648, 4294901760
        %4145 = vmatpush1.msra.mxu0 %v4144
        %4146 = vmatprep.subr.mxu0 0.0
        %v4147 = vand.u32 %v3649, 4294901760
        %4148 = vmatpush1.msra.mxu0 %v4147
        %4149 = vmatprep.subr.mxu0 0.0
        %v4150 = vand.u32 %v3650, 4294901760
        %4151 = vmatpush1.msra.mxu0 %v4150
        %4152 = vmatprep.subr.mxu0 0.0
        %v4153 = vand.u32 %v3651, 4294901760
        %4154 = vmatpush1.msra.mxu0 %v4153
        %4155 = vmatprep.subr.mxu0 0.0
        %4156 = vmatpush1.msra.mxu0 0.0
        %4157 = vmatprep.subr.mxu0 0.0
        %4158 = vmatpush1.msra.mxu0 0.0
        %4159 = vmatprep.subr.mxu0 0.0
        %4160 = vmatpush1.msra.mxu0 0.0
        %4161 = vmatprep.subr.mxu0 0.0
        %4162 = vmatpush1.msra.mxu0 0.0
        %4163 = vmatprep.subr.mxu0 0.0
        %4164 = vmatpush1.msra.mxu0 0.0
        %4165 = vmatprep.subr.mxu0 0.0
        %4166 = vmatpush1.msra.mxu0 0.0
        %4167 = vmatprep.subr.mxu0 0.0
        %4168 = vmatpush1.msra.mxu0 0.0
        %4169 = vmatprep.subr.mxu0 0.0
        %4170 = vmatpush1.msra.mxu0 0.0
        %4171 = vmatprep.subr.mxu0 0.0
        %4172 = vmatpush1.msra.mxu0 0.0
        %4173 = vmatprep.subr.mxu0 0.0
        %4174 = vmatpush1.msra.mxu0 0.0
        %4175 = vmatprep.subr.mxu0 0.0
        %4176 = vmatpush1.msra.mxu0 0.0
        %4177 = vmatprep.subr.mxu0 0.0
        %4178 = vmatpush1.msra.mxu0 0.0
        %4179 = vmatprep.subr.mxu0 0.0
        %4180 = vmatpush1.msra.mxu0 0.0
        %4181 = vmatprep.subr.mxu0 0.0
        %4182 = vmatpush1.msra.mxu0 0.0
        %4183 = vmatprep.subr.mxu0 0.0
        %4184 = vmatpush1.msra.mxu0 0.0
        %4185 = vmatprep.subr.mxu0 0.0
        %4186 = vmatpush1.msra.mxu0 0.0
        %4187 = vmatprep.subr.mxu0 0.0
        %4188 = vmatpush1.msra.mxu0 0.0
        %4189 = vmatprep.subr.mxu0 0.0
        %4190 = vmatpush1.msra.mxu0 0.0
        %4191 = vmatprep.subr.mxu0 0.0
        %4192 = vmatpush1.msra.mxu0 0.0
        %4193 = vmatprep.subr.mxu0 0.0
        %4194 = vmatpush1.msra.mxu0 0.0
        %4195 = vmatprep.subr.mxu0 0.0
        %4196 = vmatpush1.msra.mxu0 0.0
        %4197 = vmatprep.subr.mxu0 0.0
        %4198 = vmatpush1.msra.mxu0 0.0
        %4199 = vmatprep.subr.mxu0 0.0
        %4200 = vmatpush1.msra.mxu0 0.0
        %4201 = vmatprep.subr.mxu0 0.0
        %4202 = vmatpush1.msra.mxu0 0.0
        %4203 = vmatprep.subr.mxu0 0.0
        %4204 = vmatpush1.msra.mxu0 0.0
        %4205 = vmatprep.subr.mxu0 0.0
        %4206 = vmatpush1.msra.mxu0 0.0
        %4207 = vmatprep.subr.mxu0 0.0
        %4208 = vmatpush1.msra.mxu0 0.0
        %4209 = vmatprep.subr.mxu0 0.0
        %4210 = vmatpush1.msra.mxu0 0.0
        %4211 = vmatprep.mubr.f32.mxu0 0.0
        %v4212 = vand.u32 %v3709, 4294901760
        %v4213 = vsub.f32 %v3709, %v4212
        %v4214 = vand.u32 %v4213, 4294901760
        %4215 = vmatmul.mubr.f32.gmra.mrb[0].mxu0 %v4214
        %v4216 = vpop.f32.mrb[0].mxu0
        %v4217 = vadd.f32 %v4091, %v4216
        %v4218 = vpop.f32.mrb[0].mxu0
        %4219 = vmatprep.mubr.f32.mxu0 0.0
        %v4220 = vand.u32 %v3712, 4294901760
        %v4221 = vsub.f32 %v3712, %v4220
        %v4222 = vand.u32 %v4221, 4294901760
        %4223 = vmatmul.mubr.f32.gmra.mrb[0].mxu0 %v4222
        %v4224 = vpop.f32.mrb[0].mxu0
        %v4225 = vadd.f32 %v4098, %v4224
        %v4226 = vpop.f32.mrb[0].mxu0
        %4227 = vmatprep.mubr.f32.mxu0 0.0
        %v4228 = vand.u32 %v3715, 4294901760
        %v4229 = vsub.f32 %v3715, %v4228
        %v4230 = vand.u32 %v4229, 4294901760
        %4231 = vmatmul.mubr.f32.gmra.mrb[0].mxu0 %v4230
        %v4232 = vpop.f32.mrb[0].mxu0
        %v4233 = vadd.f32 %v4105, %v4232
        %v4234 = vpop.f32.mrb[0].mxu0
        %4235 = vmatprep.mubr.f32.mxu0 0.0
        %v4236 = vand.u32 %v3718, 4294901760
        %v4237 = vsub.f32 %v3718, %v4236
        %v4238 = vand.u32 %v4237, 4294901760
        %4239 = vmatmul.mubr.f32.gmra.mrb[0].mxu0 %v4238
        %v4240 = vpop.f32.mrb[0].mxu0
        %v4241 = vadd.f32 %v4112, %v4240
        %v4242 = vpop.f32.mrb[0].mxu0
        %4243 = vmatprep.mubr.f32.mxu0 0.0
        %v4244 = vand.u32 %v3721, 4294901760
        %v4245 = vsub.f32 %v3721, %v4244
        %v4246 = vand.u32 %v4245, 4294901760
        %4247 = vmatmul.mubr.f32.gmra.mrb[0].mxu0 %v4246
        %v4248 = vpop.f32.mrb[0].mxu0
        %v4249 = vadd.f32 %v4119, %v4248
        %v4250 = vpop.f32.mrb[0].mxu0
        %4251 = vmatprep.mubr.f32.mxu0 0.0
        %v4252 = vand.u32 %v3724, 4294901760
        %v4253 = vsub.f32 %v3724, %v4252
        %v4254 = vand.u32 %v4253, 4294901760
        %4255 = vmatmul.mubr.f32.gmra.mrb[0].mxu0 %v4254
        %v4256 = vpop.f32.mrb[0].mxu0
        %v4257 = vadd.f32 %v4126, %v4256
        %v4258 = vpop.f32.mrb[0].mxu0
        %4259 = vmatprep.mubr.f32.mxu0 0.0
        %v4260 = vand.u32 %v3727, 4294901760
        %v4261 = vsub.f32 %v3727, %v4260
        %v4262 = vand.u32 %v4261, 4294901760
        %4263 = vmatmul.mubr.f32.gmra.mrb[0].mxu0 %v4262
        %v4264 = vpop.f32.mrb[0].mxu0
        %v4265 = vadd.f32 %v4133, %v4264
        %v4266 = vpop.f32.mrb[0].mxu0
        %4267 = vmatprep.mubr.f32.mxu0 0.0
        %v4268 = vand.u32 %v3730, 4294901760
        %v4269 = vsub.f32 %v3730, %v4268
        %v4270 = vand.u32 %v4269, 4294901760
        %4271 = vmatmul.mubr.f32.gmra.mrb[0].mxu0 %v4270
        %v4272 = vpop.f32.mrb[0].mxu0
        %v4273 = vadd.f32 %v4140, %v4272
        %v4274 = vpop.f32.mrb[0].mxu0
        %4275 = vdwg.mxu0
        %4276 = vmatprep.subr.mxu0 0.0
        %v4277 = vand.u32 %v3648, 4294901760
        %v4278 = vsub.f32 %v3648, %v4277
        %v4279 = vand.u32 %v4278, 4294901760
        %4280 = vmatpush1.msra.mxu0 %v4279
        %4281 = vmatprep.subr.mxu0 0.0
        %v4282 = vand.u32 %v3649, 4294901760
        %v4283 = vsub.f32 %v3649, %v4282
        %v4284 = vand.u32 %v4283, 4294901760
        %4285 = vmatpush1.msra.mxu0 %v4284
        %4286 = vmatprep.subr.mxu0 0.0
        %v4287 = vand.u32 %v3650, 4294901760
        %v4288 = vsub.f32 %v3650, %v4287
        %v4289 = vand.u32 %v4288, 4294901760
        %4290 = vmatpush1.msra.mxu0 %v4289
        %4291 = vmatprep.subr.mxu0 0.0
        %v4292 = vand.u32 %v3651, 4294901760
        %v4293 = vsub.f32 %v3651, %v4292
        %v4294 = vand.u32 %v4293, 4294901760
        %4295 = vmatpush1.msra.mxu0 %v4294
        %4296 = vmatprep.subr.mxu0 0.0
        %4297 = vmatpush1.msra.mxu0 0.0
        %4298 = vmatprep.subr.mxu0 0.0
        %4299 = vmatpush1.msra.mxu0 0.0
        %4300 = vmatprep.subr.mxu0 0.0
        %4301 = vmatpush1.msra.mxu0 0.0
        %4302 = vmatprep.subr.mxu0 0.0
        %4303 = vmatpush1.msra.mxu0 0.0
        %4304 = vmatprep.subr.mxu0 0.0
        %4305 = vmatpush1.msra.mxu0 0.0
        %4306 = vmatprep.subr.mxu0 0.0
        %4307 = vmatpush1.msra.mxu0 0.0
        %4308 = vmatprep.subr.mxu0 0.0
        %4309 = vmatpush1.msra.mxu0 0.0
        %4310 = vmatprep.subr.mxu0 0.0
        %4311 = vmatpush1.msra.mxu0 0.0
        %4312 = vmatprep.subr.mxu0 0.0
        %4313 = vmatpush1.msra.mxu0 0.0
        %4314 = vmatprep.subr.mxu0 0.0
        %4315 = vmatpush1.msra.mxu0 0.0
        %4316 = vmatprep.subr.mxu0 0.0
        %4317 = vmatpush1.msra.mxu0 0.0
        %4318 = vmatprep.subr.mxu0 0.0
        %4319 = vmatpush1.msra.mxu0 0.0
        %4320 = vmatprep.subr.mxu0 0.0
        %4321 = vmatpush1.msra.mxu0 0.0
        %4322 = vmatprep.subr.mxu0 0.0
        %4323 = vmatpush1.msra.mxu0 0.0
        %4324 = vmatprep.subr.mxu0 0.0
        %4325 = vmatpush1.msra.mxu0 0.0
        %4326 = vmatprep.subr.mxu0 0.0
        %4327 = vmatpush1.msra.mxu0 0.0
        %4328 = vmatprep.subr.mxu0 0.0
        %4329 = vmatpush1.msra.mxu0 0.0
        %4330 = vmatprep.subr.mxu0 0.0
        %4331 = vmatpush1.msra.mxu0 0.0
        %4332 = vmatprep.subr.mxu0 0.0
        %4333 = vmatpush1.msra.mxu0 0.0
        %4334 = vmatprep.subr.mxu0 0.0
        %4335 = vmatpush1.msra.mxu0 0.0
        %4336 = vmatprep.subr.mxu0 0.0
        %4337 = vmatpush1.msra.mxu0 0.0
        %4338 = vmatprep.subr.mxu0 0.0
        %4339 = vmatpush1.msra.mxu0 0.0
        %4340 = vmatprep.subr.mxu0 0.0
        %4341 = vmatpush1.msra.mxu0 0.0
        %4342 = vmatprep.subr.mxu0 0.0
        %4343 = vmatpush1.msra.mxu0 0.0
        %4344 = vmatprep.subr.mxu0 0.0
        %4345 = vmatpush1.msra.mxu0 0.0
        %4346 = vmatprep.subr.mxu0 0.0
        %4347 = vmatpush1.msra.mxu0 0.0
        %4348 = vmatprep.subr.mxu0 0.0
        %4349 = vmatpush1.msra.mxu0 0.0
        %4350 = vmatprep.subr.mxu0 0.0
        %4351 = vmatpush1.msra.mxu0 0.0
        %4352 = vmatprep.mubr.f32.mxu0 0.0
        %v4353 = vand.u32 %v3709, 4294901760
        %4354 = vmatmul.mubr.f32.gmra.mrb[0].mxu0 %v4353
        %v4355 = vpop.f32.mrb[0].mxu0
        %v4356 = vadd.f32 %v4217, %v4355
        %v4357 = vpop.f32.mrb[0].mxu0
        %4358 = vmatprep.mubr.f32.mxu0 0.0
        %v4359 = vand.u32 %v3712, 4294901760
        %4360 = vmatmul.mubr.f32.gmra.mrb[0].mxu0 %v4359
        %v4361 = vpop.f32.mrb[0].mxu0
        %v4362 = vadd.f32 %v4225, %v4361
        %v4363 = vpop.f32.mrb[0].mxu0
        %4364 = vmatprep.mubr.f32.mxu0 0.0
        %v4365 = vand.u32 %v3715, 4294901760
        %4366 = vmatmul.mubr.f32.gmra.mrb[0].mxu0 %v4365
        %v4367 = vpop.f32.mrb[0].mxu0
        %v4368 = vadd.f32 %v4233, %v4367
        %v4369 = vpop.f32.mrb[0].mxu0
        %4370 = vmatprep.mubr.f32.mxu0 0.0
        %v4371 = vand.u32 %v3718, 4294901760
        %4372 = vmatmul.mubr.f32.gmra.mrb[0].mxu0 %v4371
        %v4373 = vpop.f32.mrb[0].mxu0
        %v4374 = vadd.f32 %v4241, %v4373
        %v4375 = vpop.f32.mrb[0].mxu0
        %4376 = vmatprep.mubr.f32.mxu0 0.0
        %v4377 = vand.u32 %v3721, 4294901760
        %4378 = vmatmul.mubr.f32.gmra.mrb[0].mxu0 %v4377
        %v4379 = vpop.f32.mrb[0].mxu0
        %v4380 = vadd.f32 %v4249, %v4379
        %v4381 = vpop.f32.mrb[0].mxu0
        %4382 = vmatprep.mubr.f32.mxu0 0.0
        %v4383 = vand.u32 %v3724, 4294901760
        %4384 = vmatmul.mubr.f32.gmra.mrb[0].mxu0 %v4383
        %v4385 = vpop.f32.mrb[0].mxu0
        %v4386 = vadd.f32 %v4257, %v4385
        %v4387 = vpop.f32.mrb[0].mxu0
        %4388 = vmatprep.mubr.f32.mxu0 0.0
        %v4389 = vand.u32 %v3727, 4294901760
        %4390 = vmatmul.mubr.f32.gmra.mrb[0].mxu0 %v4389
        %v4391 = vpop.f32.mrb[0].mxu0
        %v4392 = vadd.f32 %v4265, %v4391
        %v4393 = vpop.f32.mrb[0].mxu0
        %4394 = vmatprep.mubr.f32.mxu0 0.0
        %v4395 = vand.u32 %v3730, 4294901760
        %4396 = vmatmul.mubr.f32.gmra.mrb[0].mxu0 %v4395
        %v4397 = vpop.f32.mrb[0].mxu0
        %v4398 = vadd.f32 %v4273, %v4397
        %v4399 = vpop.f32.mrb[0].mxu0
        %4400 = vdwg.mxu0
        %4401 = vmatprep.subr.mxu0 0.0
        %v4402 = vand.u32 %v3648, 4294901760
        %4403 = vmatpush1.msra.mxu0 %v4402
        %4404 = vmatprep.subr.mxu0 0.0
        %v4405 = vand.u32 %v3649, 4294901760
        %4406 = vmatpush1.msra.mxu0 %v4405
        %4407 = vmatprep.subr.mxu0 0.0
        %v4408 = vand.u32 %v3650, 4294901760
        %4409 = vmatpush1.msra.mxu0 %v4408
        %4410 = vmatprep.subr.mxu0 0.0
        %v4411 = vand.u32 %v3651, 4294901760
        %4412 = vmatpush1.msra.mxu0 %v4411
        %4413 = vmatprep.subr.mxu0 0.0
        %4414 = vmatpush1.msra.mxu0 0.0
        %4415 = vmatprep.subr.mxu0 0.0
        %4416 = vmatpush1.msra.mxu0 0.0
        %4417 = vmatprep.subr.mxu0 0.0
        %4418 = vmatpush1.msra.mxu0 0.0
        %4419 = vmatprep.subr.mxu0 0.0
        %4420 = vmatpush1.msra.mxu0 0.0
        %4421 = vmatprep.subr.mxu0 0.0
        %4422 = vmatpush1.msra.mxu0 0.0
        %4423 = vmatprep.subr.mxu0 0.0
        %4424 = vmatpush1.msra.mxu0 0.0
        %4425 = vmatprep.subr.mxu0 0.0
        %4426 = vmatpush1.msra.mxu0 0.0
        %4427 = vmatprep.subr.mxu0 0.0
        %4428 = vmatpush1.msra.mxu0 0.0
        %4429 = vmatprep.subr.mxu0 0.0
        %4430 = vmatpush1.msra.mxu0 0.0
        %4431 = vmatprep.subr.mxu0 0.0
        %4432 = vmatpush1.msra.mxu0 0.0
        %4433 = vmatprep.subr.mxu0 0.0
        %4434 = vmatpush1.msra.mxu0 0.0
        %4435 = vmatprep.subr.mxu0 0.0
        %4436 = vmatpush1.msra.mxu0 0.0
        %4437 = vmatprep.subr.mxu0 0.0
        %4438 = vmatpush1.msra.mxu0 0.0
        %4439 = vmatprep.subr.mxu0 0.0
        %4440 = vmatpush1.msra.mxu0 0.0
        %4441 = vmatprep.subr.mxu0 0.0
        %4442 = vmatpush1.msra.mxu0 0.0
        %4443 = vmatprep.subr.mxu0 0.0
        %4444 = vmatpush1.msra.mxu0 0.0
        %4445 = vmatprep.subr.mxu0 0.0
        %4446 = vmatpush1.msra.mxu0 0.0
        %4447 = vmatprep.subr.mxu0 0.0
        %4448 = vmatpush1.msra.mxu0 0.0
        %4449 = vmatprep.subr.mxu0 0.0
        %4450 = vmatpush1.msra.mxu0 0.0
        %4451 = vmatprep.subr.mxu0 0.0
        %4452 = vmatpush1.msra.mxu0 0.0
        %4453 = vmatprep.subr.mxu0 0.0
        %4454 = vmatpush1.msra.mxu0 0.0
        %4455 = vmatprep.subr.mxu0 0.0
        %4456 = vmatpush1.msra.mxu0 0.0
        %4457 = vmatprep.subr.mxu0 0.0
        %4458 = vmatpush1.msra.mxu0 0.0
        %4459 = vmatprep.subr.mxu0 0.0
        %4460 = vmatpush1.msra.mxu0 0.0
        %4461 = vmatprep.subr.mxu0 0.0
        %4462 = vmatpush1.msra.mxu0 0.0
        %4463 = vmatprep.subr.mxu0 0.0
        %4464 = vmatpush1.msra.mxu0 0.0
        %4465 = vmatprep.subr.mxu0 0.0
        %4466 = vmatpush1.msra.mxu0 0.0
        %4467 = vmatprep.subr.mxu0 0.0
        %4468 = vmatpush1.msra.mxu0 0.0
        %4469 = vmatprep.mubr.f32.mxu0 0.0
        %v4470 = vand.u32 %v3709, 4294901760
        %4471 = vmatmul.mubr.f32.gmra.mrb[0].mxu0 %v4470
        %v4472 = vpop.f32.mrb[0].mxu0
        %v4473 = vadd.f32 %v4356, %v4472
        %v4474 = vpop.f32.mrb[0].mxu0
        %4475 = vmatprep.mubr.f32.mxu0 0.0
        %v4476 = vand.u32 %v3712, 4294901760
        %4477 = vmatmul.mubr.f32.gmra.mrb[0].mxu0 %v4476
        %v4478 = vpop.f32.mrb[0].mxu0
        %v4479 = vadd.f32 %v4362, %v4478
        %v4480 = vpop.f32.mrb[0].mxu0
        %4481 = vmatprep.mubr.f32.mxu0 0.0
        %v4482 = vand.u32 %v3715, 4294901760
        %4483 = vmatmul.mubr.f32.gmra.mrb[0].mxu0 %v4482
        %v4484 = vpop.f32.mrb[0].mxu0
        %v4485 = vadd.f32 %v4368, %v4484
        %v4486 = vpop.f32.mrb[0].mxu0
        %4487 = vmatprep.mubr.f32.mxu0 0.0
        %v4488 = vand.u32 %v3718, 4294901760
        %4489 = vmatmul.mubr.f32.gmra.mrb[0].mxu0 %v4488
        %v4490 = vpop.f32.mrb[0].mxu0
        %v4491 = vadd.f32 %v4374, %v4490
        %v4492 = vpop.f32.mrb[0].mxu0
        %4493 = vmatprep.mubr.f32.mxu0 0.0
        %v4494 = vand.u32 %v3721, 4294901760
        %4495 = vmatmul.mubr.f32.gmra.mrb[0].mxu0 %v4494
        %v4496 = vpop.f32.mrb[0].mxu0
        %v4497 = vadd.f32 %v4380, %v4496
        %v4498 = vpop.f32.mrb[0].mxu0
        %4499 = vmatprep.mubr.f32.mxu0 0.0
        %v4500 = vand.u32 %v3724, 4294901760
        %4501 = vmatmul.mubr.f32.gmra.mrb[0].mxu0 %v4500
        %v4502 = vpop.f32.mrb[0].mxu0
        %v4503 = vadd.f32 %v4386, %v4502
        %v4504 = vpop.f32.mrb[0].mxu0
        %4505 = vmatprep.mubr.f32.mxu0 0.0
        %v4506 = vand.u32 %v3727, 4294901760
        %4507 = vmatmul.mubr.f32.gmra.mrb[0].mxu0 %v4506
        %v4508 = vpop.f32.mrb[0].mxu0
        %v4509 = vadd.f32 %v4392, %v4508
        %v4510 = vpop.f32.mrb[0].mxu0
        %4511 = vmatprep.mubr.f32.mxu0 0.0
        %v4512 = vand.u32 %v3730, 4294901760
        %4513 = vmatmul.mubr.f32.gmra.mrb[0].mxu0 %v4512
        %v4514 = vpop.f32.mrb[0].mxu0
        %v4515 = vadd.f32 %v4398, %v4514
        %v4516 = vpop.f32.mrb[0].mxu0
        %4517 = vdwg.mxu0
        %v4518 = vadd.f32 %v1033, %v4473
        %v4519 = vadd.f32 %v1034, %v4479
        %v4520 = vadd.f32 %v1035, %v4485
        %v4521 = vadd.f32 %v1036, %v4491
        %v4522 = vmul.f32 %v4518, %v1031
        %v4523 = vmul.f32 %v4519, %v1031
        %v4524 = vmul.f32 %v4520, %v1031
        %v4525 = vmul.f32 %v4521, %v1031
        %v4526 = vadd.f32 %v4497, 0.0
        %v4527 = vadd.f32 %v4503, 0.0
        %v4528 = vadd.f32 %v4509, 0.0
        %v4529 = vadd.f32 %v4515, 0.0
        %4534 = vrot.lane.b32.xlu0 %v4522, 2
        %v4535 = vpop.permute.xlu0 %4534
        %4536 = vrot.lane.b32.xlu0 %v4523, 2
        %v4537 = vpop.permute.xlu0 %4536
        %4538 = vrot.lane.b32.xlu0 %v4524, 2
        %v4539 = vpop.permute.xlu0 %4538
        %4540 = vrot.lane.b32.xlu0 %v4525, 2
        %v4541 = vpop.permute.xlu0 %4540
        %4546 = vst.msk [vmem:[#allocation2] sm:$0xff] %vm1062, %v4535
        %4547 = vst.msk [vmem:[#allocation2 + $0x8] sm:$0xff] %vm1062, %v4537
        %4548 = vst.msk [vmem:[#allocation2 + $0x10] sm:$0xff] %vm1062, %v4539
        %4549 = vst.msk [vmem:[#allocation2 + $0x18] sm:$0xff] %vm1062, %v4541
        %v4550 = vld [vmem:[#allocation2] sm:$0xff]
        %v4551 = vld [vmem:[#allocation2 + $0x8] sm:$0xff]
        %v4552 = vld [vmem:[#allocation2 + $0x10] sm:$0xff]
        %v4553 = vld [vmem:[#allocation2 + $0x18] sm:$0xff]
        %s4554 = scalar_lea.vmem %s4, 192
        %v4555 = vld [vmem:[%s4554] sm:$0xff]
        %v4556 = vld [vmem:[%s4554 + $0x8] sm:$0xff]
        %v4557 = vld [vmem:[%s4554 + $0x10] sm:$0xff]
        %v4558 = vld [vmem:[%s4554 + $0x18] sm:$0xff]
        %v4559 = vld [vmem:[%s4554 + $0x20] sm:$0xff]
        %v4560 = vld [vmem:[%s4554 + $0x28] sm:$0xff]
        %v4561 = vld [vmem:[%s4554 + $0x30] sm:$0xff]
        %v4562 = vld [vmem:[%s4554 + $0x38] sm:$0xff]
        %s4563 = scalar_lea.vmem %s4, 256
        %v4564 = vld [vmem:[%s4563] sm:$0xff]
        %v4565 = vld [vmem:[%s4563 + $0x8] sm:$0xff]
        %v4566 = vld [vmem:[%s4563 + $0x10] sm:$0xff]
        %v4567 = vld [vmem:[%s4563 + $0x18] sm:$0xff]
        %v4568 = vld [vmem:[%s4563 + $0x20] sm:$0xff]
        %v4569 = vld [vmem:[%s4563 + $0x28] sm:$0xff]
        %v4570 = vld [vmem:[%s4563 + $0x30] sm:$0xff]
        %v4571 = vld [vmem:[%s4563 + $0x38] sm:$0xff]
        %v4573 = vsel %vm1088, %v4564, 0
        %v4576 = vsel %vm1088, %v4565, 0
        %v4579 = vsel %vm1088, %v4566, 0
        %v4582 = vsel %vm1088, %v4567, 0
        %v4585 = vsel %vm1088, %v4568, 0
        %v4588 = vsel %vm1088, %v4569, 0
        %v4591 = vsel %vm1088, %v4570, 0
        %v4594 = vsel %vm1088, %v4571, 0
        %4596 = vmatprep.subr.mxu0 0.0
        %v4597 = vand.u32 %v4522, 4294901760
        %4598 = vmatpush1.msra.mxu0 %v4597
        %4599 = vmatprep.subr.mxu0 0.0
        %v4600 = vand.u32 %v4523, 4294901760
        %4601 = vmatpush1.msra.mxu0 %v4600
        %4602 = vmatprep.subr.mxu0 0.0
        %v4603 = vand.u32 %v4524, 4294901760
        %4604 = vmatpush1.msra.mxu0 %v4603
        %4605 = vmatprep.subr.mxu0 0.0
        %v4606 = vand.u32 %v4525, 4294901760
        %4607 = vmatpush1.msra.mxu0 %v4606
        %4608 = vmatprep.subr.mxu0 0.0
        %4609 = vmatpush1.msra.mxu0 0.0
        %4610 = vmatprep.subr.mxu0 0.0
        %4611 = vmatpush1.msra.mxu0 0.0
        %4612 = vmatprep.subr.mxu0 0.0
        %4613 = vmatpush1.msra.mxu0 0.0
        %4614 = vmatprep.subr.mxu0 0.0
        %4615 = vmatpush1.msra.mxu0 0.0
        %4616 = vmatprep.subr.mxu0 0.0
        %4617 = vmatpush1.msra.mxu0 0.0
        %4618 = vmatprep.subr.mxu0 0.0
        %4619 = vmatpush1.msra.mxu0 0.0
        %4620 = vmatprep.subr.mxu0 0.0
        %4621 = vmatpush1.msra.mxu0 0.0
        %4622 = vmatprep.subr.mxu0 0.0
        %4623 = vmatpush1.msra.mxu0 0.0
        %4624 = vmatprep.subr.mxu0 0.0
        %4625 = vmatpush1.msra.mxu0 0.0
        %4626 = vmatprep.subr.mxu0 0.0
        %4627 = vmatpush1.msra.mxu0 0.0
        %4628 = vmatprep.subr.mxu0 0.0
        %4629 = vmatpush1.msra.mxu0 0.0
        %4630 = vmatprep.subr.mxu0 0.0
        %4631 = vmatpush1.msra.mxu0 0.0
        %4632 = vmatprep.subr.mxu0 0.0
        %4633 = vmatpush1.msra.mxu0 0.0
        %4634 = vmatprep.subr.mxu0 0.0
        %4635 = vmatpush1.msra.mxu0 0.0
        %4636 = vmatprep.subr.mxu0 0.0
        %4637 = vmatpush1.msra.mxu0 0.0
        %4638 = vmatprep.subr.mxu0 0.0
        %4639 = vmatpush1.msra.mxu0 0.0
        %4640 = vmatprep.subr.mxu0 0.0
        %4641 = vmatpush1.msra.mxu0 0.0
        %4642 = vmatprep.subr.mxu0 0.0
        %4643 = vmatpush1.msra.mxu0 0.0
        %4644 = vmatprep.subr.mxu0 0.0
        %4645 = vmatpush1.msra.mxu0 0.0
        %4646 = vmatprep.subr.mxu0 0.0
        %4647 = vmatpush1.msra.mxu0 0.0
        %4648 = vmatprep.subr.mxu0 0.0
        %4649 = vmatpush1.msra.mxu0 0.0
        %4650 = vmatprep.subr.mxu0 0.0
        %4651 = vmatpush1.msra.mxu0 0.0
        %4652 = vmatprep.subr.mxu0 0.0
        %4653 = vmatpush1.msra.mxu0 0.0
        %4654 = vmatprep.subr.mxu0 0.0
        %4655 = vmatpush1.msra.mxu0 0.0
        %4656 = vmatprep.subr.mxu0 0.0
        %4657 = vmatpush1.msra.mxu0 0.0
        %4658 = vmatprep.subr.mxu0 0.0
        %4659 = vmatpush1.msra.mxu0 0.0
        %4660 = vmatprep.subr.mxu0 0.0
        %4661 = vmatpush1.msra.mxu0 0.0
        %4662 = vmatprep.subr.mxu0 0.0
        %4663 = vmatpush1.msra.mxu0 0.0
        %4664 = vmatprep.mubr.f32.mxu0 0.0
        %v4665 = vand.u32 %v4573, 4294901760
        %v4666 = vsub.f32 %v4573, %v4665
        %v4667 = vand.u32 %v4666, 4294901760
        %v4668 = vsub.f32 %v4666, %v4667
        %v4669 = vand.u32 %v4668, 4294901760
        %4670 = vmatmul.mubr.f32.gmra.mrb[0].mxu0 %v4669
        %v4671 = vpop.f32.mrb[0].mxu0
        %v4672 = vadd.f32 0.0, %v4671
        %v4673 = vpop.f32.mrb[0].mxu0
        %4674 = vmatprep.mubr.f32.mxu0 0.0
        %v4675 = vand.u32 %v4576, 4294901760
        %v4676 = vsub.f32 %v4576, %v4675
        %v4677 = vand.u32 %v4676, 4294901760
        %v4678 = vsub.f32 %v4676, %v4677
        %v4679 = vand.u32 %v4678, 4294901760
        %4680 = vmatmul.mubr.f32.gmra.mrb[0].mxu0 %v4679
        %v4681 = vpop.f32.mrb[0].mxu0
        %v4682 = vadd.f32 0.0, %v4681
        %v4683 = vpop.f32.mrb[0].mxu0
        %4684 = vmatprep.mubr.f32.mxu0 0.0
        %v4685 = vand.u32 %v4579, 4294901760
        %v4686 = vsub.f32 %v4579, %v4685
        %v4687 = vand.u32 %v4686, 4294901760
        %v4688 = vsub.f32 %v4686, %v4687
        %v4689 = vand.u32 %v4688, 4294901760
        %4690 = vmatmul.mubr.f32.gmra.mrb[0].mxu0 %v4689
        %v4691 = vpop.f32.mrb[0].mxu0
        %v4692 = vadd.f32 0.0, %v4691
        %v4693 = vpop.f32.mrb[0].mxu0
        %4694 = vmatprep.mubr.f32.mxu0 0.0
        %v4695 = vand.u32 %v4582, 4294901760
        %v4696 = vsub.f32 %v4582, %v4695
        %v4697 = vand.u32 %v4696, 4294901760
        %v4698 = vsub.f32 %v4696, %v4697
        %v4699 = vand.u32 %v4698, 4294901760
        %4700 = vmatmul.mubr.f32.gmra.mrb[0].mxu0 %v4699
        %v4701 = vpop.f32.mrb[0].mxu0
        %v4702 = vadd.f32 0.0, %v4701
        %v4703 = vpop.f32.mrb[0].mxu0
        %4704 = vmatprep.mubr.f32.mxu0 0.0
        %v4705 = vand.u32 %v4585, 4294901760
        %v4706 = vsub.f32 %v4585, %v4705
        %v4707 = vand.u32 %v4706, 4294901760
        %v4708 = vsub.f32 %v4706, %v4707
        %v4709 = vand.u32 %v4708, 4294901760
        %4710 = vmatmul.mubr.f32.gmra.mrb[0].mxu0 %v4709
        %v4711 = vpop.f32.mrb[0].mxu0
        %v4712 = vadd.f32 0.0, %v4711
        %v4713 = vpop.f32.mrb[0].mxu0
        %4714 = vmatprep.mubr.f32.mxu0 0.0
        %v4715 = vand.u32 %v4588, 4294901760
        %v4716 = vsub.f32 %v4588, %v4715
        %v4717 = vand.u32 %v4716, 4294901760
        %v4718 = vsub.f32 %v4716, %v4717
        %v4719 = vand.u32 %v4718, 4294901760
        %4720 = vmatmul.mubr.f32.gmra.mrb[0].mxu0 %v4719
        %v4721 = vpop.f32.mrb[0].mxu0
        %v4722 = vadd.f32 0.0, %v4721
        %v4723 = vpop.f32.mrb[0].mxu0
        %4724 = vmatprep.mubr.f32.mxu0 0.0
        %v4725 = vand.u32 %v4591, 4294901760
        %v4726 = vsub.f32 %v4591, %v4725
        %v4727 = vand.u32 %v4726, 4294901760
        %v4728 = vsub.f32 %v4726, %v4727
        %v4729 = vand.u32 %v4728, 4294901760
        %4730 = vmatmul.mubr.f32.gmra.mrb[0].mxu0 %v4729
        %v4731 = vpop.f32.mrb[0].mxu0
        %v4732 = vadd.f32 0.0, %v4731
        %v4733 = vpop.f32.mrb[0].mxu0
        %4734 = vmatprep.mubr.f32.mxu0 0.0
        %v4735 = vand.u32 %v4594, 4294901760
        %v4736 = vsub.f32 %v4594, %v4735
        %v4737 = vand.u32 %v4736, 4294901760
        %v4738 = vsub.f32 %v4736, %v4737
        %v4739 = vand.u32 %v4738, 4294901760
        %4740 = vmatmul.mubr.f32.gmra.mrb[0].mxu0 %v4739
        %v4741 = vpop.f32.mrb[0].mxu0
        %v4742 = vadd.f32 0.0, %v4741
        %v4743 = vpop.f32.mrb[0].mxu0
        %4744 = vdwg.mxu0
        %4745 = vmatprep.subr.mxu0 0.0
        %v4746 = vand.u32 %v4522, 4294901760
        %v4747 = vsub.f32 %v4522, %v4746
        %v4748 = vand.u32 %v4747, 4294901760
        %v4749 = vsub.f32 %v4747, %v4748
        %v4750 = vand.u32 %v4749, 4294901760
        %4751 = vmatpush1.msra.mxu0 %v4750
        %4752 = vmatprep.subr.mxu0 0.0
        %v4753 = vand.u32 %v4523, 4294901760
        %v4754 = vsub.f32 %v4523, %v4753
        %v4755 = vand.u32 %v4754, 4294901760
        %v4756 = vsub.f32 %v4754, %v4755
        %v4757 = vand.u32 %v4756, 4294901760
        %4758 = vmatpush1.msra.mxu0 %v4757
        %4759 = vmatprep.subr.mxu0 0.0
        %v4760 = vand.u32 %v4524, 4294901760
        %v4761 = vsub.f32 %v4524, %v4760
        %v4762 = vand.u32 %v4761, 4294901760
        %v4763 = vsub.f32 %v4761, %v4762
        %v4764 = vand.u32 %v4763, 4294901760
        %4765 = vmatpush1.msra.mxu0 %v4764
        %4766 = vmatprep.subr.mxu0 0.0
        %v4767 = vand.u32 %v4525, 4294901760
        %v4768 = vsub.f32 %v4525, %v4767
        %v4769 = vand.u32 %v4768, 4294901760
        %v4770 = vsub.f32 %v4768, %v4769
        %v4771 = vand.u32 %v4770, 4294901760
        %4772 = vmatpush1.msra.mxu0 %v4771
        %4773 = vmatprep.subr.mxu0 0.0
        %4774 = vmatpush1.msra.mxu0 0.0
        %4775 = vmatprep.subr.mxu0 0.0
        %4776 = vmatpush1.msra.mxu0 0.0
        %4777 = vmatprep.subr.mxu0 0.0
        %4778 = vmatpush1.msra.mxu0 0.0
        %4779 = vmatprep.subr.mxu0 0.0
        %4780 = vmatpush1.msra.mxu0 0.0
        %4781 = vmatprep.subr.mxu0 0.0
        %4782 = vmatpush1.msra.mxu0 0.0
        %4783 = vmatprep.subr.mxu0 0.0
        %4784 = vmatpush1.msra.mxu0 0.0
        %4785 = vmatprep.subr.mxu0 0.0
        %4786 = vmatpush1.msra.mxu0 0.0
        %4787 = vmatprep.subr.mxu0 0.0
        %4788 = vmatpush1.msra.mxu0 0.0
        %4789 = vmatprep.subr.mxu0 0.0
        %4790 = vmatpush1.msra.mxu0 0.0
        %4791 = vmatprep.subr.mxu0 0.0
        %4792 = vmatpush1.msra.mxu0 0.0
        %4793 = vmatprep.subr.mxu0 0.0
        %4794 = vmatpush1.msra.mxu0 0.0
        %4795 = vmatprep.subr.mxu0 0.0
        %4796 = vmatpush1.msra.mxu0 0.0
        %4797 = vmatprep.subr.mxu0 0.0
        %4798 = vmatpush1.msra.mxu0 0.0
        %4799 = vmatprep.subr.mxu0 0.0
        %4800 = vmatpush1.msra.mxu0 0.0
        %4801 = vmatprep.subr.mxu0 0.0
        %4802 = vmatpush1.msra.mxu0 0.0
        %4803 = vmatprep.subr.mxu0 0.0
        %4804 = vmatpush1.msra.mxu0 0.0
        %4805 = vmatprep.subr.mxu0 0.0
        %4806 = vmatpush1.msra.mxu0 0.0
        %4807 = vmatprep.subr.mxu0 0.0
        %4808 = vmatpush1.msra.mxu0 0.0
        %4809 = vmatprep.subr.mxu0 0.0
        %4810 = vmatpush1.msra.mxu0 0.0
        %4811 = vmatprep.subr.mxu0 0.0
        %4812 = vmatpush1.msra.mxu0 0.0
        %4813 = vmatprep.subr.mxu0 0.0
        %4814 = vmatpush1.msra.mxu0 0.0
        %4815 = vmatprep.subr.mxu0 0.0
        %4816 = vmatpush1.msra.mxu0 0.0
        %4817 = vmatprep.subr.mxu0 0.0
        %4818 = vmatpush1.msra.mxu0 0.0
        %4819 = vmatprep.subr.mxu0 0.0
        %4820 = vmatpush1.msra.mxu0 0.0
        %4821 = vmatprep.subr.mxu0 0.0
        %4822 = vmatpush1.msra.mxu0 0.0
        %4823 = vmatprep.subr.mxu0 0.0
        %4824 = vmatpush1.msra.mxu0 0.0
        %4825 = vmatprep.subr.mxu0 0.0
        %4826 = vmatpush1.msra.mxu0 0.0
        %4827 = vmatprep.subr.mxu0 0.0
        %4828 = vmatpush1.msra.mxu0 0.0
        %4829 = vmatprep.mubr.f32.mxu0 0.0
        %v4830 = vand.u32 %v4573, 4294901760
        %4831 = vmatmul.mubr.f32.gmra.mrb[0].mxu0 %v4830
        %v4832 = vpop.f32.mrb[0].mxu0
        %v4833 = vadd.f32 %v4672, %v4832
        %v4834 = vpop.f32.mrb[0].mxu0
        %4835 = vmatprep.mubr.f32.mxu0 0.0
        %v4836 = vand.u32 %v4576, 4294901760
        %4837 = vmatmul.mubr.f32.gmra.mrb[0].mxu0 %v4836
        %v4838 = vpop.f32.mrb[0].mxu0
        %v4839 = vadd.f32 %v4682, %v4838
        %v4840 = vpop.f32.mrb[0].mxu0
        %4841 = vmatprep.mubr.f32.mxu0 0.0
        %v4842 = vand.u32 %v4579, 4294901760
        %4843 = vmatmul.mubr.f32.gmra.mrb[0].mxu0 %v4842
        %v4844 = vpop.f32.mrb[0].mxu0
        %v4845 = vadd.f32 %v4692, %v4844
        %v4846 = vpop.f32.mrb[0].mxu0
        %4847 = vmatprep.mubr.f32.mxu0 0.0
        %v4848 = vand.u32 %v4582, 4294901760
        %4849 = vmatmul.mubr.f32.gmra.mrb[0].mxu0 %v4848
        %v4850 = vpop.f32.mrb[0].mxu0
        %v4851 = vadd.f32 %v4702, %v4850
        %v4852 = vpop.f32.mrb[0].mxu0
        %4853 = vmatprep.mubr.f32.mxu0 0.0
        %v4854 = vand.u32 %v4585, 4294901760
        %4855 = vmatmul.mubr.f32.gmra.mrb[0].mxu0 %v4854
        %v4856 = vpop.f32.mrb[0].mxu0
        %v4857 = vadd.f32 %v4712, %v4856
        %v4858 = vpop.f32.mrb[0].mxu0
        %4859 = vmatprep.mubr.f32.mxu0 0.0
        %v4860 = vand.u32 %v4588, 4294901760
        %4861 = vmatmul.mubr.f32.gmra.mrb[0].mxu0 %v4860
        %v4862 = vpop.f32.mrb[0].mxu0
        %v4863 = vadd.f32 %v4722, %v4862
        %v4864 = vpop.f32.mrb[0].mxu0
        %4865 = vmatprep.mubr.f32.mxu0 0.0
        %v4866 = vand.u32 %v4591, 4294901760
        %4867 = vmatmul.mubr.f32.gmra.mrb[0].mxu0 %v4866
        %v4868 = vpop.f32.mrb[0].mxu0
        %v4869 = vadd.f32 %v4732, %v4868
        %v4870 = vpop.f32.mrb[0].mxu0
        %4871 = vmatprep.mubr.f32.mxu0 0.0
        %v4872 = vand.u32 %v4594, 4294901760
        %4873 = vmatmul.mubr.f32.gmra.mrb[0].mxu0 %v4872
        %v4874 = vpop.f32.mrb[0].mxu0
        %v4875 = vadd.f32 %v4742, %v4874
        %v4876 = vpop.f32.mrb[0].mxu0
        %4877 = vdwg.mxu0
        %4878 = vmatprep.subr.mxu0 0.0
        %v4879 = vand.u32 %v4522, 4294901760
        %v4880 = vsub.f32 %v4522, %v4879
        %4881 = vmatpush1.msra.mxu0 %v4880
        %4882 = vmatprep.subr.mxu0 0.0
        %v4883 = vand.u32 %v4523, 4294901760
        %v4884 = vsub.f32 %v4523, %v4883
        %4885 = vmatpush1.msra.mxu0 %v4884
        %4886 = vmatprep.subr.mxu0 0.0
        %v4887 = vand.u32 %v4524, 4294901760
        %v4888 = vsub.f32 %v4524, %v4887
        %4889 = vmatpush1.msra.mxu0 %v4888
        %4890 = vmatprep.subr.mxu0 0.0
        %v4891 = vand.u32 %v4525, 4294901760
        %v4892 = vsub.f32 %v4525, %v4891
        %4893 = vmatpush1.msra.mxu0 %v4892
        %4894 = vmatprep.subr.mxu0 0.0
        %4895 = vmatpush1.msra.mxu0 0.0
        %4896 = vmatprep.subr.mxu0 0.0
        %4897 = vmatpush1.msra.mxu0 0.0
        %4898 = vmatprep.subr.mxu0 0.0
        %4899 = vmatpush1.msra.mxu0 0.0
        %4900 = vmatprep.subr.mxu0 0.0
        %4901 = vmatpush1.msra.mxu0 0.0
        %4902 = vmatprep.subr.mxu0 0.0
        %4903 = vmatpush1.msra.mxu0 0.0
        %4904 = vmatprep.subr.mxu0 0.0
        %4905 = vmatpush1.msra.mxu0 0.0
        %4906 = vmatprep.subr.mxu0 0.0
        %4907 = vmatpush1.msra.mxu0 0.0
        %4908 = vmatprep.subr.mxu0 0.0
        %4909 = vmatpush1.msra.mxu0 0.0
        %4910 = vmatprep.subr.mxu0 0.0
        %4911 = vmatpush1.msra.mxu0 0.0
        %4912 = vmatprep.subr.mxu0 0.0
        %4913 = vmatpush1.msra.mxu0 0.0
        %4914 = vmatprep.subr.mxu0 0.0
        %4915 = vmatpush1.msra.mxu0 0.0
        %4916 = vmatprep.subr.mxu0 0.0
        %4917 = vmatpush1.msra.mxu0 0.0
        %4918 = vmatprep.subr.mxu0 0.0
        %4919 = vmatpush1.msra.mxu0 0.0
        %4920 = vmatprep.subr.mxu0 0.0
        %4921 = vmatpush1.msra.mxu0 0.0
        %4922 = vmatprep.subr.mxu0 0.0
        %4923 = vmatpush1.msra.mxu0 0.0
        %4924 = vmatprep.subr.mxu0 0.0
        %4925 = vmatpush1.msra.mxu0 0.0
        %4926 = vmatprep.subr.mxu0 0.0
        %4927 = vmatpush1.msra.mxu0 0.0
        %4928 = vmatprep.subr.mxu0 0.0
        %4929 = vmatpush1.msra.mxu0 0.0
        %4930 = vmatprep.subr.mxu0 0.0
        %4931 = vmatpush1.msra.mxu0 0.0
        %4932 = vmatprep.subr.mxu0 0.0
        %4933 = vmatpush1.msra.mxu0 0.0
        %4934 = vmatprep.subr.mxu0 0.0
        %4935 = vmatpush1.msra.mxu0 0.0
        %4936 = vmatprep.subr.mxu0 0.0
        %4937 = vmatpush1.msra.mxu0 0.0
        %4938 = vmatprep.subr.mxu0 0.0
        %4939 = vmatpush1.msra.mxu0 0.0
        %4940 = vmatprep.subr.mxu0 0.0
        %4941 = vmatpush1.msra.mxu0 0.0
        %4942 = vmatprep.subr.mxu0 0.0
        %4943 = vmatpush1.msra.mxu0 0.0
        %4944 = vmatprep.subr.mxu0 0.0
        %4945 = vmatpush1.msra.mxu0 0.0
        %4946 = vmatprep.subr.mxu0 0.0
        %4947 = vmatpush1.msra.mxu0 0.0
        %4948 = vmatprep.subr.mxu0 0.0
        %4949 = vmatpush1.msra.mxu0 0.0
        %4950 = vmatprep.mubr.f32.mxu0 0.0
        %v4951 = vand.u32 %v4573, 4294901760
        %v4952 = vsub.f32 %v4573, %v4951
        %4953 = vmatmul.mubr.f32.gmra.mrb[0].mxu0 %v4952
        %v4954 = vpop.f32.mrb[0].mxu0
        %v4955 = vadd.f32 %v4833, %v4954
        %v4956 = vpop.f32.mrb[0].mxu0
        %4957 = vmatprep.mubr.f32.mxu0 0.0
        %v4958 = vand.u32 %v4576, 4294901760
        %v4959 = vsub.f32 %v4576, %v4958
        %4960 = vmatmul.mubr.f32.gmra.mrb[0].mxu0 %v4959
        %v4961 = vpop.f32.mrb[0].mxu0
        %v4962 = vadd.f32 %v4839, %v4961
        %v4963 = vpop.f32.mrb[0].mxu0
        %4964 = vmatprep.mubr.f32.mxu0 0.0
        %v4965 = vand.u32 %v4579, 4294901760
        %v4966 = vsub.f32 %v4579, %v4965
        %4967 = vmatmul.mubr.f32.gmra.mrb[0].mxu0 %v4966
        %v4968 = vpop.f32.mrb[0].mxu0
        %v4969 = vadd.f32 %v4845, %v4968
        %v4970 = vpop.f32.mrb[0].mxu0
        %4971 = vmatprep.mubr.f32.mxu0 0.0
        %v4972 = vand.u32 %v4582, 4294901760
        %v4973 = vsub.f32 %v4582, %v4972
        %4974 = vmatmul.mubr.f32.gmra.mrb[0].mxu0 %v4973
        %v4975 = vpop.f32.mrb[0].mxu0
        %v4976 = vadd.f32 %v4851, %v4975
        %v4977 = vpop.f32.mrb[0].mxu0
        %4978 = vmatprep.mubr.f32.mxu0 0.0
        %v4979 = vand.u32 %v4585, 4294901760
        %v4980 = vsub.f32 %v4585, %v4979
        %4981 = vmatmul.mubr.f32.gmra.mrb[0].mxu0 %v4980
        %v4982 = vpop.f32.mrb[0].mxu0
        %v4983 = vadd.f32 %v4857, %v4982
        %v4984 = vpop.f32.mrb[0].mxu0
        %4985 = vmatprep.mubr.f32.mxu0 0.0
        %v4986 = vand.u32 %v4588, 4294901760
        %v4987 = vsub.f32 %v4588, %v4986
        %4988 = vmatmul.mubr.f32.gmra.mrb[0].mxu0 %v4987
        %v4989 = vpop.f32.mrb[0].mxu0
        %v4990 = vadd.f32 %v4863, %v4989
        %v4991 = vpop.f32.mrb[0].mxu0
        %4992 = vmatprep.mubr.f32.mxu0 0.0
        %v4993 = vand.u32 %v4591, 4294901760
        %v4994 = vsub.f32 %v4591, %v4993
        %4995 = vmatmul.mubr.f32.gmra.mrb[0].mxu0 %v4994
        %v4996 = vpop.f32.mrb[0].mxu0
        %v4997 = vadd.f32 %v4869, %v4996
        %v4998 = vpop.f32.mrb[0].mxu0
        %4999 = vmatprep.mubr.f32.mxu0 0.0
        %v5000 = vand.u32 %v4594, 4294901760
        %v5001 = vsub.f32 %v4594, %v5000
        %5002 = vmatmul.mubr.f32.gmra.mrb[0].mxu0 %v5001
        %v5003 = vpop.f32.mrb[0].mxu0
        %v5004 = vadd.f32 %v4875, %v5003
        %v5005 = vpop.f32.mrb[0].mxu0
        %5006 = vdwg.mxu0
        %5007 = vmatprep.subr.mxu0 0.0
        %v5008 = vand.u32 %v4522, 4294901760
        %5009 = vmatpush1.msra.mxu0 %v5008
        %5010 = vmatprep.subr.mxu0 0.0
        %v5011 = vand.u32 %v4523, 4294901760
        %5012 = vmatpush1.msra.mxu0 %v5011
        %5013 = vmatprep.subr.mxu0 0.0
        %v5014 = vand.u32 %v4524, 4294901760
        %5015 = vmatpush1.msra.mxu0 %v5014
        %5016 = vmatprep.subr.mxu0 0.0
        %v5017 = vand.u32 %v4525, 4294901760
        %5018 = vmatpush1.msra.mxu0 %v5017
        %5019 = vmatprep.subr.mxu0 0.0
        %5020 = vmatpush1.msra.mxu0 0.0
        %5021 = vmatprep.subr.mxu0 0.0
        %5022 = vmatpush1.msra.mxu0 0.0
        %5023 = vmatprep.subr.mxu0 0.0
        %5024 = vmatpush1.msra.mxu0 0.0
        %5025 = vmatprep.subr.mxu0 0.0
        %5026 = vmatpush1.msra.mxu0 0.0
        %5027 = vmatprep.subr.mxu0 0.0
        %5028 = vmatpush1.msra.mxu0 0.0
        %5029 = vmatprep.subr.mxu0 0.0
        %5030 = vmatpush1.msra.mxu0 0.0
        %5031 = vmatprep.subr.mxu0 0.0
        %5032 = vmatpush1.msra.mxu0 0.0
        %5033 = vmatprep.subr.mxu0 0.0
        %5034 = vmatpush1.msra.mxu0 0.0
        %5035 = vmatprep.subr.mxu0 0.0
        %5036 = vmatpush1.msra.mxu0 0.0
        %5037 = vmatprep.subr.mxu0 0.0
        %5038 = vmatpush1.msra.mxu0 0.0
        %5039 = vmatprep.subr.mxu0 0.0
        %5040 = vmatpush1.msra.mxu0 0.0
        %5041 = vmatprep.subr.mxu0 0.0
        %5042 = vmatpush1.msra.mxu0 0.0
        %5043 = vmatprep.subr.mxu0 0.0
        %5044 = vmatpush1.msra.mxu0 0.0
        %5045 = vmatprep.subr.mxu0 0.0
        %5046 = vmatpush1.msra.mxu0 0.0
        %5047 = vmatprep.subr.mxu0 0.0
        %5048 = vmatpush1.msra.mxu0 0.0
        %5049 = vmatprep.subr.mxu0 0.0
        %5050 = vmatpush1.msra.mxu0 0.0
        %5051 = vmatprep.subr.mxu0 0.0
        %5052 = vmatpush1.msra.mxu0 0.0
        %5053 = vmatprep.subr.mxu0 0.0
        %5054 = vmatpush1.msra.mxu0 0.0
        %5055 = vmatprep.subr.mxu0 0.0
        %5056 = vmatpush1.msra.mxu0 0.0
        %5057 = vmatprep.subr.mxu0 0.0
        %5058 = vmatpush1.msra.mxu0 0.0
        %5059 = vmatprep.subr.mxu0 0.0
        %5060 = vmatpush1.msra.mxu0 0.0
        %5061 = vmatprep.subr.mxu0 0.0
        %5062 = vmatpush1.msra.mxu0 0.0
        %5063 = vmatprep.subr.mxu0 0.0
        %5064 = vmatpush1.msra.mxu0 0.0
        %5065 = vmatprep.subr.mxu0 0.0
        %5066 = vmatpush1.msra.mxu0 0.0
        %5067 = vmatprep.subr.mxu0 0.0
        %5068 = vmatpush1.msra.mxu0 0.0
        %5069 = vmatprep.subr.mxu0 0.0
        %5070 = vmatpush1.msra.mxu0 0.0
        %5071 = vmatprep.subr.mxu0 0.0
        %5072 = vmatpush1.msra.mxu0 0.0
        %5073 = vmatprep.subr.mxu0 0.0
        %5074 = vmatpush1.msra.mxu0 0.0
        %5075 = vmatprep.mubr.f32.mxu0 0.0
        %v5076 = vand.u32 %v4573, 4294901760
        %v5077 = vsub.f32 %v4573, %v5076
        %v5078 = vand.u32 %v5077, 4294901760
        %5079 = vmatmul.mubr.f32.gmra.mrb[0].mxu0 %v5078
        %v5080 = vpop.f32.mrb[0].mxu0
        %v5081 = vadd.f32 %v4955, %v5080
        %v5082 = vpop.f32.mrb[0].mxu0
        %5083 = vmatprep.mubr.f32.mxu0 0.0
        %v5084 = vand.u32 %v4576, 4294901760
        %v5085 = vsub.f32 %v4576, %v5084
        %v5086 = vand.u32 %v5085, 4294901760
        %5087 = vmatmul.mubr.f32.gmra.mrb[0].mxu0 %v5086
        %v5088 = vpop.f32.mrb[0].mxu0
        %v5089 = vadd.f32 %v4962, %v5088
        %v5090 = vpop.f32.mrb[0].mxu0
        %5091 = vmatprep.mubr.f32.mxu0 0.0
        %v5092 = vand.u32 %v4579, 4294901760
        %v5093 = vsub.f32 %v4579, %v5092
        %v5094 = vand.u32 %v5093, 4294901760
        %5095 = vmatmul.mubr.f32.gmra.mrb[0].mxu0 %v5094
        %v5096 = vpop.f32.mrb[0].mxu0
        %v5097 = vadd.f32 %v4969, %v5096
        %v5098 = vpop.f32.mrb[0].mxu0
        %5099 = vmatprep.mubr.f32.mxu0 0.0
        %v5100 = vand.u32 %v4582, 4294901760
        %v5101 = vsub.f32 %v4582, %v5100
        %v5102 = vand.u32 %v5101, 4294901760
        %5103 = vmatmul.mubr.f32.gmra.mrb[0].mxu0 %v5102
        %v5104 = vpop.f32.mrb[0].mxu0
        %v5105 = vadd.f32 %v4976, %v5104
        %v5106 = vpop.f32.mrb[0].mxu0
        %5107 = vmatprep.mubr.f32.mxu0 0.0
        %v5108 = vand.u32 %v4585, 4294901760
        %v5109 = vsub.f32 %v4585, %v5108
        %v5110 = vand.u32 %v5109, 4294901760
        %5111 = vmatmul.mubr.f32.gmra.mrb[0].mxu0 %v5110
        %v5112 = vpop.f32.mrb[0].mxu0
        %v5113 = vadd.f32 %v4983, %v5112
        %v5114 = vpop.f32.mrb[0].mxu0
        %5115 = vmatprep.mubr.f32.mxu0 0.0
        %v5116 = vand.u32 %v4588, 4294901760
        %v5117 = vsub.f32 %v4588, %v5116
        %v5118 = vand.u32 %v5117, 4294901760
        %5119 = vmatmul.mubr.f32.gmra.mrb[0].mxu0 %v5118
        %v5120 = vpop.f32.mrb[0].mxu0
        %v5121 = vadd.f32 %v4990, %v5120
        %v5122 = vpop.f32.mrb[0].mxu0
        %5123 = vmatprep.mubr.f32.mxu0 0.0
        %v5124 = vand.u32 %v4591, 4294901760
        %v5125 = vsub.f32 %v4591, %v5124
        %v5126 = vand.u32 %v5125, 4294901760
        %5127 = vmatmul.mubr.f32.gmra.mrb[0].mxu0 %v5126
        %v5128 = vpop.f32.mrb[0].mxu0
        %v5129 = vadd.f32 %v4997, %v5128
        %v5130 = vpop.f32.mrb[0].mxu0
        %5131 = vmatprep.mubr.f32.mxu0 0.0
        %v5132 = vand.u32 %v4594, 4294901760
        %v5133 = vsub.f32 %v4594, %v5132
        %v5134 = vand.u32 %v5133, 4294901760
        %5135 = vmatmul.mubr.f32.gmra.mrb[0].mxu0 %v5134
        %v5136 = vpop.f32.mrb[0].mxu0
        %v5137 = vadd.f32 %v5004, %v5136
        %v5138 = vpop.f32.mrb[0].mxu0
        %5139 = vdwg.mxu0
        %5140 = vmatprep.subr.mxu0 0.0
        %v5141 = vand.u32 %v4522, 4294901760
        %v5142 = vsub.f32 %v4522, %v5141
        %v5143 = vand.u32 %v5142, 4294901760
        %5144 = vmatpush1.msra.mxu0 %v5143
        %5145 = vmatprep.subr.mxu0 0.0
        %v5146 = vand.u32 %v4523, 4294901760
        %v5147 = vsub.f32 %v4523, %v5146
        %v5148 = vand.u32 %v5147, 4294901760
        %5149 = vmatpush1.msra.mxu0 %v5148
        %5150 = vmatprep.subr.mxu0 0.0
        %v5151 = vand.u32 %v4524, 4294901760
        %v5152 = vsub.f32 %v4524, %v5151
        %v5153 = vand.u32 %v5152, 4294901760
        %5154 = vmatpush1.msra.mxu0 %v5153
        %5155 = vmatprep.subr.mxu0 0.0
        %v5156 = vand.u32 %v4525, 4294901760
        %v5157 = vsub.f32 %v4525, %v5156
        %v5158 = vand.u32 %v5157, 4294901760
        %5159 = vmatpush1.msra.mxu0 %v5158
        %5160 = vmatprep.subr.mxu0 0.0
        %5161 = vmatpush1.msra.mxu0 0.0
        %5162 = vmatprep.subr.mxu0 0.0
        %5163 = vmatpush1.msra.mxu0 0.0
        %5164 = vmatprep.subr.mxu0 0.0
        %5165 = vmatpush1.msra.mxu0 0.0
        %5166 = vmatprep.subr.mxu0 0.0
        %5167 = vmatpush1.msra.mxu0 0.0
        %5168 = vmatprep.subr.mxu0 0.0
        %5169 = vmatpush1.msra.mxu0 0.0
        %5170 = vmatprep.subr.mxu0 0.0
        %5171 = vmatpush1.msra.mxu0 0.0
        %5172 = vmatprep.subr.mxu0 0.0
        %5173 = vmatpush1.msra.mxu0 0.0
        %5174 = vmatprep.subr.mxu0 0.0
        %5175 = vmatpush1.msra.mxu0 0.0
        %5176 = vmatprep.subr.mxu0 0.0
        %5177 = vmatpush1.msra.mxu0 0.0
        %5178 = vmatprep.subr.mxu0 0.0
        %5179 = vmatpush1.msra.mxu0 0.0
        %5180 = vmatprep.subr.mxu0 0.0
        %5181 = vmatpush1.msra.mxu0 0.0
        %5182 = vmatprep.subr.mxu0 0.0
        %5183 = vmatpush1.msra.mxu0 0.0
        %5184 = vmatprep.subr.mxu0 0.0
        %5185 = vmatpush1.msra.mxu0 0.0
        %5186 = vmatprep.subr.mxu0 0.0
        %5187 = vmatpush1.msra.mxu0 0.0
        %5188 = vmatprep.subr.mxu0 0.0
        %5189 = vmatpush1.msra.mxu0 0.0
        %5190 = vmatprep.subr.mxu0 0.0
        %5191 = vmatpush1.msra.mxu0 0.0
        %5192 = vmatprep.subr.mxu0 0.0
        %5193 = vmatpush1.msra.mxu0 0.0
        %5194 = vmatprep.subr.mxu0 0.0
        %5195 = vmatpush1.msra.mxu0 0.0
        %5196 = vmatprep.subr.mxu0 0.0
        %5197 = vmatpush1.msra.mxu0 0.0
        %5198 = vmatprep.subr.mxu0 0.0
        %5199 = vmatpush1.msra.mxu0 0.0
        %5200 = vmatprep.subr.mxu0 0.0
        %5201 = vmatpush1.msra.mxu0 0.0
        %5202 = vmatprep.subr.mxu0 0.0
        %5203 = vmatpush1.msra.mxu0 0.0
        %5204 = vmatprep.subr.mxu0 0.0
        %5205 = vmatpush1.msra.mxu0 0.0
        %5206 = vmatprep.subr.mxu0 0.0
        %5207 = vmatpush1.msra.mxu0 0.0
        %5208 = vmatprep.subr.mxu0 0.0
        %5209 = vmatpush1.msra.mxu0 0.0
        %5210 = vmatprep.subr.mxu0 0.0
        %5211 = vmatpush1.msra.mxu0 0.0
        %5212 = vmatprep.subr.mxu0 0.0
        %5213 = vmatpush1.msra.mxu0 0.0
        %5214 = vmatprep.subr.mxu0 0.0
        %5215 = vmatpush1.msra.mxu0 0.0
        %5216 = vmatprep.mubr.f32.mxu0 0.0
        %v5217 = vand.u32 %v4573, 4294901760
        %5218 = vmatmul.mubr.f32.gmra.mrb[0].mxu0 %v5217
        %v5219 = vpop.f32.mrb[0].mxu0
        %v5220 = vadd.f32 %v5081, %v5219
        %v5221 = vpop.f32.mrb[0].mxu0
        %5222 = vmatprep.mubr.f32.mxu0 0.0
        %v5223 = vand.u32 %v4576, 4294901760
        %5224 = vmatmul.mubr.f32.gmra.mrb[0].mxu0 %v5223
        %v5225 = vpop.f32.mrb[0].mxu0
        %v5226 = vadd.f32 %v5089, %v5225
        %v5227 = vpop.f32.mrb[0].mxu0
        %5228 = vmatprep.mubr.f32.mxu0 0.0
        %v5229 = vand.u32 %v4579, 4294901760
        %5230 = vmatmul.mubr.f32.gmra.mrb[0].mxu0 %v5229
        %v5231 = vpop.f32.mrb[0].mxu0
        %v5232 = vadd.f32 %v5097, %v5231
        %v5233 = vpop.f32.mrb[0].mxu0
        %5234 = vmatprep.mubr.f32.mxu0 0.0
        %v5235 = vand.u32 %v4582, 4294901760
        %5236 = vmatmul.mubr.f32.gmra.mrb[0].mxu0 %v5235
        %v5237 = vpop.f32.mrb[0].mxu0
        %v5238 = vadd.f32 %v5105, %v5237
        %v5239 = vpop.f32.mrb[0].mxu0
        %5240 = vmatprep.mubr.f32.mxu0 0.0
        %v5241 = vand.u32 %v4585, 4294901760
        %5242 = vmatmul.mubr.f32.gmra.mrb[0].mxu0 %v5241
        %v5243 = vpop.f32.mrb[0].mxu0
        %v5244 = vadd.f32 %v5113, %v5243
        %v5245 = vpop.f32.mrb[0].mxu0
        %5246 = vmatprep.mubr.f32.mxu0 0.0
        %v5247 = vand.u32 %v4588, 4294901760
        %5248 = vmatmul.mubr.f32.gmra.mrb[0].mxu0 %v5247
        %v5249 = vpop.f32.mrb[0].mxu0
        %v5250 = vadd.f32 %v5121, %v5249
        %v5251 = vpop.f32.mrb[0].mxu0
        %5252 = vmatprep.mubr.f32.mxu0 0.0
        %v5253 = vand.u32 %v4591, 4294901760
        %5254 = vmatmul.mubr.f32.gmra.mrb[0].mxu0 %v5253
        %v5255 = vpop.f32.mrb[0].mxu0
        %v5256 = vadd.f32 %v5129, %v5255
        %v5257 = vpop.f32.mrb[0].mxu0
        %5258 = vmatprep.mubr.f32.mxu0 0.0
        %v5259 = vand.u32 %v4594, 4294901760
        %5260 = vmatmul.mubr.f32.gmra.mrb[0].mxu0 %v5259
        %v5261 = vpop.f32.mrb[0].mxu0
        %v5262 = vadd.f32 %v5137, %v5261
        %v5263 = vpop.f32.mrb[0].mxu0
        %5264 = vdwg.mxu0
        %5265 = vmatprep.subr.mxu0 0.0
        %v5266 = vand.u32 %v4522, 4294901760
        %5267 = vmatpush1.msra.mxu0 %v5266
        %5268 = vmatprep.subr.mxu0 0.0
        %v5269 = vand.u32 %v4523, 4294901760
        %5270 = vmatpush1.msra.mxu0 %v5269
        %5271 = vmatprep.subr.mxu0 0.0
        %v5272 = vand.u32 %v4524, 4294901760
        %5273 = vmatpush1.msra.mxu0 %v5272
        %5274 = vmatprep.subr.mxu0 0.0
        %v5275 = vand.u32 %v4525, 4294901760
        %5276 = vmatpush1.msra.mxu0 %v5275
        %5277 = vmatprep.subr.mxu0 0.0
        %5278 = vmatpush1.msra.mxu0 0.0
        %5279 = vmatprep.subr.mxu0 0.0
        %5280 = vmatpush1.msra.mxu0 0.0
        %5281 = vmatprep.subr.mxu0 0.0
        %5282 = vmatpush1.msra.mxu0 0.0
        %5283 = vmatprep.subr.mxu0 0.0
        %5284 = vmatpush1.msra.mxu0 0.0
        %5285 = vmatprep.subr.mxu0 0.0
        %5286 = vmatpush1.msra.mxu0 0.0
        %5287 = vmatprep.subr.mxu0 0.0
        %5288 = vmatpush1.msra.mxu0 0.0
        %5289 = vmatprep.subr.mxu0 0.0
        %5290 = vmatpush1.msra.mxu0 0.0
        %5291 = vmatprep.subr.mxu0 0.0
        %5292 = vmatpush1.msra.mxu0 0.0
        %5293 = vmatprep.subr.mxu0 0.0
        %5294 = vmatpush1.msra.mxu0 0.0
        %5295 = vmatprep.subr.mxu0 0.0
        %5296 = vmatpush1.msra.mxu0 0.0
        %5297 = vmatprep.subr.mxu0 0.0
        %5298 = vmatpush1.msra.mxu0 0.0
        %5299 = vmatprep.subr.mxu0 0.0
        %5300 = vmatpush1.msra.mxu0 0.0
        %5301 = vmatprep.subr.mxu0 0.0
        %5302 = vmatpush1.msra.mxu0 0.0
        %5303 = vmatprep.subr.mxu0 0.0
        %5304 = vmatpush1.msra.mxu0 0.0
        %5305 = vmatprep.subr.mxu0 0.0
        %5306 = vmatpush1.msra.mxu0 0.0
        %5307 = vmatprep.subr.mxu0 0.0
        %5308 = vmatpush1.msra.mxu0 0.0
        %5309 = vmatprep.subr.mxu0 0.0
        %5310 = vmatpush1.msra.mxu0 0.0
        %5311 = vmatprep.subr.mxu0 0.0
        %5312 = vmatpush1.msra.mxu0 0.0
        %5313 = vmatprep.subr.mxu0 0.0
        %5314 = vmatpush1.msra.mxu0 0.0
        %5315 = vmatprep.subr.mxu0 0.0
        %5316 = vmatpush1.msra.mxu0 0.0
        %5317 = vmatprep.subr.mxu0 0.0
        %5318 = vmatpush1.msra.mxu0 0.0
        %5319 = vmatprep.subr.mxu0 0.0
        %5320 = vmatpush1.msra.mxu0 0.0
        %5321 = vmatprep.subr.mxu0 0.0
        %5322 = vmatpush1.msra.mxu0 0.0
        %5323 = vmatprep.subr.mxu0 0.0
        %5324 = vmatpush1.msra.mxu0 0.0
        %5325 = vmatprep.subr.mxu0 0.0
        %5326 = vmatpush1.msra.mxu0 0.0
        %5327 = vmatprep.subr.mxu0 0.0
        %5328 = vmatpush1.msra.mxu0 0.0
        %5329 = vmatprep.subr.mxu0 0.0
        %5330 = vmatpush1.msra.mxu0 0.0
        %5331 = vmatprep.subr.mxu0 0.0
        %5332 = vmatpush1.msra.mxu0 0.0
        %5333 = vmatprep.mubr.f32.mxu0 0.0
        %v5334 = vand.u32 %v4573, 4294901760
        %5335 = vmatmul.mubr.f32.gmra.mrb[0].mxu0 %v5334
        %v5336 = vpop.f32.mrb[0].mxu0
        %v5337 = vadd.f32 %v5220, %v5336
        %v5338 = vpop.f32.mrb[0].mxu0
        %5339 = vmatprep.mubr.f32.mxu0 0.0
        %v5340 = vand.u32 %v4576, 4294901760
        %5341 = vmatmul.mubr.f32.gmra.mrb[0].mxu0 %v5340
        %v5342 = vpop.f32.mrb[0].mxu0
        %v5343 = vadd.f32 %v5226, %v5342
        %v5344 = vpop.f32.mrb[0].mxu0
        %5345 = vmatprep.mubr.f32.mxu0 0.0
        %v5346 = vand.u32 %v4579, 4294901760
        %5347 = vmatmul.mubr.f32.gmra.mrb[0].mxu0 %v5346
        %v5348 = vpop.f32.mrb[0].mxu0
        %v5349 = vadd.f32 %v5232, %v5348
        %v5350 = vpop.f32.mrb[0].mxu0
        %5351 = vmatprep.mubr.f32.mxu0 0.0
        %v5352 = vand.u32 %v4582, 4294901760
        %5353 = vmatmul.mubr.f32.gmra.mrb[0].mxu0 %v5352
        %v5354 = vpop.f32.mrb[0].mxu0
        %v5355 = vadd.f32 %v5238, %v5354
        %v5356 = vpop.f32.mrb[0].mxu0
        %5357 = vmatprep.mubr.f32.mxu0 0.0
        %v5358 = vand.u32 %v4585, 4294901760
        %5359 = vmatmul.mubr.f32.gmra.mrb[0].mxu0 %v5358
        %v5360 = vpop.f32.mrb[0].mxu0
        %v5361 = vadd.f32 %v5244, %v5360
        %v5362 = vpop.f32.mrb[0].mxu0
        %5363 = vmatprep.mubr.f32.mxu0 0.0
        %v5364 = vand.u32 %v4588, 4294901760
        %5365 = vmatmul.mubr.f32.gmra.mrb[0].mxu0 %v5364
        %v5366 = vpop.f32.mrb[0].mxu0
        %v5367 = vadd.f32 %v5250, %v5366
        %v5368 = vpop.f32.mrb[0].mxu0
        %5369 = vmatprep.mubr.f32.mxu0 0.0
        %v5370 = vand.u32 %v4591, 4294901760
        %5371 = vmatmul.mubr.f32.gmra.mrb[0].mxu0 %v5370
        %v5372 = vpop.f32.mrb[0].mxu0
        %v5373 = vadd.f32 %v5256, %v5372
        %v5374 = vpop.f32.mrb[0].mxu0
        %5375 = vmatprep.mubr.f32.mxu0 0.0
        %v5376 = vand.u32 %v4594, 4294901760
        %5377 = vmatmul.mubr.f32.gmra.mrb[0].mxu0 %v5376
        %v5378 = vpop.f32.mrb[0].mxu0
        %v5379 = vadd.f32 %v5262, %v5378
        %v5380 = vpop.f32.mrb[0].mxu0
        %5381 = vdwg.mxu0
        %v5383 = vsel %vm1088, %v4555, 0
        %v5386 = vsel %vm1088, %v4556, 0
        %v5389 = vsel %vm1088, %v4557, 0
        %v5392 = vsel %vm1088, %v4558, 0
        %v5395 = vsel %vm1088, %v4559, 0
        %v5398 = vsel %vm1088, %v4560, 0
        %v5401 = vsel %vm1088, %v4561, 0
        %v5404 = vsel %vm1088, %v4562, 0
        %5406 = vmatprep.subr.mxu0 0.0
        %v5407 = vand.u32 %v4550, 4294901760
        %5408 = vmatpush1.msra.mxu0 %v5407
        %5409 = vmatprep.subr.mxu0 0.0
        %v5410 = vand.u32 %v4551, 4294901760
        %5411 = vmatpush1.msra.mxu0 %v5410
        %5412 = vmatprep.subr.mxu0 0.0
        %v5413 = vand.u32 %v4552, 4294901760
        %5414 = vmatpush1.msra.mxu0 %v5413
        %5415 = vmatprep.subr.mxu0 0.0
        %v5416 = vand.u32 %v4553, 4294901760
        %5417 = vmatpush1.msra.mxu0 %v5416
        %5418 = vmatprep.subr.mxu0 0.0
        %5419 = vmatpush1.msra.mxu0 0.0
        %5420 = vmatprep.subr.mxu0 0.0
        %5421 = vmatpush1.msra.mxu0 0.0
        %5422 = vmatprep.subr.mxu0 0.0
        %5423 = vmatpush1.msra.mxu0 0.0
        %5424 = vmatprep.subr.mxu0 0.0
        %5425 = vmatpush1.msra.mxu0 0.0
        %5426 = vmatprep.subr.mxu0 0.0
        %5427 = vmatpush1.msra.mxu0 0.0
        %5428 = vmatprep.subr.mxu0 0.0
        %5429 = vmatpush1.msra.mxu0 0.0
        %5430 = vmatprep.subr.mxu0 0.0
        %5431 = vmatpush1.msra.mxu0 0.0
        %5432 = vmatprep.subr.mxu0 0.0
        %5433 = vmatpush1.msra.mxu0 0.0
        %5434 = vmatprep.subr.mxu0 0.0
        %5435 = vmatpush1.msra.mxu0 0.0
        %5436 = vmatprep.subr.mxu0 0.0
        %5437 = vmatpush1.msra.mxu0 0.0
        %5438 = vmatprep.subr.mxu0 0.0
        %5439 = vmatpush1.msra.mxu0 0.0
        %5440 = vmatprep.subr.mxu0 0.0
        %5441 = vmatpush1.msra.mxu0 0.0
        %5442 = vmatprep.subr.mxu0 0.0
        %5443 = vmatpush1.msra.mxu0 0.0
        %5444 = vmatprep.subr.mxu0 0.0
        %5445 = vmatpush1.msra.mxu0 0.0
        %5446 = vmatprep.subr.mxu0 0.0
        %5447 = vmatpush1.msra.mxu0 0.0
        %5448 = vmatprep.subr.mxu0 0.0
        %5449 = vmatpush1.msra.mxu0 0.0
        %5450 = vmatprep.subr.mxu0 0.0
        %5451 = vmatpush1.msra.mxu0 0.0
        %5452 = vmatprep.subr.mxu0 0.0
        %5453 = vmatpush1.msra.mxu0 0.0
        %5454 = vmatprep.subr.mxu0 0.0
        %5455 = vmatpush1.msra.mxu0 0.0
        %5456 = vmatprep.subr.mxu0 0.0
        %5457 = vmatpush1.msra.mxu0 0.0
        %5458 = vmatprep.subr.mxu0 0.0
        %5459 = vmatpush1.msra.mxu0 0.0
        %5460 = vmatprep.subr.mxu0 0.0
        %5461 = vmatpush1.msra.mxu0 0.0
        %5462 = vmatprep.subr.mxu0 0.0
        %5463 = vmatpush1.msra.mxu0 0.0
        %5464 = vmatprep.subr.mxu0 0.0
        %5465 = vmatpush1.msra.mxu0 0.0
        %5466 = vmatprep.subr.mxu0 0.0
        %5467 = vmatpush1.msra.mxu0 0.0
        %5468 = vmatprep.subr.mxu0 0.0
        %5469 = vmatpush1.msra.mxu0 0.0
        %5470 = vmatprep.subr.mxu0 0.0
        %5471 = vmatpush1.msra.mxu0 0.0
        %5472 = vmatprep.subr.mxu0 0.0
        %5473 = vmatpush1.msra.mxu0 0.0
        %5474 = vmatprep.mubr.f32.mxu0 0.0
        %v5475 = vand.u32 %v5383, 4294901760
        %v5476 = vsub.f32 %v5383, %v5475
        %v5477 = vand.u32 %v5476, 4294901760
        %v5478 = vsub.f32 %v5476, %v5477
        %v5479 = vand.u32 %v5478, 4294901760
        %5480 = vmatmul.mubr.f32.gmra.mrb[0].mxu0 %v5479
        %v5481 = vpop.f32.mrb[0].mxu0
        %v5482 = vadd.f32 %v5337, %v5481
        %v5483 = vpop.f32.mrb[0].mxu0
        %5484 = vmatprep.mubr.f32.mxu0 0.0
        %v5485 = vand.u32 %v5386, 4294901760
        %v5486 = vsub.f32 %v5386, %v5485
        %v5487 = vand.u32 %v5486, 4294901760
        %v5488 = vsub.f32 %v5486, %v5487
        %v5489 = vand.u32 %v5488, 4294901760
        %5490 = vmatmul.mubr.f32.gmra.mrb[0].mxu0 %v5489
        %v5491 = vpop.f32.mrb[0].mxu0
        %v5492 = vadd.f32 %v5343, %v5491
        %v5493 = vpop.f32.mrb[0].mxu0
        %5494 = vmatprep.mubr.f32.mxu0 0.0
        %v5495 = vand.u32 %v5389, 4294901760
        %v5496 = vsub.f32 %v5389, %v5495
        %v5497 = vand.u32 %v5496, 4294901760
        %v5498 = vsub.f32 %v5496, %v5497
        %v5499 = vand.u32 %v5498, 4294901760
        %5500 = vmatmul.mubr.f32.gmra.mrb[0].mxu0 %v5499
        %v5501 = vpop.f32.mrb[0].mxu0
        %v5502 = vadd.f32 %v5349, %v5501
        %v5503 = vpop.f32.mrb[0].mxu0
        %5504 = vmatprep.mubr.f32.mxu0 0.0
        %v5505 = vand.u32 %v5392, 4294901760
        %v5506 = vsub.f32 %v5392, %v5505
        %v5507 = vand.u32 %v5506, 4294901760
        %v5508 = vsub.f32 %v5506, %v5507
        %v5509 = vand.u32 %v5508, 4294901760
        %5510 = vmatmul.mubr.f32.gmra.mrb[0].mxu0 %v5509
        %v5511 = vpop.f32.mrb[0].mxu0
        %v5512 = vadd.f32 %v5355, %v5511
        %v5513 = vpop.f32.mrb[0].mxu0
        %5514 = vmatprep.mubr.f32.mxu0 0.0
        %v5515 = vand.u32 %v5395, 4294901760
        %v5516 = vsub.f32 %v5395, %v5515
        %v5517 = vand.u32 %v5516, 4294901760
        %v5518 = vsub.f32 %v5516, %v5517
        %v5519 = vand.u32 %v5518, 4294901760
        %5520 = vmatmul.mubr.f32.gmra.mrb[0].mxu0 %v5519
        %v5521 = vpop.f32.mrb[0].mxu0
        %v5522 = vadd.f32 %v5361, %v5521
        %v5523 = vpop.f32.mrb[0].mxu0
        %5524 = vmatprep.mubr.f32.mxu0 0.0
        %v5525 = vand.u32 %v5398, 4294901760
        %v5526 = vsub.f32 %v5398, %v5525
        %v5527 = vand.u32 %v5526, 4294901760
        %v5528 = vsub.f32 %v5526, %v5527
        %v5529 = vand.u32 %v5528, 4294901760
        %5530 = vmatmul.mubr.f32.gmra.mrb[0].mxu0 %v5529
        %v5531 = vpop.f32.mrb[0].mxu0
        %v5532 = vadd.f32 %v5367, %v5531
        %v5533 = vpop.f32.mrb[0].mxu0
        %5534 = vmatprep.mubr.f32.mxu0 0.0
        %v5535 = vand.u32 %v5401, 4294901760
        %v5536 = vsub.f32 %v5401, %v5535
        %v5537 = vand.u32 %v5536, 4294901760
        %v5538 = vsub.f32 %v5536, %v5537
        %v5539 = vand.u32 %v5538, 4294901760
        %5540 = vmatmul.mubr.f32.gmra.mrb[0].mxu0 %v5539
        %v5541 = vpop.f32.mrb[0].mxu0
        %v5542 = vadd.f32 %v5373, %v5541
        %v5543 = vpop.f32.mrb[0].mxu0
        %5544 = vmatprep.mubr.f32.mxu0 0.0
        %v5545 = vand.u32 %v5404, 4294901760
        %v5546 = vsub.f32 %v5404, %v5545
        %v5547 = vand.u32 %v5546, 4294901760
        %v5548 = vsub.f32 %v5546, %v5547
        %v5549 = vand.u32 %v5548, 4294901760
        %5550 = vmatmul.mubr.f32.gmra.mrb[0].mxu0 %v5549
        %v5551 = vpop.f32.mrb[0].mxu0
        %v5552 = vadd.f32 %v5379, %v5551
        %v5553 = vpop.f32.mrb[0].mxu0
        %5554 = vdwg.mxu0
        %5555 = vmatprep.subr.mxu0 0.0
        %v5556 = vand.u32 %v4550, 4294901760
        %v5557 = vsub.f32 %v4550, %v5556
        %v5558 = vand.u32 %v5557, 4294901760
        %v5559 = vsub.f32 %v5557, %v5558
        %v5560 = vand.u32 %v5559, 4294901760
        %5561 = vmatpush1.msra.mxu0 %v5560
        %5562 = vmatprep.subr.mxu0 0.0
        %v5563 = vand.u32 %v4551, 4294901760
        %v5564 = vsub.f32 %v4551, %v5563
        %v5565 = vand.u32 %v5564, 4294901760
        %v5566 = vsub.f32 %v5564, %v5565
        %v5567 = vand.u32 %v5566, 4294901760
        %5568 = vmatpush1.msra.mxu0 %v5567
        %5569 = vmatprep.subr.mxu0 0.0
        %v5570 = vand.u32 %v4552, 4294901760
        %v5571 = vsub.f32 %v4552, %v5570
        %v5572 = vand.u32 %v5571, 4294901760
        %v5573 = vsub.f32 %v5571, %v5572
        %v5574 = vand.u32 %v5573, 4294901760
        %5575 = vmatpush1.msra.mxu0 %v5574
        %5576 = vmatprep.subr.mxu0 0.0
        %v5577 = vand.u32 %v4553, 4294901760
        %v5578 = vsub.f32 %v4553, %v5577
        %v5579 = vand.u32 %v5578, 4294901760
        %v5580 = vsub.f32 %v5578, %v5579
        %v5581 = vand.u32 %v5580, 4294901760
        %5582 = vmatpush1.msra.mxu0 %v5581
        %5583 = vmatprep.subr.mxu0 0.0
        %5584 = vmatpush1.msra.mxu0 0.0
        %5585 = vmatprep.subr.mxu0 0.0
        %5586 = vmatpush1.msra.mxu0 0.0
        %5587 = vmatprep.subr.mxu0 0.0
        %5588 = vmatpush1.msra.mxu0 0.0
        %5589 = vmatprep.subr.mxu0 0.0
        %5590 = vmatpush1.msra.mxu0 0.0
        %5591 = vmatprep.subr.mxu0 0.0
        %5592 = vmatpush1.msra.mxu0 0.0
        %5593 = vmatprep.subr.mxu0 0.0
        %5594 = vmatpush1.msra.mxu0 0.0
        %5595 = vmatprep.subr.mxu0 0.0
        %5596 = vmatpush1.msra.mxu0 0.0
        %5597 = vmatprep.subr.mxu0 0.0
        %5598 = vmatpush1.msra.mxu0 0.0
        %5599 = vmatprep.subr.mxu0 0.0
        %5600 = vmatpush1.msra.mxu0 0.0
        %5601 = vmatprep.subr.mxu0 0.0
        %5602 = vmatpush1.msra.mxu0 0.0
        %5603 = vmatprep.subr.mxu0 0.0
        %5604 = vmatpush1.msra.mxu0 0.0
        %5605 = vmatprep.subr.mxu0 0.0
        %5606 = vmatpush1.msra.mxu0 0.0
        %5607 = vmatprep.subr.mxu0 0.0
        %5608 = vmatpush1.msra.mxu0 0.0
        %5609 = vmatprep.subr.mxu0 0.0
        %5610 = vmatpush1.msra.mxu0 0.0
        %5611 = vmatprep.subr.mxu0 0.0
        %5612 = vmatpush1.msra.mxu0 0.0
        %5613 = vmatprep.subr.mxu0 0.0
        %5614 = vmatpush1.msra.mxu0 0.0
        %5615 = vmatprep.subr.mxu0 0.0
        %5616 = vmatpush1.msra.mxu0 0.0
        %5617 = vmatprep.subr.mxu0 0.0
        %5618 = vmatpush1.msra.mxu0 0.0
        %5619 = vmatprep.subr.mxu0 0.0
        %5620 = vmatpush1.msra.mxu0 0.0
        %5621 = vmatprep.subr.mxu0 0.0
        %5622 = vmatpush1.msra.mxu0 0.0
        %5623 = vmatprep.subr.mxu0 0.0
        %5624 = vmatpush1.msra.mxu0 0.0
        %5625 = vmatprep.subr.mxu0 0.0
        %5626 = vmatpush1.msra.mxu0 0.0
        %5627 = vmatprep.subr.mxu0 0.0
        %5628 = vmatpush1.msra.mxu0 0.0
        %5629 = vmatprep.subr.mxu0 0.0
        %5630 = vmatpush1.msra.mxu0 0.0
        %5631 = vmatprep.subr.mxu0 0.0
        %5632 = vmatpush1.msra.mxu0 0.0
        %5633 = vmatprep.subr.mxu0 0.0
        %5634 = vmatpush1.msra.mxu0 0.0
        %5635 = vmatprep.subr.mxu0 0.0
        %5636 = vmatpush1.msra.mxu0 0.0
        %5637 = vmatprep.subr.mxu0 0.0
        %5638 = vmatpush1.msra.mxu0 0.0
        %5639 = vmatprep.mubr.f32.mxu0 0.0
        %v5640 = vand.u32 %v5383, 4294901760
        %5641 = vmatmul.mubr.f32.gmra.mrb[0].mxu0 %v5640
        %v5642 = vpop.f32.mrb[0].mxu0
        %v5643 = vadd.f32 %v5482, %v5642
        %v5644 = vpop.f32.mrb[0].mxu0
        %5645 = vmatprep.mubr.f32.mxu0 0.0
        %v5646 = vand.u32 %v5386, 4294901760
        %5647 = vmatmul.mubr.f32.gmra.mrb[0].mxu0 %v5646
        %v5648 = vpop.f32.mrb[0].mxu0
        %v5649 = vadd.f32 %v5492, %v5648
        %v5650 = vpop.f32.mrb[0].mxu0
        %5651 = vmatprep.mubr.f32.mxu0 0.0
        %v5652 = vand.u32 %v5389, 4294901760
        %5653 = vmatmul.mubr.f32.gmra.mrb[0].mxu0 %v5652
        %v5654 = vpop.f32.mrb[0].mxu0
        %v5655 = vadd.f32 %v5502, %v5654
        %v5656 = vpop.f32.mrb[0].mxu0
        %5657 = vmatprep.mubr.f32.mxu0 0.0
        %v5658 = vand.u32 %v5392, 4294901760
        %5659 = vmatmul.mubr.f32.gmra.mrb[0].mxu0 %v5658
        %v5660 = vpop.f32.mrb[0].mxu0
        %v5661 = vadd.f32 %v5512, %v5660
        %v5662 = vpop.f32.mrb[0].mxu0
        %5663 = vmatprep.mubr.f32.mxu0 0.0
        %v5664 = vand.u32 %v5395, 4294901760
        %5665 = vmatmul.mubr.f32.gmra.mrb[0].mxu0 %v5664
        %v5666 = vpop.f32.mrb[0].mxu0
        %v5667 = vadd.f32 %v5522, %v5666
        %v5668 = vpop.f32.mrb[0].mxu0
        %5669 = vmatprep.mubr.f32.mxu0 0.0
        %v5670 = vand.u32 %v5398, 4294901760
        %5671 = vmatmul.mubr.f32.gmra.mrb[0].mxu0 %v5670
        %v5672 = vpop.f32.mrb[0].mxu0
        %v5673 = vadd.f32 %v5532, %v5672
        %v5674 = vpop.f32.mrb[0].mxu0
        %5675 = vmatprep.mubr.f32.mxu0 0.0
        %v5676 = vand.u32 %v5401, 4294901760
        %5677 = vmatmul.mubr.f32.gmra.mrb[0].mxu0 %v5676
        %v5678 = vpop.f32.mrb[0].mxu0
        %v5679 = vadd.f32 %v5542, %v5678
        %v5680 = vpop.f32.mrb[0].mxu0
        %5681 = vmatprep.mubr.f32.mxu0 0.0
        %v5682 = vand.u32 %v5404, 4294901760
        %5683 = vmatmul.mubr.f32.gmra.mrb[0].mxu0 %v5682
        %v5684 = vpop.f32.mrb[0].mxu0
        %v5685 = vadd.f32 %v5552, %v5684
        %v5686 = vpop.f32.mrb[0].mxu0
        %5687 = vdwg.mxu0
        %5688 = vmatprep.subr.mxu0 0.0
        %v5689 = vand.u32 %v4550, 4294901760
        %v5690 = vsub.f32 %v4550, %v5689
        %5691 = vmatpush1.msra.mxu0 %v5690
        %5692 = vmatprep.subr.mxu0 0.0
        %v5693 = vand.u32 %v4551, 4294901760
        %v5694 = vsub.f32 %v4551, %v5693
        %5695 = vmatpush1.msra.mxu0 %v5694
        %5696 = vmatprep.subr.mxu0 0.0
        %v5697 = vand.u32 %v4552, 4294901760
        %v5698 = vsub.f32 %v4552, %v5697
        %5699 = vmatpush1.msra.mxu0 %v5698
        %5700 = vmatprep.subr.mxu0 0.0
        %v5701 = vand.u32 %v4553, 4294901760
        %v5702 = vsub.f32 %v4553, %v5701
        %5703 = vmatpush1.msra.mxu0 %v5702
        %5704 = vmatprep.subr.mxu0 0.0
        %5705 = vmatpush1.msra.mxu0 0.0
        %5706 = vmatprep.subr.mxu0 0.0
        %5707 = vmatpush1.msra.mxu0 0.0
        %5708 = vmatprep.subr.mxu0 0.0
        %5709 = vmatpush1.msra.mxu0 0.0
        %5710 = vmatprep.subr.mxu0 0.0
        %5711 = vmatpush1.msra.mxu0 0.0
        %5712 = vmatprep.subr.mxu0 0.0
        %5713 = vmatpush1.msra.mxu0 0.0
        %5714 = vmatprep.subr.mxu0 0.0
        %5715 = vmatpush1.msra.mxu0 0.0
        %5716 = vmatprep.subr.mxu0 0.0
        %5717 = vmatpush1.msra.mxu0 0.0
        %5718 = vmatprep.subr.mxu0 0.0
        %5719 = vmatpush1.msra.mxu0 0.0
        %5720 = vmatprep.subr.mxu0 0.0
        %5721 = vmatpush1.msra.mxu0 0.0
        %5722 = vmatprep.subr.mxu0 0.0
        %5723 = vmatpush1.msra.mxu0 0.0
        %5724 = vmatprep.subr.mxu0 0.0
        %5725 = vmatpush1.msra.mxu0 0.0
        %5726 = vmatprep.subr.mxu0 0.0
        %5727 = vmatpush1.msra.mxu0 0.0
        %5728 = vmatprep.subr.mxu0 0.0
        %5729 = vmatpush1.msra.mxu0 0.0
        %5730 = vmatprep.subr.mxu0 0.0
        %5731 = vmatpush1.msra.mxu0 0.0
        %5732 = vmatprep.subr.mxu0 0.0
        %5733 = vmatpush1.msra.mxu0 0.0
        %5734 = vmatprep.subr.mxu0 0.0
        %5735 = vmatpush1.msra.mxu0 0.0
        %5736 = vmatprep.subr.mxu0 0.0
        %5737 = vmatpush1.msra.mxu0 0.0
        %5738 = vmatprep.subr.mxu0 0.0
        %5739 = vmatpush1.msra.mxu0 0.0
        %5740 = vmatprep.subr.mxu0 0.0
        %5741 = vmatpush1.msra.mxu0 0.0
        %5742 = vmatprep.subr.mxu0 0.0
        %5743 = vmatpush1.msra.mxu0 0.0
        %5744 = vmatprep.subr.mxu0 0.0
        %5745 = vmatpush1.msra.mxu0 0.0
        %5746 = vmatprep.subr.mxu0 0.0
        %5747 = vmatpush1.msra.mxu0 0.0
        %5748 = vmatprep.subr.mxu0 0.0
        %5749 = vmatpush1.msra.mxu0 0.0
        %5750 = vmatprep.subr.mxu0 0.0
        %5751 = vmatpush1.msra.mxu0 0.0
        %5752 = vmatprep.subr.mxu0 0.0
        %5753 = vmatpush1.msra.mxu0 0.0
        %5754 = vmatprep.subr.mxu0 0.0
        %5755 = vmatpush1.msra.mxu0 0.0
        %5756 = vmatprep.subr.mxu0 0.0
        %5757 = vmatpush1.msra.mxu0 0.0
        %5758 = vmatprep.subr.mxu0 0.0
        %5759 = vmatpush1.msra.mxu0 0.0
        %5760 = vmatprep.mubr.f32.mxu0 0.0
        %v5761 = vand.u32 %v5383, 4294901760
        %v5762 = vsub.f32 %v5383, %v5761
        %5763 = vmatmul.mubr.f32.gmra.mrb[0].mxu0 %v5762
        %v5764 = vpop.f32.mrb[0].mxu0
        %v5765 = vadd.f32 %v5643, %v5764
        %v5766 = vpop.f32.mrb[0].mxu0
        %5767 = vmatprep.mubr.f32.mxu0 0.0
        %v5768 = vand.u32 %v5386, 4294901760
        %v5769 = vsub.f32 %v5386, %v5768
        %5770 = vmatmul.mubr.f32.gmra.mrb[0].mxu0 %v5769
        %v5771 = vpop.f32.mrb[0].mxu0
        %v5772 = vadd.f32 %v5649, %v5771
        %v5773 = vpop.f32.mrb[0].mxu0
        %5774 = vmatprep.mubr.f32.mxu0 0.0
        %v5775 = vand.u32 %v5389, 4294901760
        %v5776 = vsub.f32 %v5389, %v5775
        %5777 = vmatmul.mubr.f32.gmra.mrb[0].mxu0 %v5776
        %v5778 = vpop.f32.mrb[0].mxu0
        %v5779 = vadd.f32 %v5655, %v5778
        %v5780 = vpop.f32.mrb[0].mxu0
        %5781 = vmatprep.mubr.f32.mxu0 0.0
        %v5782 = vand.u32 %v5392, 4294901760
        %v5783 = vsub.f32 %v5392, %v5782
        %5784 = vmatmul.mubr.f32.gmra.mrb[0].mxu0 %v5783
        %v5785 = vpop.f32.mrb[0].mxu0
        %v5786 = vadd.f32 %v5661, %v5785
        %v5787 = vpop.f32.mrb[0].mxu0
        %5788 = vmatprep.mubr.f32.mxu0 0.0
        %v5789 = vand.u32 %v5395, 4294901760
        %v5790 = vsub.f32 %v5395, %v5789
        %5791 = vmatmul.mubr.f32.gmra.mrb[0].mxu0 %v5790
        %v5792 = vpop.f32.mrb[0].mxu0
        %v5793 = vadd.f32 %v5667, %v5792
        %v5794 = vpop.f32.mrb[0].mxu0
        %5795 = vmatprep.mubr.f32.mxu0 0.0
        %v5796 = vand.u32 %v5398, 4294901760
        %v5797 = vsub.f32 %v5398, %v5796
        %5798 = vmatmul.mubr.f32.gmra.mrb[0].mxu0 %v5797
        %v5799 = vpop.f32.mrb[0].mxu0
        %v5800 = vadd.f32 %v5673, %v5799
        %v5801 = vpop.f32.mrb[0].mxu0
        %5802 = vmatprep.mubr.f32.mxu0 0.0
        %v5803 = vand.u32 %v5401, 4294901760
        %v5804 = vsub.f32 %v5401, %v5803
        %5805 = vmatmul.mubr.f32.gmra.mrb[0].mxu0 %v5804
        %v5806 = vpop.f32.mrb[0].mxu0
        %v5807 = vadd.f32 %v5679, %v5806
        %v5808 = vpop.f32.mrb[0].mxu0
        %5809 = vmatprep.mubr.f32.mxu0 0.0
        %v5810 = vand.u32 %v5404, 4294901760
        %v5811 = vsub.f32 %v5404, %v5810
        %5812 = vmatmul.mubr.f32.gmra.mrb[0].mxu0 %v5811
        %v5813 = vpop.f32.mrb[0].mxu0
        %v5814 = vadd.f32 %v5685, %v5813
        %v5815 = vpop.f32.mrb[0].mxu0
        %5816 = vdwg.mxu0
        %5817 = vmatprep.subr.mxu0 0.0
        %v5818 = vand.u32 %v4550, 4294901760
        %5819 = vmatpush1.msra.mxu0 %v5818
        %5820 = vmatprep.subr.mxu0 0.0
        %v5821 = vand.u32 %v4551, 4294901760
        %5822 = vmatpush1.msra.mxu0 %v5821
        %5823 = vmatprep.subr.mxu0 0.0
        %v5824 = vand.u32 %v4552, 4294901760
        %5825 = vmatpush1.msra.mxu0 %v5824
        %5826 = vmatprep.subr.mxu0 0.0
        %v5827 = vand.u32 %v4553, 4294901760
        %5828 = vmatpush1.msra.mxu0 %v5827
        %5829 = vmatprep.subr.mxu0 0.0
        %5830 = vmatpush1.msra.mxu0 0.0
        %5831 = vmatprep.subr.mxu0 0.0
        %5832 = vmatpush1.msra.mxu0 0.0
        %5833 = vmatprep.subr.mxu0 0.0
        %5834 = vmatpush1.msra.mxu0 0.0
        %5835 = vmatprep.subr.mxu0 0.0
        %5836 = vmatpush1.msra.mxu0 0.0
        %5837 = vmatprep.subr.mxu0 0.0
        %5838 = vmatpush1.msra.mxu0 0.0
        %5839 = vmatprep.subr.mxu0 0.0
        %5840 = vmatpush1.msra.mxu0 0.0
        %5841 = vmatprep.subr.mxu0 0.0
        %5842 = vmatpush1.msra.mxu0 0.0
        %5843 = vmatprep.subr.mxu0 0.0
        %5844 = vmatpush1.msra.mxu0 0.0
        %5845 = vmatprep.subr.mxu0 0.0
        %5846 = vmatpush1.msra.mxu0 0.0
        %5847 = vmatprep.subr.mxu0 0.0
        %5848 = vmatpush1.msra.mxu0 0.0
        %5849 = vmatprep.subr.mxu0 0.0
        %5850 = vmatpush1.msra.mxu0 0.0
        %5851 = vmatprep.subr.mxu0 0.0
        %5852 = vmatpush1.msra.mxu0 0.0
        %5853 = vmatprep.subr.mxu0 0.0
        %5854 = vmatpush1.msra.mxu0 0.0
        %5855 = vmatprep.subr.mxu0 0.0
        %5856 = vmatpush1.msra.mxu0 0.0
        %5857 = vmatprep.subr.mxu0 0.0
        %5858 = vmatpush1.msra.mxu0 0.0
        %5859 = vmatprep.subr.mxu0 0.0
        %5860 = vmatpush1.msra.mxu0 0.0
        %5861 = vmatprep.subr.mxu0 0.0
        %5862 = vmatpush1.msra.mxu0 0.0
        %5863 = vmatprep.subr.mxu0 0.0
        %5864 = vmatpush1.msra.mxu0 0.0
        %5865 = vmatprep.subr.mxu0 0.0
        %5866 = vmatpush1.msra.mxu0 0.0
        %5867 = vmatprep.subr.mxu0 0.0
        %5868 = vmatpush1.msra.mxu0 0.0
        %5869 = vmatprep.subr.mxu0 0.0
        %5870 = vmatpush1.msra.mxu0 0.0
        %5871 = vmatprep.subr.mxu0 0.0
        %5872 = vmatpush1.msra.mxu0 0.0
        %5873 = vmatprep.subr.mxu0 0.0
        %5874 = vmatpush1.msra.mxu0 0.0
        %5875 = vmatprep.subr.mxu0 0.0
        %5876 = vmatpush1.msra.mxu0 0.0
        %5877 = vmatprep.subr.mxu0 0.0
        %5878 = vmatpush1.msra.mxu0 0.0
        %5879 = vmatprep.subr.mxu0 0.0
        %5880 = vmatpush1.msra.mxu0 0.0
        %5881 = vmatprep.subr.mxu0 0.0
        %5882 = vmatpush1.msra.mxu0 0.0
        %5883 = vmatprep.subr.mxu0 0.0
        %5884 = vmatpush1.msra.mxu0 0.0
        %5885 = vmatprep.mubr.f32.mxu0 0.0
        %v5886 = vand.u32 %v5383, 4294901760
        %v5887 = vsub.f32 %v5383, %v5886
        %v5888 = vand.u32 %v5887, 4294901760
        %5889 = vmatmul.mubr.f32.gmra.mrb[0].mxu0 %v5888
        %v5890 = vpop.f32.mrb[0].mxu0
        %v5891 = vadd.f32 %v5765, %v5890
        %v5892 = vpop.f32.mrb[0].mxu0
        %5893 = vmatprep.mubr.f32.mxu0 0.0
        %v5894 = vand.u32 %v5386, 4294901760
        %v5895 = vsub.f32 %v5386, %v5894
        %v5896 = vand.u32 %v5895, 4294901760
        %5897 = vmatmul.mubr.f32.gmra.mrb[0].mxu0 %v5896
        %v5898 = vpop.f32.mrb[0].mxu0
        %v5899 = vadd.f32 %v5772, %v5898
        %v5900 = vpop.f32.mrb[0].mxu0
        %5901 = vmatprep.mubr.f32.mxu0 0.0
        %v5902 = vand.u32 %v5389, 4294901760
        %v5903 = vsub.f32 %v5389, %v5902
        %v5904 = vand.u32 %v5903, 4294901760
        %5905 = vmatmul.mubr.f32.gmra.mrb[0].mxu0 %v5904
        %v5906 = vpop.f32.mrb[0].mxu0
        %v5907 = vadd.f32 %v5779, %v5906
        %v5908 = vpop.f32.mrb[0].mxu0
        %5909 = vmatprep.mubr.f32.mxu0 0.0
        %v5910 = vand.u32 %v5392, 4294901760
        %v5911 = vsub.f32 %v5392, %v5910
        %v5912 = vand.u32 %v5911, 4294901760
        %5913 = vmatmul.mubr.f32.gmra.mrb[0].mxu0 %v5912
        %v5914 = vpop.f32.mrb[0].mxu0
        %v5915 = vadd.f32 %v5786, %v5914
        %v5916 = vpop.f32.mrb[0].mxu0
        %5917 = vmatprep.mubr.f32.mxu0 0.0
        %v5918 = vand.u32 %v5395, 4294901760
        %v5919 = vsub.f32 %v5395, %v5918
        %v5920 = vand.u32 %v5919, 4294901760
        %5921 = vmatmul.mubr.f32.gmra.mrb[0].mxu0 %v5920
        %v5922 = vpop.f32.mrb[0].mxu0
        %v5923 = vadd.f32 %v5793, %v5922
        %v5924 = vpop.f32.mrb[0].mxu0
        %5925 = vmatprep.mubr.f32.mxu0 0.0
        %v5926 = vand.u32 %v5398, 4294901760
        %v5927 = vsub.f32 %v5398, %v5926
        %v5928 = vand.u32 %v5927, 4294901760
        %5929 = vmatmul.mubr.f32.gmra.mrb[0].mxu0 %v5928
        %v5930 = vpop.f32.mrb[0].mxu0
        %v5931 = vadd.f32 %v5800, %v5930
        %v5932 = vpop.f32.mrb[0].mxu0
        %5933 = vmatprep.mubr.f32.mxu0 0.0
        %v5934 = vand.u32 %v5401, 4294901760
        %v5935 = vsub.f32 %v5401, %v5934
        %v5936 = vand.u32 %v5935, 4294901760
        %5937 = vmatmul.mubr.f32.gmra.mrb[0].mxu0 %v5936
        %v5938 = vpop.f32.mrb[0].mxu0
        %v5939 = vadd.f32 %v5807, %v5938
        %v5940 = vpop.f32.mrb[0].mxu0
        %5941 = vmatprep.mubr.f32.mxu0 0.0
        %v5942 = vand.u32 %v5404, 4294901760
        %v5943 = vsub.f32 %v5404, %v5942
        %v5944 = vand.u32 %v5943, 4294901760
        %5945 = vmatmul.mubr.f32.gmra.mrb[0].mxu0 %v5944
        %v5946 = vpop.f32.mrb[0].mxu0
        %v5947 = vadd.f32 %v5814, %v5946
        %v5948 = vpop.f32.mrb[0].mxu0
        %5949 = vdwg.mxu0
        %5950 = vmatprep.subr.mxu0 0.0
        %v5951 = vand.u32 %v4550, 4294901760
        %v5952 = vsub.f32 %v4550, %v5951
        %v5953 = vand.u32 %v5952, 4294901760
        %5954 = vmatpush1.msra.mxu0 %v5953
        %5955 = vmatprep.subr.mxu0 0.0
        %v5956 = vand.u32 %v4551, 4294901760
        %v5957 = vsub.f32 %v4551, %v5956
        %v5958 = vand.u32 %v5957, 4294901760
        %5959 = vmatpush1.msra.mxu0 %v5958
        %5960 = vmatprep.subr.mxu0 0.0
        %v5961 = vand.u32 %v4552, 4294901760
        %v5962 = vsub.f32 %v4552, %v5961
        %v5963 = vand.u32 %v5962, 4294901760
        %5964 = vmatpush1.msra.mxu0 %v5963
        %5965 = vmatprep.subr.mxu0 0.0
        %v5966 = vand.u32 %v4553, 4294901760
        %v5967 = vsub.f32 %v4553, %v5966
        %v5968 = vand.u32 %v5967, 4294901760
        %5969 = vmatpush1.msra.mxu0 %v5968
        %5970 = vmatprep.subr.mxu0 0.0
        %5971 = vmatpush1.msra.mxu0 0.0
        %5972 = vmatprep.subr.mxu0 0.0
        %5973 = vmatpush1.msra.mxu0 0.0
        %5974 = vmatprep.subr.mxu0 0.0
        %5975 = vmatpush1.msra.mxu0 0.0
        %5976 = vmatprep.subr.mxu0 0.0
        %5977 = vmatpush1.msra.mxu0 0.0
        %5978 = vmatprep.subr.mxu0 0.0
        %5979 = vmatpush1.msra.mxu0 0.0
        %5980 = vmatprep.subr.mxu0 0.0
        %5981 = vmatpush1.msra.mxu0 0.0
        %5982 = vmatprep.subr.mxu0 0.0
        %5983 = vmatpush1.msra.mxu0 0.0
        %5984 = vmatprep.subr.mxu0 0.0
        %5985 = vmatpush1.msra.mxu0 0.0
        %5986 = vmatprep.subr.mxu0 0.0
        %5987 = vmatpush1.msra.mxu0 0.0
        %5988 = vmatprep.subr.mxu0 0.0
        %5989 = vmatpush1.msra.mxu0 0.0
        %5990 = vmatprep.subr.mxu0 0.0
        %5991 = vmatpush1.msra.mxu0 0.0
        %5992 = vmatprep.subr.mxu0 0.0
        %5993 = vmatpush1.msra.mxu0 0.0
        %5994 = vmatprep.subr.mxu0 0.0
        %5995 = vmatpush1.msra.mxu0 0.0
        %5996 = vmatprep.subr.mxu0 0.0
        %5997 = vmatpush1.msra.mxu0 0.0
        %5998 = vmatprep.subr.mxu0 0.0
        %5999 = vmatpush1.msra.mxu0 0.0
        %6000 = vmatprep.subr.mxu0 0.0
        %6001 = vmatpush1.msra.mxu0 0.0
        %6002 = vmatprep.subr.mxu0 0.0
        %6003 = vmatpush1.msra.mxu0 0.0
        %6004 = vmatprep.subr.mxu0 0.0
        %6005 = vmatpush1.msra.mxu0 0.0
        %6006 = vmatprep.subr.mxu0 0.0
        %6007 = vmatpush1.msra.mxu0 0.0
        %6008 = vmatprep.subr.mxu0 0.0
        %6009 = vmatpush1.msra.mxu0 0.0
        %6010 = vmatprep.subr.mxu0 0.0
        %6011 = vmatpush1.msra.mxu0 0.0
        %6012 = vmatprep.subr.mxu0 0.0
        %6013 = vmatpush1.msra.mxu0 0.0
        %6014 = vmatprep.subr.mxu0 0.0
        %6015 = vmatpush1.msra.mxu0 0.0
        %6016 = vmatprep.subr.mxu0 0.0
        %6017 = vmatpush1.msra.mxu0 0.0
        %6018 = vmatprep.subr.mxu0 0.0
        %6019 = vmatpush1.msra.mxu0 0.0
        %6020 = vmatprep.subr.mxu0 0.0
        %6021 = vmatpush1.msra.mxu0 0.0
        %6022 = vmatprep.subr.mxu0 0.0
        %6023 = vmatpush1.msra.mxu0 0.0
        %6024 = vmatprep.subr.mxu0 0.0
        %6025 = vmatpush1.msra.mxu0 0.0
        %6026 = vmatprep.mubr.f32.mxu0 0.0
        %v6027 = vand.u32 %v5383, 4294901760
        %6028 = vmatmul.mubr.f32.gmra.mrb[0].mxu0 %v6027
        %v6029 = vpop.f32.mrb[0].mxu0
        %v6030 = vadd.f32 %v5891, %v6029
        %v6031 = vpop.f32.mrb[0].mxu0
        %6032 = vmatprep.mubr.f32.mxu0 0.0
        %v6033 = vand.u32 %v5386, 4294901760
        %6034 = vmatmul.mubr.f32.gmra.mrb[0].mxu0 %v6033
        %v6035 = vpop.f32.mrb[0].mxu0
        %v6036 = vadd.f32 %v5899, %v6035
        %v6037 = vpop.f32.mrb[0].mxu0
        %6038 = vmatprep.mubr.f32.mxu0 0.0
        %v6039 = vand.u32 %v5389, 4294901760
        %6040 = vmatmul.mubr.f32.gmra.mrb[0].mxu0 %v6039
        %v6041 = vpop.f32.mrb[0].mxu0
        %v6042 = vadd.f32 %v5907, %v6041
        %v6043 = vpop.f32.mrb[0].mxu0
        %6044 = vmatprep.mubr.f32.mxu0 0.0
        %v6045 = vand.u32 %v5392, 4294901760
        %6046 = vmatmul.mubr.f32.gmra.mrb[0].mxu0 %v6045
        %v6047 = vpop.f32.mrb[0].mxu0
        %v6048 = vadd.f32 %v5915, %v6047
        %v6049 = vpop.f32.mrb[0].mxu0
        %6050 = vmatprep.mubr.f32.mxu0 0.0
        %v6051 = vand.u32 %v5395, 4294901760
        %6052 = vmatmul.mubr.f32.gmra.mrb[0].mxu0 %v6051
        %v6053 = vpop.f32.mrb[0].mxu0
        %v6054 = vadd.f32 %v5923, %v6053
        %v6055 = vpop.f32.mrb[0].mxu0
        %6056 = vmatprep.mubr.f32.mxu0 0.0
        %v6057 = vand.u32 %v5398, 4294901760
        %6058 = vmatmul.mubr.f32.gmra.mrb[0].mxu0 %v6057
        %v6059 = vpop.f32.mrb[0].mxu0
        %v6060 = vadd.f32 %v5931, %v6059
        %v6061 = vpop.f32.mrb[0].mxu0
        %6062 = vmatprep.mubr.f32.mxu0 0.0
        %v6063 = vand.u32 %v5401, 4294901760
        %6064 = vmatmul.mubr.f32.gmra.mrb[0].mxu0 %v6063
        %v6065 = vpop.f32.mrb[0].mxu0
        %v6066 = vadd.f32 %v5939, %v6065
        %v6067 = vpop.f32.mrb[0].mxu0
        %6068 = vmatprep.mubr.f32.mxu0 0.0
        %v6069 = vand.u32 %v5404, 4294901760
        %6070 = vmatmul.mubr.f32.gmra.mrb[0].mxu0 %v6069
        %v6071 = vpop.f32.mrb[0].mxu0
        %v6072 = vadd.f32 %v5947, %v6071
        %v6073 = vpop.f32.mrb[0].mxu0
        %6074 = vdwg.mxu0
        %6075 = vmatprep.subr.mxu0 0.0
        %v6076 = vand.u32 %v4550, 4294901760
        %6077 = vmatpush1.msra.mxu0 %v6076
        %6078 = vmatprep.subr.mxu0 0.0
        %v6079 = vand.u32 %v4551, 4294901760
        %6080 = vmatpush1.msra.mxu0 %v6079
        %6081 = vmatprep.subr.mxu0 0.0
        %v6082 = vand.u32 %v4552, 4294901760
        %6083 = vmatpush1.msra.mxu0 %v6082
        %6084 = vmatprep.subr.mxu0 0.0
        %v6085 = vand.u32 %v4553, 4294901760
        %6086 = vmatpush1.msra.mxu0 %v6085
        %6087 = vmatprep.subr.mxu0 0.0
        %6088 = vmatpush1.msra.mxu0 0.0
        %6089 = vmatprep.subr.mxu0 0.0
        %6090 = vmatpush1.msra.mxu0 0.0
        %6091 = vmatprep.subr.mxu0 0.0
        %6092 = vmatpush1.msra.mxu0 0.0
        %6093 = vmatprep.subr.mxu0 0.0
        %6094 = vmatpush1.msra.mxu0 0.0
        %6095 = vmatprep.subr.mxu0 0.0
        %6096 = vmatpush1.msra.mxu0 0.0
        %6097 = vmatprep.subr.mxu0 0.0
        %6098 = vmatpush1.msra.mxu0 0.0
        %6099 = vmatprep.subr.mxu0 0.0
        %6100 = vmatpush1.msra.mxu0 0.0
        %6101 = vmatprep.subr.mxu0 0.0
        %6102 = vmatpush1.msra.mxu0 0.0
        %6103 = vmatprep.subr.mxu0 0.0
        %6104 = vmatpush1.msra.mxu0 0.0
        %6105 = vmatprep.subr.mxu0 0.0
        %6106 = vmatpush1.msra.mxu0 0.0
        %6107 = vmatprep.subr.mxu0 0.0
        %6108 = vmatpush1.msra.mxu0 0.0
        %6109 = vmatprep.subr.mxu0 0.0
        %6110 = vmatpush1.msra.mxu0 0.0
        %6111 = vmatprep.subr.mxu0 0.0
        %6112 = vmatpush1.msra.mxu0 0.0
        %6113 = vmatprep.subr.mxu0 0.0
        %6114 = vmatpush1.msra.mxu0 0.0
        %6115 = vmatprep.subr.mxu0 0.0
        %6116 = vmatpush1.msra.mxu0 0.0
        %6117 = vmatprep.subr.mxu0 0.0
        %6118 = vmatpush1.msra.mxu0 0.0
        %6119 = vmatprep.subr.mxu0 0.0
        %6120 = vmatpush1.msra.mxu0 0.0
        %6121 = vmatprep.subr.mxu0 0.0
        %6122 = vmatpush1.msra.mxu0 0.0
        %6123 = vmatprep.subr.mxu0 0.0
        %6124 = vmatpush1.msra.mxu0 0.0
        %6125 = vmatprep.subr.mxu0 0.0
        %6126 = vmatpush1.msra.mxu0 0.0
        %6127 = vmatprep.subr.mxu0 0.0
        %6128 = vmatpush1.msra.mxu0 0.0
        %6129 = vmatprep.subr.mxu0 0.0
        %6130 = vmatpush1.msra.mxu0 0.0
        %6131 = vmatprep.subr.mxu0 0.0
        %6132 = vmatpush1.msra.mxu0 0.0
        %6133 = vmatprep.subr.mxu0 0.0
        %6134 = vmatpush1.msra.mxu0 0.0
        %6135 = vmatprep.subr.mxu0 0.0
        %6136 = vmatpush1.msra.mxu0 0.0
        %6137 = vmatprep.subr.mxu0 0.0
        %6138 = vmatpush1.msra.mxu0 0.0
        %6139 = vmatprep.subr.mxu0 0.0
        %6140 = vmatpush1.msra.mxu0 0.0
        %6141 = vmatprep.subr.mxu0 0.0
        %6142 = vmatpush1.msra.mxu0 0.0
        %6143 = vmatprep.mubr.f32.mxu0 0.0
        %v6144 = vand.u32 %v5383, 4294901760
        %6145 = vmatmul.mubr.f32.gmra.mrb[0].mxu0 %v6144
        %v6146 = vpop.f32.mrb[0].mxu0
        %v6147 = vadd.f32 %v6030, %v6146
        %v6148 = vpop.f32.mrb[0].mxu0
        %6149 = vmatprep.mubr.f32.mxu0 0.0
        %v6150 = vand.u32 %v5386, 4294901760
        %6151 = vmatmul.mubr.f32.gmra.mrb[0].mxu0 %v6150
        %v6152 = vpop.f32.mrb[0].mxu0
        %v6153 = vadd.f32 %v6036, %v6152
        %v6154 = vpop.f32.mrb[0].mxu0
        %6155 = vmatprep.mubr.f32.mxu0 0.0
        %v6156 = vand.u32 %v5389, 4294901760
        %6157 = vmatmul.mubr.f32.gmra.mrb[0].mxu0 %v6156
        %v6158 = vpop.f32.mrb[0].mxu0
        %v6159 = vadd.f32 %v6042, %v6158
        %v6160 = vpop.f32.mrb[0].mxu0
        %6161 = vmatprep.mubr.f32.mxu0 0.0
        %v6162 = vand.u32 %v5392, 4294901760
        %6163 = vmatmul.mubr.f32.gmra.mrb[0].mxu0 %v6162
        %v6164 = vpop.f32.mrb[0].mxu0
        %v6165 = vadd.f32 %v6048, %v6164
        %v6166 = vpop.f32.mrb[0].mxu0
        %6167 = vmatprep.mubr.f32.mxu0 0.0
        %v6168 = vand.u32 %v5395, 4294901760
        %6169 = vmatmul.mubr.f32.gmra.mrb[0].mxu0 %v6168
        %v6170 = vpop.f32.mrb[0].mxu0
        %v6171 = vadd.f32 %v6054, %v6170
        %v6172 = vpop.f32.mrb[0].mxu0
        %6173 = vmatprep.mubr.f32.mxu0 0.0
        %v6174 = vand.u32 %v5398, 4294901760
        %6175 = vmatmul.mubr.f32.gmra.mrb[0].mxu0 %v6174
        %v6176 = vpop.f32.mrb[0].mxu0
        %v6177 = vadd.f32 %v6060, %v6176
        %v6178 = vpop.f32.mrb[0].mxu0
        %6179 = vmatprep.mubr.f32.mxu0 0.0
        %v6180 = vand.u32 %v5401, 4294901760
        %6181 = vmatmul.mubr.f32.gmra.mrb[0].mxu0 %v6180
        %v6182 = vpop.f32.mrb[0].mxu0
        %v6183 = vadd.f32 %v6066, %v6182
        %v6184 = vpop.f32.mrb[0].mxu0
        %6185 = vmatprep.mubr.f32.mxu0 0.0
        %v6186 = vand.u32 %v5404, 4294901760
        %6187 = vmatmul.mubr.f32.gmra.mrb[0].mxu0 %v6186
        %v6188 = vpop.f32.mrb[0].mxu0
        %v6189 = vadd.f32 %v6072, %v6188
        %v6190 = vpop.f32.mrb[0].mxu0
        %6191 = vdwg.mxu0
        %s6192 = scalar_lea.vmem %s4, 320
        %v6193 = vld [vmem:[%s6192] sm:$0xff]
        %v6194 = vld [vmem:[%s6192 + $0x8] sm:$0xff]
        %v6195 = vld [vmem:[%s6192 + $0x10] sm:$0xff]
        %v6196 = vld [vmem:[%s6192 + $0x18] sm:$0xff]
        %v6197 = vld [vmem:[%s6192 + $0x20] sm:$0xff]
        %v6198 = vld [vmem:[%s6192 + $0x28] sm:$0xff]
        %v6199 = vld [vmem:[%s6192 + $0x30] sm:$0xff]
        %v6200 = vld [vmem:[%s6192 + $0x38] sm:$0xff]
        %6205 = vrot.lane.b32.xlu0 %v4550, 124
        %v6206 = vpop.permute.xlu0 %6205
        %6207 = vrot.lane.b32.xlu0 %v4551, 124
        %v6208 = vpop.permute.xlu0 %6207
        %6209 = vrot.lane.b32.xlu0 %v4552, 124
        %v6210 = vpop.permute.xlu0 %6209
        %6211 = vrot.lane.b32.xlu0 %v4553, 124
        %v6212 = vpop.permute.xlu0 %6211
        %v6218 = vsel %vm1088, %v6193, 0
        %v6221 = vsel %vm1088, %v6194, 0
        %v6224 = vsel %vm1088, %v6195, 0
        %v6227 = vsel %vm1088, %v6196, 0
        %v6230 = vsel %vm1088, %v6197, 0
        %v6233 = vsel %vm1088, %v6198, 0
        %v6236 = vsel %vm1088, %v6199, 0
        %v6239 = vsel %vm1088, %v6200, 0
        %6241 = vmatprep.subr.mxu0 0.0
        %v6242 = vand.u32 %v6206, 4294901760
        %6243 = vmatpush1.msra.mxu0 %v6242
        %6244 = vmatprep.subr.mxu0 0.0
        %v6245 = vand.u32 %v6208, 4294901760
        %6246 = vmatpush1.msra.mxu0 %v6245
        %6247 = vmatprep.subr.mxu0 0.0
        %v6248 = vand.u32 %v6210, 4294901760
        %6249 = vmatpush1.msra.mxu0 %v6248
        %6250 = vmatprep.subr.mxu0 0.0
        %v6251 = vand.u32 %v6212, 4294901760
        %6252 = vmatpush1.msra.mxu0 %v6251
        %6253 = vmatprep.subr.mxu0 0.0
        %6254 = vmatpush1.msra.mxu0 0.0
        %6255 = vmatprep.subr.mxu0 0.0
        %6256 = vmatpush1.msra.mxu0 0.0
        %6257 = vmatprep.subr.mxu0 0.0
        %6258 = vmatpush1.msra.mxu0 0.0
        %6259 = vmatprep.subr.mxu0 0.0
        %6260 = vmatpush1.msra.mxu0 0.0
        %6261 = vmatprep.subr.mxu0 0.0
        %6262 = vmatpush1.msra.mxu0 0.0
        %6263 = vmatprep.subr.mxu0 0.0
        %6264 = vmatpush1.msra.mxu0 0.0
        %6265 = vmatprep.subr.mxu0 0.0
        %6266 = vmatpush1.msra.mxu0 0.0
        %6267 = vmatprep.subr.mxu0 0.0
        %6268 = vmatpush1.msra.mxu0 0.0
        %6269 = vmatprep.subr.mxu0 0.0
        %6270 = vmatpush1.msra.mxu0 0.0
        %6271 = vmatprep.subr.mxu0 0.0
        %6272 = vmatpush1.msra.mxu0 0.0
        %6273 = vmatprep.subr.mxu0 0.0
        %6274 = vmatpush1.msra.mxu0 0.0
        %6275 = vmatprep.subr.mxu0 0.0
        %6276 = vmatpush1.msra.mxu0 0.0
        %6277 = vmatprep.subr.mxu0 0.0
        %6278 = vmatpush1.msra.mxu0 0.0
        %6279 = vmatprep.subr.mxu0 0.0
        %6280 = vmatpush1.msra.mxu0 0.0
        %6281 = vmatprep.subr.mxu0 0.0
        %6282 = vmatpush1.msra.mxu0 0.0
        %6283 = vmatprep.subr.mxu0 0.0
        %6284 = vmatpush1.msra.mxu0 0.0
        %6285 = vmatprep.subr.mxu0 0.0
        %6286 = vmatpush1.msra.mxu0 0.0
        %6287 = vmatprep.subr.mxu0 0.0
        %6288 = vmatpush1.msra.mxu0 0.0
        %6289 = vmatprep.subr.mxu0 0.0
        %6290 = vmatpush1.msra.mxu0 0.0
        %6291 = vmatprep.subr.mxu0 0.0
        %6292 = vmatpush1.msra.mxu0 0.0
        %6293 = vmatprep.subr.mxu0 0.0
        %6294 = vmatpush1.msra.mxu0 0.0
        %6295 = vmatprep.subr.mxu0 0.0
        %6296 = vmatpush1.msra.mxu0 0.0
        %6297 = vmatprep.subr.mxu0 0.0
        %6298 = vmatpush1.msra.mxu0 0.0
        %6299 = vmatprep.subr.mxu0 0.0
        %6300 = vmatpush1.msra.mxu0 0.0
        %6301 = vmatprep.subr.mxu0 0.0
        %6302 = vmatpush1.msra.mxu0 0.0
        %6303 = vmatprep.subr.mxu0 0.0
        %6304 = vmatpush1.msra.mxu0 0.0
        %6305 = vmatprep.subr.mxu0 0.0
        %6306 = vmatpush1.msra.mxu0 0.0
        %6307 = vmatprep.subr.mxu0 0.0
        %6308 = vmatpush1.msra.mxu0 0.0
        %6309 = vmatprep.mubr.f32.mxu0 0.0
        %v6310 = vand.u32 %v6218, 4294901760
        %v6311 = vsub.f32 %v6218, %v6310
        %v6312 = vand.u32 %v6311, 4294901760
        %v6313 = vsub.f32 %v6311, %v6312
        %v6314 = vand.u32 %v6313, 4294901760
        %6315 = vmatmul.mubr.f32.gmra.mrb[0].mxu0 %v6314
        %v6316 = vpop.f32.mrb[0].mxu0
        %v6317 = vadd.f32 0.0, %v6316
        %v6318 = vpop.f32.mrb[0].mxu0
        %6319 = vmatprep.mubr.f32.mxu0 0.0
        %v6320 = vand.u32 %v6221, 4294901760
        %v6321 = vsub.f32 %v6221, %v6320
        %v6322 = vand.u32 %v6321, 4294901760
        %v6323 = vsub.f32 %v6321, %v6322
        %v6324 = vand.u32 %v6323, 4294901760
        %6325 = vmatmul.mubr.f32.gmra.mrb[0].mxu0 %v6324
        %v6326 = vpop.f32.mrb[0].mxu0
        %v6327 = vadd.f32 0.0, %v6326
        %v6328 = vpop.f32.mrb[0].mxu0
        %6329 = vmatprep.mubr.f32.mxu0 0.0
        %v6330 = vand.u32 %v6224, 4294901760
        %v6331 = vsub.f32 %v6224, %v6330
        %v6332 = vand.u32 %v6331, 4294901760
        %v6333 = vsub.f32 %v6331, %v6332
        %v6334 = vand.u32 %v6333, 4294901760
        %6335 = vmatmul.mubr.f32.gmra.mrb[0].mxu0 %v6334
        %v6336 = vpop.f32.mrb[0].mxu0
        %v6337 = vadd.f32 0.0, %v6336
        %v6338 = vpop.f32.mrb[0].mxu0
        %6339 = vmatprep.mubr.f32.mxu0 0.0
        %v6340 = vand.u32 %v6227, 4294901760
        %v6341 = vsub.f32 %v6227, %v6340
        %v6342 = vand.u32 %v6341, 4294901760
        %v6343 = vsub.f32 %v6341, %v6342
        %v6344 = vand.u32 %v6343, 4294901760
        %6345 = vmatmul.mubr.f32.gmra.mrb[0].mxu0 %v6344
        %v6346 = vpop.f32.mrb[0].mxu0
        %v6347 = vadd.f32 0.0, %v6346
        %v6348 = vpop.f32.mrb[0].mxu0
        %6349 = vmatprep.mubr.f32.mxu0 0.0
        %v6350 = vand.u32 %v6230, 4294901760
        %v6351 = vsub.f32 %v6230, %v6350
        %v6352 = vand.u32 %v6351, 4294901760
        %v6353 = vsub.f32 %v6351, %v6352
        %v6354 = vand.u32 %v6353, 4294901760
        %6355 = vmatmul.mubr.f32.gmra.mrb[0].mxu0 %v6354
        %v6356 = vpop.f32.mrb[0].mxu0
        %v6357 = vadd.f32 0.0, %v6356
        %v6358 = vpop.f32.mrb[0].mxu0
        %6359 = vmatprep.mubr.f32.mxu0 0.0
        %v6360 = vand.u32 %v6233, 4294901760
        %v6361 = vsub.f32 %v6233, %v6360
        %v6362 = vand.u32 %v6361, 4294901760
        %v6363 = vsub.f32 %v6361, %v6362
        %v6364 = vand.u32 %v6363, 4294901760
        %6365 = vmatmul.mubr.f32.gmra.mrb[0].mxu0 %v6364
        %v6366 = vpop.f32.mrb[0].mxu0
        %v6367 = vadd.f32 0.0, %v6366
        %v6368 = vpop.f32.mrb[0].mxu0
        %6369 = vmatprep.mubr.f32.mxu0 0.0
        %v6370 = vand.u32 %v6236, 4294901760
        %v6371 = vsub.f32 %v6236, %v6370
        %v6372 = vand.u32 %v6371, 4294901760
        %v6373 = vsub.f32 %v6371, %v6372
        %v6374 = vand.u32 %v6373, 4294901760
        %6375 = vmatmul.mubr.f32.gmra.mrb[0].mxu0 %v6374
        %v6376 = vpop.f32.mrb[0].mxu0
        %v6377 = vadd.f32 0.0, %v6376
        %v6378 = vpop.f32.mrb[0].mxu0
        %6379 = vmatprep.mubr.f32.mxu0 0.0
        %v6380 = vand.u32 %v6239, 4294901760
        %v6381 = vsub.f32 %v6239, %v6380
        %v6382 = vand.u32 %v6381, 4294901760
        %v6383 = vsub.f32 %v6381, %v6382
        %v6384 = vand.u32 %v6383, 4294901760
        %6385 = vmatmul.mubr.f32.gmra.mrb[0].mxu0 %v6384
        %v6386 = vpop.f32.mrb[0].mxu0
        %v6387 = vadd.f32 0.0, %v6386
        %v6388 = vpop.f32.mrb[0].mxu0
        %6389 = vdwg.mxu0
        %6390 = vmatprep.subr.mxu0 0.0
        %v6391 = vand.u32 %v6206, 4294901760
        %v6392 = vsub.f32 %v6206, %v6391
        %v6393 = vand.u32 %v6392, 4294901760
        %v6394 = vsub.f32 %v6392, %v6393
        %v6395 = vand.u32 %v6394, 4294901760
        %6396 = vmatpush1.msra.mxu0 %v6395
        %6397 = vmatprep.subr.mxu0 0.0
        %v6398 = vand.u32 %v6208, 4294901760
        %v6399 = vsub.f32 %v6208, %v6398
        %v6400 = vand.u32 %v6399, 4294901760
        %v6401 = vsub.f32 %v6399, %v6400
        %v6402 = vand.u32 %v6401, 4294901760
        %6403 = vmatpush1.msra.mxu0 %v6402
        %6404 = vmatprep.subr.mxu0 0.0
        %v6405 = vand.u32 %v6210, 4294901760
        %v6406 = vsub.f32 %v6210, %v6405
        %v6407 = vand.u32 %v6406, 4294901760
        %v6408 = vsub.f32 %v6406, %v6407
        %v6409 = vand.u32 %v6408, 4294901760
        %6410 = vmatpush1.msra.mxu0 %v6409
        %6411 = vmatprep.subr.mxu0 0.0
        %v6412 = vand.u32 %v6212, 4294901760
        %v6413 = vsub.f32 %v6212, %v6412
        %v6414 = vand.u32 %v6413, 4294901760
        %v6415 = vsub.f32 %v6413, %v6414
        %v6416 = vand.u32 %v6415, 4294901760
        %6417 = vmatpush1.msra.mxu0 %v6416
        %6418 = vmatprep.subr.mxu0 0.0
        %6419 = vmatpush1.msra.mxu0 0.0
        %6420 = vmatprep.subr.mxu0 0.0
        %6421 = vmatpush1.msra.mxu0 0.0
        %6422 = vmatprep.subr.mxu0 0.0
        %6423 = vmatpush1.msra.mxu0 0.0
        %6424 = vmatprep.subr.mxu0 0.0
        %6425 = vmatpush1.msra.mxu0 0.0
        %6426 = vmatprep.subr.mxu0 0.0
        %6427 = vmatpush1.msra.mxu0 0.0
        %6428 = vmatprep.subr.mxu0 0.0
        %6429 = vmatpush1.msra.mxu0 0.0
        %6430 = vmatprep.subr.mxu0 0.0
        %6431 = vmatpush1.msra.mxu0 0.0
        %6432 = vmatprep.subr.mxu0 0.0
        %6433 = vmatpush1.msra.mxu0 0.0
        %6434 = vmatprep.subr.mxu0 0.0
        %6435 = vmatpush1.msra.mxu0 0.0
        %6436 = vmatprep.subr.mxu0 0.0
        %6437 = vmatpush1.msra.mxu0 0.0
        %6438 = vmatprep.subr.mxu0 0.0
        %6439 = vmatpush1.msra.mxu0 0.0
        %6440 = vmatprep.subr.mxu0 0.0
        %6441 = vmatpush1.msra.mxu0 0.0
        %6442 = vmatprep.subr.mxu0 0.0
        %6443 = vmatpush1.msra.mxu0 0.0
        %6444 = vmatprep.subr.mxu0 0.0
        %6445 = vmatpush1.msra.mxu0 0.0
        %6446 = vmatprep.subr.mxu0 0.0
        %6447 = vmatpush1.msra.mxu0 0.0
        %6448 = vmatprep.subr.mxu0 0.0
        %6449 = vmatpush1.msra.mxu0 0.0
        %6450 = vmatprep.subr.mxu0 0.0
        %6451 = vmatpush1.msra.mxu0 0.0
        %6452 = vmatprep.subr.mxu0 0.0
        %6453 = vmatpush1.msra.mxu0 0.0
        %6454 = vmatprep.subr.mxu0 0.0
        %6455 = vmatpush1.msra.mxu0 0.0
        %6456 = vmatprep.subr.mxu0 0.0
        %6457 = vmatpush1.msra.mxu0 0.0
        %6458 = vmatprep.subr.mxu0 0.0
        %6459 = vmatpush1.msra.mxu0 0.0
        %6460 = vmatprep.subr.mxu0 0.0
        %6461 = vmatpush1.msra.mxu0 0.0
        %6462 = vmatprep.subr.mxu0 0.0
        %6463 = vmatpush1.msra.mxu0 0.0
        %6464 = vmatprep.subr.mxu0 0.0
        %6465 = vmatpush1.msra.mxu0 0.0
        %6466 = vmatprep.subr.mxu0 0.0
        %6467 = vmatpush1.msra.mxu0 0.0
        %6468 = vmatprep.subr.mxu0 0.0
        %6469 = vmatpush1.msra.mxu0 0.0
        %6470 = vmatprep.subr.mxu0 0.0
        %6471 = vmatpush1.msra.mxu0 0.0
        %6472 = vmatprep.subr.mxu0 0.0
        %6473 = vmatpush1.msra.mxu0 0.0
        %6474 = vmatprep.mubr.f32.mxu0 0.0
        %v6475 = vand.u32 %v6218, 4294901760
        %6476 = vmatmul.mubr.f32.gmra.mrb[0].mxu0 %v6475
        %v6477 = vpop.f32.mrb[0].mxu0
        %v6478 = vadd.f32 %v6317, %v6477
        %v6479 = vpop.f32.mrb[0].mxu0
        %6480 = vmatprep.mubr.f32.mxu0 0.0
        %v6481 = vand.u32 %v6221, 4294901760
        %6482 = vmatmul.mubr.f32.gmra.mrb[0].mxu0 %v6481
        %v6483 = vpop.f32.mrb[0].mxu0
        %v6484 = vadd.f32 %v6327, %v6483
        %v6485 = vpop.f32.mrb[0].mxu0
        %6486 = vmatprep.mubr.f32.mxu0 0.0
        %v6487 = vand.u32 %v6224, 4294901760
        %6488 = vmatmul.mubr.f32.gmra.mrb[0].mxu0 %v6487
        %v6489 = vpop.f32.mrb[0].mxu0
        %v6490 = vadd.f32 %v6337, %v6489
        %v6491 = vpop.f32.mrb[0].mxu0
        %6492 = vmatprep.mubr.f32.mxu0 0.0
        %v6493 = vand.u32 %v6227, 4294901760
        %6494 = vmatmul.mubr.f32.gmra.mrb[0].mxu0 %v6493
        %v6495 = vpop.f32.mrb[0].mxu0
        %v6496 = vadd.f32 %v6347, %v6495
        %v6497 = vpop.f32.mrb[0].mxu0
        %6498 = vmatprep.mubr.f32.mxu0 0.0
        %v6499 = vand.u32 %v6230, 4294901760
        %6500 = vmatmul.mubr.f32.gmra.mrb[0].mxu0 %v6499
        %v6501 = vpop.f32.mrb[0].mxu0
        %v6502 = vadd.f32 %v6357, %v6501
        %v6503 = vpop.f32.mrb[0].mxu0
        %6504 = vmatprep.mubr.f32.mxu0 0.0
        %v6505 = vand.u32 %v6233, 4294901760
        %6506 = vmatmul.mubr.f32.gmra.mrb[0].mxu0 %v6505
        %v6507 = vpop.f32.mrb[0].mxu0
        %v6508 = vadd.f32 %v6367, %v6507
        %v6509 = vpop.f32.mrb[0].mxu0
        %6510 = vmatprep.mubr.f32.mxu0 0.0
        %v6511 = vand.u32 %v6236, 4294901760
        %6512 = vmatmul.mubr.f32.gmra.mrb[0].mxu0 %v6511
        %v6513 = vpop.f32.mrb[0].mxu0
        %v6514 = vadd.f32 %v6377, %v6513
        %v6515 = vpop.f32.mrb[0].mxu0
        %6516 = vmatprep.mubr.f32.mxu0 0.0
        %v6517 = vand.u32 %v6239, 4294901760
        %6518 = vmatmul.mubr.f32.gmra.mrb[0].mxu0 %v6517
        %v6519 = vpop.f32.mrb[0].mxu0
        %v6520 = vadd.f32 %v6387, %v6519
        %v6521 = vpop.f32.mrb[0].mxu0
        %6522 = vdwg.mxu0
        %6523 = vmatprep.subr.mxu0 0.0
        %v6524 = vand.u32 %v6206, 4294901760
        %v6525 = vsub.f32 %v6206, %v6524
        %6526 = vmatpush1.msra.mxu0 %v6525
        %6527 = vmatprep.subr.mxu0 0.0
        %v6528 = vand.u32 %v6208, 4294901760
        %v6529 = vsub.f32 %v6208, %v6528
        %6530 = vmatpush1.msra.mxu0 %v6529
        %6531 = vmatprep.subr.mxu0 0.0
        %v6532 = vand.u32 %v6210, 4294901760
        %v6533 = vsub.f32 %v6210, %v6532
        %6534 = vmatpush1.msra.mxu0 %v6533
        %6535 = vmatprep.subr.mxu0 0.0
        %v6536 = vand.u32 %v6212, 4294901760
        %v6537 = vsub.f32 %v6212, %v6536
        %6538 = vmatpush1.msra.mxu0 %v6537
        %6539 = vmatprep.subr.mxu0 0.0
        %6540 = vmatpush1.msra.mxu0 0.0
        %6541 = vmatprep.subr.mxu0 0.0
        %6542 = vmatpush1.msra.mxu0 0.0
        %6543 = vmatprep.subr.mxu0 0.0
        %6544 = vmatpush1.msra.mxu0 0.0
        %6545 = vmatprep.subr.mxu0 0.0
        %6546 = vmatpush1.msra.mxu0 0.0
        %6547 = vmatprep.subr.mxu0 0.0
        %6548 = vmatpush1.msra.mxu0 0.0
        %6549 = vmatprep.subr.mxu0 0.0
        %6550 = vmatpush1.msra.mxu0 0.0
        %6551 = vmatprep.subr.mxu0 0.0
        %6552 = vmatpush1.msra.mxu0 0.0
        %6553 = vmatprep.subr.mxu0 0.0
        %6554 = vmatpush1.msra.mxu0 0.0
        %6555 = vmatprep.subr.mxu0 0.0
        %6556 = vmatpush1.msra.mxu0 0.0
        %6557 = vmatprep.subr.mxu0 0.0
        %6558 = vmatpush1.msra.mxu0 0.0
        %6559 = vmatprep.subr.mxu0 0.0
        %6560 = vmatpush1.msra.mxu0 0.0
        %6561 = vmatprep.subr.mxu0 0.0
        %6562 = vmatpush1.msra.mxu0 0.0
        %6563 = vmatprep.subr.mxu0 0.0
        %6564 = vmatpush1.msra.mxu0 0.0
        %6565 = vmatprep.subr.mxu0 0.0
        %6566 = vmatpush1.msra.mxu0 0.0
        %6567 = vmatprep.subr.mxu0 0.0
        %6568 = vmatpush1.msra.mxu0 0.0
        %6569 = vmatprep.subr.mxu0 0.0
        %6570 = vmatpush1.msra.mxu0 0.0
        %6571 = vmatprep.subr.mxu0 0.0
        %6572 = vmatpush1.msra.mxu0 0.0
        %6573 = vmatprep.subr.mxu0 0.0
        %6574 = vmatpush1.msra.mxu0 0.0
        %6575 = vmatprep.subr.mxu0 0.0
        %6576 = vmatpush1.msra.mxu0 0.0
        %6577 = vmatprep.subr.mxu0 0.0
        %6578 = vmatpush1.msra.mxu0 0.0
        %6579 = vmatprep.subr.mxu0 0.0
        %6580 = vmatpush1.msra.mxu0 0.0
        %6581 = vmatprep.subr.mxu0 0.0
        %6582 = vmatpush1.msra.mxu0 0.0
        %6583 = vmatprep.subr.mxu0 0.0
        %6584 = vmatpush1.msra.mxu0 0.0
        %6585 = vmatprep.subr.mxu0 0.0
        %6586 = vmatpush1.msra.mxu0 0.0
        %6587 = vmatprep.subr.mxu0 0.0
        %6588 = vmatpush1.msra.mxu0 0.0
        %6589 = vmatprep.subr.mxu0 0.0
        %6590 = vmatpush1.msra.mxu0 0.0
        %6591 = vmatprep.subr.mxu0 0.0
        %6592 = vmatpush1.msra.mxu0 0.0
        %6593 = vmatprep.subr.mxu0 0.0
        %6594 = vmatpush1.msra.mxu0 0.0
        %6595 = vmatprep.mubr.f32.mxu0 0.0
        %v6596 = vand.u32 %v6218, 4294901760
        %v6597 = vsub.f32 %v6218, %v6596
        %6598 = vmatmul.mubr.f32.gmra.mrb[0].mxu0 %v6597
        %v6599 = vpop.f32.mrb[0].mxu0
        %v6600 = vadd.f32 %v6478, %v6599
        %v6601 = vpop.f32.mrb[0].mxu0
        %6602 = vmatprep.mubr.f32.mxu0 0.0
        %v6603 = vand.u32 %v6221, 4294901760
        %v6604 = vsub.f32 %v6221, %v6603
        %6605 = vmatmul.mubr.f32.gmra.mrb[0].mxu0 %v6604
        %v6606 = vpop.f32.mrb[0].mxu0
        %v6607 = vadd.f32 %v6484, %v6606
        %v6608 = vpop.f32.mrb[0].mxu0
        %6609 = vmatprep.mubr.f32.mxu0 0.0
        %v6610 = vand.u32 %v6224, 4294901760
        %v6611 = vsub.f32 %v6224, %v6610
        %6612 = vmatmul.mubr.f32.gmra.mrb[0].mxu0 %v6611
        %v6613 = vpop.f32.mrb[0].mxu0
        %v6614 = vadd.f32 %v6490, %v6613
        %v6615 = vpop.f32.mrb[0].mxu0
        %6616 = vmatprep.mubr.f32.mxu0 0.0
        %v6617 = vand.u32 %v6227, 4294901760
        %v6618 = vsub.f32 %v6227, %v6617
        %6619 = vmatmul.mubr.f32.gmra.mrb[0].mxu0 %v6618
        %v6620 = vpop.f32.mrb[0].mxu0
        %v6621 = vadd.f32 %v6496, %v6620
        %v6622 = vpop.f32.mrb[0].mxu0
        %6623 = vmatprep.mubr.f32.mxu0 0.0
        %v6624 = vand.u32 %v6230, 4294901760
        %v6625 = vsub.f32 %v6230, %v6624
        %6626 = vmatmul.mubr.f32.gmra.mrb[0].mxu0 %v6625
        %v6627 = vpop.f32.mrb[0].mxu0
        %v6628 = vadd.f32 %v6502, %v6627
        %v6629 = vpop.f32.mrb[0].mxu0
        %6630 = vmatprep.mubr.f32.mxu0 0.0
        %v6631 = vand.u32 %v6233, 4294901760
        %v6632 = vsub.f32 %v6233, %v6631
        %6633 = vmatmul.mubr.f32.gmra.mrb[0].mxu0 %v6632
        %v6634 = vpop.f32.mrb[0].mxu0
        %v6635 = vadd.f32 %v6508, %v6634
        %v6636 = vpop.f32.mrb[0].mxu0
        %6637 = vmatprep.mubr.f32.mxu0 0.0
        %v6638 = vand.u32 %v6236, 4294901760
        %v6639 = vsub.f32 %v6236, %v6638
        %6640 = vmatmul.mubr.f32.gmra.mrb[0].mxu0 %v6639
        %v6641 = vpop.f32.mrb[0].mxu0
        %v6642 = vadd.f32 %v6514, %v6641
        %v6643 = vpop.f32.mrb[0].mxu0
        %6644 = vmatprep.mubr.f32.mxu0 0.0
        %v6645 = vand.u32 %v6239, 4294901760
        %v6646 = vsub.f32 %v6239, %v6645
        %6647 = vmatmul.mubr.f32.gmra.mrb[0].mxu0 %v6646
        %v6648 = vpop.f32.mrb[0].mxu0
        %v6649 = vadd.f32 %v6520, %v6648
        %v6650 = vpop.f32.mrb[0].mxu0
        %6651 = vdwg.mxu0
        %6652 = vmatprep.subr.mxu0 0.0
        %v6653 = vand.u32 %v6206, 4294901760
        %6654 = vmatpush1.msra.mxu0 %v6653
        %6655 = vmatprep.subr.mxu0 0.0
        %v6656 = vand.u32 %v6208, 4294901760
        %6657 = vmatpush1.msra.mxu0 %v6656
        %6658 = vmatprep.subr.mxu0 0.0
        %v6659 = vand.u32 %v6210, 4294901760
        %6660 = vmatpush1.msra.mxu0 %v6659
        %6661 = vmatprep.subr.mxu0 0.0
        %v6662 = vand.u32 %v6212, 4294901760
        %6663 = vmatpush1.msra.mxu0 %v6662
        %6664 = vmatprep.subr.mxu0 0.0
        %6665 = vmatpush1.msra.mxu0 0.0
        %6666 = vmatprep.subr.mxu0 0.0
        %6667 = vmatpush1.msra.mxu0 0.0
        %6668 = vmatprep.subr.mxu0 0.0
        %6669 = vmatpush1.msra.mxu0 0.0
        %6670 = vmatprep.subr.mxu0 0.0
        %6671 = vmatpush1.msra.mxu0 0.0
        %6672 = vmatprep.subr.mxu0 0.0
        %6673 = vmatpush1.msra.mxu0 0.0
        %6674 = vmatprep.subr.mxu0 0.0
        %6675 = vmatpush1.msra.mxu0 0.0
        %6676 = vmatprep.subr.mxu0 0.0
        %6677 = vmatpush1.msra.mxu0 0.0
        %6678 = vmatprep.subr.mxu0 0.0
        %6679 = vmatpush1.msra.mxu0 0.0
        %6680 = vmatprep.subr.mxu0 0.0
        %6681 = vmatpush1.msra.mxu0 0.0
        %6682 = vmatprep.subr.mxu0 0.0
        %6683 = vmatpush1.msra.mxu0 0.0
        %6684 = vmatprep.subr.mxu0 0.0
        %6685 = vmatpush1.msra.mxu0 0.0
        %6686 = vmatprep.subr.mxu0 0.0
        %6687 = vmatpush1.msra.mxu0 0.0
        %6688 = vmatprep.subr.mxu0 0.0
        %6689 = vmatpush1.msra.mxu0 0.0
        %6690 = vmatprep.subr.mxu0 0.0
        %6691 = vmatpush1.msra.mxu0 0.0
        %6692 = vmatprep.subr.mxu0 0.0
        %6693 = vmatpush1.msra.mxu0 0.0
        %6694 = vmatprep.subr.mxu0 0.0
        %6695 = vmatpush1.msra.mxu0 0.0
        %6696 = vmatprep.subr.mxu0 0.0
        %6697 = vmatpush1.msra.mxu0 0.0
        %6698 = vmatprep.subr.mxu0 0.0
        %6699 = vmatpush1.msra.mxu0 0.0
        %6700 = vmatprep.subr.mxu0 0.0
        %6701 = vmatpush1.msra.mxu0 0.0
        %6702 = vmatprep.subr.mxu0 0.0
        %6703 = vmatpush1.msra.mxu0 0.0
        %6704 = vmatprep.subr.mxu0 0.0
        %6705 = vmatpush1.msra.mxu0 0.0
        %6706 = vmatprep.subr.mxu0 0.0
        %6707 = vmatpush1.msra.mxu0 0.0
        %6708 = vmatprep.subr.mxu0 0.0
        %6709 = vmatpush1.msra.mxu0 0.0
        %6710 = vmatprep.subr.mxu0 0.0
        %6711 = vmatpush1.msra.mxu0 0.0
        %6712 = vmatprep.subr.mxu0 0.0
        %6713 = vmatpush1.msra.mxu0 0.0
        %6714 = vmatprep.subr.mxu0 0.0
        %6715 = vmatpush1.msra.mxu0 0.0
        %6716 = vmatprep.subr.mxu0 0.0
        %6717 = vmatpush1.msra.mxu0 0.0
        %6718 = vmatprep.subr.mxu0 0.0
        %6719 = vmatpush1.msra.mxu0 0.0
        %6720 = vmatprep.mubr.f32.mxu0 0.0
        %v6721 = vand.u32 %v6218, 4294901760
        %v6722 = vsub.f32 %v6218, %v6721
        %v6723 = vand.u32 %v6722, 4294901760
        %6724 = vmatmul.mubr.f32.gmra.mrb[0].mxu0 %v6723
        %v6725 = vpop.f32.mrb[0].mxu0
        %v6726 = vadd.f32 %v6600, %v6725
        %v6727 = vpop.f32.mrb[0].mxu0
        %6728 = vmatprep.mubr.f32.mxu0 0.0
        %v6729 = vand.u32 %v6221, 4294901760
        %v6730 = vsub.f32 %v6221, %v6729
        %v6731 = vand.u32 %v6730, 4294901760
        %6732 = vmatmul.mubr.f32.gmra.mrb[0].mxu0 %v6731
        %v6733 = vpop.f32.mrb[0].mxu0
        %v6734 = vadd.f32 %v6607, %v6733
        %v6735 = vpop.f32.mrb[0].mxu0
        %6736 = vmatprep.mubr.f32.mxu0 0.0
        %v6737 = vand.u32 %v6224, 4294901760
        %v6738 = vsub.f32 %v6224, %v6737
        %v6739 = vand.u32 %v6738, 4294901760
        %6740 = vmatmul.mubr.f32.gmra.mrb[0].mxu0 %v6739
        %v6741 = vpop.f32.mrb[0].mxu0
        %v6742 = vadd.f32 %v6614, %v6741
        %v6743 = vpop.f32.mrb[0].mxu0
        %6744 = vmatprep.mubr.f32.mxu0 0.0
        %v6745 = vand.u32 %v6227, 4294901760
        %v6746 = vsub.f32 %v6227, %v6745
        %v6747 = vand.u32 %v6746, 4294901760
        %6748 = vmatmul.mubr.f32.gmra.mrb[0].mxu0 %v6747
        %v6749 = vpop.f32.mrb[0].mxu0
        %v6750 = vadd.f32 %v6621, %v6749
        %v6751 = vpop.f32.mrb[0].mxu0
        %6752 = vmatprep.mubr.f32.mxu0 0.0
        %v6753 = vand.u32 %v6230, 4294901760
        %v6754 = vsub.f32 %v6230, %v6753
        %v6755 = vand.u32 %v6754, 4294901760
        %6756 = vmatmul.mubr.f32.gmra.mrb[0].mxu0 %v6755
        %v6757 = vpop.f32.mrb[0].mxu0
        %v6758 = vadd.f32 %v6628, %v6757
        %v6759 = vpop.f32.mrb[0].mxu0
        %6760 = vmatprep.mubr.f32.mxu0 0.0
        %v6761 = vand.u32 %v6233, 4294901760
        %v6762 = vsub.f32 %v6233, %v6761
        %v6763 = vand.u32 %v6762, 4294901760
        %6764 = vmatmul.mubr.f32.gmra.mrb[0].mxu0 %v6763
        %v6765 = vpop.f32.mrb[0].mxu0
        %v6766 = vadd.f32 %v6635, %v6765
        %v6767 = vpop.f32.mrb[0].mxu0
        %6768 = vmatprep.mubr.f32.mxu0 0.0
        %v6769 = vand.u32 %v6236, 4294901760
        %v6770 = vsub.f32 %v6236, %v6769
        %v6771 = vand.u32 %v6770, 4294901760
        %6772 = vmatmul.mubr.f32.gmra.mrb[0].mxu0 %v6771
        %v6773 = vpop.f32.mrb[0].mxu0
        %v6774 = vadd.f32 %v6642, %v6773
        %v6775 = vpop.f32.mrb[0].mxu0
        %6776 = vmatprep.mubr.f32.mxu0 0.0
        %v6777 = vand.u32 %v6239, 4294901760
        %v6778 = vsub.f32 %v6239, %v6777
        %v6779 = vand.u32 %v6778, 4294901760
        %6780 = vmatmul.mubr.f32.gmra.mrb[0].mxu0 %v6779
        %v6781 = vpop.f32.mrb[0].mxu0
        %v6782 = vadd.f32 %v6649, %v6781
        %v6783 = vpop.f32.mrb[0].mxu0
        %6784 = vdwg.mxu0
        %6785 = vmatprep.subr.mxu0 0.0
        %v6786 = vand.u32 %v6206, 4294901760
        %v6787 = vsub.f32 %v6206, %v6786
        %v6788 = vand.u32 %v6787, 4294901760
        %6789 = vmatpush1.msra.mxu0 %v6788
        %6790 = vmatprep.subr.mxu0 0.0
        %v6791 = vand.u32 %v6208, 4294901760
        %v6792 = vsub.f32 %v6208, %v6791
        %v6793 = vand.u32 %v6792, 4294901760
        %6794 = vmatpush1.msra.mxu0 %v6793
        %6795 = vmatprep.subr.mxu0 0.0
        %v6796 = vand.u32 %v6210, 4294901760
        %v6797 = vsub.f32 %v6210, %v6796
        %v6798 = vand.u32 %v6797, 4294901760
        %6799 = vmatpush1.msra.mxu0 %v6798
        %6800 = vmatprep.subr.mxu0 0.0
        %v6801 = vand.u32 %v6212, 4294901760
        %v6802 = vsub.f32 %v6212, %v6801
        %v6803 = vand.u32 %v6802, 4294901760
        %6804 = vmatpush1.msra.mxu0 %v6803
        %6805 = vmatprep.subr.mxu0 0.0
        %6806 = vmatpush1.msra.mxu0 0.0
        %6807 = vmatprep.subr.mxu0 0.0
        %6808 = vmatpush1.msra.mxu0 0.0
        %6809 = vmatprep.subr.mxu0 0.0
        %6810 = vmatpush1.msra.mxu0 0.0
        %6811 = vmatprep.subr.mxu0 0.0
        %6812 = vmatpush1.msra.mxu0 0.0
        %6813 = vmatprep.subr.mxu0 0.0
        %6814 = vmatpush1.msra.mxu0 0.0
        %6815 = vmatprep.subr.mxu0 0.0
        %6816 = vmatpush1.msra.mxu0 0.0
        %6817 = vmatprep.subr.mxu0 0.0
        %6818 = vmatpush1.msra.mxu0 0.0
        %6819 = vmatprep.subr.mxu0 0.0
        %6820 = vmatpush1.msra.mxu0 0.0
        %6821 = vmatprep.subr.mxu0 0.0
        %6822 = vmatpush1.msra.mxu0 0.0
        %6823 = vmatprep.subr.mxu0 0.0
        %6824 = vmatpush1.msra.mxu0 0.0
        %6825 = vmatprep.subr.mxu0 0.0
        %6826 = vmatpush1.msra.mxu0 0.0
        %6827 = vmatprep.subr.mxu0 0.0
        %6828 = vmatpush1.msra.mxu0 0.0
        %6829 = vmatprep.subr.mxu0 0.0
        %6830 = vmatpush1.msra.mxu0 0.0
        %6831 = vmatprep.subr.mxu0 0.0
        %6832 = vmatpush1.msra.mxu0 0.0
        %6833 = vmatprep.subr.mxu0 0.0
        %6834 = vmatpush1.msra.mxu0 0.0
        %6835 = vmatprep.subr.mxu0 0.0
        %6836 = vmatpush1.msra.mxu0 0.0
        %6837 = vmatprep.subr.mxu0 0.0
        %6838 = vmatpush1.msra.mxu0 0.0
        %6839 = vmatprep.subr.mxu0 0.0
        %6840 = vmatpush1.msra.mxu0 0.0
        %6841 = vmatprep.subr.mxu0 0.0
        %6842 = vmatpush1.msra.mxu0 0.0
        %6843 = vmatprep.subr.mxu0 0.0
        %6844 = vmatpush1.msra.mxu0 0.0
        %6845 = vmatprep.subr.mxu0 0.0
        %6846 = vmatpush1.msra.mxu0 0.0
        %6847 = vmatprep.subr.mxu0 0.0
        %6848 = vmatpush1.msra.mxu0 0.0
        %6849 = vmatprep.subr.mxu0 0.0
        %6850 = vmatpush1.msra.mxu0 0.0
        %6851 = vmatprep.subr.mxu0 0.0
        %6852 = vmatpush1.msra.mxu0 0.0
        %6853 = vmatprep.subr.mxu0 0.0
        %6854 = vmatpush1.msra.mxu0 0.0
        %6855 = vmatprep.subr.mxu0 0.0
        %6856 = vmatpush1.msra.mxu0 0.0
        %6857 = vmatprep.subr.mxu0 0.0
        %6858 = vmatpush1.msra.mxu0 0.0
        %6859 = vmatprep.subr.mxu0 0.0
        %6860 = vmatpush1.msra.mxu0 0.0
        %6861 = vmatprep.mubr.f32.mxu0 0.0
        %v6862 = vand.u32 %v6218, 4294901760
        %6863 = vmatmul.mubr.f32.gmra.mrb[0].mxu0 %v6862
        %v6864 = vpop.f32.mrb[0].mxu0
        %v6865 = vadd.f32 %v6726, %v6864
        %v6866 = vpop.f32.mrb[0].mxu0
        %6867 = vmatprep.mubr.f32.mxu0 0.0
        %v6868 = vand.u32 %v6221, 4294901760
        %6869 = vmatmul.mubr.f32.gmra.mrb[0].mxu0 %v6868
        %v6870 = vpop.f32.mrb[0].mxu0
        %v6871 = vadd.f32 %v6734, %v6870
        %v6872 = vpop.f32.mrb[0].mxu0
        %6873 = vmatprep.mubr.f32.mxu0 0.0
        %v6874 = vand.u32 %v6224, 4294901760
        %6875 = vmatmul.mubr.f32.gmra.mrb[0].mxu0 %v6874
        %v6876 = vpop.f32.mrb[0].mxu0
        %v6877 = vadd.f32 %v6742, %v6876
        %v6878 = vpop.f32.mrb[0].mxu0
        %6879 = vmatprep.mubr.f32.mxu0 0.0
        %v6880 = vand.u32 %v6227, 4294901760
        %6881 = vmatmul.mubr.f32.gmra.mrb[0].mxu0 %v6880
        %v6882 = vpop.f32.mrb[0].mxu0
        %v6883 = vadd.f32 %v6750, %v6882
        %v6884 = vpop.f32.mrb[0].mxu0
        %6885 = vmatprep.mubr.f32.mxu0 0.0
        %v6886 = vand.u32 %v6230, 4294901760
        %6887 = vmatmul.mubr.f32.gmra.mrb[0].mxu0 %v6886
        %v6888 = vpop.f32.mrb[0].mxu0
        %v6889 = vadd.f32 %v6758, %v6888
        %v6890 = vpop.f32.mrb[0].mxu0
        %6891 = vmatprep.mubr.f32.mxu0 0.0
        %v6892 = vand.u32 %v6233, 4294901760
        %6893 = vmatmul.mubr.f32.gmra.mrb[0].mxu0 %v6892
        %v6894 = vpop.f32.mrb[0].mxu0
        %v6895 = vadd.f32 %v6766, %v6894
        %v6896 = vpop.f32.mrb[0].mxu0
        %6897 = vmatprep.mubr.f32.mxu0 0.0
        %v6898 = vand.u32 %v6236, 4294901760
        %6899 = vmatmul.mubr.f32.gmra.mrb[0].mxu0 %v6898
        %v6900 = vpop.f32.mrb[0].mxu0
        %v6901 = vadd.f32 %v6774, %v6900
        %v6902 = vpop.f32.mrb[0].mxu0
        %6903 = vmatprep.mubr.f32.mxu0 0.0
        %v6904 = vand.u32 %v6239, 4294901760
        %6905 = vmatmul.mubr.f32.gmra.mrb[0].mxu0 %v6904
        %v6906 = vpop.f32.mrb[0].mxu0
        %v6907 = vadd.f32 %v6782, %v6906
        %v6908 = vpop.f32.mrb[0].mxu0
        %6909 = vdwg.mxu0
        %6910 = vmatprep.subr.mxu0 0.0
        %v6911 = vand.u32 %v6206, 4294901760
        %6912 = vmatpush1.msra.mxu0 %v6911
        %6913 = vmatprep.subr.mxu0 0.0
        %v6914 = vand.u32 %v6208, 4294901760
        %6915 = vmatpush1.msra.mxu0 %v6914
        %6916 = vmatprep.subr.mxu0 0.0
        %v6917 = vand.u32 %v6210, 4294901760
        %6918 = vmatpush1.msra.mxu0 %v6917
        %6919 = vmatprep.subr.mxu0 0.0
        %v6920 = vand.u32 %v6212, 4294901760
        %6921 = vmatpush1.msra.mxu0 %v6920
        %6922 = vmatprep.subr.mxu0 0.0
        %6923 = vmatpush1.msra.mxu0 0.0
        %6924 = vmatprep.subr.mxu0 0.0
        %6925 = vmatpush1.msra.mxu0 0.0
        %6926 = vmatprep.subr.mxu0 0.0
        %6927 = vmatpush1.msra.mxu0 0.0
        %6928 = vmatprep.subr.mxu0 0.0
        %6929 = vmatpush1.msra.mxu0 0.0
        %6930 = vmatprep.subr.mxu0 0.0
        %6931 = vmatpush1.msra.mxu0 0.0
        %6932 = vmatprep.subr.mxu0 0.0
        %6933 = vmatpush1.msra.mxu0 0.0
        %6934 = vmatprep.subr.mxu0 0.0
        %6935 = vmatpush1.msra.mxu0 0.0
        %6936 = vmatprep.subr.mxu0 0.0
        %6937 = vmatpush1.msra.mxu0 0.0
        %6938 = vmatprep.subr.mxu0 0.0
        %6939 = vmatpush1.msra.mxu0 0.0
        %6940 = vmatprep.subr.mxu0 0.0
        %6941 = vmatpush1.msra.mxu0 0.0
        %6942 = vmatprep.subr.mxu0 0.0
        %6943 = vmatpush1.msra.mxu0 0.0
        %6944 = vmatprep.subr.mxu0 0.0
        %6945 = vmatpush1.msra.mxu0 0.0
        %6946 = vmatprep.subr.mxu0 0.0
        %6947 = vmatpush1.msra.mxu0 0.0
        %6948 = vmatprep.subr.mxu0 0.0
        %6949 = vmatpush1.msra.mxu0 0.0
        %6950 = vmatprep.subr.mxu0 0.0
        %6951 = vmatpush1.msra.mxu0 0.0
        %6952 = vmatprep.subr.mxu0 0.0
        %6953 = vmatpush1.msra.mxu0 0.0
        %6954 = vmatprep.subr.mxu0 0.0
        %6955 = vmatpush1.msra.mxu0 0.0
        %6956 = vmatprep.subr.mxu0 0.0
        %6957 = vmatpush1.msra.mxu0 0.0
        %6958 = vmatprep.subr.mxu0 0.0
        %6959 = vmatpush1.msra.mxu0 0.0
        %6960 = vmatprep.subr.mxu0 0.0
        %6961 = vmatpush1.msra.mxu0 0.0
        %6962 = vmatprep.subr.mxu0 0.0
        %6963 = vmatpush1.msra.mxu0 0.0
        %6964 = vmatprep.subr.mxu0 0.0
        %6965 = vmatpush1.msra.mxu0 0.0
        %6966 = vmatprep.subr.mxu0 0.0
        %6967 = vmatpush1.msra.mxu0 0.0
        %6968 = vmatprep.subr.mxu0 0.0
        %6969 = vmatpush1.msra.mxu0 0.0
        %6970 = vmatprep.subr.mxu0 0.0
        %6971 = vmatpush1.msra.mxu0 0.0
        %6972 = vmatprep.subr.mxu0 0.0
        %6973 = vmatpush1.msra.mxu0 0.0
        %6974 = vmatprep.subr.mxu0 0.0
        %6975 = vmatpush1.msra.mxu0 0.0
        %6976 = vmatprep.subr.mxu0 0.0
        %6977 = vmatpush1.msra.mxu0 0.0
        %6978 = vmatprep.mubr.f32.mxu0 0.0
        %v6979 = vand.u32 %v6218, 4294901760
        %6980 = vmatmul.mubr.f32.gmra.mrb[0].mxu0 %v6979
        %v6981 = vpop.f32.mrb[0].mxu0
        %v6982 = vadd.f32 %v6865, %v6981
        %v6983 = vpop.f32.mrb[0].mxu0
        %6984 = vmatprep.mubr.f32.mxu0 0.0
        %v6985 = vand.u32 %v6221, 4294901760
        %6986 = vmatmul.mubr.f32.gmra.mrb[0].mxu0 %v6985
        %v6987 = vpop.f32.mrb[0].mxu0
        %v6988 = vadd.f32 %v6871, %v6987
        %v6989 = vpop.f32.mrb[0].mxu0
        %6990 = vmatprep.mubr.f32.mxu0 0.0
        %v6991 = vand.u32 %v6224, 4294901760
        %6992 = vmatmul.mubr.f32.gmra.mrb[0].mxu0 %v6991
        %v6993 = vpop.f32.mrb[0].mxu0
        %v6994 = vadd.f32 %v6877, %v6993
        %v6995 = vpop.f32.mrb[0].mxu0
        %6996 = vmatprep.mubr.f32.mxu0 0.0
        %v6997 = vand.u32 %v6227, 4294901760
        %6998 = vmatmul.mubr.f32.gmra.mrb[0].mxu0 %v6997
        %v6999 = vpop.f32.mrb[0].mxu0
        %v7000 = vadd.f32 %v6883, %v6999
        %v7001 = vpop.f32.mrb[0].mxu0
        %7002 = vmatprep.mubr.f32.mxu0 0.0
        %v7003 = vand.u32 %v6230, 4294901760
        %7004 = vmatmul.mubr.f32.gmra.mrb[0].mxu0 %v7003
        %v7005 = vpop.f32.mrb[0].mxu0
        %v7006 = vadd.f32 %v6889, %v7005
        %v7007 = vpop.f32.mrb[0].mxu0
        %7008 = vmatprep.mubr.f32.mxu0 0.0
        %v7009 = vand.u32 %v6233, 4294901760
        %7010 = vmatmul.mubr.f32.gmra.mrb[0].mxu0 %v7009
        %v7011 = vpop.f32.mrb[0].mxu0
        %v7012 = vadd.f32 %v6895, %v7011
        %v7013 = vpop.f32.mrb[0].mxu0
        %7014 = vmatprep.mubr.f32.mxu0 0.0
        %v7015 = vand.u32 %v6236, 4294901760
        %7016 = vmatmul.mubr.f32.gmra.mrb[0].mxu0 %v7015
        %v7017 = vpop.f32.mrb[0].mxu0
        %v7018 = vadd.f32 %v6901, %v7017
        %v7019 = vpop.f32.mrb[0].mxu0
        %7020 = vmatprep.mubr.f32.mxu0 0.0
        %v7021 = vand.u32 %v6239, 4294901760
        %7022 = vmatmul.mubr.f32.gmra.mrb[0].mxu0 %v7021
        %v7023 = vpop.f32.mrb[0].mxu0
        %v7024 = vadd.f32 %v6907, %v7023
        %v7025 = vpop.f32.mrb[0].mxu0
        %7026 = vdwg.mxu0
        %v7027 = vadd.f32 %v6147, %v6982
        %v7028 = vadd.f32 %v6153, %v6988
        %v7029 = vadd.f32 %v6159, %v6994
        %v7030 = vadd.f32 %v6165, %v7000
        %v7031 = vadd.f32 %v6171, %v7006
        %v7032 = vadd.f32 %v6177, %v7012
        %v7033 = vadd.f32 %v6183, %v7018
        %v7034 = vadd.f32 %v6189, %v7024
        %s7035 = scalar_lea.vmem %s5, 64
        %v7036 = vld [vmem:[%s7035] sm:$0xff]
        %v7037 = vld [vmem:[%s7035 + $0x8] sm:$0xff]
        %v7038 = vld [vmem:[%s7035 + $0x10] sm:$0xff]
        %v7039 = vld [vmem:[%s7035 + $0x18] sm:$0xff]
        %v7040 = vld [vmem:[%s7035 + $0x20] sm:$0xff]
        %v7041 = vld [vmem:[%s7035 + $0x28] sm:$0xff]
        %v7042 = vld [vmem:[%s7035 + $0x30] sm:$0xff]
        %v7043 = vld [vmem:[%s7035 + $0x38] sm:$0xff]
        %7045 = vset.pattern.permute.xlu0 0
        %7046 = vperm.xlu0 %7045, %v7036
        %v7047 = vpop.permute.xlu0 %7046
        %7050 = vset.pattern.permute.xlu0 0
        %7051 = vperm.xlu0 %7050, %v7037
        %v7052 = vpop.permute.xlu0 %7051
        %7055 = vset.pattern.permute.xlu0 0
        %7056 = vperm.xlu0 %7055, %v7038
        %v7057 = vpop.permute.xlu0 %7056
        %7060 = vset.pattern.permute.xlu0 0
        %7061 = vperm.xlu0 %7060, %v7039
        %v7062 = vpop.permute.xlu0 %7061
        %7065 = vset.pattern.permute.xlu0 0
        %7066 = vperm.xlu0 %7065, %v7040
        %v7067 = vpop.permute.xlu0 %7066
        %7070 = vset.pattern.permute.xlu0 0
        %7071 = vperm.xlu0 %7070, %v7041
        %v7072 = vpop.permute.xlu0 %7071
        %7075 = vset.pattern.permute.xlu0 0
        %7076 = vperm.xlu0 %7075, %v7042
        %v7077 = vpop.permute.xlu0 %7076
        %7080 = vset.pattern.permute.xlu0 0
        %7081 = vperm.xlu0 %7080, %v7043
        %v7082 = vpop.permute.xlu0 %7081
        %v7084 = vadd.f32 %v7027, %v7047
        %v7085 = vadd.f32 %v7028, %v7052
        %v7086 = vadd.f32 %v7029, %v7057
        %v7087 = vadd.f32 %v7030, %v7062
        %v7088 = vadd.f32 %v7031, %v7067
        %v7089 = vadd.f32 %v7032, %v7072
        %v7090 = vadd.f32 %v7033, %v7077
        %v7091 = vadd.f32 %v7034, %v7082
        %v7092 = vtanh.pop %v7084
        %v7093 = vtanh.pop %v7085
        %v7094 = vtanh.pop %v7086
        %v7095 = vtanh.pop %v7087
        %v7096 = vxor.u32 %v7088, 2147483648
        %v7097 = vxor.u32 %v7089, 2147483648
        %v7098 = vxor.u32 %v7090, 2147483648
        %v7099 = vxor.u32 %v7091, 2147483648
        %v7100 = vmul.f32 %v7096, 1.442695
        %v7101 = vpow.pop %v7100
        %v7102 = vmul.f32 %v7097, 1.442695
        %v7103 = vpow.pop %v7102
        %v7104 = vmul.f32 %v7098, 1.442695
        %v7105 = vpow.pop %v7104
        %v7106 = vmul.f32 %v7099, 1.442695
        %v7107 = vpow.pop %v7106
        %v7108 = vadd.f32 %v7101, 1.0
        %v7109 = vadd.f32 %v7103, 1.0
        %v7110 = vadd.f32 %v7105, 1.0
        %v7111 = vadd.f32 %v7107, 1.0
        %v7112 = vrcp.pop %v7108
        %v7113 = vmul.f32 1.0, %v7112
        %v7114 = vrcp.pop %v7109
        %v7115 = vmul.f32 1.0, %v7114
        %v7116 = vrcp.pop %v7110
        %v7117 = vmul.f32 1.0, %v7116
        %v7118 = vrcp.pop %v7111
        %v7119 = vmul.f32 1.0, %v7118
        %v7120 = vmul.f32 %v7092, %v7113
        %v7121 = vmul.f32 %v7093, %v7115
        %v7122 = vmul.f32 %v7094, %v7117
        %v7123 = vmul.f32 %v7095, %v7119
        %s7124 = scalar_lea.vmem %s6, 64
        %v7125 = vld [vmem:[%s7124] sm:$0xff]
        %v7126 = vld [vmem:[%s7124 + $0x8] sm:$0xff]
        %v7127 = vld [vmem:[%s7124 + $0x10] sm:$0xff]
        %v7128 = vld [vmem:[%s7124 + $0x18] sm:$0xff]
        %v7129 = vld [vmem:[%s7124 + $0x20] sm:$0xff]
        %v7130 = vld [vmem:[%s7124 + $0x28] sm:$0xff]
        %v7131 = vld [vmem:[%s7124 + $0x30] sm:$0xff]
        %v7132 = vld [vmem:[%s7124 + $0x38] sm:$0xff]
        %s7133 = scalar_lea.vmem %s7, 64
        %v7134 = vld [vmem:[%s7133] sm:$0xff]
        %v7135 = vld [vmem:[%s7133 + $0x8] sm:$0xff]
        %v7136 = vld [vmem:[%s7133 + $0x10] sm:$0xff]
        %v7137 = vld [vmem:[%s7133 + $0x18] sm:$0xff]
        %v7138 = vld [vmem:[%s7133 + $0x20] sm:$0xff]
        %v7139 = vld [vmem:[%s7133 + $0x28] sm:$0xff]
        %v7140 = vld [vmem:[%s7133 + $0x30] sm:$0xff]
        %v7141 = vld [vmem:[%s7133 + $0x38] sm:$0xff]
        %7143 = vset.pattern.permute.xlu0 0
        %7144 = vperm.xlu0 %7143, %v7134
        %v7145 = vpop.permute.xlu0 %7144
        %7148 = vset.pattern.permute.xlu0 0
        %7149 = vperm.xlu0 %7148, %v7135
        %v7150 = vpop.permute.xlu0 %7149
        %7153 = vset.pattern.permute.xlu0 0
        %7154 = vperm.xlu0 %7153, %v7136
        %v7155 = vpop.permute.xlu0 %7154
        %7158 = vset.pattern.permute.xlu0 0
        %7159 = vperm.xlu0 %7158, %v7137
        %v7160 = vpop.permute.xlu0 %7159
        %7163 = vset.pattern.permute.xlu0 0
        %7164 = vperm.xlu0 %7163, %v7138
        %v7165 = vpop.permute.xlu0 %7164
        %7167 = vset.pattern.permute.xlu0 0
        %7168 = vperm.xlu0 %7167, %v7139
        %v7169 = vpop.permute.xlu0 %7168
        %7171 = vset.pattern.permute.xlu0 0
        %7172 = vperm.xlu0 %7171, %v7140
        %v7173 = vpop.permute.xlu0 %7172
        %7175 = vset.pattern.permute.xlu0 0
        %7176 = vperm.xlu0 %7175, %v7141
        %v7177 = vpop.permute.xlu0 %7176
        %v7179 = vsel %vm1088, %v7125, 0
        %v7182 = vsel %vm1088, %v7126, 0
        %v7185 = vsel %vm1088, %v7127, 0
        %v7188 = vsel %vm1088, %v7128, 0
        %v7191 = vsel %vm1088, %v7129, 0
        %v7194 = vsel %vm1088, %v7130, 0
        %v7197 = vsel %vm1088, %v7131, 0
        %v7200 = vsel %vm1088, %v7132, 0
        %7202 = vmatprep.subr.mxu0 0.0
        %v7203 = vand.u32 %v7120, 4294901760
        %7204 = vmatpush1.msra.mxu0 %v7203
        %7205 = vmatprep.subr.mxu0 0.0
        %v7206 = vand.u32 %v7121, 4294901760
        %7207 = vmatpush1.msra.mxu0 %v7206
        %7208 = vmatprep.subr.mxu0 0.0
        %v7209 = vand.u32 %v7122, 4294901760
        %7210 = vmatpush1.msra.mxu0 %v7209
        %7211 = vmatprep.subr.mxu0 0.0
        %v7212 = vand.u32 %v7123, 4294901760
        %7213 = vmatpush1.msra.mxu0 %v7212
        %7214 = vmatprep.subr.mxu0 0.0
        %7215 = vmatpush1.msra.mxu0 0.0
        %7216 = vmatprep.subr.mxu0 0.0
        %7217 = vmatpush1.msra.mxu0 0.0
        %7218 = vmatprep.subr.mxu0 0.0
        %7219 = vmatpush1.msra.mxu0 0.0
        %7220 = vmatprep.subr.mxu0 0.0
        %7221 = vmatpush1.msra.mxu0 0.0
        %7222 = vmatprep.subr.mxu0 0.0
        %7223 = vmatpush1.msra.mxu0 0.0
        %7224 = vmatprep.subr.mxu0 0.0
        %7225 = vmatpush1.msra.mxu0 0.0
        %7226 = vmatprep.subr.mxu0 0.0
        %7227 = vmatpush1.msra.mxu0 0.0
        %7228 = vmatprep.subr.mxu0 0.0
        %7229 = vmatpush1.msra.mxu0 0.0
        %7230 = vmatprep.subr.mxu0 0.0
        %7231 = vmatpush1.msra.mxu0 0.0
        %7232 = vmatprep.subr.mxu0 0.0
        %7233 = vmatpush1.msra.mxu0 0.0
        %7234 = vmatprep.subr.mxu0 0.0
        %7235 = vmatpush1.msra.mxu0 0.0
        %7236 = vmatprep.subr.mxu0 0.0
        %7237 = vmatpush1.msra.mxu0 0.0
        %7238 = vmatprep.subr.mxu0 0.0
        %7239 = vmatpush1.msra.mxu0 0.0
        %7240 = vmatprep.subr.mxu0 0.0
        %7241 = vmatpush1.msra.mxu0 0.0
        %7242 = vmatprep.subr.mxu0 0.0
        %7243 = vmatpush1.msra.mxu0 0.0
        %7244 = vmatprep.subr.mxu0 0.0
        %7245 = vmatpush1.msra.mxu0 0.0
        %7246 = vmatprep.subr.mxu0 0.0
        %7247 = vmatpush1.msra.mxu0 0.0
        %7248 = vmatprep.subr.mxu0 0.0
        %7249 = vmatpush1.msra.mxu0 0.0
        %7250 = vmatprep.subr.mxu0 0.0
        %7251 = vmatpush1.msra.mxu0 0.0
        %7252 = vmatprep.subr.mxu0 0.0
        %7253 = vmatpush1.msra.mxu0 0.0
        %7254 = vmatprep.subr.mxu0 0.0
        %7255 = vmatpush1.msra.mxu0 0.0
        %7256 = vmatprep.subr.mxu0 0.0
        %7257 = vmatpush1.msra.mxu0 0.0
        %7258 = vmatprep.subr.mxu0 0.0
        %7259 = vmatpush1.msra.mxu0 0.0
        %7260 = vmatprep.subr.mxu0 0.0
        %7261 = vmatpush1.msra.mxu0 0.0
        %7262 = vmatprep.subr.mxu0 0.0
        %7263 = vmatpush1.msra.mxu0 0.0
        %7264 = vmatprep.subr.mxu0 0.0
        %7265 = vmatpush1.msra.mxu0 0.0
        %7266 = vmatprep.subr.mxu0 0.0
        %7267 = vmatpush1.msra.mxu0 0.0
        %7268 = vmatprep.subr.mxu0 0.0
        %7269 = vmatpush1.msra.mxu0 0.0
        %7270 = vmatprep.mubr.f32.mxu0 0.0
        %v7271 = vand.u32 %v7179, 4294901760
        %v7272 = vsub.f32 %v7179, %v7271
        %v7273 = vand.u32 %v7272, 4294901760
        %v7274 = vsub.f32 %v7272, %v7273
        %v7275 = vand.u32 %v7274, 4294901760
        %7276 = vmatmul.mubr.f32.gmra.mrb[0].mxu0 %v7275
        %v7277 = vpop.f32.mrb[0].mxu0
        %v7278 = vadd.f32 %v7145, %v7277
        %v7279 = vpop.f32.mrb[0].mxu0
        %7280 = vmatprep.mubr.f32.mxu0 0.0
        %v7281 = vand.u32 %v7182, 4294901760
        %v7282 = vsub.f32 %v7182, %v7281
        %v7283 = vand.u32 %v7282, 4294901760
        %v7284 = vsub.f32 %v7282, %v7283
        %v7285 = vand.u32 %v7284, 4294901760
        %7286 = vmatmul.mubr.f32.gmra.mrb[0].mxu0 %v7285
        %v7287 = vpop.f32.mrb[0].mxu0
        %v7288 = vadd.f32 %v7150, %v7287
        %v7289 = vpop.f32.mrb[0].mxu0
        %7290 = vmatprep.mubr.f32.mxu0 0.0
        %v7291 = vand.u32 %v7185, 4294901760
        %v7292 = vsub.f32 %v7185, %v7291
        %v7293 = vand.u32 %v7292, 4294901760
        %v7294 = vsub.f32 %v7292, %v7293
        %v7295 = vand.u32 %v7294, 4294901760
        %7296 = vmatmul.mubr.f32.gmra.mrb[0].mxu0 %v7295
        %v7297 = vpop.f32.mrb[0].mxu0
        %v7298 = vadd.f32 %v7155, %v7297
        %v7299 = vpop.f32.mrb[0].mxu0
        %7300 = vmatprep.mubr.f32.mxu0 0.0
        %v7301 = vand.u32 %v7188, 4294901760
        %v7302 = vsub.f32 %v7188, %v7301
        %v7303 = vand.u32 %v7302, 4294901760
        %v7304 = vsub.f32 %v7302, %v7303
        %v7305 = vand.u32 %v7304, 4294901760
        %7306 = vmatmul.mubr.f32.gmra.mrb[0].mxu0 %v7305
        %v7307 = vpop.f32.mrb[0].mxu0
        %v7308 = vadd.f32 %v7160, %v7307
        %v7309 = vpop.f32.mrb[0].mxu0
        %7310 = vmatprep.mubr.f32.mxu0 0.0
        %v7311 = vand.u32 %v7191, 4294901760
        %v7312 = vsub.f32 %v7191, %v7311
        %v7313 = vand.u32 %v7312, 4294901760
        %v7314 = vsub.f32 %v7312, %v7313
        %v7315 = vand.u32 %v7314, 4294901760
        %7316 = vmatmul.mubr.f32.gmra.mrb[0].mxu0 %v7315
        %v7317 = vpop.f32.mrb[0].mxu0
        %v7318 = vpop.f32.mrb[0].mxu0
        %7319 = vmatprep.mubr.f32.mxu0 0.0
        %v7320 = vand.u32 %v7194, 4294901760
        %v7321 = vsub.f32 %v7194, %v7320
        %v7322 = vand.u32 %v7321, 4294901760
        %v7323 = vsub.f32 %v7321, %v7322
        %v7324 = vand.u32 %v7323, 4294901760
        %7325 = vmatmul.mubr.f32.gmra.mrb[0].mxu0 %v7324
        %v7326 = vpop.f32.mrb[0].mxu0
        %v7327 = vpop.f32.mrb[0].mxu0
        %7328 = vmatprep.mubr.f32.mxu0 0.0
        %v7329 = vand.u32 %v7197, 4294901760
        %v7330 = vsub.f32 %v7197, %v7329
        %v7331 = vand.u32 %v7330, 4294901760
        %v7332 = vsub.f32 %v7330, %v7331
        %v7333 = vand.u32 %v7332, 4294901760
        %7334 = vmatmul.mubr.f32.gmra.mrb[0].mxu0 %v7333
        %v7335 = vpop.f32.mrb[0].mxu0
        %v7336 = vpop.f32.mrb[0].mxu0
        %7337 = vmatprep.mubr.f32.mxu0 0.0
        %v7338 = vand.u32 %v7200, 4294901760
        %v7339 = vsub.f32 %v7200, %v7338
        %v7340 = vand.u32 %v7339, 4294901760
        %v7341 = vsub.f32 %v7339, %v7340
        %v7342 = vand.u32 %v7341, 4294901760
        %7343 = vmatmul.mubr.f32.gmra.mrb[0].mxu0 %v7342
        %v7344 = vpop.f32.mrb[0].mxu0
        %v7345 = vpop.f32.mrb[0].mxu0
        %7346 = vdwg.mxu0
        %7347 = vmatprep.subr.mxu0 0.0
        %v7348 = vand.u32 %v7120, 4294901760
        %v7349 = vsub.f32 %v7120, %v7348
        %v7350 = vand.u32 %v7349, 4294901760
        %v7351 = vsub.f32 %v7349, %v7350
        %v7352 = vand.u32 %v7351, 4294901760
        %7353 = vmatpush1.msra.mxu0 %v7352
        %7354 = vmatprep.subr.mxu0 0.0
        %v7355 = vand.u32 %v7121, 4294901760
        %v7356 = vsub.f32 %v7121, %v7355
        %v7357 = vand.u32 %v7356, 4294901760
        %v7358 = vsub.f32 %v7356, %v7357
        %v7359 = vand.u32 %v7358, 4294901760
        %7360 = vmatpush1.msra.mxu0 %v7359
        %7361 = vmatprep.subr.mxu0 0.0
        %v7362 = vand.u32 %v7122, 4294901760
        %v7363 = vsub.f32 %v7122, %v7362
        %v7364 = vand.u32 %v7363, 4294901760
        %v7365 = vsub.f32 %v7363, %v7364
        %v7366 = vand.u32 %v7365, 4294901760
        %7367 = vmatpush1.msra.mxu0 %v7366
        %7368 = vmatprep.subr.mxu0 0.0
        %v7369 = vand.u32 %v7123, 4294901760
        %v7370 = vsub.f32 %v7123, %v7369
        %v7371 = vand.u32 %v7370, 4294901760
        %v7372 = vsub.f32 %v7370, %v7371
        %v7373 = vand.u32 %v7372, 4294901760
        %7374 = vmatpush1.msra.mxu0 %v7373
        %7375 = vmatprep.subr.mxu0 0.0
        %7376 = vmatpush1.msra.mxu0 0.0
        %7377 = vmatprep.subr.mxu0 0.0
        %7378 = vmatpush1.msra.mxu0 0.0
        %7379 = vmatprep.subr.mxu0 0.0
        %7380 = vmatpush1.msra.mxu0 0.0
        %7381 = vmatprep.subr.mxu0 0.0
        %7382 = vmatpush1.msra.mxu0 0.0
        %7383 = vmatprep.subr.mxu0 0.0
        %7384 = vmatpush1.msra.mxu0 0.0
        %7385 = vmatprep.subr.mxu0 0.0
        %7386 = vmatpush1.msra.mxu0 0.0
        %7387 = vmatprep.subr.mxu0 0.0
        %7388 = vmatpush1.msra.mxu0 0.0
        %7389 = vmatprep.subr.mxu0 0.0
        %7390 = vmatpush1.msra.mxu0 0.0
        %7391 = vmatprep.subr.mxu0 0.0
        %7392 = vmatpush1.msra.mxu0 0.0
        %7393 = vmatprep.subr.mxu0 0.0
        %7394 = vmatpush1.msra.mxu0 0.0
        %7395 = vmatprep.subr.mxu0 0.0
        %7396 = vmatpush1.msra.mxu0 0.0
        %7397 = vmatprep.subr.mxu0 0.0
        %7398 = vmatpush1.msra.mxu0 0.0
        %7399 = vmatprep.subr.mxu0 0.0
        %7400 = vmatpush1.msra.mxu0 0.0
        %7401 = vmatprep.subr.mxu0 0.0
        %7402 = vmatpush1.msra.mxu0 0.0
        %7403 = vmatprep.subr.mxu0 0.0
        %7404 = vmatpush1.msra.mxu0 0.0
        %7405 = vmatprep.subr.mxu0 0.0
        %7406 = vmatpush1.msra.mxu0 0.0
        %7407 = vmatprep.subr.mxu0 0.0
        %7408 = vmatpush1.msra.mxu0 0.0
        %7409 = vmatprep.subr.mxu0 0.0
        %7410 = vmatpush1.msra.mxu0 0.0
        %7411 = vmatprep.subr.mxu0 0.0
        %7412 = vmatpush1.msra.mxu0 0.0
        %7413 = vmatprep.subr.mxu0 0.0
        %7414 = vmatpush1.msra.mxu0 0.0
        %7415 = vmatprep.subr.mxu0 0.0
        %7416 = vmatpush1.msra.mxu0 0.0
        %7417 = vmatprep.subr.mxu0 0.0
        %7418 = vmatpush1.msra.mxu0 0.0
        %7419 = vmatprep.subr.mxu0 0.0
        %7420 = vmatpush1.msra.mxu0 0.0
        %7421 = vmatprep.subr.mxu0 0.0
        %7422 = vmatpush1.msra.mxu0 0.0
        %7423 = vmatprep.subr.mxu0 0.0
        %7424 = vmatpush1.msra.mxu0 0.0
        %7425 = vmatprep.subr.mxu0 0.0
        %7426 = vmatpush1.msra.mxu0 0.0
        %7427 = vmatprep.subr.mxu0 0.0
        %7428 = vmatpush1.msra.mxu0 0.0
        %7429 = vmatprep.subr.mxu0 0.0
        %7430 = vmatpush1.msra.mxu0 0.0
        %7431 = vmatprep.mubr.f32.mxu0 0.0
        %v7432 = vand.u32 %v7179, 4294901760
        %7433 = vmatmul.mubr.f32.gmra.mrb[0].mxu0 %v7432
        %v7434 = vpop.f32.mrb[0].mxu0
        %v7435 = vadd.f32 %v7278, %v7434
        %v7436 = vpop.f32.mrb[0].mxu0
        %7437 = vmatprep.mubr.f32.mxu0 0.0
        %v7438 = vand.u32 %v7182, 4294901760
        %7439 = vmatmul.mubr.f32.gmra.mrb[0].mxu0 %v7438
        %v7440 = vpop.f32.mrb[0].mxu0
        %v7441 = vadd.f32 %v7288, %v7440
        %v7442 = vpop.f32.mrb[0].mxu0
        %7443 = vmatprep.mubr.f32.mxu0 0.0
        %v7444 = vand.u32 %v7185, 4294901760
        %7445 = vmatmul.mubr.f32.gmra.mrb[0].mxu0 %v7444
        %v7446 = vpop.f32.mrb[0].mxu0
        %v7447 = vadd.f32 %v7298, %v7446
        %v7448 = vpop.f32.mrb[0].mxu0
        %7449 = vmatprep.mubr.f32.mxu0 0.0
        %v7450 = vand.u32 %v7188, 4294901760
        %7451 = vmatmul.mubr.f32.gmra.mrb[0].mxu0 %v7450
        %v7452 = vpop.f32.mrb[0].mxu0
        %v7453 = vadd.f32 %v7308, %v7452
        %v7454 = vpop.f32.mrb[0].mxu0
        %7455 = vmatprep.mubr.f32.mxu0 0.0
        %v7456 = vand.u32 %v7191, 4294901760
        %7457 = vmatmul.mubr.f32.gmra.mrb[0].mxu0 %v7456
        %v7458 = vpop.f32.mrb[0].mxu0
        %v7459 = vpop.f32.mrb[0].mxu0
        %7460 = vmatprep.mubr.f32.mxu0 0.0
        %v7461 = vand.u32 %v7194, 4294901760
        %7462 = vmatmul.mubr.f32.gmra.mrb[0].mxu0 %v7461
        %v7463 = vpop.f32.mrb[0].mxu0
        %v7464 = vpop.f32.mrb[0].mxu0
        %7465 = vmatprep.mubr.f32.mxu0 0.0
        %v7466 = vand.u32 %v7197, 4294901760
        %7467 = vmatmul.mubr.f32.gmra.mrb[0].mxu0 %v7466
        %v7468 = vpop.f32.mrb[0].mxu0
        %v7469 = vpop.f32.mrb[0].mxu0
        %7470 = vmatprep.mubr.f32.mxu0 0.0
        %v7471 = vand.u32 %v7200, 4294901760
        %7472 = vmatmul.mubr.f32.gmra.mrb[0].mxu0 %v7471
        %v7473 = vpop.f32.mrb[0].mxu0
        %v7474 = vpop.f32.mrb[0].mxu0
        %7475 = vdwg.mxu0
        %7476 = vmatprep.subr.mxu0 0.0
        %v7477 = vand.u32 %v7120, 4294901760
        %v7478 = vsub.f32 %v7120, %v7477
        %7479 = vmatpush1.msra.mxu0 %v7478
        %7480 = vmatprep.subr.mxu0 0.0
        %v7481 = vand.u32 %v7121, 4294901760
        %v7482 = vsub.f32 %v7121, %v7481
        %7483 = vmatpush1.msra.mxu0 %v7482
        %7484 = vmatprep.subr.mxu0 0.0
        %v7485 = vand.u32 %v7122, 4294901760
        %v7486 = vsub.f32 %v7122, %v7485
        %7487 = vmatpush1.msra.mxu0 %v7486
        %7488 = vmatprep.subr.mxu0 0.0
        %v7489 = vand.u32 %v7123, 4294901760
        %v7490 = vsub.f32 %v7123, %v7489
        %7491 = vmatpush1.msra.mxu0 %v7490
        %7492 = vmatprep.subr.mxu0 0.0
        %7493 = vmatpush1.msra.mxu0 0.0
        %7494 = vmatprep.subr.mxu0 0.0
        %7495 = vmatpush1.msra.mxu0 0.0
        %7496 = vmatprep.subr.mxu0 0.0
        %7497 = vmatpush1.msra.mxu0 0.0
        %7498 = vmatprep.subr.mxu0 0.0
        %7499 = vmatpush1.msra.mxu0 0.0
        %7500 = vmatprep.subr.mxu0 0.0
        %7501 = vmatpush1.msra.mxu0 0.0
        %7502 = vmatprep.subr.mxu0 0.0
        %7503 = vmatpush1.msra.mxu0 0.0
        %7504 = vmatprep.subr.mxu0 0.0
        %7505 = vmatpush1.msra.mxu0 0.0
        %7506 = vmatprep.subr.mxu0 0.0
        %7507 = vmatpush1.msra.mxu0 0.0
        %7508 = vmatprep.subr.mxu0 0.0
        %7509 = vmatpush1.msra.mxu0 0.0
        %7510 = vmatprep.subr.mxu0 0.0
        %7511 = vmatpush1.msra.mxu0 0.0
        %7512 = vmatprep.subr.mxu0 0.0
        %7513 = vmatpush1.msra.mxu0 0.0
        %7514 = vmatprep.subr.mxu0 0.0
        %7515 = vmatpush1.msra.mxu0 0.0
        %7516 = vmatprep.subr.mxu0 0.0
        %7517 = vmatpush1.msra.mxu0 0.0
        %7518 = vmatprep.subr.mxu0 0.0
        %7519 = vmatpush1.msra.mxu0 0.0
        %7520 = vmatprep.subr.mxu0 0.0
        %7521 = vmatpush1.msra.mxu0 0.0
        %7522 = vmatprep.subr.mxu0 0.0
        %7523 = vmatpush1.msra.mxu0 0.0
        %7524 = vmatprep.subr.mxu0 0.0
        %7525 = vmatpush1.msra.mxu0 0.0
        %7526 = vmatprep.subr.mxu0 0.0
        %7527 = vmatpush1.msra.mxu0 0.0
        %7528 = vmatprep.subr.mxu0 0.0
        %7529 = vmatpush1.msra.mxu0 0.0
        %7530 = vmatprep.subr.mxu0 0.0
        %7531 = vmatpush1.msra.mxu0 0.0
        %7532 = vmatprep.subr.mxu0 0.0
        %7533 = vmatpush1.msra.mxu0 0.0
        %7534 = vmatprep.subr.mxu0 0.0
        %7535 = vmatpush1.msra.mxu0 0.0
        %7536 = vmatprep.subr.mxu0 0.0
        %7537 = vmatpush1.msra.mxu0 0.0
        %7538 = vmatprep.subr.mxu0 0.0
        %7539 = vmatpush1.msra.mxu0 0.0
        %7540 = vmatprep.subr.mxu0 0.0
        %7541 = vmatpush1.msra.mxu0 0.0
        %7542 = vmatprep.subr.mxu0 0.0
        %7543 = vmatpush1.msra.mxu0 0.0
        %7544 = vmatprep.subr.mxu0 0.0
        %7545 = vmatpush1.msra.mxu0 0.0
        %7546 = vmatprep.subr.mxu0 0.0
        %7547 = vmatpush1.msra.mxu0 0.0
        %7548 = vmatprep.mubr.f32.mxu0 0.0
        %v7549 = vand.u32 %v7179, 4294901760
        %v7550 = vsub.f32 %v7179, %v7549
        %7551 = vmatmul.mubr.f32.gmra.mrb[0].mxu0 %v7550
        %v7552 = vpop.f32.mrb[0].mxu0
        %v7553 = vadd.f32 %v7435, %v7552
        %v7554 = vpop.f32.mrb[0].mxu0
        %7555 = vmatprep.mubr.f32.mxu0 0.0
        %v7556 = vand.u32 %v7182, 4294901760
        %v7557 = vsub.f32 %v7182, %v7556
        %7558 = vmatmul.mubr.f32.gmra.mrb[0].mxu0 %v7557
        %v7559 = vpop.f32.mrb[0].mxu0
        %v7560 = vadd.f32 %v7441, %v7559
        %v7561 = vpop.f32.mrb[0].mxu0
        %7562 = vmatprep.mubr.f32.mxu0 0.0
        %v7563 = vand.u32 %v7185, 4294901760
        %v7564 = vsub.f32 %v7185, %v7563
        %7565 = vmatmul.mubr.f32.gmra.mrb[0].mxu0 %v7564
        %v7566 = vpop.f32.mrb[0].mxu0
        %v7567 = vadd.f32 %v7447, %v7566
        %v7568 = vpop.f32.mrb[0].mxu0
        %7569 = vmatprep.mubr.f32.mxu0 0.0
        %v7570 = vand.u32 %v7188, 4294901760
        %v7571 = vsub.f32 %v7188, %v7570
        %7572 = vmatmul.mubr.f32.gmra.mrb[0].mxu0 %v7571
        %v7573 = vpop.f32.mrb[0].mxu0
        %v7574 = vadd.f32 %v7453, %v7573
        %v7575 = vpop.f32.mrb[0].mxu0
        %7576 = vmatprep.mubr.f32.mxu0 0.0
        %v7577 = vand.u32 %v7191, 4294901760
        %v7578 = vsub.f32 %v7191, %v7577
        %7579 = vmatmul.mubr.f32.gmra.mrb[0].mxu0 %v7578
        %v7580 = vpop.f32.mrb[0].mxu0
        %v7581 = vpop.f32.mrb[0].mxu0
        %7582 = vmatprep.mubr.f32.mxu0 0.0
        %v7583 = vand.u32 %v7194, 4294901760
        %v7584 = vsub.f32 %v7194, %v7583
        %7585 = vmatmul.mubr.f32.gmra.mrb[0].mxu0 %v7584
        %v7586 = vpop.f32.mrb[0].mxu0
        %v7587 = vpop.f32.mrb[0].mxu0
        %7588 = vmatprep.mubr.f32.mxu0 0.0
        %v7589 = vand.u32 %v7197, 4294901760
        %v7590 = vsub.f32 %v7197, %v7589
        %7591 = vmatmul.mubr.f32.gmra.mrb[0].mxu0 %v7590
        %v7592 = vpop.f32.mrb[0].mxu0
        %v7593 = vpop.f32.mrb[0].mxu0
        %7594 = vmatprep.mubr.f32.mxu0 0.0
        %v7595 = vand.u32 %v7200, 4294901760
        %v7596 = vsub.f32 %v7200, %v7595
        %7597 = vmatmul.mubr.f32.gmra.mrb[0].mxu0 %v7596
        %v7598 = vpop.f32.mrb[0].mxu0
        %v7599 = vpop.f32.mrb[0].mxu0
        %7600 = vdwg.mxu0
        %7601 = vmatprep.subr.mxu0 0.0
        %v7602 = vand.u32 %v7120, 4294901760
        %7603 = vmatpush1.msra.mxu0 %v7602
        %7604 = vmatprep.subr.mxu0 0.0
        %v7605 = vand.u32 %v7121, 4294901760
        %7606 = vmatpush1.msra.mxu0 %v7605
        %7607 = vmatprep.subr.mxu0 0.0
        %v7608 = vand.u32 %v7122, 4294901760
        %7609 = vmatpush1.msra.mxu0 %v7608
        %7610 = vmatprep.subr.mxu0 0.0
        %v7611 = vand.u32 %v7123, 4294901760
        %7612 = vmatpush1.msra.mxu0 %v7611
        %7613 = vmatprep.subr.mxu0 0.0
        %7614 = vmatpush1.msra.mxu0 0.0
        %7615 = vmatprep.subr.mxu0 0.0
        %7616 = vmatpush1.msra.mxu0 0.0
        %7617 = vmatprep.subr.mxu0 0.0
        %7618 = vmatpush1.msra.mxu0 0.0
        %7619 = vmatprep.subr.mxu0 0.0
        %7620 = vmatpush1.msra.mxu0 0.0
        %7621 = vmatprep.subr.mxu0 0.0
        %7622 = vmatpush1.msra.mxu0 0.0
        %7623 = vmatprep.subr.mxu0 0.0
        %7624 = vmatpush1.msra.mxu0 0.0
        %7625 = vmatprep.subr.mxu0 0.0
        %7626 = vmatpush1.msra.mxu0 0.0
        %7627 = vmatprep.subr.mxu0 0.0
        %7628 = vmatpush1.msra.mxu0 0.0
        %7629 = vmatprep.subr.mxu0 0.0
        %7630 = vmatpush1.msra.mxu0 0.0
        %7631 = vmatprep.subr.mxu0 0.0
        %7632 = vmatpush1.msra.mxu0 0.0
        %7633 = vmatprep.subr.mxu0 0.0
        %7634 = vmatpush1.msra.mxu0 0.0
        %7635 = vmatprep.subr.mxu0 0.0
        %7636 = vmatpush1.msra.mxu0 0.0
        %7637 = vmatprep.subr.mxu0 0.0
        %7638 = vmatpush1.msra.mxu0 0.0
        %7639 = vmatprep.subr.mxu0 0.0
        %7640 = vmatpush1.msra.mxu0 0.0
        %7641 = vmatprep.subr.mxu0 0.0
        %7642 = vmatpush1.msra.mxu0 0.0
        %7643 = vmatprep.subr.mxu0 0.0
        %7644 = vmatpush1.msra.mxu0 0.0
        %7645 = vmatprep.subr.mxu0 0.0
        %7646 = vmatpush1.msra.mxu0 0.0
        %7647 = vmatprep.subr.mxu0 0.0
        %7648 = vmatpush1.msra.mxu0 0.0
        %7649 = vmatprep.subr.mxu0 0.0
        %7650 = vmatpush1.msra.mxu0 0.0
        %7651 = vmatprep.subr.mxu0 0.0
        %7652 = vmatpush1.msra.mxu0 0.0
        %7653 = vmatprep.subr.mxu0 0.0
        %7654 = vmatpush1.msra.mxu0 0.0
        %7655 = vmatprep.subr.mxu0 0.0
        %7656 = vmatpush1.msra.mxu0 0.0
        %7657 = vmatprep.subr.mxu0 0.0
        %7658 = vmatpush1.msra.mxu0 0.0
        %7659 = vmatprep.subr.mxu0 0.0
        %7660 = vmatpush1.msra.mxu0 0.0
        %7661 = vmatprep.subr.mxu0 0.0
        %7662 = vmatpush1.msra.mxu0 0.0
        %7663 = vmatprep.subr.mxu0 0.0
        %7664 = vmatpush1.msra.mxu0 0.0
        %7665 = vmatprep.subr.mxu0 0.0
        %7666 = vmatpush1.msra.mxu0 0.0
        %7667 = vmatprep.subr.mxu0 0.0
        %7668 = vmatpush1.msra.mxu0 0.0
        %7669 = vmatprep.mubr.f32.mxu0 0.0
        %v7670 = vand.u32 %v7179, 4294901760
        %v7671 = vsub.f32 %v7179, %v7670
        %v7672 = vand.u32 %v7671, 4294901760
        %7673 = vmatmul.mubr.f32.gmra.mrb[0].mxu0 %v7672
        %v7674 = vpop.f32.mrb[0].mxu0
        %v7675 = vadd.f32 %v7553, %v7674
        %v7676 = vpop.f32.mrb[0].mxu0
        %7677 = vmatprep.mubr.f32.mxu0 0.0
        %v7678 = vand.u32 %v7182, 4294901760
        %v7679 = vsub.f32 %v7182, %v7678
        %v7680 = vand.u32 %v7679, 4294901760
        %7681 = vmatmul.mubr.f32.gmra.mrb[0].mxu0 %v7680
        %v7682 = vpop.f32.mrb[0].mxu0
        %v7683 = vadd.f32 %v7560, %v7682
        %v7684 = vpop.f32.mrb[0].mxu0
        %7685 = vmatprep.mubr.f32.mxu0 0.0
        %v7686 = vand.u32 %v7185, 4294901760
        %v7687 = vsub.f32 %v7185, %v7686
        %v7688 = vand.u32 %v7687, 4294901760
        %7689 = vmatmul.mubr.f32.gmra.mrb[0].mxu0 %v7688
        %v7690 = vpop.f32.mrb[0].mxu0
        %v7691 = vadd.f32 %v7567, %v7690
        %v7692 = vpop.f32.mrb[0].mxu0
        %7693 = vmatprep.mubr.f32.mxu0 0.0
        %v7694 = vand.u32 %v7188, 4294901760
        %v7695 = vsub.f32 %v7188, %v7694
        %v7696 = vand.u32 %v7695, 4294901760
        %7697 = vmatmul.mubr.f32.gmra.mrb[0].mxu0 %v7696
        %v7698 = vpop.f32.mrb[0].mxu0
        %v7699 = vadd.f32 %v7574, %v7698
        %v7700 = vpop.f32.mrb[0].mxu0
        %7701 = vmatprep.mubr.f32.mxu0 0.0
        %v7702 = vand.u32 %v7191, 4294901760
        %v7703 = vsub.f32 %v7191, %v7702
        %v7704 = vand.u32 %v7703, 4294901760
        %7705 = vmatmul.mubr.f32.gmra.mrb[0].mxu0 %v7704
        %v7706 = vpop.f32.mrb[0].mxu0
        %v7707 = vpop.f32.mrb[0].mxu0
        %7708 = vmatprep.mubr.f32.mxu0 0.0
        %v7709 = vand.u32 %v7194, 4294901760
        %v7710 = vsub.f32 %v7194, %v7709
        %v7711 = vand.u32 %v7710, 4294901760
        %7712 = vmatmul.mubr.f32.gmra.mrb[0].mxu0 %v7711
        %v7713 = vpop.f32.mrb[0].mxu0
        %v7714 = vpop.f32.mrb[0].mxu0
        %7715 = vmatprep.mubr.f32.mxu0 0.0
        %v7716 = vand.u32 %v7197, 4294901760
        %v7717 = vsub.f32 %v7197, %v7716
        %v7718 = vand.u32 %v7717, 4294901760
        %7719 = vmatmul.mubr.f32.gmra.mrb[0].mxu0 %v7718
        %v7720 = vpop.f32.mrb[0].mxu0
        %v7721 = vpop.f32.mrb[0].mxu0
        %7722 = vmatprep.mubr.f32.mxu0 0.0
        %v7723 = vand.u32 %v7200, 4294901760
        %v7724 = vsub.f32 %v7200, %v7723
        %v7725 = vand.u32 %v7724, 4294901760
        %7726 = vmatmul.mubr.f32.gmra.mrb[0].mxu0 %v7725
        %v7727 = vpop.f32.mrb[0].mxu0
        %v7728 = vpop.f32.mrb[0].mxu0
        %7729 = vdwg.mxu0
        %7730 = vmatprep.subr.mxu0 0.0
        %v7731 = vand.u32 %v7120, 4294901760
        %v7732 = vsub.f32 %v7120, %v7731
        %v7733 = vand.u32 %v7732, 4294901760
        %7734 = vmatpush1.msra.mxu0 %v7733
        %7735 = vmatprep.subr.mxu0 0.0
        %v7736 = vand.u32 %v7121, 4294901760
        %v7737 = vsub.f32 %v7121, %v7736
        %v7738 = vand.u32 %v7737, 4294901760
        %7739 = vmatpush1.msra.mxu0 %v7738
        %7740 = vmatprep.subr.mxu0 0.0
        %v7741 = vand.u32 %v7122, 4294901760
        %v7742 = vsub.f32 %v7122, %v7741
        %v7743 = vand.u32 %v7742, 4294901760
        %7744 = vmatpush1.msra.mxu0 %v7743
        %7745 = vmatprep.subr.mxu0 0.0
        %v7746 = vand.u32 %v7123, 4294901760
        %v7747 = vsub.f32 %v7123, %v7746
        %v7748 = vand.u32 %v7747, 4294901760
        %7749 = vmatpush1.msra.mxu0 %v7748
        %7750 = vmatprep.subr.mxu0 0.0
        %7751 = vmatpush1.msra.mxu0 0.0
        %7752 = vmatprep.subr.mxu0 0.0
        %7753 = vmatpush1.msra.mxu0 0.0
        %7754 = vmatprep.subr.mxu0 0.0
        %7755 = vmatpush1.msra.mxu0 0.0
        %7756 = vmatprep.subr.mxu0 0.0
        %7757 = vmatpush1.msra.mxu0 0.0
        %7758 = vmatprep.subr.mxu0 0.0
        %7759 = vmatpush1.msra.mxu0 0.0
        %7760 = vmatprep.subr.mxu0 0.0
        %7761 = vmatpush1.msra.mxu0 0.0
        %7762 = vmatprep.subr.mxu0 0.0
        %7763 = vmatpush1.msra.mxu0 0.0
        %7764 = vmatprep.subr.mxu0 0.0
        %7765 = vmatpush1.msra.mxu0 0.0
        %7766 = vmatprep.subr.mxu0 0.0
        %7767 = vmatpush1.msra.mxu0 0.0
        %7768 = vmatprep.subr.mxu0 0.0
        %7769 = vmatpush1.msra.mxu0 0.0
        %7770 = vmatprep.subr.mxu0 0.0
        %7771 = vmatpush1.msra.mxu0 0.0
        %7772 = vmatprep.subr.mxu0 0.0
        %7773 = vmatpush1.msra.mxu0 0.0
        %7774 = vmatprep.subr.mxu0 0.0
        %7775 = vmatpush1.msra.mxu0 0.0
        %7776 = vmatprep.subr.mxu0 0.0
        %7777 = vmatpush1.msra.mxu0 0.0
        %7778 = vmatprep.subr.mxu0 0.0
        %7779 = vmatpush1.msra.mxu0 0.0
        %7780 = vmatprep.subr.mxu0 0.0
        %7781 = vmatpush1.msra.mxu0 0.0
        %7782 = vmatprep.subr.mxu0 0.0
        %7783 = vmatpush1.msra.mxu0 0.0
        %7784 = vmatprep.subr.mxu0 0.0
        %7785 = vmatpush1.msra.mxu0 0.0
        %7786 = vmatprep.subr.mxu0 0.0
        %7787 = vmatpush1.msra.mxu0 0.0
        %7788 = vmatprep.subr.mxu0 0.0
        %7789 = vmatpush1.msra.mxu0 0.0
        %7790 = vmatprep.subr.mxu0 0.0
        %7791 = vmatpush1.msra.mxu0 0.0
        %7792 = vmatprep.subr.mxu0 0.0
        %7793 = vmatpush1.msra.mxu0 0.0
        %7794 = vmatprep.subr.mxu0 0.0
        %7795 = vmatpush1.msra.mxu0 0.0
        %7796 = vmatprep.subr.mxu0 0.0
        %7797 = vmatpush1.msra.mxu0 0.0
        %7798 = vmatprep.subr.mxu0 0.0
        %7799 = vmatpush1.msra.mxu0 0.0
        %7800 = vmatprep.subr.mxu0 0.0
        %7801 = vmatpush1.msra.mxu0 0.0
        %7802 = vmatprep.subr.mxu0 0.0
        %7803 = vmatpush1.msra.mxu0 0.0
        %7804 = vmatprep.subr.mxu0 0.0
        %7805 = vmatpush1.msra.mxu0 0.0
        %7806 = vmatprep.mubr.f32.mxu0 0.0
        %v7807 = vand.u32 %v7179, 4294901760
        %7808 = vmatmul.mubr.f32.gmra.mrb[0].mxu0 %v7807
        %v7809 = vpop.f32.mrb[0].mxu0
        %v7810 = vadd.f32 %v7675, %v7809
        %v7811 = vpop.f32.mrb[0].mxu0
        %7812 = vmatprep.mubr.f32.mxu0 0.0
        %v7813 = vand.u32 %v7182, 4294901760
        %7814 = vmatmul.mubr.f32.gmra.mrb[0].mxu0 %v7813
        %v7815 = vpop.f32.mrb[0].mxu0
        %v7816 = vadd.f32 %v7683, %v7815
        %v7817 = vpop.f32.mrb[0].mxu0
        %7818 = vmatprep.mubr.f32.mxu0 0.0
        %v7819 = vand.u32 %v7185, 4294901760
        %7820 = vmatmul.mubr.f32.gmra.mrb[0].mxu0 %v7819
        %v7821 = vpop.f32.mrb[0].mxu0
        %v7822 = vadd.f32 %v7691, %v7821
        %v7823 = vpop.f32.mrb[0].mxu0
        %7824 = vmatprep.mubr.f32.mxu0 0.0
        %v7825 = vand.u32 %v7188, 4294901760
        %7826 = vmatmul.mubr.f32.gmra.mrb[0].mxu0 %v7825
        %v7827 = vpop.f32.mrb[0].mxu0
        %v7828 = vadd.f32 %v7699, %v7827
        %v7829 = vpop.f32.mrb[0].mxu0
        %7830 = vmatprep.mubr.f32.mxu0 0.0
        %v7831 = vand.u32 %v7191, 4294901760
        %7832 = vmatmul.mubr.f32.gmra.mrb[0].mxu0 %v7831
        %v7833 = vpop.f32.mrb[0].mxu0
        %v7834 = vpop.f32.mrb[0].mxu0
        %7835 = vmatprep.mubr.f32.mxu0 0.0
        %v7836 = vand.u32 %v7194, 4294901760
        %7837 = vmatmul.mubr.f32.gmra.mrb[0].mxu0 %v7836
        %v7838 = vpop.f32.mrb[0].mxu0
        %v7839 = vpop.f32.mrb[0].mxu0
        %7840 = vmatprep.mubr.f32.mxu0 0.0
        %v7841 = vand.u32 %v7197, 4294901760
        %7842 = vmatmul.mubr.f32.gmra.mrb[0].mxu0 %v7841
        %v7843 = vpop.f32.mrb[0].mxu0
        %v7844 = vpop.f32.mrb[0].mxu0
        %7845 = vmatprep.mubr.f32.mxu0 0.0
        %v7846 = vand.u32 %v7200, 4294901760
        %7847 = vmatmul.mubr.f32.gmra.mrb[0].mxu0 %v7846
        %v7848 = vpop.f32.mrb[0].mxu0
        %v7849 = vpop.f32.mrb[0].mxu0
        %7850 = vdwg.mxu0
        %7851 = vmatprep.subr.mxu0 0.0
        %v7852 = vand.u32 %v7120, 4294901760
        %7853 = vmatpush1.msra.mxu0 %v7852
        %7854 = vmatprep.subr.mxu0 0.0
        %v7855 = vand.u32 %v7121, 4294901760
        %7856 = vmatpush1.msra.mxu0 %v7855
        %7857 = vmatprep.subr.mxu0 0.0
        %v7858 = vand.u32 %v7122, 4294901760
        %7859 = vmatpush1.msra.mxu0 %v7858
        %7860 = vmatprep.subr.mxu0 0.0
        %v7861 = vand.u32 %v7123, 4294901760
        %7862 = vmatpush1.msra.mxu0 %v7861
        %7863 = vmatprep.subr.mxu0 0.0
        %7864 = vmatpush1.msra.mxu0 0.0
        %7865 = vmatprep.subr.mxu0 0.0
        %7866 = vmatpush1.msra.mxu0 0.0
        %7867 = vmatprep.subr.mxu0 0.0
        %7868 = vmatpush1.msra.mxu0 0.0
        %7869 = vmatprep.subr.mxu0 0.0
        %7870 = vmatpush1.msra.mxu0 0.0
        %7871 = vmatprep.subr.mxu0 0.0
        %7872 = vmatpush1.msra.mxu0 0.0
        %7873 = vmatprep.subr.mxu0 0.0
        %7874 = vmatpush1.msra.mxu0 0.0
        %7875 = vmatprep.subr.mxu0 0.0
        %7876 = vmatpush1.msra.mxu0 0.0
        %7877 = vmatprep.subr.mxu0 0.0
        %7878 = vmatpush1.msra.mxu0 0.0
        %7879 = vmatprep.subr.mxu0 0.0
        %7880 = vmatpush1.msra.mxu0 0.0
        %7881 = vmatprep.subr.mxu0 0.0
        %7882 = vmatpush1.msra.mxu0 0.0
        %7883 = vmatprep.subr.mxu0 0.0
        %7884 = vmatpush1.msra.mxu0 0.0
        %7885 = vmatprep.subr.mxu0 0.0
        %7886 = vmatpush1.msra.mxu0 0.0
        %7887 = vmatprep.subr.mxu0 0.0
        %7888 = vmatpush1.msra.mxu0 0.0
        %7889 = vmatprep.subr.mxu0 0.0
        %7890 = vmatpush1.msra.mxu0 0.0
        %7891 = vmatprep.subr.mxu0 0.0
        %7892 = vmatpush1.msra.mxu0 0.0
        %7893 = vmatprep.subr.mxu0 0.0
        %7894 = vmatpush1.msra.mxu0 0.0
        %7895 = vmatprep.subr.mxu0 0.0
        %7896 = vmatpush1.msra.mxu0 0.0
        %7897 = vmatprep.subr.mxu0 0.0
        %7898 = vmatpush1.msra.mxu0 0.0
        %7899 = vmatprep.subr.mxu0 0.0
        %7900 = vmatpush1.msra.mxu0 0.0
        %7901 = vmatprep.subr.mxu0 0.0
        %7902 = vmatpush1.msra.mxu0 0.0
        %7903 = vmatprep.subr.mxu0 0.0
        %7904 = vmatpush1.msra.mxu0 0.0
        %7905 = vmatprep.subr.mxu0 0.0
        %7906 = vmatpush1.msra.mxu0 0.0
        %7907 = vmatprep.subr.mxu0 0.0
        %7908 = vmatpush1.msra.mxu0 0.0
        %7909 = vmatprep.subr.mxu0 0.0
        %7910 = vmatpush1.msra.mxu0 0.0
        %7911 = vmatprep.subr.mxu0 0.0
        %7912 = vmatpush1.msra.mxu0 0.0
        %7913 = vmatprep.subr.mxu0 0.0
        %7914 = vmatpush1.msra.mxu0 0.0
        %7915 = vmatprep.subr.mxu0 0.0
        %7916 = vmatpush1.msra.mxu0 0.0
        %7917 = vmatprep.subr.mxu0 0.0
        %7918 = vmatpush1.msra.mxu0 0.0
        %7919 = vmatprep.mubr.f32.mxu0 0.0
        %v7920 = vand.u32 %v7179, 4294901760
        %7921 = vmatmul.mubr.f32.gmra.mrb[0].mxu0 %v7920
        %v7922 = vpop.f32.mrb[0].mxu0
        %v7923 = vadd.f32 %v7810, %v7922
        %v7924 = vpop.f32.mrb[0].mxu0
        %7925 = vmatprep.mubr.f32.mxu0 0.0
        %v7926 = vand.u32 %v7182, 4294901760
        %7927 = vmatmul.mubr.f32.gmra.mrb[0].mxu0 %v7926
        %v7928 = vpop.f32.mrb[0].mxu0
        %v7929 = vadd.f32 %v7816, %v7928
        %v7930 = vpop.f32.mrb[0].mxu0
        %7931 = vmatprep.mubr.f32.mxu0 0.0
        %v7932 = vand.u32 %v7185, 4294901760
        %7933 = vmatmul.mubr.f32.gmra.mrb[0].mxu0 %v7932
        %v7934 = vpop.f32.mrb[0].mxu0
        %v7935 = vadd.f32 %v7822, %v7934
        %v7936 = vpop.f32.mrb[0].mxu0
        %7937 = vmatprep.mubr.f32.mxu0 0.0
        %v7938 = vand.u32 %v7188, 4294901760
        %7939 = vmatmul.mubr.f32.gmra.mrb[0].mxu0 %v7938
        %v7940 = vpop.f32.mrb[0].mxu0
        %v7941 = vadd.f32 %v7828, %v7940
        %v7942 = vpop.f32.mrb[0].mxu0
        %7943 = vmatprep.mubr.f32.mxu0 0.0
        %v7944 = vand.u32 %v7191, 4294901760
        %7945 = vmatmul.mubr.f32.gmra.mrb[0].mxu0 %v7944
        %v7946 = vpop.f32.mrb[0].mxu0
        %v7947 = vpop.f32.mrb[0].mxu0
        %7948 = vmatprep.mubr.f32.mxu0 0.0
        %v7949 = vand.u32 %v7194, 4294901760
        %7950 = vmatmul.mubr.f32.gmra.mrb[0].mxu0 %v7949
        %v7951 = vpop.f32.mrb[0].mxu0
        %v7952 = vpop.f32.mrb[0].mxu0
        %7953 = vmatprep.mubr.f32.mxu0 0.0
        %v7954 = vand.u32 %v7197, 4294901760
        %7955 = vmatmul.mubr.f32.gmra.mrb[0].mxu0 %v7954
        %v7956 = vpop.f32.mrb[0].mxu0
        %v7957 = vpop.f32.mrb[0].mxu0
        %7958 = vmatprep.mubr.f32.mxu0 0.0
        %v7959 = vand.u32 %v7200, 4294901760
        %7960 = vmatmul.mubr.f32.gmra.mrb[0].mxu0 %v7959
        %v7961 = vpop.f32.mrb[0].mxu0
        %v7962 = vpop.f32.mrb[0].mxu0
        %7963 = vdwg.mxu0
        %v7964 = vadd.f32 %v4526, %v7923
        %v7965 = vadd.f32 %v4527, %v7929
        %v7966 = vadd.f32 %v4528, %v7935
        %v7967 = vadd.f32 %v4529, %v7941
        %v7968 = vmul.f32 %v7964, %v1031
        %v7969 = vmul.f32 %v7965, %v1031
        %v7970 = vmul.f32 %v7966, %v1031
        %v7971 = vmul.f32 %v7967, %v1031
        %v7972 = vld [vmem:[%s8] sm:$0xf]
        %v7973 = vld [vmem:[%s9] sm:$0xf]
        %7975 = vset.pattern.permute.xlu0 0
        %7976 = vperm.xlu0 %7975, %v7973
        %v7977 = vpop.permute.xlu0 %7976
        %v7980 = vsel %vm1088, %v7972, 0
        %7982 = vmatprep.subr.mxu0 0.0
        %v7983 = vand.u32 %v7968, 4294901760
        %7984 = vmatpush1.msra.mxu0 %v7983
        %7985 = vmatprep.subr.mxu0 0.0
        %v7986 = vand.u32 %v7969, 4294901760
        %7987 = vmatpush1.msra.mxu0 %v7986
        %7988 = vmatprep.subr.mxu0 0.0
        %v7989 = vand.u32 %v7970, 4294901760
        %7990 = vmatpush1.msra.mxu0 %v7989
        %7991 = vmatprep.subr.mxu0 0.0
        %v7992 = vand.u32 %v7971, 4294901760
        %7993 = vmatpush1.msra.mxu0 %v7992
        %7994 = vmatprep.subr.mxu0 0.0
        %7995 = vmatpush1.msra.mxu0 0.0
        %7996 = vmatprep.subr.mxu0 0.0
        %7997 = vmatpush1.msra.mxu0 0.0
        %7998 = vmatprep.subr.mxu0 0.0
        %7999 = vmatpush1.msra.mxu0 0.0
        %8000 = vmatprep.subr.mxu0 0.0
        %8001 = vmatpush1.msra.mxu0 0.0
        %8002 = vmatprep.subr.mxu0 0.0
        %8003 = vmatpush1.msra.mxu0 0.0
        %8004 = vmatprep.subr.mxu0 0.0
        %8005 = vmatpush1.msra.mxu0 0.0
        %8006 = vmatprep.subr.mxu0 0.0
        %8007 = vmatpush1.msra.mxu0 0.0
        %8008 = vmatprep.subr.mxu0 0.0
        %8009 = vmatpush1.msra.mxu0 0.0
        %8010 = vmatprep.subr.mxu0 0.0
        %8011 = vmatpush1.msra.mxu0 0.0
        %8012 = vmatprep.subr.mxu0 0.0
        %8013 = vmatpush1.msra.mxu0 0.0
        %8014 = vmatprep.subr.mxu0 0.0
        %8015 = vmatpush1.msra.mxu0 0.0
        %8016 = vmatprep.subr.mxu0 0.0
        %8017 = vmatpush1.msra.mxu0 0.0
        %8018 = vmatprep.subr.mxu0 0.0
        %8019 = vmatpush1.msra.mxu0 0.0
        %8020 = vmatprep.subr.mxu0 0.0
        %8021 = vmatpush1.msra.mxu0 0.0
        %8022 = vmatprep.subr.mxu0 0.0
        %8023 = vmatpush1.msra.mxu0 0.0
        %8024 = vmatprep.subr.mxu0 0.0
        %8025 = vmatpush1.msra.mxu0 0.0
        %8026 = vmatprep.subr.mxu0 0.0
        %8027 = vmatpush1.msra.mxu0 0.0
        %8028 = vmatprep.subr.mxu0 0.0
        %8029 = vmatpush1.msra.mxu0 0.0
        %8030 = vmatprep.subr.mxu0 0.0
        %8031 = vmatpush1.msra.mxu0 0.0
        %8032 = vmatprep.subr.mxu0 0.0
        %8033 = vmatpush1.msra.mxu0 0.0
        %8034 = vmatprep.subr.mxu0 0.0
        %8035 = vmatpush1.msra.mxu0 0.0
        %8036 = vmatprep.subr.mxu0 0.0
        %8037 = vmatpush1.msra.mxu0 0.0
        %8038 = vmatprep.subr.mxu0 0.0
        %8039 = vmatpush1.msra.mxu0 0.0
        %8040 = vmatprep.subr.mxu0 0.0
        %8041 = vmatpush1.msra.mxu0 0.0
        %8042 = vmatprep.subr.mxu0 0.0
        %8043 = vmatpush1.msra.mxu0 0.0
        %8044 = vmatprep.subr.mxu0 0.0
        %8045 = vmatpush1.msra.mxu0 0.0
        %8046 = vmatprep.subr.mxu0 0.0
        %8047 = vmatpush1.msra.mxu0 0.0
        %8048 = vmatprep.subr.mxu0 0.0
        %8049 = vmatpush1.msra.mxu0 0.0
        %8050 = vmatprep.mubr.f32.mxu0 0.0
        %v8051 = vand.u32 %v7980, 4294901760
        %v8052 = vsub.f32 %v7980, %v8051
        %v8053 = vand.u32 %v8052, 4294901760
        %v8054 = vsub.f32 %v8052, %v8053
        %v8055 = vand.u32 %v8054, 4294901760
        %8056 = vmatmul.mubr.f32.gmra.mrb[0].mxu0 %v8055
        %v8057 = vpop.f32.mrb[0].mxu0
        %v8058 = vadd.f32 %v7977, %v8057
        %v8059 = vpop.f32.mrb[0].mxu0
        %8060 = vdwg.mxu0
        %8061 = vmatprep.subr.mxu0 0.0
        %v8062 = vand.u32 %v7968, 4294901760
        %v8063 = vsub.f32 %v7968, %v8062
        %v8064 = vand.u32 %v8063, 4294901760
        %v8065 = vsub.f32 %v8063, %v8064
        %v8066 = vand.u32 %v8065, 4294901760
        %8067 = vmatpush1.msra.mxu0 %v8066
        %8068 = vmatprep.subr.mxu0 0.0
        %v8069 = vand.u32 %v7969, 4294901760
        %v8070 = vsub.f32 %v7969, %v8069
        %v8071 = vand.u32 %v8070, 4294901760
        %v8072 = vsub.f32 %v8070, %v8071
        %v8073 = vand.u32 %v8072, 4294901760
        %8074 = vmatpush1.msra.mxu0 %v8073
        %8075 = vmatprep.subr.mxu0 0.0
        %v8076 = vand.u32 %v7970, 4294901760
        %v8077 = vsub.f32 %v7970, %v8076
        %v8078 = vand.u32 %v8077, 4294901760
        %v8079 = vsub.f32 %v8077, %v8078
        %v8080 = vand.u32 %v8079, 4294901760
        %8081 = vmatpush1.msra.mxu0 %v8080
        %8082 = vmatprep.subr.mxu0 0.0
        %v8083 = vand.u32 %v7971, 4294901760
        %v8084 = vsub.f32 %v7971, %v8083
        %v8085 = vand.u32 %v8084, 4294901760
        %v8086 = vsub.f32 %v8084, %v8085
        %v8087 = vand.u32 %v8086, 4294901760
        %8088 = vmatpush1.msra.mxu0 %v8087
        %8089 = vmatprep.subr.mxu0 0.0
        %8090 = vmatpush1.msra.mxu0 0.0
        %8091 = vmatprep.subr.mxu0 0.0
        %8092 = vmatpush1.msra.mxu0 0.0
        %8093 = vmatprep.subr.mxu0 0.0
        %8094 = vmatpush1.msra.mxu0 0.0
        %8095 = vmatprep.subr.mxu0 0.0
        %8096 = vmatpush1.msra.mxu0 0.0
        %8097 = vmatprep.subr.mxu0 0.0
        %8098 = vmatpush1.msra.mxu0 0.0
        %8099 = vmatprep.subr.mxu0 0.0
        %8100 = vmatpush1.msra.mxu0 0.0
        %8101 = vmatprep.subr.mxu0 0.0
        %8102 = vmatpush1.msra.mxu0 0.0
        %8103 = vmatprep.subr.mxu0 0.0
        %8104 = vmatpush1.msra.mxu0 0.0
        %8105 = vmatprep.subr.mxu0 0.0
        %8106 = vmatpush1.msra.mxu0 0.0
        %8107 = vmatprep.subr.mxu0 0.0
        %8108 = vmatpush1.msra.mxu0 0.0
        %8109 = vmatprep.subr.mxu0 0.0
        %8110 = vmatpush1.msra.mxu0 0.0
        %8111 = vmatprep.subr.mxu0 0.0
        %8112 = vmatpush1.msra.mxu0 0.0
        %8113 = vmatprep.subr.mxu0 0.0
        %8114 = vmatpush1.msra.mxu0 0.0
        %8115 = vmatprep.subr.mxu0 0.0
        %8116 = vmatpush1.msra.mxu0 0.0
        %8117 = vmatprep.subr.mxu0 0.0
        %8118 = vmatpush1.msra.mxu0 0.0
        %8119 = vmatprep.subr.mxu0 0.0
        %8120 = vmatpush1.msra.mxu0 0.0
        %8121 = vmatprep.subr.mxu0 0.0
        %8122 = vmatpush1.msra.mxu0 0.0
        %8123 = vmatprep.subr.mxu0 0.0
        %8124 = vmatpush1.msra.mxu0 0.0
        %8125 = vmatprep.subr.mxu0 0.0
        %8126 = vmatpush1.msra.mxu0 0.0
        %8127 = vmatprep.subr.mxu0 0.0
        %8128 = vmatpush1.msra.mxu0 0.0
        %8129 = vmatprep.subr.mxu0 0.0
        %8130 = vmatpush1.msra.mxu0 0.0
        %8131 = vmatprep.subr.mxu0 0.0
        %8132 = vmatpush1.msra.mxu0 0.0
        %8133 = vmatprep.subr.mxu0 0.0
        %8134 = vmatpush1.msra.mxu0 0.0
        %8135 = vmatprep.subr.mxu0 0.0
        %8136 = vmatpush1.msra.mxu0 0.0
        %8137 = vmatprep.subr.mxu0 0.0
        %8138 = vmatpush1.msra.mxu0 0.0
        %8139 = vmatprep.subr.mxu0 0.0
        %8140 = vmatpush1.msra.mxu0 0.0
        %8141 = vmatprep.subr.mxu0 0.0
        %8142 = vmatpush1.msra.mxu0 0.0
        %8143 = vmatprep.subr.mxu0 0.0
        %8144 = vmatpush1.msra.mxu0 0.0
        %8145 = vmatprep.mubr.f32.mxu0 0.0
        %v8146 = vand.u32 %v7980, 4294901760
        %8147 = vmatmul.mubr.f32.gmra.mrb[0].mxu0 %v8146
        %v8148 = vpop.f32.mrb[0].mxu0
        %v8149 = vadd.f32 %v8058, %v8148
        %v8150 = vpop.f32.mrb[0].mxu0
        %8151 = vdwg.mxu0
        %8152 = vmatprep.subr.mxu0 0.0
        %v8153 = vand.u32 %v7968, 4294901760
        %v8154 = vsub.f32 %v7968, %v8153
        %8155 = vmatpush1.msra.mxu0 %v8154
        %8156 = vmatprep.subr.mxu0 0.0
        %v8157 = vand.u32 %v7969, 4294901760
        %v8158 = vsub.f32 %v7969, %v8157
        %8159 = vmatpush1.msra.mxu0 %v8158
        %8160 = vmatprep.subr.mxu0 0.0
        %v8161 = vand.u32 %v7970, 4294901760
        %v8162 = vsub.f32 %v7970, %v8161
        %8163 = vmatpush1.msra.mxu0 %v8162
        %8164 = vmatprep.subr.mxu0 0.0
        %v8165 = vand.u32 %v7971, 4294901760
        %v8166 = vsub.f32 %v7971, %v8165
        %8167 = vmatpush1.msra.mxu0 %v8166
        %8168 = vmatprep.subr.mxu0 0.0
        %8169 = vmatpush1.msra.mxu0 0.0
        %8170 = vmatprep.subr.mxu0 0.0
        %8171 = vmatpush1.msra.mxu0 0.0
        %8172 = vmatprep.subr.mxu0 0.0
        %8173 = vmatpush1.msra.mxu0 0.0
        %8174 = vmatprep.subr.mxu0 0.0
        %8175 = vmatpush1.msra.mxu0 0.0
        %8176 = vmatprep.subr.mxu0 0.0
        %8177 = vmatpush1.msra.mxu0 0.0
        %8178 = vmatprep.subr.mxu0 0.0
        %8179 = vmatpush1.msra.mxu0 0.0
        %8180 = vmatprep.subr.mxu0 0.0
        %8181 = vmatpush1.msra.mxu0 0.0
        %8182 = vmatprep.subr.mxu0 0.0
        %8183 = vmatpush1.msra.mxu0 0.0
        %8184 = vmatprep.subr.mxu0 0.0
        %8185 = vmatpush1.msra.mxu0 0.0
        %8186 = vmatprep.subr.mxu0 0.0
        %8187 = vmatpush1.msra.mxu0 0.0
        %8188 = vmatprep.subr.mxu0 0.0
        %8189 = vmatpush1.msra.mxu0 0.0
        %8190 = vmatprep.subr.mxu0 0.0
        %8191 = vmatpush1.msra.mxu0 0.0
        %8192 = vmatprep.subr.mxu0 0.0
        %8193 = vmatpush1.msra.mxu0 0.0
        %8194 = vmatprep.subr.mxu0 0.0
        %8195 = vmatpush1.msra.mxu0 0.0
        %8196 = vmatprep.subr.mxu0 0.0
        %8197 = vmatpush1.msra.mxu0 0.0
        %8198 = vmatprep.subr.mxu0 0.0
        %8199 = vmatpush1.msra.mxu0 0.0
        %8200 = vmatprep.subr.mxu0 0.0
        %8201 = vmatpush1.msra.mxu0 0.0
        %8202 = vmatprep.subr.mxu0 0.0
        %8203 = vmatpush1.msra.mxu0 0.0
        %8204 = vmatprep.subr.mxu0 0.0
        %8205 = vmatpush1.msra.mxu0 0.0
        %8206 = vmatprep.subr.mxu0 0.0
        %8207 = vmatpush1.msra.mxu0 0.0
        %8208 = vmatprep.subr.mxu0 0.0
        %8209 = vmatpush1.msra.mxu0 0.0
        %8210 = vmatprep.subr.mxu0 0.0
        %8211 = vmatpush1.msra.mxu0 0.0
        %8212 = vmatprep.subr.mxu0 0.0
        %8213 = vmatpush1.msra.mxu0 0.0
        %8214 = vmatprep.subr.mxu0 0.0
        %8215 = vmatpush1.msra.mxu0 0.0
        %8216 = vmatprep.subr.mxu0 0.0
        %8217 = vmatpush1.msra.mxu0 0.0
        %8218 = vmatprep.subr.mxu0 0.0
        %8219 = vmatpush1.msra.mxu0 0.0
        %8220 = vmatprep.subr.mxu0 0.0
        %8221 = vmatpush1.msra.mxu0 0.0
        %8222 = vmatprep.subr.mxu0 0.0
        %8223 = vmatpush1.msra.mxu0 0.0
        %8224 = vmatprep.mubr.f32.mxu0 0.0
        %v8225 = vand.u32 %v7980, 4294901760
        %v8226 = vsub.f32 %v7980, %v8225
        %8227 = vmatmul.mubr.f32.gmra.mrb[0].mxu0 %v8226
        %v8228 = vpop.f32.mrb[0].mxu0
        %v8229 = vadd.f32 %v8149, %v8228
        %v8230 = vpop.f32.mrb[0].mxu0
        %8231 = vdwg.mxu0
        %8232 = vmatprep.subr.mxu0 0.0
        %v8233 = vand.u32 %v7968, 4294901760
        %8234 = vmatpush1.msra.mxu0 %v8233
        %8235 = vmatprep.subr.mxu0 0.0
        %v8236 = vand.u32 %v7969, 4294901760
        %8237 = vmatpush1.msra.mxu0 %v8236
        %8238 = vmatprep.subr.mxu0 0.0
        %v8239 = vand.u32 %v7970, 4294901760
        %8240 = vmatpush1.msra.mxu0 %v8239
        %8241 = vmatprep.subr.mxu0 0.0
        %v8242 = vand.u32 %v7971, 4294901760
        %8243 = vmatpush1.msra.mxu0 %v8242
        %8244 = vmatprep.subr.mxu0 0.0
        %8245 = vmatpush1.msra.mxu0 0.0
        %8246 = vmatprep.subr.mxu0 0.0
        %8247 = vmatpush1.msra.mxu0 0.0
        %8248 = vmatprep.subr.mxu0 0.0
        %8249 = vmatpush1.msra.mxu0 0.0
        %8250 = vmatprep.subr.mxu0 0.0
        %8251 = vmatpush1.msra.mxu0 0.0
        %8252 = vmatprep.subr.mxu0 0.0
        %8253 = vmatpush1.msra.mxu0 0.0
        %8254 = vmatprep.subr.mxu0 0.0
        %8255 = vmatpush1.msra.mxu0 0.0
        %8256 = vmatprep.subr.mxu0 0.0
        %8257 = vmatpush1.msra.mxu0 0.0
        %8258 = vmatprep.subr.mxu0 0.0
        %8259 = vmatpush1.msra.mxu0 0.0
        %8260 = vmatprep.subr.mxu0 0.0
        %8261 = vmatpush1.msra.mxu0 0.0
        %8262 = vmatprep.subr.mxu0 0.0
        %8263 = vmatpush1.msra.mxu0 0.0
        %8264 = vmatprep.subr.mxu0 0.0
        %8265 = vmatpush1.msra.mxu0 0.0
        %8266 = vmatprep.subr.mxu0 0.0
        %8267 = vmatpush1.msra.mxu0 0.0
        %8268 = vmatprep.subr.mxu0 0.0
        %8269 = vmatpush1.msra.mxu0 0.0
        %8270 = vmatprep.subr.mxu0 0.0
        %8271 = vmatpush1.msra.mxu0 0.0
        %8272 = vmatprep.subr.mxu0 0.0
        %8273 = vmatpush1.msra.mxu0 0.0
        %8274 = vmatprep.subr.mxu0 0.0
        %8275 = vmatpush1.msra.mxu0 0.0
        %8276 = vmatprep.subr.mxu0 0.0
        %8277 = vmatpush1.msra.mxu0 0.0
        %8278 = vmatprep.subr.mxu0 0.0
        %8279 = vmatpush1.msra.mxu0 0.0
        %8280 = vmatprep.subr.mxu0 0.0
        %8281 = vmatpush1.msra.mxu0 0.0
        %8282 = vmatprep.subr.mxu0 0.0
        %8283 = vmatpush1.msra.mxu0 0.0
        %8284 = vmatprep.subr.mxu0 0.0
        %8285 = vmatpush1.msra.mxu0 0.0
        %8286 = vmatprep.subr.mxu0 0.0
        %8287 = vmatpush1.msra.mxu0 0.0
        %8288 = vmatprep.subr.mxu0 0.0
        %8289 = vmatpush1.msra.mxu0 0.0
        %8290 = vmatprep.subr.mxu0 0.0
        %8291 = vmatpush1.msra.mxu0 0.0
        %8292 = vmatprep.subr.mxu0 0.0
        %8293 = vmatpush1.msra.mxu0 0.0
        %8294 = vmatprep.subr.mxu0 0.0
        %8295 = vmatpush1.msra.mxu0 0.0
        %8296 = vmatprep.subr.mxu0 0.0
        %8297 = vmatpush1.msra.mxu0 0.0
        %8298 = vmatprep.subr.mxu0 0.0
        %8299 = vmatpush1.msra.mxu0 0.0
        %8300 = vmatprep.mubr.f32.mxu0 0.0
        %v8301 = vand.u32 %v7980, 4294901760
        %v8302 = vsub.f32 %v7980, %v8301
        %v8303 = vand.u32 %v8302, 4294901760
        %8304 = vmatmul.mubr.f32.gmra.mrb[0].mxu0 %v8303
        %v8305 = vpop.f32.mrb[0].mxu0
        %v8306 = vadd.f32 %v8229, %v8305
        %v8307 = vpop.f32.mrb[0].mxu0
        %8308 = vdwg.mxu0
        %8309 = vmatprep.subr.mxu0 0.0
        %v8310 = vand.u32 %v7968, 4294901760
        %v8311 = vsub.f32 %v7968, %v8310
        %v8312 = vand.u32 %v8311, 4294901760
        %8313 = vmatpush1.msra.mxu0 %v8312
        %8314 = vmatprep.subr.mxu0 0.0
        %v8315 = vand.u32 %v7969, 4294901760
        %v8316 = vsub.f32 %v7969, %v8315
        %v8317 = vand.u32 %v8316, 4294901760
        %8318 = vmatpush1.msra.mxu0 %v8317
        %8319 = vmatprep.subr.mxu0 0.0
        %v8320 = vand.u32 %v7970, 4294901760
        %v8321 = vsub.f32 %v7970, %v8320
        %v8322 = vand.u32 %v8321, 4294901760
        %8323 = vmatpush1.msra.mxu0 %v8322
        %8324 = vmatprep.subr.mxu0 0.0
        %v8325 = vand.u32 %v7971, 4294901760
        %v8326 = vsub.f32 %v7971, %v8325
        %v8327 = vand.u32 %v8326, 4294901760
        %8328 = vmatpush1.msra.mxu0 %v8327
        %8329 = vmatprep.subr.mxu0 0.0
        %8330 = vmatpush1.msra.mxu0 0.0
        %8331 = vmatprep.subr.mxu0 0.0
        %8332 = vmatpush1.msra.mxu0 0.0
        %8333 = vmatprep.subr.mxu0 0.0
        %8334 = vmatpush1.msra.mxu0 0.0
        %8335 = vmatprep.subr.mxu0 0.0
        %8336 = vmatpush1.msra.mxu0 0.0
        %8337 = vmatprep.subr.mxu0 0.0
        %8338 = vmatpush1.msra.mxu0 0.0
        %8339 = vmatprep.subr.mxu0 0.0
        %8340 = vmatpush1.msra.mxu0 0.0
        %8341 = vmatprep.subr.mxu0 0.0
        %8342 = vmatpush1.msra.mxu0 0.0
        %8343 = vmatprep.subr.mxu0 0.0
        %8344 = vmatpush1.msra.mxu0 0.0
        %8345 = vmatprep.subr.mxu0 0.0
        %8346 = vmatpush1.msra.mxu0 0.0
        %8347 = vmatprep.subr.mxu0 0.0
        %8348 = vmatpush1.msra.mxu0 0.0
        %8349 = vmatprep.subr.mxu0 0.0
        %8350 = vmatpush1.msra.mxu0 0.0
        %8351 = vmatprep.subr.mxu0 0.0
        %8352 = vmatpush1.msra.mxu0 0.0
        %8353 = vmatprep.subr.mxu0 0.0
        %8354 = vmatpush1.msra.mxu0 0.0
        %8355 = vmatprep.subr.mxu0 0.0
        %8356 = vmatpush1.msra.mxu0 0.0
        %8357 = vmatprep.subr.mxu0 0.0
        %8358 = vmatpush1.msra.mxu0 0.0
        %8359 = vmatprep.subr.mxu0 0.0
        %8360 = vmatpush1.msra.mxu0 0.0
        %8361 = vmatprep.subr.mxu0 0.0
        %8362 = vmatpush1.msra.mxu0 0.0
        %8363 = vmatprep.subr.mxu0 0.0
        %8364 = vmatpush1.msra.mxu0 0.0
        %8365 = vmatprep.subr.mxu0 0.0
        %8366 = vmatpush1.msra.mxu0 0.0
        %8367 = vmatprep.subr.mxu0 0.0
        %8368 = vmatpush1.msra.mxu0 0.0
        %8369 = vmatprep.subr.mxu0 0.0
        %8370 = vmatpush1.msra.mxu0 0.0
        %8371 = vmatprep.subr.mxu0 0.0
        %8372 = vmatpush1.msra.mxu0 0.0
        %8373 = vmatprep.subr.mxu0 0.0
        %8374 = vmatpush1.msra.mxu0 0.0
        %8375 = vmatprep.subr.mxu0 0.0
        %8376 = vmatpush1.msra.mxu0 0.0
        %8377 = vmatprep.subr.mxu0 0.0
        %8378 = vmatpush1.msra.mxu0 0.0
        %8379 = vmatprep.subr.mxu0 0.0
        %8380 = vmatpush1.msra.mxu0 0.0
        %8381 = vmatprep.subr.mxu0 0.0
        %8382 = vmatpush1.msra.mxu0 0.0
        %8383 = vmatprep.subr.mxu0 0.0
        %8384 = vmatpush1.msra.mxu0 0.0
        %8385 = vmatprep.mubr.f32.mxu0 0.0
        %v8386 = vand.u32 %v7980, 4294901760
        %8387 = vmatmul.mubr.f32.gmra.mrb[0].mxu0 %v8386
        %v8388 = vpop.f32.mrb[0].mxu0
        %v8389 = vadd.f32 %v8306, %v8388
        %v8390 = vpop.f32.mrb[0].mxu0
        %8391 = vdwg.mxu0
        %8392 = vmatprep.subr.mxu0 0.0
        %v8393 = vand.u32 %v7968, 4294901760
        %8394 = vmatpush1.msra.mxu0 %v8393
        %8395 = vmatprep.subr.mxu0 0.0
        %v8396 = vand.u32 %v7969, 4294901760
        %8397 = vmatpush1.msra.mxu0 %v8396
        %8398 = vmatprep.subr.mxu0 0.0
        %v8399 = vand.u32 %v7970, 4294901760
        %8400 = vmatpush1.msra.mxu0 %v8399
        %8401 = vmatprep.subr.mxu0 0.0
        %v8402 = vand.u32 %v7971, 4294901760
        %8403 = vmatpush1.msra.mxu0 %v8402
        %8404 = vmatprep.subr.mxu0 0.0
        %8405 = vmatpush1.msra.mxu0 0.0
        %8406 = vmatprep.subr.mxu0 0.0
        %8407 = vmatpush1.msra.mxu0 0.0
        %8408 = vmatprep.subr.mxu0 0.0
        %8409 = vmatpush1.msra.mxu0 0.0
        %8410 = vmatprep.subr.mxu0 0.0
        %8411 = vmatpush1.msra.mxu0 0.0
        %8412 = vmatprep.subr.mxu0 0.0
        %8413 = vmatpush1.msra.mxu0 0.0
        %8414 = vmatprep.subr.mxu0 0.0
        %8415 = vmatpush1.msra.mxu0 0.0
        %8416 = vmatprep.subr.mxu0 0.0
        %8417 = vmatpush1.msra.mxu0 0.0
        %8418 = vmatprep.subr.mxu0 0.0
        %8419 = vmatpush1.msra.mxu0 0.0
        %8420 = vmatprep.subr.mxu0 0.0
        %8421 = vmatpush1.msra.mxu0 0.0
        %8422 = vmatprep.subr.mxu0 0.0
        %8423 = vmatpush1.msra.mxu0 0.0
        %8424 = vmatprep.subr.mxu0 0.0
        %8425 = vmatpush1.msra.mxu0 0.0
        %8426 = vmatprep.subr.mxu0 0.0
        %8427 = vmatpush1.msra.mxu0 0.0
        %8428 = vmatprep.subr.mxu0 0.0
        %8429 = vmatpush1.msra.mxu0 0.0
        %8430 = vmatprep.subr.mxu0 0.0
        %8431 = vmatpush1.msra.mxu0 0.0
        %8432 = vmatprep.subr.mxu0 0.0
        %8433 = vmatpush1.msra.mxu0 0.0
        %8434 = vmatprep.subr.mxu0 0.0
        %8435 = vmatpush1.msra.mxu0 0.0
        %8436 = vmatprep.subr.mxu0 0.0
        %8437 = vmatpush1.msra.mxu0 0.0
        %8438 = vmatprep.subr.mxu0 0.0
        %8439 = vmatpush1.msra.mxu0 0.0
        %8440 = vmatprep.subr.mxu0 0.0
        %8441 = vmatpush1.msra.mxu0 0.0
        %8442 = vmatprep.subr.mxu0 0.0
        %8443 = vmatpush1.msra.mxu0 0.0
        %8444 = vmatprep.subr.mxu0 0.0
        %8445 = vmatpush1.msra.mxu0 0.0
        %8446 = vmatprep.subr.mxu0 0.0
        %8447 = vmatpush1.msra.mxu0 0.0
        %8448 = vmatprep.subr.mxu0 0.0
        %8449 = vmatpush1.msra.mxu0 0.0
        %8450 = vmatprep.subr.mxu0 0.0
        %8451 = vmatpush1.msra.mxu0 0.0
        %8452 = vmatprep.subr.mxu0 0.0
        %8453 = vmatpush1.msra.mxu0 0.0
        %8454 = vmatprep.subr.mxu0 0.0
        %8455 = vmatpush1.msra.mxu0 0.0
        %8456 = vmatprep.subr.mxu0 0.0
        %8457 = vmatpush1.msra.mxu0 0.0
        %8458 = vmatprep.subr.mxu0 0.0
        %8459 = vmatpush1.msra.mxu0 0.0
        %8460 = vmatprep.mubr.f32.mxu0 0.0
        %v8461 = vand.u32 %v7980, 4294901760
        %8462 = vmatmul.mubr.f32.gmra.mrb[0].mxu0 %v8461
        %v8463 = vpop.f32.mrb[0].mxu0
        %v8464 = vadd.f32 %v8389, %v8463
        %v8465 = vpop.f32.mrb[0].mxu0
        %8466 = vdwg.mxu0
        %v8467 = vmul.f32 %v8464, 1.442695
        %v8468 = vpow.pop %v8467
        %v8469 = vmul.f32 %v8468, %v406
        %v8471 = vrot.slane %v8469, 2
        %v8473 = vadd.f32 %v8464, %v8471
        %v8474 = vmul.f32 %v8473, %v1031
        %vm8475 = vcmask 123904
        %8476 = vst.msk [vmem:[%s389] sm:$0x3] %vm8475, %v406
        %8477 = vst.msk [vmem:[%s389 + $0x2] sm:$0x3] %vm8475, %v8474
        %v8478 = vmul.f32 %v8464, %v1031
        %v8480 = vrot.slane %v8478, 2
        %v8482 = vsel %vm8475, %v8480, 0.0
        %8483 = vadd.xlane.f32.xlu0 %v8482
        %v8484 = vpop.xlane.xlu0 %8483
        %v8485 = vrot.slane %v8484, 4
        %v8486 = vadd.f32 %v8484, %v8485
        %v8487 = vrot.slane %v8486, 2
        %v8488 = vadd.f32 %v8486, %v8487
        %v8489 = vrot.slane %v8488, 1
        %v8490 = vadd.f32 %v8488, %v8489
        %s8491 = vtos %v8490
        %v8492 = vstv %s8491
        %vm8493 = vcmask 0
        %8494 = vst.msk [vmem:[%s404] sm:$0x1] %vm8493, %v8492
        %s8495 = sand.u32 %s254, 1
        %s8496 = scalar_lea.sflag [#allocation4], %s8495
        %s8497 = sand.u32 %s254, 1
        %s8498 = smul.addr %s8497, 4
        %s8499 = scalar_lea.vmem [#allocation3], %s8498
        %p8500 = scmp.lt.s32.totalorder %s26, 1
        %s8501 = scalar_select %p8500, %s26, 1
        %s8502 = scalar_lea.vmem %s11, %s8501
        // Predicated region
        $region61: #{tpu_custom_call.1} parent=59 // pred_check
          %p8503 = pneg %p264
        $region62: #{tpu_custom_call.1} parent=59 // pred_check_branch
          %8505 = sbr.rel (%p8503) target = $region64
        $region63: #{tpu_custom_call.1} parent=59 // pred_region
          %s8507 = ssub.s32 64, 64
          %8508 = vsyncadd %s8496, %s8507
          %s8509 = smul.addr %s26, 64
          %s8510 = scalar_lea.hbm %s10, %s8509
          %s8512 = sshll.u32 %s8499, 4
          %s8513 = int_to_ptr.vmem [resolvable:$true] %s8512
          %8515 = dma.vmem_to_hbm [thread:$0]  %s8513, 64, %s8510, %s8496
        $region64: #{tpu_custom_call.1} parent=59 // pred_fallthru
          _
        // Predicated region
        $region65: #{tpu_custom_call.1} parent=59 // pred_check
          %p8516 = pneg %p290
        $region66: #{tpu_custom_call.1} parent=59 // pred_check_branch
          %8518 = sbr.rel (%p8516) target = $region68
        $region67: #{tpu_custom_call.1} parent=59 // pred_region
          _
        $region68: #{tpu_custom_call.1} parent=59 // pred_fallthru
          _
      $region60: #{tpu_custom_call.1} parent=5 // pred_fallthru
        _
      %p8519 = scmp.le.s32.totalorder 2, %s21
      // Predicated region
      $region69: #{tpu_custom_call.1} parent=5 // pred_check
        %p8520 = pneg %p8519
      $region70: #{tpu_custom_call.1} parent=5 // pred_check_branch
        %8522 = sbr.rel (%p8520) target = $region72
      $region71: #{tpu_custom_call.1} parent=5 // pred_region
        %s8523 = ssub.s32 %s21, 2
        // Predicated region
        $region73: #{tpu_custom_call.1} parent=71 // pred_check
          %p8524 = pneg %p270
        $region74: #{tpu_custom_call.1} parent=71 // pred_check_branch
          %8526 = sbr.rel (%p8524) target = $region76
        $region75: #{tpu_custom_call.1} parent=71 // pred_region
          %s8527 = sand.u32 %s255, 1
          %s8528 = scalar_lea.sflag [#allocation4], %s8527
          %s8529 = sand.u32 %s255, 1
          %s8530 = smul.addr %s8529, 4
          %s8531 = scalar_lea.vmem [#allocation3], %s8530
          %8532 = dma.done %s8528, 64
        $region76: #{tpu_custom_call.1} parent=71 // pred_fallthru
          _
        // Predicated region
        $region77: #{tpu_custom_call.1} parent=71 // pred_check
          %p8533 = pneg %p296
        $region78: #{tpu_custom_call.1} parent=71 // pred_check_branch
          %8535 = sbr.rel (%p8533) target = $region80
        $region79: #{tpu_custom_call.1} parent=71 // pred_region
          %p8536 = scmp.lt.s32.totalorder %s27, 1
          %s8537 = scalar_select %p8536, %s27, 1
          %s8538 = scalar_lea.vmem %s11, %s8537
        $region80: #{tpu_custom_call.1} parent=71 // pred_fallthru
          _
      $region72: #{tpu_custom_call.1} parent=5 // pred_fallthru
        _
    $region6: #{tpu_custom_call.1} parent=1 // loop_footer
      %s25 = sadd.s32 1, %s21
    $region7: #{tpu_custom_call.1} parent=1 // loop_footer_branch
      %20 = sbr.rel target = $region3
    $region8: #{tpu_custom_call.1} parent=1 // loop_exit
      _
    %8539 = vsyncpa [#allocation4], 1
    %s8540 = scalar_lea.sflag [#allocation4], 1
    %8541 = vsyncpa %s8540, 1

</llo_original>
